<compile_context>
chip_gen: v5e
topology: v5e:2x2
jax: 0.10.0
libtpu: 0.0.40
codegen_flags: <defaults>
</compile_context>

<pallas_src>
import functools
import math

import jax
import jax.numpy as jnp
from jax import lax
from jax.experimental import pallas as pl
from jax.experimental.pallas import tpu as pltpu

LN_EPS = 1e-5


# ----------------------------- in-kernel helpers (values, not refs) -----------------------------

def _layernorm(y, g, b):
    mean = jnp.mean(y, axis=-1, keepdims=True)
    var = jnp.mean(jnp.square(y - mean), axis=-1, keepdims=True)
    return (y - mean) * lax.rsqrt(var + LN_EPS) * g + b


def _ffn(x, w1, b1, w2, b2):
    # relu(x @ W1 + b1) @ W2 + b2   (weights pre-transposed to [in, out])
    h = jnp.dot(x, w1, preferred_element_type=jnp.float32) + b1
    h = jnp.maximum(h, 0.0)
    return jnp.dot(h, w2, preferred_element_type=jnp.float32) + b2


def _attend(q, k, v, wo, bo, *, nhead, batch, seq):
    # q,k,v: (B*S, D) values; per-batch, per-head softmax attention (no masks).
    d_model = q.shape[-1]
    dh = d_model // nhead
    scale = 1.0 / math.sqrt(dh)
    rows = []
    for bi in range(batch):                       # static unroll (batch is tiny)
        r = slice(bi * seq, (bi + 1) * seq)
        qb, kb, vb = q[r], k[r], v[r]
        heads = []
        for h in range(nhead):                    # static unroll over heads
            c = slice(h * dh, (h + 1) * dh)
            s = lax.dot_general(qb[:, c], kb[:, c], (((1,), (1,)), ((), ())),
                                preferred_element_type=jnp.float32) * scale
            s = s - jnp.max(s, axis=-1, keepdims=True)
            p = jnp.exp(s)
            p = p * pl.reciprocal(jnp.sum(p, axis=-1, keepdims=True), approx=True)
            heads.append(jnp.dot(p, vb[:, c], preferred_element_type=jnp.float32))
        rows.append(jnp.concatenate(heads, axis=-1))
    ctx = jnp.concatenate(rows, axis=0)           # (B*S, D)
    return jnp.dot(ctx, wo, preferred_element_type=jnp.float32) + bo


def _self_mha(x, wqkv, bqkv, wo, bo, *, nhead, batch, seq):
    d = x.shape[-1]
    qkv = jnp.dot(x, wqkv, preferred_element_type=jnp.float32) + bqkv     # fused QKV (N = 3D)
    return _attend(qkv[:, :d], qkv[:, d:2 * d], qkv[:, 2 * d:], wo, bo,
                   nhead=nhead, batch=batch, seq=seq)


def _cross_mha(x, mem, wq, bq, wkv, bkv, wo, bo, *, nhead, batch, seq):
    d = x.shape[-1]
    q = jnp.dot(x, wq, preferred_element_type=jnp.float32) + bq
    kv = jnp.dot(mem, wkv, preferred_element_type=jnp.float32) + bkv      # fused K/V (N = 2D)
    return _attend(q, kv[:, :d], kv[:, d:], wo, bo, nhead=nhead, batch=batch, seq=seq)


# ----------------------------- Pallas kernels -----------------------------

def _embed_kernel(x_ref, w_ref, b_ref, o_ref):
    o_ref[...] = jnp.dot(x_ref[...], w_ref[...], preferred_element_type=jnp.float32) + b_ref[...]


def _encoder_layer_kernel(x_ref, wqkv_ref, bqkv_ref, wo_ref, bo_ref,
                          g1_ref, bn1_ref, w1_ref, bf1_ref, w2_ref, bf2_ref,
                          g2_ref, bn2_ref, o_ref, *, nhead, batch, seq):
    x = x_ref[...]
    a = _self_mha(x, wqkv_ref[...], bqkv_ref[...], wo_ref[...], bo_ref[...],
                  nhead=nhead, batch=batch, seq=seq)
    x = _layernorm(x + a, g1_ref[...], bn1_ref[...])
    f = _ffn(x, w1_ref[...], bf1_ref[...], w2_ref[...], bf2_ref[...])
    o_ref[...] = _layernorm(x + f, g2_ref[...], bn2_ref[...])


def _decoder_layer_kernel(x_ref, mem_ref,
                          s_wqkv_ref, s_bqkv_ref, s_wo_ref, s_bo_ref, g1_ref, bn1_ref,
                          c_wq_ref, c_bq_ref, c_wkv_ref, c_bkv_ref, c_wo_ref, c_bo_ref,
                          g2_ref, bn2_ref,
                          w1_ref, bf1_ref, w2_ref, bf2_ref, g3_ref, bn3_ref,
                          o_ref, *, nhead, batch, seq):
    x = x_ref[...]
    mem = mem_ref[...]
    a = _self_mha(x, s_wqkv_ref[...], s_bqkv_ref[...], s_wo_ref[...], s_bo_ref[...],
                  nhead=nhead, batch=batch, seq=seq)
    x = _layernorm(x + a, g1_ref[...], bn1_ref[...])
    a = _cross_mha(x, mem, c_wq_ref[...], c_bq_ref[...], c_wkv_ref[...], c_bkv_ref[...],
                   c_wo_ref[...], c_bo_ref[...], nhead=nhead, batch=batch, seq=seq)
    x = _layernorm(x + a, g2_ref[...], bn2_ref[...])
    f = _ffn(x, w1_ref[...], bf1_ref[...], w2_ref[...], bf2_ref[...])
    o_ref[...] = _layernorm(x + f, g3_ref[...], bn3_ref[...])


def _ln_kernel(x_ref, g_ref, b_ref, o_ref):
    o_ref[...] = _layernorm(x_ref[...], g_ref[...], b_ref[...])


def _head_kernel(x_ref, g_ref, b_ref, wf_ref, bf_ref, o_ref, *, batch, seq):
    # decoder final LayerNorm on the last token of each sequence + final fc, fused.
    x = x_ref[...]
    last = jnp.concatenate(
        [x[bi * seq + seq - 1:bi * seq + seq, :] for bi in range(batch)], axis=0)  # (B, D)
    y = _layernorm(last, g_ref[...], b_ref[...])
    o_ref[...] = jnp.dot(y, wf_ref[...], preferred_element_type=jnp.float32) + bf_ref[...]


# ----------------------------- pallas_call wrapper -----------------------------

def _spec2d(shape):
    return pl.BlockSpec(shape, lambda i: (0, 0))


def _call(kernel, out_shape, args):
    # All args are 2D f32 arrays; single grid step, whole arrays as VMEM blocks.
    return pl.pallas_call(
        kernel,
        out_shape=jax.ShapeDtypeStruct(out_shape, jnp.float32),
        grid=(1,),
        in_specs=[_spec2d(a.shape) for a in args],
        out_specs=_spec2d(out_shape),
        compiler_params=pltpu.CompilerParams(dimension_semantics=("arbitrary",)),
    )(*args)


# ----------------------------- forward -----------------------------

def transformer_predictor_forward(prep, src, *, nhead):
    # src: (B, S, input_size)
    B, S, in_size = src.shape
    M = B * S
    D = prep["embed_w"].shape[1]

    x = _call(_embed_kernel, (M, D),
              (src.reshape(M, in_size), prep["embed_w"], prep["embed_b"]))

    enc_kernel = functools.partial(_encoder_layer_kernel, nhead=nhead, batch=B, seq=S)
    mem = x
    for p in prep["enc_layers"]:
        mem = _call(enc_kernel, (M, D),
                    (mem, p["wqkv"], p["bqkv"], p["wo"], p["bo"],
                     p["g1"], p["bn1"], p["w1"], p["bf1"], p["w2"], p["bf2"],
                     p["g2"], p["bn2"]))
    mem = _call(_ln_kernel, (M, D), (mem, prep["enc_norm_g"], prep["enc_norm_b"]))

    dec_kernel = functools.partial(_decoder_layer_kernel, nhead=nhead, batch=B, seq=S)
    out = x                      # tgt == embedded src (module passes src twice)
    for p in prep["dec_layers"]:
        out = _call(dec_kernel, (M, D),
                    (out, mem,
                     p["s_wqkv"], p["s_bqkv"], p["s_wo"], p["s_bo"], p["g1"], p["bn1"],
                     p["c_wq"], p["c_bq"], p["c_wkv"], p["c_bkv"], p["c_wo"], p["c_bo"],
                     p["g2"], p["bn2"],
                     p["w1"], p["bf1"], p["w2"], p["bf2"], p["g3"], p["bn3"]))

    head_kernel = functools.partial(_head_kernel, batch=B, seq=S)
    out_size = prep["fc_w"].shape[1]
    return _call(head_kernel, (B, out_size),
                 (out, prep["dec_norm_g"], prep["dec_norm_b"], prep["fc_w"], prep["fc_b"]))


# ----------------------------- parameters -----------------------------

def init_params(key, input_size, d_model, num_encoder_layers, num_decoder_layers,
                dim_feedforward, output_size):
    """PyTorch-layout parameters: Linear/attention weights are [out_features, in_features]."""
    keys = iter(jax.random.split(key, 256))

    def w(shape, scale=0.05):
        return jax.random.normal(next(keys), shape, jnp.float32) * scale

    def mha_p():
        return {"in_w": w((3 * d_model, d_model)), "in_b": w((3 * d_model,), 0.01),
                "out_w": w((d_model, d_model)), "out_b": w((d_model,), 0.01)}

    def enc_layer():
        return {"self_attn": mha_p(),
                "lin1_w": w((dim_feedforward, d_model)), "lin1_b": w((dim_feedforward,), 0.01),
                "lin2_w": w((d_model, dim_feedforward)), "lin2_b": w((d_model,), 0.01),
                "norm1_g": jnp.ones((d_model,), jnp.float32), "norm1_b": jnp.zeros((d_model,), jnp.float32),
                "norm2_g": jnp.ones((d_model,), jnp.float32), "norm2_b": jnp.zeros((d_model,), jnp.float32)}

    def dec_layer():
        return {"self_attn": mha_p(), "cross_attn": mha_p(),
                "lin1_w": w((dim_feedforward, d_model)), "lin1_b": w((dim_feedforward,), 0.01),
                "lin2_w": w((d_model, dim_feedforward)), "lin2_b": w((d_model,), 0.01),
                "norm1_g": jnp.ones((d_model,), jnp.float32), "norm1_b": jnp.zeros((d_model,), jnp.float32),
                "norm2_g": jnp.ones((d_model,), jnp.float32), "norm2_b": jnp.zeros((d_model,), jnp.float32),
                "norm3_g": jnp.ones((d_model,), jnp.float32), "norm3_b": jnp.zeros((d_model,), jnp.float32)}

    return {
        "embedding": {"w": w((d_model, input_size)), "b": w((d_model,), 0.01)},
        "encoder_layers": [enc_layer() for _ in range(num_encoder_layers)],
        "enc_norm_g": jnp.ones((d_model,), jnp.float32), "enc_norm_b": jnp.zeros((d_model,), jnp.float32),
        "decoder_layers": [dec_layer() for _ in range(num_decoder_layers)],
        "dec_norm_g": jnp.ones((d_model,), jnp.float32), "dec_norm_b": jnp.zeros((d_model,), jnp.float32),
        "fc": {"w": w((output_size, d_model)), "b": w((output_size,), 0.01)},
    }


def prepare_params(params):
    """One-time layout conversion (outside jit): transpose weights to [in, out], biases to (1, N)."""
    def t(x):
        return jnp.asarray(x, jnp.float32).T

    def row(x):
        return jnp.asarray(x, jnp.float32).reshape(1, -1)

    def prep_self(p):
        return {"wqkv": t(p["in_w"]), "bqkv": row(p["in_b"]),
                "wo": t(p["out_w"]), "bo": row(p["out_b"])}

    def prep_cross(p):
        d = p["out_w"].shape[0]
        return {"wq": t(p["in_w"][:d]), "bq": row(p["in_b"][:d]),
                "wkv": t(p["in_w"][d:]), "bkv": row(p["in_b"][d:]),
                "wo": t(p["out_w"]), "bo": row(p["out_b"])}

    def prep_enc(p):
        sa = prep_self(p["self_attn"])
        return {"wqkv": sa["wqkv"], "bqkv": sa["bqkv"], "wo": sa["wo"], "bo": sa["bo"],
                "g1": row(p["norm1_g"]), "bn1": row(p["norm1_b"]),
                "w1": t(p["lin1_w"]), "bf1": row(p["lin1_b"]),
                "w2": t(p["lin2_w"]), "bf2": row(p["lin2_b"]),
                "g2": row(p["norm2_g"]), "bn2": row(p["norm2_b"])}

    def prep_dec(p):
        sa = prep_self(p["self_attn"])
        ca = prep_cross(p["cross_attn"])
        return {"s_wqkv": sa["wqkv"], "s_bqkv": sa["bqkv"], "s_wo": sa["wo"], "s_bo": sa["bo"],
                "g1": row(p["norm1_g"]), "bn1": row(p["norm1_b"]),
                "c_wq": ca["wq"], "c_bq": ca["bq"], "c_wkv": ca["wkv"], "c_bkv": ca["bkv"],
                "c_wo": ca["wo"], "c_bo": ca["bo"],
                "g2": row(p["norm2_g"]), "bn2": row(p["norm2_b"]),
                "w1": t(p["lin1_w"]), "bf1": row(p["lin1_b"]),
                "w2": t(p["lin2_w"]), "bf2": row(p["lin2_b"]),
                "g3": row(p["norm3_g"]), "bn3": row(p["norm3_b"])}

    return {
        "embed_w": t(params["embedding"]["w"]), "embed_b": row(params["embedding"]["b"]),
        "enc_layers": [prep_enc(p) for p in params["encoder_layers"]],
        "enc_norm_g": row(params["enc_norm_g"]), "enc_norm_b": row(params["enc_norm_b"]),
        "dec_layers": [prep_dec(p) for p in params["decoder_layers"]],
        "dec_norm_g": row(params["dec_norm_g"]), "dec_norm_b": row(params["dec_norm_b"]),
        "fc_w": t(params["fc"]["w"]), "fc_b": row(params["fc"]["b"]),
    }


# ----------------------------- main -----------------------------

if __name__ == "__main__":
    INPUT_SIZE = 8
    D_MODEL = 32
    NHEAD = 4
    NUM_LAYERS = 2            # -> num_encoder_layers (3rd positional arg of nn.Transformer)
    NUM_DECODER_LAYERS = 6    # nn.Transformer default
    DIM_FEEDFORWARD = 2048    # nn.Transformer default
    OUTPUT_SIZE = 1
    BATCH, SEQ = 2, 8

    root = jax.random.PRNGKey(0)
    k_param, k_src = jax.random.split(root)
    params = init_params(k_param, INPUT_SIZE, D_MODEL, NUM_LAYERS,
                         NUM_DECODER_LAYERS, DIM_FEEDFORWARD, OUTPUT_SIZE)
    prep = prepare_params(params)    # layout conversion done once, outside the hot path
    src = jax.random.normal(k_src, (BATCH, SEQ, INPUT_SIZE), jnp.float32)

    fwd = jax.jit(functools.partial(transformer_predictor_forward, nhead=NHEAD))
    out = jax.block_until_ready(fwd(prep, src))

    assert out.shape == (BATCH, OUTPUT_SIZE), out.shape
    assert bool(jnp.all(jnp.isfinite(out)))
    print("KERNEL_OK")
</pallas_src>

<mosaic_0001>
module attributes {stable_mosaic.version = 11 : i64} {
  func.func @_embed_kernel(%arg0: i32, %arg1: memref<16x8xf32, #tpu.memory_space<vmem>>, %arg2: memref<8x32xf32, #tpu.memory_space<vmem>>, %arg3: memref<1x32xf32, #tpu.memory_space<vmem>>, %arg4: memref<16x32xf32, #tpu.memory_space<vmem>>) attributes {dimension_semantics = [#tpu.dimension_semantics<arbitrary>], iteration_bounds = array<i64: 1>, scalar_prefetch = 0 : i64, scratch_operands = 0 : i64, tpu.core_type = #tpu.core_type<tc>, window_params = [{pipeline_mode = #tpu.pipeline_mode<synchronous>, transform_indices = @transform_0, window_bounds = array<i64: 16, 8>}, {pipeline_mode = #tpu.pipeline_mode<synchronous>, transform_indices = @transform_1, window_bounds = array<i64: 8, 32>}, {pipeline_mode = #tpu.pipeline_mode<synchronous>, transform_indices = @transform_2, window_bounds = array<i64: 1, 32>}, {pipeline_mode = #tpu.pipeline_mode<synchronous>, transform_indices = @transform_3, window_bounds = array<i64: 16, 32>}]} {
    %c0 = arith.constant 0 : index
    %c0_0 = arith.constant 0 : index
    %0 = vector.load %arg1[%c0, %c0_0] : memref<16x8xf32, #tpu.memory_space<vmem>>, vector<16x8xf32>
    %c0_1 = arith.constant 0 : index
    %c0_2 = arith.constant 0 : index
    %1 = vector.load %arg2[%c0_1, %c0_2] : memref<8x32xf32, #tpu.memory_space<vmem>>, vector<8x32xf32>
    %cst = arith.constant dense<0.000000e+00> : vector<16x32xf32>
    %2 = tpu.matmul %0, %1, %cst {dimension_numbers = #tpu.dot_dimension_numbers<[1], [0], [0], [1], [0, 0, 1, 1], [], []>} : vector<16x8xf32>, vector<8x32xf32>, vector<16x32xf32> -> vector<16x32xf32>
    %c0_3 = arith.constant 0 : index
    %c0_4 = arith.constant 0 : index
    %3 = vector.load %arg3[%c0_3, %c0_4] : memref<1x32xf32, #tpu.memory_space<vmem>>, vector<1x32xf32>
    %4 = vector.broadcast %3 : vector<1x32xf32> to vector<16x32xf32>
    %5 = arith.addf %2, %4 : vector<16x32xf32>
    %c0_5 = arith.constant 0 : index
    %c0_6 = arith.constant 0 : index
    %6 = vector.load %arg4[%c0_5, %c0_6] : memref<16x32xf32, #tpu.memory_space<vmem>>, vector<16x32xf32>
    tpu.vector_store %arg4[%c0_5, %c0_6], %5 {strides = array<i32>} : memref<16x32xf32, #tpu.memory_space<vmem>>, vector<16x32xf32>,
    return
  }
  func.func @transform_0(%arg0: i32) -> (i32, i32) {
    %c0_i32 = arith.constant 0 : i32
    %c0_i32_0 = arith.constant 0 : i32
    %c0_i32_1 = arith.constant 0 : i32
    return %c0_i32, %c0_i32_0 : i32, i32
  }
  func.func @transform_1(%arg0: i32) -> (i32, i32) {
    %c0_i32 = arith.constant 0 : i32
    %c0_i32_0 = arith.constant 0 : i32
    %c0_i32_1 = arith.constant 0 : i32
    return %c0_i32, %c0_i32_0 : i32, i32
  }
  func.func @transform_2(%arg0: i32) -> (i32, i32) {
    %c0_i32 = arith.constant 0 : i32
    %c0_i32_0 = arith.constant 0 : i32
    %c0_i32_1 = arith.constant 0 : i32
    return %c0_i32, %c0_i32_0 : i32, i32
  }
  func.func @transform_3(%arg0: i32) -> (i32, i32) {
    %c0_i32 = arith.constant 0 : i32
    %c0_i32_0 = arith.constant 0 : i32
    %c0_i32_1 = arith.constant 0 : i32
    return %c0_i32, %c0_i32_0 : i32, i32
  }
}

module attributes {stable_mosaic.version = 11 : i64} {
  func.func @_encoder_layer_kernel(%arg0: i32, %arg1: memref<16x32xf32, #tpu.memory_space<vmem>>, %arg2: memref<32x96xf32, #tpu.memory_space<vmem>>, %arg3: memref<1x96xf32, #tpu.memory_space<vmem>>, %arg4: memref<32x32xf32, #tpu.memory_space<vmem>>, %arg5: memref<1x32xf32, #tpu.memory_space<vmem>>, %arg6: memref<1x32xf32, #tpu.memory_space<vmem>>, %arg7: memref<1x32xf32, #tpu.memory_space<vmem>>, %arg8: memref<32x2048xf32, #tpu.memory_space<vmem>>, %arg9: memref<1x2048xf32, #tpu.memory_space<vmem>>, %arg10: memref<2048x32xf32, #tpu.memory_space<vmem>>, %arg11: memref<1x32xf32, #tpu.memory_space<vmem>>, %arg12: memref<1x32xf32, #tpu.memory_space<vmem>>, %arg13: memref<1x32xf32, #tpu.memory_space<vmem>>, %arg14: memref<16x32xf32, #tpu.memory_space<vmem>>) attributes {dimension_semantics = [#tpu.dimension_semantics<arbitrary>], iteration_bounds = array<i64: 1>, scalar_prefetch = 0 : i64, scratch_operands = 0 : i64, tpu.core_type = #tpu.core_type<tc>, window_params = [{pipeline_mode = #tpu.pipeline_mode<synchronous>, transform_indices = @transform_0, window_bounds = array<i64: 16, 32>}, {pipeline_mode = #tpu.pipeline_mode<synchronous>, transform_indices = @transform_1, window_bounds = array<i64: 32, 96>}, {pipeline_mode = #tpu.pipeline_mode<synchronous>, transform_indices = @transform_2, window_bounds = array<i64: 1, 96>}, {pipeline_mode = #tpu.pipeline_mode<synchronous>, transform_indices = @transform_3, window_bounds = array<i64: 32, 32>}, {pipeline_mode = #tpu.pipeline_mode<synchronous>, transform_indices = @transform_4, window_bounds = array<i64: 1, 32>}, {pipeline_mode = #tpu.pipeline_mode<synchronous>, transform_indices = @transform_5, window_bounds = array<i64: 1, 32>}, {pipeline_mode = #tpu.pipeline_mode<synchronous>, transform_indices = @transform_6, window_bounds = array<i64: 1, 32>}, {pipeline_mode = #tpu.pipeline_mode<synchronous>, transform_indices = @transform_7, window_bounds = array<i64: 32, 2048>}, {pipeline_mode = #tpu.pipeline_mode<synchronous>, transform_indices = @transform_8, window_bounds = array<i64: 1, 2048>}, {pipeline_mode = #tpu.pipeline_mode<synchronous>, transform_indices = @transform_9, window_bounds = array<i64: 2048, 32>}, {pipeline_mode = #tpu.pipeline_mode<synchronous>, transform_indices = @transform_10, window_bounds = array<i64: 1, 32>}, {pipeline_mode = #tpu.pipeline_mode<synchronous>, transform_indices = @transform_11, window_bounds = array<i64: 1, 32>}, {pipeline_mode = #tpu.pipeline_mode<synchronous>, transform_indices = @transform_12, window_bounds = array<i64: 1, 32>}, {pipeline_mode = #tpu.pipeline_mode<synchronous>, transform_indices = @transform_13, window_bounds = array<i64: 16, 32>}]} {
    %c0 = arith.constant 0 : index
    %c0_0 = arith.constant 0 : index
    %0 = vector.load %arg1[%c0, %c0_0] : memref<16x32xf32, #tpu.memory_space<vmem>>, vector<16x32xf32>
    %c0_1 = arith.constant 0 : index
    %c0_2 = arith.constant 0 : index
    %1 = vector.load %arg2[%c0_1, %c0_2] : memref<32x96xf32, #tpu.memory_space<vmem>>, vector<32x96xf32>
    %c0_3 = arith.constant 0 : index
    %c0_4 = arith.constant 0 : index
    %2 = vector.load %arg3[%c0_3, %c0_4] : memref<1x96xf32, #tpu.memory_space<vmem>>, vector<1x96xf32>
    %c0_5 = arith.constant 0 : index
    %c0_6 = arith.constant 0 : index
    %3 = vector.load %arg4[%c0_5, %c0_6] : memref<32x32xf32, #tpu.memory_space<vmem>>, vector<32x32xf32>
    %c0_7 = arith.constant 0 : index
    %c0_8 = arith.constant 0 : index
    %4 = vector.load %arg5[%c0_7, %c0_8] : memref<1x32xf32, #tpu.memory_space<vmem>>, vector<1x32xf32>
    %cst = arith.constant dense<0.000000e+00> : vector<16x96xf32>
    %5 = tpu.matmul %0, %1, %cst {dimension_numbers = #tpu.dot_dimension_numbers<[1], [0], [0], [1], [0, 0, 1, 1], [], []>} : vector<16x32xf32>, vector<32x96xf32>, vector<16x96xf32> -> vector<16x96xf32>
    %6 = vector.broadcast %2 : vector<1x96xf32> to vector<16x96xf32>
    %7 = arith.addf %5, %6 : vector<16x96xf32>
    %8 = vector.extract_strided_slice %7 {offsets = [0, 0], sizes = [16, 32], strides = [1, 1]} : vector<16x96xf32> to vector<16x32xf32>
    %9 = vector.extract_strided_slice %7 {offsets = [0, 32], sizes = [16, 32], strides = [1, 1]} : vector<16x96xf32> to vector<16x32xf32>
    %10 = vector.extract_strided_slice %7 {offsets = [0, 64], sizes = [16, 32], strides = [1, 1]} : vector<16x96xf32> to vector<16x32xf32>
    %11 = vector.extract_strided_slice %8 {offsets = [0, 0], sizes = [8, 32], strides = [1, 1]} : vector<16x32xf32> to vector<8x32xf32>
    %12 = vector.extract_strided_slice %9 {offsets = [0, 0], sizes = [8, 32], strides = [1, 1]} : vector<16x32xf32> to vector<8x32xf32>
    %13 = vector.extract_strided_slice %10 {offsets = [0, 0], sizes = [8, 32], strides = [1, 1]} : vector<16x32xf32> to vector<8x32xf32>
    %14 = vector.extract_strided_slice %11 {offsets = [0, 0], sizes = [8, 8], strides = [1, 1]} : vector<8x32xf32> to vector<8x8xf32>
    %15 = vector.extract_strided_slice %12 {offsets = [0, 0], sizes = [8, 8], strides = [1, 1]} : vector<8x32xf32> to vector<8x8xf32>
    %cst_9 = arith.constant dense<0.000000e+00> : vector<8x8xf32>
    %16 = tpu.matmul %14, %15, %cst_9 {dimension_numbers = #tpu.dot_dimension_numbers<[1], [1], [0], [0], [0, 0, 1, 0], [], []>} : vector<8x8xf32>, vector<8x8xf32>, vector<8x8xf32> -> vector<8x8xf32>
    %cst_10 = arith.constant 0.353553385 : f32
    %17 = vector.broadcast %cst_10 : f32 to vector<8x8xf32>
    %18 = arith.mulf %16, %17 : vector<8x8xf32>
    %cst_11 = arith.constant dense<0xFF800000> : vector<8xf32>
    %19 = vector.multi_reduction <maximumf>, %18, %cst_11 [1] : vector<8x8xf32> to vector<8xf32>
    %20 = vector.shape_cast %19 : vector<8xf32> to vector<8x1xf32>
    %21 = vector.broadcast %20 : vector<8x1xf32> to vector<8x8xf32>
    %22 = arith.subf %18, %21 : vector<8x8xf32>
    %23 = math.exp %22 : vector<8x8xf32>
    %cst_12 = arith.constant dense<0.000000e+00> : vector<8xf32>
    %24 = vector.multi_reduction <add>, %23, %cst_12 [1] : vector<8x8xf32> to vector<8xf32>
    %25 = vector.shape_cast %24 : vector<8xf32> to vector<8x1xf32>
    %26 = tpu.reciprocal %25 {approx = true} : vector<8x1xf32> -> vector<8x1xf32>
    %27 = vector.broadcast %26 : vector<8x1xf32> to vector<8x8xf32>
    %28 = arith.mulf %23, %27 : vector<8x8xf32>
    %29 = vector.extract_strided_slice %13 {offsets = [0, 0], sizes = [8, 8], strides = [1, 1]} : vector<8x32xf32> to vector<8x8xf32>
    %cst_13 = arith.constant dense<0.000000e+00> : vector<8x8xf32>
    %30 = tpu.matmul %28, %29, %cst_13 {dimension_numbers = #tpu.dot_dimension_numbers<[1], [0], [0], [1], [0, 0, 1, 1], [], []>} : vector<8x8xf32>, vector<8x8xf32>, vector<8x8xf32> -> vector<8x8xf32>
    %31 = vector.extract_strided_slice %11 {offsets = [0, 8], sizes = [8, 8], strides = [1, 1]} : vector<8x32xf32> to vector<8x8xf32>
    %32 = vector.extract_strided_slice %12 {offsets = [0, 8], sizes = [8, 8], strides = [1, 1]} : vector<8x32xf32> to vector<8x8xf32>
    %cst_14 = arith.constant dense<0.000000e+00> : vector<8x8xf32>
    %33 = tpu.matmul %31, %32, %cst_14 {dimension_numbers = #tpu.dot_dimension_numbers<[1], [1], [0], [0], [0, 0, 1, 0], [], []>} : vector<8x8xf32>, vector<8x8xf32>, vector<8x8xf32> -> vector<8x8xf32>
    %cst_15 = arith.constant 0.353553385 : f32
    %34 = vector.broadcast %cst_15 : f32 to vector<8x8xf32>
    %35 = arith.mulf %33, %34 : vector<8x8xf32>
    %cst_16 = arith.constant dense<0xFF800000> : vector<8xf32>
    %36 = vector.multi_reduction <maximumf>, %35, %cst_16 [1] : vector<8x8xf32> to vector<8xf32>
    %37 = vector.shape_cast %36 : vector<8xf32> to vector<8x1xf32>
    %38 = vector.broadcast %37 : vector<8x1xf32> to vector<8x8xf32>
    %39 = arith.subf %35, %38 : vector<8x8xf32>
    %40 = math.exp %39 : vector<8x8xf32>
    %cst_17 = arith.constant dense<0.000000e+00> : vector<8xf32>
    %41 = vector.multi_reduction <add>, %40, %cst_17 [1] : vector<8x8xf32> to vector<8xf32>
    %42 = vector.shape_cast %41 : vector<8xf32> to vector<8x1xf32>
    %43 = tpu.reciprocal %42 {approx = true} : vector<8x1xf32> -> vector<8x1xf32>
    %44 = vector.broadcast %43 : vector<8x1xf32> to vector<8x8xf32>
    %45 = arith.mulf %40, %44 : vector<8x8xf32>
    %46 = vector.extract_strided_slice %13 {offsets = [0, 8], sizes = [8, 8], strides = [1, 1]} : vector<8x32xf32> to vector<8x8xf32>
    %cst_18 = arith.constant dense<0.000000e+00> : vector<8x8xf32>
    %47 = tpu.matmul %45, %46, %cst_18 {dimension_numbers = #tpu.dot_dimension_numbers<[1], [0], [0], [1], [0, 0, 1, 1], [], []>} : vector<8x8xf32>, vector<8x8xf32>, vector<8x8xf32> -> vector<8x8xf32>
    %48 = vector.extract_strided_slice %11 {offsets = [0, 16], sizes = [8, 8], strides = [1, 1]} : vector<8x32xf32> to vector<8x8xf32>
    %49 = vector.extract_strided_slice %12 {offsets = [0, 16], sizes = [8, 8], strides = [1, 1]} : vector<8x32xf32> to vector<8x8xf32>
    %cst_19 = arith.constant dense<0.000000e+00> : vector<8x8xf32>
    %50 = tpu.matmul %48, %49, %cst_19 {dimension_numbers = #tpu.dot_dimension_numbers<[1], [1], [0], [0], [0, 0, 1, 0], [], []>} : vector<8x8xf32>, vector<8x8xf32>, vector<8x8xf32> -> vector<8x8xf32>
    %cst_20 = arith.constant 0.353553385 : f32
    %51 = vector.broadcast %cst_20 : f32 to vector<8x8xf32>
    %52 = arith.mulf %50, %51 : vector<8x8xf32>
    %cst_21 = arith.constant dense<0xFF800000> : vector<8xf32>
    %53 = vector.multi_reduction <maximumf>, %52, %cst_21 [1] : vector<8x8xf32> to vector<8xf32>
    %54 = vector.shape_cast %53 : vector<8xf32> to vector<8x1xf32>
    %55 = vector.broadcast %54 : vector<8x1xf32> to vector<8x8xf32>
    %56 = arith.subf %52, %55 : vector<8x8xf32>
    %57 = math.exp %56 : vector<8x8xf32>
    %cst_22 = arith.constant dense<0.000000e+00> : vector<8xf32>
    %58 = vector.multi_reduction <add>, %57, %cst_22 [1] : vector<8x8xf32> to vector<8xf32>
    %59 = vector.shape_cast %58 : vector<8xf32> to vector<8x1xf32>
    %60 = tpu.reciprocal %59 {approx = true} : vector<8x1xf32> -> vector<8x1xf32>
    %61 = vector.broadcast %60 : vector<8x1xf32> to vector<8x8xf32>
    %62 = arith.mulf %57, %61 : vector<8x8xf32>
    %63 = vector.extract_strided_slice %13 {offsets = [0, 16], sizes = [8, 8], strides = [1, 1]} : vector<8x32xf32> to vector<8x8xf32>
    %cst_23 = arith.constant dense<0.000000e+00> : vector<8x8xf32>
    %64 = tpu.matmul %62, %63, %cst_23 {dimension_numbers = #tpu.dot_dimension_numbers<[1], [0], [0], [1], [0, 0, 1, 1], [], []>} : vector<8x8xf32>, vector<8x8xf32>, vector<8x8xf32> -> vector<8x8xf32>
    %65 = vector.extract_strided_slice %11 {offsets = [0, 24], sizes = [8, 8], strides = [1, 1]} : vector<8x32xf32> to vector<8x8xf32>
    %66 = vector.extract_strided_slice %12 {offsets = [0, 24], sizes = [8, 8], strides = [1, 1]} : vector<8x32xf32> to vector<8x8xf32>
    %cst_24 = arith.constant dense<0.000000e+00> : vector<8x8xf32>
    %67 = tpu.matmul %65, %66, %cst_24 {dimension_numbers = #tpu.dot_dimension_numbers<[1], [1], [0], [0], [0, 0, 1, 0], [], []>} : vector<8x8xf32>, vector<8x8xf32>, vector<8x8xf32> -> vector<8x8xf32>
    %cst_25 = arith.constant 0.353553385 : f32
    %68 = vector.broadcast %cst_25 : f32 to vector<8x8xf32>
    %69 = arith.mulf %67, %68 : vector<8x8xf32>
    %cst_26 = arith.constant dense<0xFF800000> : vector<8xf32>
    %70 = vector.multi_reduction <maximumf>, %69, %cst_26 [1] : vector<8x8xf32> to vector<8xf32>
    %71 = vector.shape_cast %70 : vector<8xf32> to vector<8x1xf32>
    %72 = vector.broadcast %71 : vector<8x1xf32> to vector<8x8xf32>
    %73 = arith.subf %69, %72 : vector<8x8xf32>
    %74 = math.exp %73 : vector<8x8xf32>
    %cst_27 = arith.constant dense<0.000000e+00> : vector<8xf32>
    %75 = vector.multi_reduction <add>, %74, %cst_27 [1] : vector<8x8xf32> to vector<8xf32>
    %76 = vector.shape_cast %75 : vector<8xf32> to vector<8x1xf32>
    %77 = tpu.reciprocal %76 {approx = true} : vector<8x1xf32> -> vector<8x1xf32>
    %78 = vector.broadcast %77 : vector<8x1xf32> to vector<8x8xf32>
    %79 = arith.mulf %74, %78 : vector<8x8xf32>
    %80 = vector.extract_strided_slice %13 {offsets = [0, 24], sizes = [8, 8], strides = [1, 1]} : vector<8x32xf32> to vector<8x8xf32>
    %cst_28 = arith.constant dense<0.000000e+00> : vector<8x8xf32>
    %81 = tpu.matmul %79, %80, %cst_28 {dimension_numbers = #tpu.dot_dimension_numbers<[1], [0], [0], [1], [0, 0, 1, 1], [], []>} : vector<8x8xf32>, vector<8x8xf32>, vector<8x8xf32> -> vector<8x8xf32>
    %82 = tpu.concatenate %30, %47, %64, %81 in 1 : vector<8x8xf32>, vector<8x8xf32>, vector<8x8xf32>, vector<8x8xf32> -> vector<8x32xf32>
    %83 = vector.extract_strided_slice %8 {offsets = [8, 0], sizes = [8, 32], strides = [1, 1]} : vector<16x32xf32> to vector<8x32xf32>
    %84 = vector.extract_strided_slice %9 {offsets = [8, 0], sizes = [8, 32], strides = [1, 1]} : vector<16x32xf32> to vector<8x32xf32>
    %85 = vector.extract_strided_slice %10 {offsets = [8, 0], sizes = [8, 32], strides = [1, 1]} : vector<16x32xf32> to vector<8x32xf32>
    %86 = vector.extract_strided_slice %83 {offsets = [0, 0], sizes = [8, 8], strides = [1, 1]} : vector<8x32xf32> to vector<8x8xf32>
    %87 = vector.extract_strided_slice %84 {offsets = [0, 0], sizes = [8, 8], strides = [1, 1]} : vector<8x32xf32> to vector<8x8xf32>
    %cst_29 = arith.constant dense<0.000000e+00> : vector<8x8xf32>
    %88 = tpu.matmul %86, %87, %cst_29 {dimension_numbers = #tpu.dot_dimension_numbers<[1], [1], [0], [0], [0, 0, 1, 0], [], []>} : vector<8x8xf32>, vector<8x8xf32>, vector<8x8xf32> -> vector<8x8xf32>
    %cst_30 = arith.constant 0.353553385 : f32
    %89 = vector.broadcast %cst_30 : f32 to vector<8x8xf32>
    %90 = arith.mulf %88, %89 : vector<8x8xf32>
    %cst_31 = arith.constant dense<0xFF800000> : vector<8xf32>
    %91 = vector.multi_reduction <maximumf>, %90, %cst_31 [1] : vector<8x8xf32> to vector<8xf32>
    %92 = vector.shape_cast %91 : vector<8xf32> to vector<8x1xf32>
    %93 = vector.broadcast %92 : vector<8x1xf32> to vector<8x8xf32>
    %94 = arith.subf %90, %93 : vector<8x8xf32>
    %95 = math.exp %94 : vector<8x8xf32>
    %cst_32 = arith.constant dense<0.000000e+00> : vector<8xf32>
    %96 = vector.multi_reduction <add>, %95, %cst_32 [1] : vector<8x8xf32> to vector<8xf32>
    %97 = vector.shape_cast %96 : vector<8xf32> to vector<8x1xf32>
    %98 = tpu.reciprocal %97 {approx = true} : vector<8x1xf32> -> vector<8x1xf32>
    %99 = vector.broadcast %98 : vector<8x1xf32> to vector<8x8xf32>
    %100 = arith.mulf %95, %99 : vector<8x8xf32>
    %101 = vector.extract_strided_slice %85 {offsets = [0, 0], sizes = [8, 8], strides = [1, 1]} : vector<8x32xf32> to vector<8x8xf32>
    %cst_33 = arith.constant dense<0.000000e+00> : vector<8x8xf32>
    %102 = tpu.matmul %100, %101, %cst_33 {dimension_numbers = #tpu.dot_dimension_numbers<[1], [0], [0], [1], [0, 0, 1, 1], [], []>} : vector<8x8xf32>, vector<8x8xf32>, vector<8x8xf32> -> vector<8x8xf32>
    %103 = vector.extract_strided_slice %83 {offsets = [0, 8], sizes = [8, 8], strides = [1, 1]} : vector<8x32xf32> to vector<8x8xf32>
    %104 = vector.extract_strided_slice %84 {offsets = [0, 8], sizes = [8, 8], strides = [1, 1]} : vector<8x32xf32> to vector<8x8xf32>
    %cst_34 = arith.constant dense<0.000000e+00> : vector<8x8xf32>
    %105 = tpu.matmul %103, %104, %cst_34 {dimension_numbers = #tpu.dot_dimension_numbers<[1], [1], [0], [0], [0, 0, 1, 0], [], []>} : vector<8x8xf32>, vector<8x8xf32>, vector<8x8xf32> -> vector<8x8xf32>
    %cst_35 = arith.constant 0.353553385 : f32
    %106 = vector.broadcast %cst_35 : f32 to vector<8x8xf32>
    %107 = arith.mulf %105, %106 : vector<8x8xf32>
    %cst_36 = arith.constant dense<0xFF800000> : vector<8xf32>
    %108 = vector.multi_reduction <maximumf>, %107, %cst_36 [1] : vector<8x8xf32> to vector<8xf32>
    %109 = vector.shape_cast %108 : vector<8xf32> to vector<8x1xf32>
    %110 = vector.broadcast %109 : vector<8x1xf32> to vector<8x8xf32>
    %111 = arith.subf %107, %110 : vector<8x8xf32>
    %112 = math.exp %111 : vector<8x8xf32>
    %cst_37 = arith.constant dense<0.000000e+00> : vector<8xf32>
    %113 = vector.multi_reduction <add>, %112, %cst_37 [1] : vector<8x8xf32> to vector<8xf32>
    %114 = vector.shape_cast %113 : vector<8xf32> to vector<8x1xf32>
    %115 = tpu.reciprocal %114 {approx = true} : vector<8x1xf32> -> vector<8x1xf32>
    %116 = vector.broadcast %115 : vector<8x1xf32> to vector<8x8xf32>
    %117 = arith.mulf %112, %116 : vector<8x8xf32>
    %118 = vector.extract_strided_slice %85 {offsets = [0, 8], sizes = [8, 8], strides = [1, 1]} : vector<8x32xf32> to vector<8x8xf32>
    %cst_38 = arith.constant dense<0.000000e+00> : vector<8x8xf32>
    %119 = tpu.matmul %117, %118, %cst_38 {dimension_numbers = #tpu.dot_dimension_numbers<[1], [0], [0], [1], [0, 0, 1, 1], [], []>} : vector<8x8xf32>, vector<8x8xf32>, vector<8x8xf32> -> vector<8x8xf32>
    %120 = vector.extract_strided_slice %83 {offsets = [0, 16], sizes = [8, 8], strides = [1, 1]} : vector<8x32xf32> to vector<8x8xf32>
    %121 = vector.extract_strided_slice %84 {offsets = [0, 16], sizes = [8, 8], strides = [1, 1]} : vector<8x32xf32> to vector<8x8xf32>
    %cst_39 = arith.constant dense<0.000000e+00> : vector<8x8xf32>
    %122 = tpu.matmul %120, %121, %cst_39 {dimension_numbers = #tpu.dot_dimension_numbers<[1], [1], [0], [0], [0, 0, 1, 0], [], []>} : vector<8x8xf32>, vector<8x8xf32>, vector<8x8xf32> -> vector<8x8xf32>
    %cst_40 = arith.constant 0.353553385 : f32
    %123 = vector.broadcast %cst_40 : f32 to vector<8x8xf32>
    %124 = arith.mulf %122, %123 : vector<8x8xf32>
    %cst_41 = arith.constant dense<0xFF800000> : vector<8xf32>
    %125 = vector.multi_reduction <maximumf>, %124, %cst_41 [1] : vector<8x8xf32> to vector<8xf32>
    %126 = vector.shape_cast %125 : vector<8xf32> to vector<8x1xf32>
    %127 = vector.broadcast %126 : vector<8x1xf32> to vector<8x8xf32>
    %128 = arith.subf %124, %127 : vector<8x8xf32>
    %129 = math.exp %128 : vector<8x8xf32>
    %cst_42 = arith.constant dense<0.000000e+00> : vector<8xf32>
    %130 = vector.multi_reduction <add>, %129, %cst_42 [1] : vector<8x8xf32> to vector<8xf32>
    %131 = vector.shape_cast %130 : vector<8xf32> to vector<8x1xf32>
    %132 = tpu.reciprocal %131 {approx = true} : vector<8x1xf32> -> vector<8x1xf32>
    %133 = vector.broadcast %132 : vector<8x1xf32> to vector<8x8xf32>
    %134 = arith.mulf %129, %133 : vector<8x8xf32>
    %135 = vector.extract_strided_slice %85 {offsets = [0, 16], sizes = [8, 8], strides = [1, 1]} : vector<8x32xf32> to vector<8x8xf32>
    %cst_43 = arith.constant dense<0.000000e+00> : vector<8x8xf32>
    %136 = tpu.matmul %134, %135, %cst_43 {dimension_numbers = #tpu.dot_dimension_numbers<[1], [0], [0], [1], [0, 0, 1, 1], [], []>} : vector<8x8xf32>, vector<8x8xf32>, vector<8x8xf32> -> vector<8x8xf32>
    %137 = vector.extract_strided_slice %83 {offsets = [0, 24], sizes = [8, 8], strides = [1, 1]} : vector<8x32xf32> to vector<8x8xf32>
    %138 = vector.extract_strided_slice %84 {offsets = [0, 24], sizes = [8, 8], strides = [1, 1]} : vector<8x32xf32> to vector<8x8xf32>
    %cst_44 = arith.constant dense<0.000000e+00> : vector<8x8xf32>
    %139 = tpu.matmul %137, %138, %cst_44 {dimension_numbers = #tpu.dot_dimension_numbers<[1], [1], [0], [0], [0, 0, 1, 0], [], []>} : vector<8x8xf32>, vector<8x8xf32>, vector<8x8xf32> -> vector<8x8xf32>
    %cst_45 = arith.constant 0.353553385 : f32
    %140 = vector.broadcast %cst_45 : f32 to vector<8x8xf32>
    %141 = arith.mulf %139, %140 : vector<8x8xf32>
    %cst_46 = arith.constant dense<0xFF800000> : vector<8xf32>
    %142 = vector.multi_reduction <maximumf>, %141, %cst_46 [1] : vector<8x8xf32> to vector<8xf32>
    %143 = vector.shape_cast %142 : vector<8xf32> to vector<8x1xf32>
    %144 = vector.broadcast %143 : vector<8x1xf32> to vector<8x8xf32>
    %145 = arith.subf %141, %144 : vector<8x8xf32>
    %146 = math.exp %145 : vector<8x8xf32>
    %cst_47 = arith.constant dense<0.000000e+00> : vector<8xf32>
    %147 = vector.multi_reduction <add>, %146, %cst_47 [1] : vector<8x8xf32> to vector<8xf32>
    %148 = vector.shape_cast %147 : vector<8xf32> to vector<8x1xf32>
    %149 = tpu.reciprocal %148 {approx = true} : vector<8x1xf32> -> vector<8x1xf32>
    %150 = vector.broadcast %149 : vector<8x1xf32> to vector<8x8xf32>
    %151 = arith.mulf %146, %150 : vector<8x8xf32>
    %152 = vector.extract_strided_slice %85 {offsets = [0, 24], sizes = [8, 8], strides = [1, 1]} : vector<8x32xf32> to vector<8x8xf32>
    %cst_48 = arith.constant dense<0.000000e+00> : vector<8x8xf32>
    %153 = tpu.matmul %151, %152, %cst_48 {dimension_numbers = #tpu.dot_dimension_numbers<[1], [0], [0], [1], [0, 0, 1, 1], [], []>} : vector<8x8xf32>, vector<8x8xf32>, vector<8x8xf32> -> vector<8x8xf32>
    %154 = tpu.concatenate %102, %119, %136, %153 in 1 : vector<8x8xf32>, vector<8x8xf32>, vector<8x8xf32>, vector<8x8xf32> -> vector<8x32xf32>
    %155 = tpu.concatenate %82, %154 in 0 : vector<8x32xf32>, vector<8x32xf32> -> vector<16x32xf32>
    %cst_49 = arith.constant dense<0.000000e+00> : vector<16x32xf32>
    %156 = tpu.matmul %155, %3, %cst_49 {dimension_numbers = #tpu.dot_dimension_numbers<[1], [0], [0], [1], [0, 0, 1, 1], [], []>} : vector<16x32xf32>, vector<32x32xf32>, vector<16x32xf32> -> vector<16x32xf32>
    %157 = vector.broadcast %4 : vector<1x32xf32> to vector<16x32xf32>
    %158 = arith.addf %156, %157 : vector<16x32xf32>
    %159 = arith.addf %0, %158 : vector<16x32xf32>
    %c0_50 = arith.constant 0 : index
    %c0_51 = arith.constant 0 : index
    %160 = vector.load %arg6[%c0_50, %c0_51] : memref<1x32xf32, #tpu.memory_space<vmem>>, vector<1x32xf32>
    %c0_52 = arith.constant 0 : index
    %c0_53 = arith.constant 0 : index
    %161 = vector.load %arg7[%c0_52, %c0_53] : memref<1x32xf32, #tpu.memory_space<vmem>>, vector<1x32xf32>
    %cst_54 = arith.constant dense<0.000000e+00> : vector<16xf32>
    %162 = vector.multi_reduction <add>, %159, %cst_54 [1] : vector<16x32xf32> to vector<16xf32>
    %163 = vector.shape_cast %162 : vector<16xf32> to vector<16x1xf32>
    %cst_55 = arith.constant 3.200000e+01 : f32
    %164 = vector.broadcast %cst_55 : f32 to vector<16x1xf32>
    %165 = arith.divf %163, %164 : vector<16x1xf32>
    %166 = vector.broadcast %165 : vector<16x1xf32> to vector<16x32xf32>
    %167 = arith.subf %159, %166 : vector<16x32xf32>
    %168 = arith.mulf %167, %167 : vector<16x32xf32>
    %cst_56 = arith.constant dense<0.000000e+00> : vector<16xf32>
    %169 = vector.multi_reduction <add>, %168, %cst_56 [1] : vector<16x32xf32> to vector<16xf32>
    %170 = vector.shape_cast %169 : vector<16xf32> to vector<16x1xf32>
    %cst_57 = arith.constant 3.200000e+01 : f32
    %171 = vector.broadcast %cst_57 : f32 to vector<16x1xf32>
    %172 = arith.divf %170, %171 : vector<16x1xf32>
    %173 = vector.broadcast %165 : vector<16x1xf32> to vector<16x32xf32>
    %174 = arith.subf %159, %173 : vector<16x32xf32>
    %cst_58 = arith.constant 9.99999974E-6 : f32
    %175 = vector.broadcast %cst_58 : f32 to vector<16x1xf32>
    %176 = arith.addf %172, %175 : vector<16x1xf32>
    %177 = math.rsqrt %176 : vector<16x1xf32>
    %178 = vector.broadcast %177 : vector<16x1xf32> to vector<16x32xf32>
    %179 = arith.mulf %174, %178 : vector<16x32xf32>
    %180 = vector.broadcast %160 : vector<1x32xf32> to vector<16x32xf32>
    %181 = arith.mulf %179, %180 : vector<16x32xf32>
    %182 = vector.broadcast %161 : vector<1x32xf32> to vector<16x32xf32>
    %183 = arith.addf %181, %182 : vector<16x32xf32>
    %c0_59 = arith.constant 0 : index
    %c0_60 = arith.constant 0 : index
    %184 = vector.load %arg8[%c0_59, %c0_60] : memref<32x2048xf32, #tpu.memory_space<vmem>>, vector<32x2048xf32>
    %c0_61 = arith.constant 0 : index
    %c0_62 = arith.constant 0 : index
    %185 = vector.load %arg9[%c0_61, %c0_62] : memref<1x2048xf32, #tpu.memory_space<vmem>>, vector<1x2048xf32>
    %c0_63 = arith.constant 0 : index
    %c0_64 = arith.constant 0 : index
    %186 = vector.load %arg10[%c0_63, %c0_64] : memref<2048x32xf32, #tpu.memory_space<vmem>>, vector<2048x32xf32>
    %c0_65 = arith.constant 0 : index
    %c0_66 = arith.constant 0 : index
    %187 = vector.load %arg11[%c0_65, %c0_66] : memref<1x32xf32, #tpu.memory_space<vmem>>, vector<1x32xf32>
    %cst_67 = arith.constant dense<0.000000e+00> : vector<16x2048xf32>
    %188 = tpu.matmul %183, %184, %cst_67 {dimension_numbers = #tpu.dot_dimension_numbers<[1], [0], [0], [1], [0, 0, 1, 1], [], []>} : vector<16x32xf32>, vector<32x2048xf32>, vector<16x2048xf32> -> vector<16x2048xf32>
    %189 = vector.broadcast %185 : vector<1x2048xf32> to vector<16x2048xf32>
    %190 = arith.addf %188, %189 : vector<16x2048xf32>
    %cst_68 = arith.constant 0.000000e+00 : f32
    %191 = vector.broadcast %cst_68 : f32 to vector<16x2048xf32>
    %192 = arith.maximumf %190, %191 : vector<16x2048xf32>
    %cst_69 = arith.constant dense<0.000000e+00> : vector<16x32xf32>
    %193 = tpu.matmul %192, %186, %cst_69 {dimension_numbers = #tpu.dot_dimension_numbers<[1], [0], [0], [1], [0, 0, 1, 1], [], []>} : vector<16x2048xf32>, vector<2048x32xf32>, vector<16x32xf32> -> vector<16x32xf32>
    %194 = vector.broadcast %187 : vector<1x32xf32> to vector<16x32xf32>
    %195 = arith.addf %193, %194 : vector<16x32xf32>
    %196 = arith.addf %183, %195 : vector<16x32xf32>
    %c0_70 = arith.constant 0 : index
    %c0_71 = arith.constant 0 : index
    %197 = vector.load %arg12[%c0_70, %c0_71] : memref<1x32xf32, #tpu.memory_space<vmem>>, vector<1x32xf32>
    %c0_72 = arith.constant 0 : index
    %c0_73 = arith.constant 0 : index
    %198 = vector.load %arg13[%c0_72, %c0_73] : memref<1x32xf32, #tpu.memory_space<vmem>>, vector<1x32xf32>
    %cst_74 = arith.constant dense<0.000000e+00> : vector<16xf32>
    %199 = vector.multi_reduction <add>, %196, %cst_74 [1] : vector<16x32xf32> to vector<16xf32>
    %200 = vector.shape_cast %199 : vector<16xf32> to vector<16x1xf32>
    %cst_75 = arith.constant 3.200000e+01 : f32
    %201 = vector.broadcast %cst_75 : f32 to vector<16x1xf32>
    %202 = arith.divf %200, %201 : vector<16x1xf32>
    %203 = vector.broadcast %202 : vector<16x1xf32> to vector<16x32xf32>
    %204 = arith.subf %196, %203 : vector<16x32xf32>
    %205 = arith.mulf %204, %204 : vector<16x32xf32>
    %cst_76 = arith.constant dense<0.000000e+00> : vector<16xf32>
    %206 = vector.multi_reduction <add>, %205, %cst_76 [1] : vector<16x32xf32> to vector<16xf32>
    %207 = vector.shape_cast %206 : vector<16xf32> to vector<16x1xf32>
    %cst_77 = arith.constant 3.200000e+01 : f32
    %208 = vector.broadcast %cst_77 : f32 to vector<16x1xf32>
    %209 = arith.divf %207, %208 : vector<16x1xf32>
    %210 = vector.broadcast %202 : vector<16x1xf32> to vector<16x32xf32>
    %211 = arith.subf %196, %210 : vector<16x32xf32>
    %cst_78 = arith.constant 9.99999974E-6 : f32
    %212 = vector.broadcast %cst_78 : f32 to vector<16x1xf32>
    %213 = arith.addf %209, %212 : vector<16x1xf32>
    %214 = math.rsqrt %213 : vector<16x1xf32>
    %215 = vector.broadcast %214 : vector<16x1xf32> to vector<16x32xf32>
    %216 = arith.mulf %211, %215 : vector<16x32xf32>
    %217 = vector.broadcast %197 : vector<1x32xf32> to vector<16x32xf32>
    %218 = arith.mulf %216, %217 : vector<16x32xf32>
    %219 = vector.broadcast %198 : vector<1x32xf32> to vector<16x32xf32>
    %220 = arith.addf %218, %219 : vector<16x32xf32>
    %c0_79 = arith.constant 0 : index
    %c0_80 = arith.constant 0 : index
    %221 = vector.load %arg14[%c0_79, %c0_80] : memref<16x32xf32, #tpu.memory_space<vmem>>, vector<16x32xf32>
    tpu.vector_store %arg14[%c0_79, %c0_80], %220 {strides = array<i32>} : memref<16x32xf32, #tpu.memory_space<vmem>>, vector<16x32xf32>,
    return
  }
  func.func @transform_0(%arg0: i32) -> (i32, i32) {
    %c0_i32 = arith.constant 0 : i32
    %c0_i32_0 = arith.constant 0 : i32
    %c0_i32_1 = arith.constant 0 : i32
    return %c0_i32, %c0_i32_0 : i32, i32
  }
  func.func @transform_1(%arg0: i32) -> (i32, i32) {
    %c0_i32 = arith.constant 0 : i32
    %c0_i32_0 = arith.constant 0 : i32
    %c0_i32_1 = arith.constant 0 : i32
    return %c0_i32, %c0_i32_0 : i32, i32
  }
  func.func @transform_2(%arg0: i32) -> (i32, i32) {
    %c0_i32 = arith.constant 0 : i32
    %c0_i32_0 = arith.constant 0 : i32
    %c0_i32_1 = arith.constant 0 : i32
    return %c0_i32, %c0_i32_0 : i32, i32
  }
  func.func @transform_3(%arg0: i32) -> (i32, i32) {
    %c0_i32 = arith.constant 0 : i32
    %c0_i32_0 = arith.constant 0 : i32
    %c0_i32_1 = arith.constant 0 : i32
    return %c0_i32, %c0_i32_0 : i32, i32
  }
  func.func @transform_4(%arg0: i32) -> (i32, i32) {
    %c0_i32 = arith.constant 0 : i32
    %c0_i32_0 = arith.constant 0 : i32
    %c0_i32_1 = arith.constant 0 : i32
    return %c0_i32, %c0_i32_0 : i32, i32
  }
  func.func @transform_5(%arg0: i32) -> (i32, i32) {
    %c0_i32 = arith.constant 0 : i32
    %c0_i32_0 = arith.constant 0 : i32
    %c0_i32_1 = arith.constant 0 : i32
    return %c0_i32, %c0_i32_0 : i32, i32
  }
  func.func @transform_6(%arg0: i32) -> (i32, i32) {
    %c0_i32 = arith.constant 0 : i32
    %c0_i32_0 = arith.constant 0 : i32
    %c0_i32_1 = arith.constant 0 : i32
    return %c0_i32, %c0_i32_0 : i32, i32
  }
  func.func @transform_7(%arg0: i32) -> (i32, i32) {
    %c0_i32 = arith.constant 0 : i32
    %c0_i32_0 = arith.constant 0 : i32
    %c0_i32_1 = arith.constant 0 : i32
    return %c0_i32, %c0_i32_0 : i32, i32
  }
  func.func @transform_8(%arg0: i32) -> (i32, i32) {
    %c0_i32 = arith.constant 0 : i32
    %c0_i32_0 = arith.constant 0 : i32
    %c0_i32_1 = arith.constant 0 : i32
    return %c0_i32, %c0_i32_0 : i32, i32
  }
  func.func @transform_9(%arg0: i32) -> (i32, i32) {
    %c0_i32 = arith.constant 0 : i32
    %c0_i32_0 = arith.constant 0 : i32
    %c0_i32_1 = arith.constant 0 : i32
    return %c0_i32, %c0_i32_0 : i32, i32
  }
  func.func @transform_10(%arg0: i32) -> (i32, i32) {
    %c0_i32 = arith.constant 0 : i32
    %c0_i32_0 = arith.constant 0 : i32
    %c0_i32_1 = arith.constant 0 : i32
    return %c0_i32, %c0_i32_0 : i32, i32
  }
  func.func @transform_11(%arg0: i32) -> (i32, i32) {
    %c0_i32 = arith.constant 0 : i32
    %c0_i32_0 = arith.constant 0 : i32
    %c0_i32_1 = arith.constant 0 : i32
    return %c0_i32, %c0_i32_0 : i32, i32
  }
  func.func @transform_12(%arg0: i32) -> (i32, i32) {
    %c0_i32 = arith.constant 0 : i32
    %c0_i32_0 = arith.constant 0 : i32
    %c0_i32_1 = arith.constant 0 : i32
    return %c0_i32, %c0_i32_0 : i32, i32
  }
  func.func @transform_13(%arg0: i32) -> (i32, i32) {
    %c0_i32 = arith.constant 0 : i32
    %c0_i32_0 = arith.constant 0 : i32
    %c0_i32_1 = arith.constant 0 : i32
    return %c0_i32, %c0_i32_0 : i32, i32
  }
}

module attributes {stable_mosaic.version = 11 : i64} {
  func.func @_ln_kernel(%arg0: i32, %arg1: memref<16x32xf32, #tpu.memory_space<vmem>>, %arg2: memref<1x32xf32, #tpu.memory_space<vmem>>, %arg3: memref<1x32xf32, #tpu.memory_space<vmem>>, %arg4: memref<16x32xf32, #tpu.memory_space<vmem>>) attributes {dimension_semantics = [#tpu.dimension_semantics<arbitrary>], iteration_bounds = array<i64: 1>, scalar_prefetch = 0 : i64, scratch_operands = 0 : i64, tpu.core_type = #tpu.core_type<tc>, window_params = [{pipeline_mode = #tpu.pipeline_mode<synchronous>, transform_indices = @transform_0, window_bounds = array<i64: 16, 32>}, {pipeline_mode = #tpu.pipeline_mode<synchronous>, transform_indices = @transform_1, window_bounds = array<i64: 1, 32>}, {pipeline_mode = #tpu.pipeline_mode<synchronous>, transform_indices = @transform_2, window_bounds = array<i64: 1, 32>}, {pipeline_mode = #tpu.pipeline_mode<synchronous>, transform_indices = @transform_3, window_bounds = array<i64: 16, 32>}]} {
    %c0 = arith.constant 0 : index
    %c0_0 = arith.constant 0 : index
    %0 = vector.load %arg1[%c0, %c0_0] : memref<16x32xf32, #tpu.memory_space<vmem>>, vector<16x32xf32>
    %c0_1 = arith.constant 0 : index
    %c0_2 = arith.constant 0 : index
    %1 = vector.load %arg2[%c0_1, %c0_2] : memref<1x32xf32, #tpu.memory_space<vmem>>, vector<1x32xf32>
    %c0_3 = arith.constant 0 : index
    %c0_4 = arith.constant 0 : index
    %2 = vector.load %arg3[%c0_3, %c0_4] : memref<1x32xf32, #tpu.memory_space<vmem>>, vector<1x32xf32>
    %cst = arith.constant dense<0.000000e+00> : vector<16xf32>
    %3 = vector.multi_reduction <add>, %0, %cst [1] : vector<16x32xf32> to vector<16xf32>
    %4 = vector.shape_cast %3 : vector<16xf32> to vector<16x1xf32>
    %cst_5 = arith.constant 3.200000e+01 : f32
    %5 = vector.broadcast %cst_5 : f32 to vector<16x1xf32>
    %6 = arith.divf %4, %5 : vector<16x1xf32>
    %7 = vector.broadcast %6 : vector<16x1xf32> to vector<16x32xf32>
    %8 = arith.subf %0, %7 : vector<16x32xf32>
    %9 = arith.mulf %8, %8 : vector<16x32xf32>
    %cst_6 = arith.constant dense<0.000000e+00> : vector<16xf32>
    %10 = vector.multi_reduction <add>, %9, %cst_6 [1] : vector<16x32xf32> to vector<16xf32>
    %11 = vector.shape_cast %10 : vector<16xf32> to vector<16x1xf32>
    %cst_7 = arith.constant 3.200000e+01 : f32
    %12 = vector.broadcast %cst_7 : f32 to vector<16x1xf32>
    %13 = arith.divf %11, %12 : vector<16x1xf32>
    %14 = vector.broadcast %6 : vector<16x1xf32> to vector<16x32xf32>
    %15 = arith.subf %0, %14 : vector<16x32xf32>
    %cst_8 = arith.constant 9.99999974E-6 : f32
    %16 = vector.broadcast %cst_8 : f32 to vector<16x1xf32>
    %17 = arith.addf %13, %16 : vector<16x1xf32>
    %18 = math.rsqrt %17 : vector<16x1xf32>
    %19 = vector.broadcast %18 : vector<16x1xf32> to vector<16x32xf32>
    %20 = arith.mulf %15, %19 : vector<16x32xf32>
    %21 = vector.broadcast %1 : vector<1x32xf32> to vector<16x32xf32>
    %22 = arith.mulf %20, %21 : vector<16x32xf32>
    %23 = vector.broadcast %2 : vector<1x32xf32> to vector<16x32xf32>
    %24 = arith.addf %22, %23 : vector<16x32xf32>
    %c0_9 = arith.constant 0 : index
    %c0_10 = arith.constant 0 : index
    %25 = vector.load %arg4[%c0_9, %c0_10] : memref<16x32xf32, #tpu.memory_space<vmem>>, vector<16x32xf32>
    tpu.vector_store %arg4[%c0_9, %c0_10], %24 {strides = array<i32>} : memref<16x32xf32, #tpu.memory_space<vmem>>, vector<16x32xf32>,
    return
  }
  func.func @transform_0(%arg0: i32) -> (i32, i32) {
    %c0_i32 = arith.constant 0 : i32
    %c0_i32_0 = arith.constant 0 : i32
    %c0_i32_1 = arith.constant 0 : i32
    return %c0_i32, %c0_i32_0 : i32, i32
  }
  func.func @transform_1(%arg0: i32) -> (i32, i32) {
    %c0_i32 = arith.constant 0 : i32
    %c0_i32_0 = arith.constant 0 : i32
    %c0_i32_1 = arith.constant 0 : i32
    return %c0_i32, %c0_i32_0 : i32, i32
  }
  func.func @transform_2(%arg0: i32) -> (i32, i32) {
    %c0_i32 = arith.constant 0 : i32
    %c0_i32_0 = arith.constant 0 : i32
    %c0_i32_1 = arith.constant 0 : i32
    return %c0_i32, %c0_i32_0 : i32, i32
  }
  func.func @transform_3(%arg0: i32) -> (i32, i32) {
    %c0_i32 = arith.constant 0 : i32
    %c0_i32_0 = arith.constant 0 : i32
    %c0_i32_1 = arith.constant 0 : i32
    return %c0_i32, %c0_i32_0 : i32, i32
  }
}

module attributes {stable_mosaic.version = 11 : i64} {
  func.func @_decoder_layer_kernel(%arg0: i32, %arg1: memref<16x32xf32, #tpu.memory_space<vmem>>, %arg2: memref<16x32xf32, #tpu.memory_space<vmem>>, %arg3: memref<32x96xf32, #tpu.memory_space<vmem>>, %arg4: memref<1x96xf32, #tpu.memory_space<vmem>>, %arg5: memref<32x32xf32, #tpu.memory_space<vmem>>, %arg6: memref<1x32xf32, #tpu.memory_space<vmem>>, %arg7: memref<1x32xf32, #tpu.memory_space<vmem>>, %arg8: memref<1x32xf32, #tpu.memory_space<vmem>>, %arg9: memref<32x32xf32, #tpu.memory_space<vmem>>, %arg10: memref<1x32xf32, #tpu.memory_space<vmem>>, %arg11: memref<32x64xf32, #tpu.memory_space<vmem>>, %arg12: memref<1x64xf32, #tpu.memory_space<vmem>>, %arg13: memref<32x32xf32, #tpu.memory_space<vmem>>, %arg14: memref<1x32xf32, #tpu.memory_space<vmem>>, %arg15: memref<1x32xf32, #tpu.memory_space<vmem>>, %arg16: memref<1x32xf32, #tpu.memory_space<vmem>>, %arg17: memref<32x2048xf32, #tpu.memory_space<vmem>>, %arg18: memref<1x2048xf32, #tpu.memory_space<vmem>>, %arg19: memref<2048x32xf32, #tpu.memory_space<vmem>>, %arg20: memref<1x32xf32, #tpu.memory_space<vmem>>, %arg21: memref<1x32xf32, #tpu.memory_space<vmem>>, %arg22: memref<1x32xf32, #tpu.memory_space<vmem>>, %arg23: memref<16x32xf32, #tpu.memory_space<vmem>>) attributes {dimension_semantics = [#tpu.dimension_semantics<arbitrary>], iteration_bounds = array<i64: 1>, scalar_prefetch = 0 : i64, scratch_operands = 0 : i64, tpu.core_type = #tpu.core_type<tc>, window_params = [{pipeline_mode = #tpu.pipeline_mode<synchronous>, transform_indices = @transform_0, window_bounds = array<i64: 16, 32>}, {pipeline_mode = #tpu.pipeline_mode<synchronous>, transform_indices = @transform_1, window_bounds = array<i64: 16, 32>}, {pipeline_mode = #tpu.pipeline_mode<synchronous>, transform_indices = @transform_2, window_bounds = array<i64: 32, 96>}, {pipeline_mode = #tpu.pipeline_mode<synchronous>, transform_indices = @transform_3, window_bounds = array<i64: 1, 96>}, {pipeline_mode = #tpu.pipeline_mode<synchronous>, transform_indices = @transform_4, window_bounds = array<i64: 32, 32>}, {pipeline_mode = #tpu.pipeline_mode<synchronous>, transform_indices = @transform_5, window_bounds = array<i64: 1, 32>}, {pipeline_mode = #tpu.pipeline_mode<synchronous>, transform_indices = @transform_6, window_bounds = array<i64: 1, 32>}, {pipeline_mode = #tpu.pipeline_mode<synchronous>, transform_indices = @transform_7, window_bounds = array<i64: 1, 32>}, {pipeline_mode = #tpu.pipeline_mode<synchronous>, transform_indices = @transform_8, window_bounds = array<i64: 32, 32>}, {pipeline_mode = #tpu.pipeline_mode<synchronous>, transform_indices = @transform_9, window_bounds = array<i64: 1, 32>}, {pipeline_mode = #tpu.pipeline_mode<synchronous>, transform_indices = @transform_10, window_bounds = array<i64: 32, 64>}, {pipeline_mode = #tpu.pipeline_mode<synchronous>, transform_indices = @transform_11, window_bounds = array<i64: 1, 64>}, {pipeline_mode = #tpu.pipeline_mode<synchronous>, transform_indices = @transform_12, window_bounds = array<i64: 32, 32>}, {pipeline_mode = #tpu.pipeline_mode<synchronous>, transform_indices = @transform_13, window_bounds = array<i64: 1, 32>}, {pipeline_mode = #tpu.pipeline_mode<synchronous>, transform_indices = @transform_14, window_bounds = array<i64: 1, 32>}, {pipeline_mode = #tpu.pipeline_mode<synchronous>, transform_indices = @transform_15, window_bounds = array<i64: 1, 32>}, {pipeline_mode = #tpu.pipeline_mode<synchronous>, transform_indices = @transform_16, window_bounds = array<i64: 32, 2048>}, {pipeline_mode = #tpu.pipeline_mode<synchronous>, transform_indices = @transform_17, window_bounds = array<i64: 1, 2048>}, {pipeline_mode = #tpu.pipeline_mode<synchronous>, transform_indices = @transform_18, window_bounds = array<i64: 2048, 32>}, {pipeline_mode = #tpu.pipeline_mode<synchronous>, transform_indices = @transform_19, window_bounds = array<i64: 1, 32>}, {pipeline_mode = #tpu.pipeline_mode<synchronous>, transform_indices = @transform_20, window_bounds = array<i64: 1, 32>}, {pipeline_mode = #tpu.pipeline_mode<synchronous>, transform_indices = @transform_21, window_bounds = array<i64: 1, 32>}, {pipeline_mode = #tpu.pipeline_mode<synchronous>, transform_indices = @transform_22, window_bounds = array<i64: 16, 32>}]} {
    %c0 = arith.constant 0 : index
    %c0_0 = arith.constant 0 : index
    %0 = vector.load %arg1[%c0, %c0_0] : memref<16x32xf32, #tpu.memory_space<vmem>>, vector<16x32xf32>
    %c0_1 = arith.constant 0 : index
    %c0_2 = arith.constant 0 : index
    %1 = vector.load %arg2[%c0_1, %c0_2] : memref<16x32xf32, #tpu.memory_space<vmem>>, vector<16x32xf32>
    %c0_3 = arith.constant 0 : index
    %c0_4 = arith.constant 0 : index
    %2 = vector.load %arg3[%c0_3, %c0_4] : memref<32x96xf32, #tpu.memory_space<vmem>>, vector<32x96xf32>
    %c0_5 = arith.constant 0 : index
    %c0_6 = arith.constant 0 : index
    %3 = vector.load %arg4[%c0_5, %c0_6] : memref<1x96xf32, #tpu.memory_space<vmem>>, vector<1x96xf32>
    %c0_7 = arith.constant 0 : index
    %c0_8 = arith.constant 0 : index
    %4 = vector.load %arg5[%c0_7, %c0_8] : memref<32x32xf32, #tpu.memory_space<vmem>>, vector<32x32xf32>
    %c0_9 = arith.constant 0 : index
    %c0_10 = arith.constant 0 : index
    %5 = vector.load %arg6[%c0_9, %c0_10] : memref<1x32xf32, #tpu.memory_space<vmem>>, vector<1x32xf32>
    %cst = arith.constant dense<0.000000e+00> : vector<16x96xf32>
    %6 = tpu.matmul %0, %2, %cst {dimension_numbers = #tpu.dot_dimension_numbers<[1], [0], [0], [1], [0, 0, 1, 1], [], []>} : vector<16x32xf32>, vector<32x96xf32>, vector<16x96xf32> -> vector<16x96xf32>
    %7 = vector.broadcast %3 : vector<1x96xf32> to vector<16x96xf32>
    %8 = arith.addf %6, %7 : vector<16x96xf32>
    %9 = vector.extract_strided_slice %8 {offsets = [0, 0], sizes = [16, 32], strides = [1, 1]} : vector<16x96xf32> to vector<16x32xf32>
    %10 = vector.extract_strided_slice %8 {offsets = [0, 32], sizes = [16, 32], strides = [1, 1]} : vector<16x96xf32> to vector<16x32xf32>
    %11 = vector.extract_strided_slice %8 {offsets = [0, 64], sizes = [16, 32], strides = [1, 1]} : vector<16x96xf32> to vector<16x32xf32>
    %12 = vector.extract_strided_slice %9 {offsets = [0, 0], sizes = [8, 32], strides = [1, 1]} : vector<16x32xf32> to vector<8x32xf32>
    %13 = vector.extract_strided_slice %10 {offsets = [0, 0], sizes = [8, 32], strides = [1, 1]} : vector<16x32xf32> to vector<8x32xf32>
    %14 = vector.extract_strided_slice %11 {offsets = [0, 0], sizes = [8, 32], strides = [1, 1]} : vector<16x32xf32> to vector<8x32xf32>
    %15 = vector.extract_strided_slice %12 {offsets = [0, 0], sizes = [8, 8], strides = [1, 1]} : vector<8x32xf32> to vector<8x8xf32>
    %16 = vector.extract_strided_slice %13 {offsets = [0, 0], sizes = [8, 8], strides = [1, 1]} : vector<8x32xf32> to vector<8x8xf32>
    %cst_11 = arith.constant dense<0.000000e+00> : vector<8x8xf32>
    %17 = tpu.matmul %15, %16, %cst_11 {dimension_numbers = #tpu.dot_dimension_numbers<[1], [1], [0], [0], [0, 0, 1, 0], [], []>} : vector<8x8xf32>, vector<8x8xf32>, vector<8x8xf32> -> vector<8x8xf32>
    %cst_12 = arith.constant 0.353553385 : f32
    %18 = vector.broadcast %cst_12 : f32 to vector<8x8xf32>
    %19 = arith.mulf %17, %18 : vector<8x8xf32>
    %cst_13 = arith.constant dense<0xFF800000> : vector<8xf32>
    %20 = vector.multi_reduction <maximumf>, %19, %cst_13 [1] : vector<8x8xf32> to vector<8xf32>
    %21 = vector.shape_cast %20 : vector<8xf32> to vector<8x1xf32>
    %22 = vector.broadcast %21 : vector<8x1xf32> to vector<8x8xf32>
    %23 = arith.subf %19, %22 : vector<8x8xf32>
    %24 = math.exp %23 : vector<8x8xf32>
    %cst_14 = arith.constant dense<0.000000e+00> : vector<8xf32>
    %25 = vector.multi_reduction <add>, %24, %cst_14 [1] : vector<8x8xf32> to vector<8xf32>
    %26 = vector.shape_cast %25 : vector<8xf32> to vector<8x1xf32>
    %27 = tpu.reciprocal %26 {approx = true} : vector<8x1xf32> -> vector<8x1xf32>
    %28 = vector.broadcast %27 : vector<8x1xf32> to vector<8x8xf32>
    %29 = arith.mulf %24, %28 : vector<8x8xf32>
    %30 = vector.extract_strided_slice %14 {offsets = [0, 0], sizes = [8, 8], strides = [1, 1]} : vector<8x32xf32> to vector<8x8xf32>
    %cst_15 = arith.constant dense<0.000000e+00> : vector<8x8xf32>
    %31 = tpu.matmul %29, %30, %cst_15 {dimension_numbers = #tpu.dot_dimension_numbers<[1], [0], [0], [1], [0, 0, 1, 1], [], []>} : vector<8x8xf32>, vector<8x8xf32>, vector<8x8xf32> -> vector<8x8xf32>
    %32 = vector.extract_strided_slice %12 {offsets = [0, 8], sizes = [8, 8], strides = [1, 1]} : vector<8x32xf32> to vector<8x8xf32>
    %33 = vector.extract_strided_slice %13 {offsets = [0, 8], sizes = [8, 8], strides = [1, 1]} : vector<8x32xf32> to vector<8x8xf32>
    %cst_16 = arith.constant dense<0.000000e+00> : vector<8x8xf32>
    %34 = tpu.matmul %32, %33, %cst_16 {dimension_numbers = #tpu.dot_dimension_numbers<[1], [1], [0], [0], [0, 0, 1, 0], [], []>} : vector<8x8xf32>, vector<8x8xf32>, vector<8x8xf32> -> vector<8x8xf32>
    %cst_17 = arith.constant 0.353553385 : f32
    %35 = vector.broadcast %cst_17 : f32 to vector<8x8xf32>
    %36 = arith.mulf %34, %35 : vector<8x8xf32>
    %cst_18 = arith.constant dense<0xFF800000> : vector<8xf32>
    %37 = vector.multi_reduction <maximumf>, %36, %cst_18 [1] : vector<8x8xf32> to vector<8xf32>
    %38 = vector.shape_cast %37 : vector<8xf32> to vector<8x1xf32>
    %39 = vector.broadcast %38 : vector<8x1xf32> to vector<8x8xf32>
    %40 = arith.subf %36, %39 : vector<8x8xf32>
    %41 = math.exp %40 : vector<8x8xf32>
    %cst_19 = arith.constant dense<0.000000e+00> : vector<8xf32>
    %42 = vector.multi_reduction <add>, %41, %cst_19 [1] : vector<8x8xf32> to vector<8xf32>
    %43 = vector.shape_cast %42 : vector<8xf32> to vector<8x1xf32>
    %44 = tpu.reciprocal %43 {approx = true} : vector<8x1xf32> -> vector<8x1xf32>
    %45 = vector.broadcast %44 : vector<8x1xf32> to vector<8x8xf32>
    %46 = arith.mulf %41, %45 : vector<8x8xf32>
    %47 = vector.extract_strided_slice %14 {offsets = [0, 8], sizes = [8, 8], strides = [1, 1]} : vector<8x32xf32> to vector<8x8xf32>
    %cst_20 = arith.constant dense<0.000000e+00> : vector<8x8xf32>
    %48 = tpu.matmul %46, %47, %cst_20 {dimension_numbers = #tpu.dot_dimension_numbers<[1], [0], [0], [1], [0, 0, 1, 1], [], []>} : vector<8x8xf32>, vector<8x8xf32>, vector<8x8xf32> -> vector<8x8xf32>
    %49 = vector.extract_strided_slice %12 {offsets = [0, 16], sizes = [8, 8], strides = [1, 1]} : vector<8x32xf32> to vector<8x8xf32>
    %50 = vector.extract_strided_slice %13 {offsets = [0, 16], sizes = [8, 8], strides = [1, 1]} : vector<8x32xf32> to vector<8x8xf32>
    %cst_21 = arith.constant dense<0.000000e+00> : vector<8x8xf32>
    %51 = tpu.matmul %49, %50, %cst_21 {dimension_numbers = #tpu.dot_dimension_numbers<[1], [1], [0], [0], [0, 0, 1, 0], [], []>} : vector<8x8xf32>, vector<8x8xf32>, vector<8x8xf32> -> vector<8x8xf32>
    %cst_22 = arith.constant 0.353553385 : f32
    %52 = vector.broadcast %cst_22 : f32 to vector<8x8xf32>
    %53 = arith.mulf %51, %52 : vector<8x8xf32>
    %cst_23 = arith.constant dense<0xFF800000> : vector<8xf32>
    %54 = vector.multi_reduction <maximumf>, %53, %cst_23 [1] : vector<8x8xf32> to vector<8xf32>
    %55 = vector.shape_cast %54 : vector<8xf32> to vector<8x1xf32>
    %56 = vector.broadcast %55 : vector<8x1xf32> to vector<8x8xf32>
    %57 = arith.subf %53, %56 : vector<8x8xf32>
    %58 = math.exp %57 : vector<8x8xf32>
    %cst_24 = arith.constant dense<0.000000e+00> : vector<8xf32>
    %59 = vector.multi_reduction <add>, %58, %cst_24 [1] : vector<8x8xf32> to vector<8xf32>
    %60 = vector.shape_cast %59 : vector<8xf32> to vector<8x1xf32>
    %61 = tpu.reciprocal %60 {approx = true} : vector<8x1xf32> -> vector<8x1xf32>
    %62 = vector.broadcast %61 : vector<8x1xf32> to vector<8x8xf32>
    %63 = arith.mulf %58, %62 : vector<8x8xf32>
    %64 = vector.extract_strided_slice %14 {offsets = [0, 16], sizes = [8, 8], strides = [1, 1]} : vector<8x32xf32> to vector<8x8xf32>
    %cst_25 = arith.constant dense<0.000000e+00> : vector<8x8xf32>
    %65 = tpu.matmul %63, %64, %cst_25 {dimension_numbers = #tpu.dot_dimension_numbers<[1], [0], [0], [1], [0, 0, 1, 1], [], []>} : vector<8x8xf32>, vector<8x8xf32>, vector<8x8xf32> -> vector<8x8xf32>
    %66 = vector.extract_strided_slice %12 {offsets = [0, 24], sizes = [8, 8], strides = [1, 1]} : vector<8x32xf32> to vector<8x8xf32>
    %67 = vector.extract_strided_slice %13 {offsets = [0, 24], sizes = [8, 8], strides = [1, 1]} : vector<8x32xf32> to vector<8x8xf32>
    %cst_26 = arith.constant dense<0.000000e+00> : vector<8x8xf32>
    %68 = tpu.matmul %66, %67, %cst_26 {dimension_numbers = #tpu.dot_dimension_numbers<[1], [1], [0], [0], [0, 0, 1, 0], [], []>} : vector<8x8xf32>, vector<8x8xf32>, vector<8x8xf32> -> vector<8x8xf32>
    %cst_27 = arith.constant 0.353553385 : f32
    %69 = vector.broadcast %cst_27 : f32 to vector<8x8xf32>
    %70 = arith.mulf %68, %69 : vector<8x8xf32>
    %cst_28 = arith.constant dense<0xFF800000> : vector<8xf32>
    %71 = vector.multi_reduction <maximumf>, %70, %cst_28 [1] : vector<8x8xf32> to vector<8xf32>
    %72 = vector.shape_cast %71 : vector<8xf32> to vector<8x1xf32>
    %73 = vector.broadcast %72 : vector<8x1xf32> to vector<8x8xf32>
    %74 = arith.subf %70, %73 : vector<8x8xf32>
    %75 = math.exp %74 : vector<8x8xf32>
    %cst_29 = arith.constant dense<0.000000e+00> : vector<8xf32>
    %76 = vector.multi_reduction <add>, %75, %cst_29 [1] : vector<8x8xf32> to vector<8xf32>
    %77 = vector.shape_cast %76 : vector<8xf32> to vector<8x1xf32>
    %78 = tpu.reciprocal %77 {approx = true} : vector<8x1xf32> -> vector<8x1xf32>
    %79 = vector.broadcast %78 : vector<8x1xf32> to vector<8x8xf32>
    %80 = arith.mulf %75, %79 : vector<8x8xf32>
    %81 = vector.extract_strided_slice %14 {offsets = [0, 24], sizes = [8, 8], strides = [1, 1]} : vector<8x32xf32> to vector<8x8xf32>
    %cst_30 = arith.constant dense<0.000000e+00> : vector<8x8xf32>
    %82 = tpu.matmul %80, %81, %cst_30 {dimension_numbers = #tpu.dot_dimension_numbers<[1], [0], [0], [1], [0, 0, 1, 1], [], []>} : vector<8x8xf32>, vector<8x8xf32>, vector<8x8xf32> -> vector<8x8xf32>
    %83 = tpu.concatenate %31, %48, %65, %82 in 1 : vector<8x8xf32>, vector<8x8xf32>, vector<8x8xf32>, vector<8x8xf32> -> vector<8x32xf32>
    %84 = vector.extract_strided_slice %9 {offsets = [8, 0], sizes = [8, 32], strides = [1, 1]} : vector<16x32xf32> to vector<8x32xf32>
    %85 = vector.extract_strided_slice %10 {offsets = [8, 0], sizes = [8, 32], strides = [1, 1]} : vector<16x32xf32> to vector<8x32xf32>
    %86 = vector.extract_strided_slice %11 {offsets = [8, 0], sizes = [8, 32], strides = [1, 1]} : vector<16x32xf32> to vector<8x32xf32>
    %87 = vector.extract_strided_slice %84 {offsets = [0, 0], sizes = [8, 8], strides = [1, 1]} : vector<8x32xf32> to vector<8x8xf32>
    %88 = vector.extract_strided_slice %85 {offsets = [0, 0], sizes = [8, 8], strides = [1, 1]} : vector<8x32xf32> to vector<8x8xf32>
    %cst_31 = arith.constant dense<0.000000e+00> : vector<8x8xf32>
    %89 = tpu.matmul %87, %88, %cst_31 {dimension_numbers = #tpu.dot_dimension_numbers<[1], [1], [0], [0], [0, 0, 1, 0], [], []>} : vector<8x8xf32>, vector<8x8xf32>, vector<8x8xf32> -> vector<8x8xf32>
    %cst_32 = arith.constant 0.353553385 : f32
    %90 = vector.broadcast %cst_32 : f32 to vector<8x8xf32>
    %91 = arith.mulf %89, %90 : vector<8x8xf32>
    %cst_33 = arith.constant dense<0xFF800000> : vector<8xf32>
    %92 = vector.multi_reduction <maximumf>, %91, %cst_33 [1] : vector<8x8xf32> to vector<8xf32>
    %93 = vector.shape_cast %92 : vector<8xf32> to vector<8x1xf32>
    %94 = vector.broadcast %93 : vector<8x1xf32> to vector<8x8xf32>
    %95 = arith.subf %91, %94 : vector<8x8xf32>
    %96 = math.exp %95 : vector<8x8xf32>
    %cst_34 = arith.constant dense<0.000000e+00> : vector<8xf32>
    %97 = vector.multi_reduction <add>, %96, %cst_34 [1] : vector<8x8xf32> to vector<8xf32>
    %98 = vector.shape_cast %97 : vector<8xf32> to vector<8x1xf32>
    %99 = tpu.reciprocal %98 {approx = true} : vector<8x1xf32> -> vector<8x1xf32>
    %100 = vector.broadcast %99 : vector<8x1xf32> to vector<8x8xf32>
    %101 = arith.mulf %96, %100 : vector<8x8xf32>
    %102 = vector.extract_strided_slice %86 {offsets = [0, 0], sizes = [8, 8], strides = [1, 1]} : vector<8x32xf32> to vector<8x8xf32>
    %cst_35 = arith.constant dense<0.000000e+00> : vector<8x8xf32>
    %103 = tpu.matmul %101, %102, %cst_35 {dimension_numbers = #tpu.dot_dimension_numbers<[1], [0], [0], [1], [0, 0, 1, 1], [], []>} : vector<8x8xf32>, vector<8x8xf32>, vector<8x8xf32> -> vector<8x8xf32>
    %104 = vector.extract_strided_slice %84 {offsets = [0, 8], sizes = [8, 8], strides = [1, 1]} : vector<8x32xf32> to vector<8x8xf32>
    %105 = vector.extract_strided_slice %85 {offsets = [0, 8], sizes = [8, 8], strides = [1, 1]} : vector<8x32xf32> to vector<8x8xf32>
    %cst_36 = arith.constant dense<0.000000e+00> : vector<8x8xf32>
    %106 = tpu.matmul %104, %105, %cst_36 {dimension_numbers = #tpu.dot_dimension_numbers<[1], [1], [0], [0], [0, 0, 1, 0], [], []>} : vector<8x8xf32>, vector<8x8xf32>, vector<8x8xf32> -> vector<8x8xf32>
    %cst_37 = arith.constant 0.353553385 : f32
    %107 = vector.broadcast %cst_37 : f32 to vector<8x8xf32>
    %108 = arith.mulf %106, %107 : vector<8x8xf32>
    %cst_38 = arith.constant dense<0xFF800000> : vector<8xf32>
    %109 = vector.multi_reduction <maximumf>, %108, %cst_38 [1] : vector<8x8xf32> to vector<8xf32>
    %110 = vector.shape_cast %109 : vector<8xf32> to vector<8x1xf32>
    %111 = vector.broadcast %110 : vector<8x1xf32> to vector<8x8xf32>
    %112 = arith.subf %108, %111 : vector<8x8xf32>
    %113 = math.exp %112 : vector<8x8xf32>
    %cst_39 = arith.constant dense<0.000000e+00> : vector<8xf32>
    %114 = vector.multi_reduction <add>, %113, %cst_39 [1] : vector<8x8xf32> to vector<8xf32>
    %115 = vector.shape_cast %114 : vector<8xf32> to vector<8x1xf32>
    %116 = tpu.reciprocal %115 {approx = true} : vector<8x1xf32> -> vector<8x1xf32>
    %117 = vector.broadcast %116 : vector<8x1xf32> to vector<8x8xf32>
    %118 = arith.mulf %113, %117 : vector<8x8xf32>
    %119 = vector.extract_strided_slice %86 {offsets = [0, 8], sizes = [8, 8], strides = [1, 1]} : vector<8x32xf32> to vector<8x8xf32>
    %cst_40 = arith.constant dense<0.000000e+00> : vector<8x8xf32>
    %120 = tpu.matmul %118, %119, %cst_40 {dimension_numbers = #tpu.dot_dimension_numbers<[1], [0], [0], [1], [0, 0, 1, 1], [], []>} : vector<8x8xf32>, vector<8x8xf32>, vector<8x8xf32> -> vector<8x8xf32>
    %121 = vector.extract_strided_slice %84 {offsets = [0, 16], sizes = [8, 8], strides = [1, 1]} : vector<8x32xf32> to vector<8x8xf32>
    %122 = vector.extract_strided_slice %85 {offsets = [0, 16], sizes = [8, 8], strides = [1, 1]} : vector<8x32xf32> to vector<8x8xf32>
    %cst_41 = arith.constant dense<0.000000e+00> : vector<8x8xf32>
    %123 = tpu.matmul %121, %122, %cst_41 {dimension_numbers = #tpu.dot_dimension_numbers<[1], [1], [0], [0], [0, 0, 1, 0], [], []>} : vector<8x8xf32>, vector<8x8xf32>, vector<8x8xf32> -> vector<8x8xf32>
    %cst_42 = arith.constant 0.353553385 : f32
    %124 = vector.broadcast %cst_42 : f32 to vector<8x8xf32>
    %125 = arith.mulf %123, %124 : vector<8x8xf32>
    %cst_43 = arith.constant dense<0xFF800000> : vector<8xf32>
    %126 = vector.multi_reduction <maximumf>, %125, %cst_43 [1] : vector<8x8xf32> to vector<8xf32>
    %127 = vector.shape_cast %126 : vector<8xf32> to vector<8x1xf32>
    %128 = vector.broadcast %127 : vector<8x1xf32> to vector<8x8xf32>
    %129 = arith.subf %125, %128 : vector<8x8xf32>
    %130 = math.exp %129 : vector<8x8xf32>
    %cst_44 = arith.constant dense<0.000000e+00> : vector<8xf32>
    %131 = vector.multi_reduction <add>, %130, %cst_44 [1] : vector<8x8xf32> to vector<8xf32>
    %132 = vector.shape_cast %131 : vector<8xf32> to vector<8x1xf32>
    %133 = tpu.reciprocal %132 {approx = true} : vector<8x1xf32> -> vector<8x1xf32>
    %134 = vector.broadcast %133 : vector<8x1xf32> to vector<8x8xf32>
    %135 = arith.mulf %130, %134 : vector<8x8xf32>
    %136 = vector.extract_strided_slice %86 {offsets = [0, 16], sizes = [8, 8], strides = [1, 1]} : vector<8x32xf32> to vector<8x8xf32>
    %cst_45 = arith.constant dense<0.000000e+00> : vector<8x8xf32>
    %137 = tpu.matmul %135, %136, %cst_45 {dimension_numbers = #tpu.dot_dimension_numbers<[1], [0], [0], [1], [0, 0, 1, 1], [], []>} : vector<8x8xf32>, vector<8x8xf32>, vector<8x8xf32> -> vector<8x8xf32>
    %138 = vector.extract_strided_slice %84 {offsets = [0, 24], sizes = [8, 8], strides = [1, 1]} : vector<8x32xf32> to vector<8x8xf32>
    %139 = vector.extract_strided_slice %85 {offsets = [0, 24], sizes = [8, 8], strides = [1, 1]} : vector<8x32xf32> to vector<8x8xf32>
    %cst_46 = arith.constant dense<0.000000e+00> : vector<8x8xf32>
    %140 = tpu.matmul %138, %139, %cst_46 {dimension_numbers = #tpu.dot_dimension_numbers<[1], [1], [0], [0], [0, 0, 1, 0], [], []>} : vector<8x8xf32>, vector<8x8xf32>, vector<8x8xf32> -> vector<8x8xf32>
    %cst_47 = arith.constant 0.353553385 : f32
    %141 = vector.broadcast %cst_47 : f32 to vector<8x8xf32>
    %142 = arith.mulf %140, %141 : vector<8x8xf32>
    %cst_48 = arith.constant dense<0xFF800000> : vector<8xf32>
    %143 = vector.multi_reduction <maximumf>, %142, %cst_48 [1] : vector<8x8xf32> to vector<8xf32>
    %144 = vector.shape_cast %143 : vector<8xf32> to vector<8x1xf32>
    %145 = vector.broadcast %144 : vector<8x1xf32> to vector<8x8xf32>
    %146 = arith.subf %142, %145 : vector<8x8xf32>
    %147 = math.exp %146 : vector<8x8xf32>
    %cst_49 = arith.constant dense<0.000000e+00> : vector<8xf32>
    %148 = vector.multi_reduction <add>, %147, %cst_49 [1] : vector<8x8xf32> to vector<8xf32>
    %149 = vector.shape_cast %148 : vector<8xf32> to vector<8x1xf32>
    %150 = tpu.reciprocal %149 {approx = true} : vector<8x1xf32> -> vector<8x1xf32>
    %151 = vector.broadcast %150 : vector<8x1xf32> to vector<8x8xf32>
    %152 = arith.mulf %147, %151 : vector<8x8xf32>
    %153 = vector.extract_strided_slice %86 {offsets = [0, 24], sizes = [8, 8], strides = [1, 1]} : vector<8x32xf32> to vector<8x8xf32>
    %cst_50 = arith.constant dense<0.000000e+00> : vector<8x8xf32>
    %154 = tpu.matmul %152, %153, %cst_50 {dimension_numbers = #tpu.dot_dimension_numbers<[1], [0], [0], [1], [0, 0, 1, 1], [], []>} : vector<8x8xf32>, vector<8x8xf32>, vector<8x8xf32> -> vector<8x8xf32>
    %155 = tpu.concatenate %103, %120, %137, %154 in 1 : vector<8x8xf32>, vector<8x8xf32>, vector<8x8xf32>, vector<8x8xf32> -> vector<8x32xf32>
    %156 = tpu.concatenate %83, %155 in 0 : vector<8x32xf32>, vector<8x32xf32> -> vector<16x32xf32>
    %cst_51 = arith.constant dense<0.000000e+00> : vector<16x32xf32>
    %157 = tpu.matmul %156, %4, %cst_51 {dimension_numbers = #tpu.dot_dimension_numbers<[1], [0], [0], [1], [0, 0, 1, 1], [], []>} : vector<16x32xf32>, vector<32x32xf32>, vector<16x32xf32> -> vector<16x32xf32>
    %158 = vector.broadcast %5 : vector<1x32xf32> to vector<16x32xf32>
    %159 = arith.addf %157, %158 : vector<16x32xf32>
    %160 = arith.addf %0, %159 : vector<16x32xf32>
    %c0_52 = arith.constant 0 : index
    %c0_53 = arith.constant 0 : index
    %161 = vector.load %arg7[%c0_52, %c0_53] : memref<1x32xf32, #tpu.memory_space<vmem>>, vector<1x32xf32>
    %c0_54 = arith.constant 0 : index
    %c0_55 = arith.constant 0 : index
    %162 = vector.load %arg8[%c0_54, %c0_55] : memref<1x32xf32, #tpu.memory_space<vmem>>, vector<1x32xf32>
    %cst_56 = arith.constant dense<0.000000e+00> : vector<16xf32>
    %163 = vector.multi_reduction <add>, %160, %cst_56 [1] : vector<16x32xf32> to vector<16xf32>
    %164 = vector.shape_cast %163 : vector<16xf32> to vector<16x1xf32>
    %cst_57 = arith.constant 3.200000e+01 : f32
    %165 = vector.broadcast %cst_57 : f32 to vector<16x1xf32>
    %166 = arith.divf %164, %165 : vector<16x1xf32>
    %167 = vector.broadcast %166 : vector<16x1xf32> to vector<16x32xf32>
    %168 = arith.subf %160, %167 : vector<16x32xf32>
    %169 = arith.mulf %168, %168 : vector<16x32xf32>
    %cst_58 = arith.constant dense<0.000000e+00> : vector<16xf32>
    %170 = vector.multi_reduction <add>, %169, %cst_58 [1] : vector<16x32xf32> to vector<16xf32>
    %171 = vector.shape_cast %170 : vector<16xf32> to vector<16x1xf32>
    %cst_59 = arith.constant 3.200000e+01 : f32
    %172 = vector.broadcast %cst_59 : f32 to vector<16x1xf32>
    %173 = arith.divf %171, %172 : vector<16x1xf32>
    %174 = vector.broadcast %166 : vector<16x1xf32> to vector<16x32xf32>
    %175 = arith.subf %160, %174 : vector<16x32xf32>
    %cst_60 = arith.constant 9.99999974E-6 : f32
    %176 = vector.broadcast %cst_60 : f32 to vector<16x1xf32>
    %177 = arith.addf %173, %176 : vector<16x1xf32>
    %178 = math.rsqrt %177 : vector<16x1xf32>
    %179 = vector.broadcast %178 : vector<16x1xf32> to vector<16x32xf32>
    %180 = arith.mulf %175, %179 : vector<16x32xf32>
    %181 = vector.broadcast %161 : vector<1x32xf32> to vector<16x32xf32>
    %182 = arith.mulf %180, %181 : vector<16x32xf32>
    %183 = vector.broadcast %162 : vector<1x32xf32> to vector<16x32xf32>
    %184 = arith.addf %182, %183 : vector<16x32xf32>
    %c0_61 = arith.constant 0 : index
    %c0_62 = arith.constant 0 : index
    %185 = vector.load %arg9[%c0_61, %c0_62] : memref<32x32xf32, #tpu.memory_space<vmem>>, vector<32x32xf32>
    %c0_63 = arith.constant 0 : index
    %c0_64 = arith.constant 0 : index
    %186 = vector.load %arg10[%c0_63, %c0_64] : memref<1x32xf32, #tpu.memory_space<vmem>>, vector<1x32xf32>
    %c0_65 = arith.constant 0 : index
    %c0_66 = arith.constant 0 : index
    %187 = vector.load %arg11[%c0_65, %c0_66] : memref<32x64xf32, #tpu.memory_space<vmem>>, vector<32x64xf32>
    %c0_67 = arith.constant 0 : index
    %c0_68 = arith.constant 0 : index
    %188 = vector.load %arg12[%c0_67, %c0_68] : memref<1x64xf32, #tpu.memory_space<vmem>>, vector<1x64xf32>
    %c0_69 = arith.constant 0 : index
    %c0_70 = arith.constant 0 : index
    %189 = vector.load %arg13[%c0_69, %c0_70] : memref<32x32xf32, #tpu.memory_space<vmem>>, vector<32x32xf32>
    %c0_71 = arith.constant 0 : index
    %c0_72 = arith.constant 0 : index
    %190 = vector.load %arg14[%c0_71, %c0_72] : memref<1x32xf32, #tpu.memory_space<vmem>>, vector<1x32xf32>
    %cst_73 = arith.constant dense<0.000000e+00> : vector<16x32xf32>
    %191 = tpu.matmul %184, %185, %cst_73 {dimension_numbers = #tpu.dot_dimension_numbers<[1], [0], [0], [1], [0, 0, 1, 1], [], []>} : vector<16x32xf32>, vector<32x32xf32>, vector<16x32xf32> -> vector<16x32xf32>
    %192 = vector.broadcast %186 : vector<1x32xf32> to vector<16x32xf32>
    %193 = arith.addf %191, %192 : vector<16x32xf32>
    %cst_74 = arith.constant dense<0.000000e+00> : vector<16x64xf32>
    %194 = tpu.matmul %1, %187, %cst_74 {dimension_numbers = #tpu.dot_dimension_numbers<[1], [0], [0], [1], [0, 0, 1, 1], [], []>} : vector<16x32xf32>, vector<32x64xf32>, vector<16x64xf32> -> vector<16x64xf32>
    %195 = vector.broadcast %188 : vector<1x64xf32> to vector<16x64xf32>
    %196 = arith.addf %194, %195 : vector<16x64xf32>
    %197 = vector.extract_strided_slice %196 {offsets = [0, 0], sizes = [16, 32], strides = [1, 1]} : vector<16x64xf32> to vector<16x32xf32>
    %198 = vector.extract_strided_slice %196 {offsets = [0, 32], sizes = [16, 32], strides = [1, 1]} : vector<16x64xf32> to vector<16x32xf32>
    %199 = vector.extract_strided_slice %193 {offsets = [0, 0], sizes = [8, 32], strides = [1, 1]} : vector<16x32xf32> to vector<8x32xf32>
    %200 = vector.extract_strided_slice %197 {offsets = [0, 0], sizes = [8, 32], strides = [1, 1]} : vector<16x32xf32> to vector<8x32xf32>
    %201 = vector.extract_strided_slice %198 {offsets = [0, 0], sizes = [8, 32], strides = [1, 1]} : vector<16x32xf32> to vector<8x32xf32>
    %202 = vector.extract_strided_slice %199 {offsets = [0, 0], sizes = [8, 8], strides = [1, 1]} : vector<8x32xf32> to vector<8x8xf32>
    %203 = vector.extract_strided_slice %200 {offsets = [0, 0], sizes = [8, 8], strides = [1, 1]} : vector<8x32xf32> to vector<8x8xf32>
    %cst_75 = arith.constant dense<0.000000e+00> : vector<8x8xf32>
    %204 = tpu.matmul %202, %203, %cst_75 {dimension_numbers = #tpu.dot_dimension_numbers<[1], [1], [0], [0], [0, 0, 1, 0], [], []>} : vector<8x8xf32>, vector<8x8xf32>, vector<8x8xf32> -> vector<8x8xf32>
    %cst_76 = arith.constant 0.353553385 : f32
    %205 = vector.broadcast %cst_76 : f32 to vector<8x8xf32>
    %206 = arith.mulf %204, %205 : vector<8x8xf32>
    %cst_77 = arith.constant dense<0xFF800000> : vector<8xf32>
    %207 = vector.multi_reduction <maximumf>, %206, %cst_77 [1] : vector<8x8xf32> to vector<8xf32>
    %208 = vector.shape_cast %207 : vector<8xf32> to vector<8x1xf32>
    %209 = vector.broadcast %208 : vector<8x1xf32> to vector<8x8xf32>
    %210 = arith.subf %206, %209 : vector<8x8xf32>
    %211 = math.exp %210 : vector<8x8xf32>
    %cst_78 = arith.constant dense<0.000000e+00> : vector<8xf32>
    %212 = vector.multi_reduction <add>, %211, %cst_78 [1] : vector<8x8xf32> to vector<8xf32>
    %213 = vector.shape_cast %212 : vector<8xf32> to vector<8x1xf32>
    %214 = tpu.reciprocal %213 {approx = true} : vector<8x1xf32> -> vector<8x1xf32>
    %215 = vector.broadcast %214 : vector<8x1xf32> to vector<8x8xf32>
    %216 = arith.mulf %211, %215 : vector<8x8xf32>
    %217 = vector.extract_strided_slice %201 {offsets = [0, 0], sizes = [8, 8], strides = [1, 1]} : vector<8x32xf32> to vector<8x8xf32>
    %cst_79 = arith.constant dense<0.000000e+00> : vector<8x8xf32>
    %218 = tpu.matmul %216, %217, %cst_79 {dimension_numbers = #tpu.dot_dimension_numbers<[1], [0], [0], [1], [0, 0, 1, 1], [], []>} : vector<8x8xf32>, vector<8x8xf32>, vector<8x8xf32> -> vector<8x8xf32>
    %219 = vector.extract_strided_slice %199 {offsets = [0, 8], sizes = [8, 8], strides = [1, 1]} : vector<8x32xf32> to vector<8x8xf32>
    %220 = vector.extract_strided_slice %200 {offsets = [0, 8], sizes = [8, 8], strides = [1, 1]} : vector<8x32xf32> to vector<8x8xf32>
    %cst_80 = arith.constant dense<0.000000e+00> : vector<8x8xf32>
    %221 = tpu.matmul %219, %220, %cst_80 {dimension_numbers = #tpu.dot_dimension_numbers<[1], [1], [0], [0], [0, 0, 1, 0], [], []>} : vector<8x8xf32>, vector<8x8xf32>, vector<8x8xf32> -> vector<8x8xf32>
    %cst_81 = arith.constant 0.353553385 : f32
    %222 = vector.broadcast %cst_81 : f32 to vector<8x8xf32>
    %223 = arith.mulf %221, %222 : vector<8x8xf32>
    %cst_82 = arith.constant dense<0xFF800000> : vector<8xf32>
    %224 = vector.multi_reduction <maximumf>, %223, %cst_82 [1] : vector<8x8xf32> to vector<8xf32>
    %225 = vector.shape_cast %224 : vector<8xf32> to vector<8x1xf32>
    %226 = vector.broadcast %225 : vector<8x1xf32> to vector<8x8xf32>
    %227 = arith.subf %223, %226 : vector<8x8xf32>
    %228 = math.exp %227 : vector<8x8xf32>
    %cst_83 = arith.constant dense<0.000000e+00> : vector<8xf32>
    %229 = vector.multi_reduction <add>, %228, %cst_83 [1] : vector<8x8xf32> to vector<8xf32>
    %230 = vector.shape_cast %229 : vector<8xf32> to vector<8x1xf32>
    %231 = tpu.reciprocal %230 {approx = true} : vector<8x1xf32> -> vector<8x1xf32>
    %232 = vector.broadcast %231 : vector<8x1xf32> to vector<8x8xf32>
    %233 = arith.mulf %228, %232 : vector<8x8xf32>
    %234 = vector.extract_strided_slice %201 {offsets = [0, 8], sizes = [8, 8], strides = [1, 1]} : vector<8x32xf32> to vector<8x8xf32>
    %cst_84 = arith.constant dense<0.000000e+00> : vector<8x8xf32>
    %235 = tpu.matmul %233, %234, %cst_84 {dimension_numbers = #tpu.dot_dimension_numbers<[1], [0], [0], [1], [0, 0, 1, 1], [], []>} : vector<8x8xf32>, vector<8x8xf32>, vector<8x8xf32> -> vector<8x8xf32>
    %236 = vector.extract_strided_slice %199 {offsets = [0, 16], sizes = [8, 8], strides = [1, 1]} : vector<8x32xf32> to vector<8x8xf32>
    %237 = vector.extract_strided_slice %200 {offsets = [0, 16], sizes = [8, 8], strides = [1, 1]} : vector<8x32xf32> to vector<8x8xf32>
    %cst_85 = arith.constant dense<0.000000e+00> : vector<8x8xf32>
    %238 = tpu.matmul %236, %237, %cst_85 {dimension_numbers = #tpu.dot_dimension_numbers<[1], [1], [0], [0], [0, 0, 1, 0], [], []>} : vector<8x8xf32>, vector<8x8xf32>, vector<8x8xf32> -> vector<8x8xf32>
    %cst_86 = arith.constant 0.353553385 : f32
    %239 = vector.broadcast %cst_86 : f32 to vector<8x8xf32>
    %240 = arith.mulf %238, %239 : vector<8x8xf32>
    %cst_87 = arith.constant dense<0xFF800000> : vector<8xf32>
    %241 = vector.multi_reduction <maximumf>, %240, %cst_87 [1] : vector<8x8xf32> to vector<8xf32>
    %242 = vector.shape_cast %241 : vector<8xf32> to vector<8x1xf32>
    %243 = vector.broadcast %242 : vector<8x1xf32> to vector<8x8xf32>
    %244 = arith.subf %240, %243 : vector<8x8xf32>
    %245 = math.exp %244 : vector<8x8xf32>
    %cst_88 = arith.constant dense<0.000000e+00> : vector<8xf32>
    %246 = vector.multi_reduction <add>, %245, %cst_88 [1] : vector<8x8xf32> to vector<8xf32>
    %247 = vector.shape_cast %246 : vector<8xf32> to vector<8x1xf32>
    %248 = tpu.reciprocal %247 {approx = true} : vector<8x1xf32> -> vector<8x1xf32>
    %249 = vector.broadcast %248 : vector<8x1xf32> to vector<8x8xf32>
    %250 = arith.mulf %245, %249 : vector<8x8xf32>
    %251 = vector.extract_strided_slice %201 {offsets = [0, 16], sizes = [8, 8], strides = [1, 1]} : vector<8x32xf32> to vector<8x8xf32>
    %cst_89 = arith.constant dense<0.000000e+00> : vector<8x8xf32>
    %252 = tpu.matmul %250, %251, %cst_89 {dimension_numbers = #tpu.dot_dimension_numbers<[1], [0], [0], [1], [0, 0, 1, 1], [], []>} : vector<8x8xf32>, vector<8x8xf32>, vector<8x8xf32> -> vector<8x8xf32>
    %253 = vector.extract_strided_slice %199 {offsets = [0, 24], sizes = [8, 8], strides = [1, 1]} : vector<8x32xf32> to vector<8x8xf32>
    %254 = vector.extract_strided_slice %200 {offsets = [0, 24], sizes = [8, 8], strides = [1, 1]} : vector<8x32xf32> to vector<8x8xf32>
    %cst_90 = arith.constant dense<0.000000e+00> : vector<8x8xf32>
    %255 = tpu.matmul %253, %254, %cst_90 {dimension_numbers = #tpu.dot_dimension_numbers<[1], [1], [0], [0], [0, 0, 1, 0], [], []>} : vector<8x8xf32>, vector<8x8xf32>, vector<8x8xf32> -> vector<8x8xf32>
    %cst_91 = arith.constant 0.353553385 : f32
    %256 = vector.broadcast %cst_91 : f32 to vector<8x8xf32>
    %257 = arith.mulf %255, %256 : vector<8x8xf32>
    %cst_92 = arith.constant dense<0xFF800000> : vector<8xf32>
    %258 = vector.multi_reduction <maximumf>, %257, %cst_92 [1] : vector<8x8xf32> to vector<8xf32>
    %259 = vector.shape_cast %258 : vector<8xf32> to vector<8x1xf32>
    %260 = vector.broadcast %259 : vector<8x1xf32> to vector<8x8xf32>
    %261 = arith.subf %257, %260 : vector<8x8xf32>
    %262 = math.exp %261 : vector<8x8xf32>
    %cst_93 = arith.constant dense<0.000000e+00> : vector<8xf32>
    %263 = vector.multi_reduction <add>, %262, %cst_93 [1] : vector<8x8xf32> to vector<8xf32>
    %264 = vector.shape_cast %263 : vector<8xf32> to vector<8x1xf32>
    %265 = tpu.reciprocal %264 {approx = true} : vector<8x1xf32> -> vector<8x1xf32>
    %266 = vector.broadcast %265 : vector<8x1xf32> to vector<8x8xf32>
    %267 = arith.mulf %262, %266 : vector<8x8xf32>
    %268 = vector.extract_strided_slice %201 {offsets = [0, 24], sizes = [8, 8], strides = [1, 1]} : vector<8x32xf32> to vector<8x8xf32>
    %cst_94 = arith.constant dense<0.000000e+00> : vector<8x8xf32>
    %269 = tpu.matmul %267, %268, %cst_94 {dimension_numbers = #tpu.dot_dimension_numbers<[1], [0], [0], [1], [0, 0, 1, 1], [], []>} : vector<8x8xf32>, vector<8x8xf32>, vector<8x8xf32> -> vector<8x8xf32>
    %270 = tpu.concatenate %218, %235, %252, %269 in 1 : vector<8x8xf32>, vector<8x8xf32>, vector<8x8xf32>, vector<8x8xf32> -> vector<8x32xf32>
    %271 = vector.extract_strided_slice %193 {offsets = [8, 0], sizes = [8, 32], strides = [1, 1]} : vector<16x32xf32> to vector<8x32xf32>
    %272 = vector.extract_strided_slice %197 {offsets = [8, 0], sizes = [8, 32], strides = [1, 1]} : vector<16x32xf32> to vector<8x32xf32>
    %273 = vector.extract_strided_slice %198 {offsets = [8, 0], sizes = [8, 32], strides = [1, 1]} : vector<16x32xf32> to vector<8x32xf32>
    %274 = vector.extract_strided_slice %271 {offsets = [0, 0], sizes = [8, 8], strides = [1, 1]} : vector<8x32xf32> to vector<8x8xf32>
    %275 = vector.extract_strided_slice %272 {offsets = [0, 0], sizes = [8, 8], strides = [1, 1]} : vector<8x32xf32> to vector<8x8xf32>
    %cst_95 = arith.constant dense<0.000000e+00> : vector<8x8xf32>
    %276 = tpu.matmul %274, %275, %cst_95 {dimension_numbers = #tpu.dot_dimension_numbers<[1], [1], [0], [0], [0, 0, 1, 0], [], []>} : vector<8x8xf32>, vector<8x8xf32>, vector<8x8xf32> -> vector<8x8xf32>
    %cst_96 = arith.constant 0.353553385 : f32
    %277 = vector.broadcast %cst_96 : f32 to vector<8x8xf32>
    %278 = arith.mulf %276, %277 : vector<8x8xf32>
    %cst_97 = arith.constant dense<0xFF800000> : vector<8xf32>
    %279 = vector.multi_reduction <maximumf>, %278, %cst_97 [1] : vector<8x8xf32> to vector<8xf32>
    %280 = vector.shape_cast %279 : vector<8xf32> to vector<8x1xf32>
    %281 = vector.broadcast %280 : vector<8x1xf32> to vector<8x8xf32>
    %282 = arith.subf %278, %281 : vector<8x8xf32>
    %283 = math.exp %282 : vector<8x8xf32>
    %cst_98 = arith.constant dense<0.000000e+00> : vector<8xf32>
    %284 = vector.multi_reduction <add>, %283, %cst_98 [1] : vector<8x8xf32> to vector<8xf32>
    %285 = vector.shape_cast %284 : vector<8xf32> to vector<8x1xf32>
    %286 = tpu.reciprocal %285 {approx = true} : vector<8x1xf32> -> vector<8x1xf32>
    %287 = vector.broadcast %286 : vector<8x1xf32> to vector<8x8xf32>
    %288 = arith.mulf %283, %287 : vector<8x8xf32>
    %289 = vector.extract_strided_slice %273 {offsets = [0, 0], sizes = [8, 8], strides = [1, 1]} : vector<8x32xf32> to vector<8x8xf32>
    %cst_99 = arith.constant dense<0.000000e+00> : vector<8x8xf32>
    %290 = tpu.matmul %288, %289, %cst_99 {dimension_numbers = #tpu.dot_dimension_numbers<[1], [0], [0], [1], [0, 0, 1, 1], [], []>} : vector<8x8xf32>, vector<8x8xf32>, vector<8x8xf32> -> vector<8x8xf32>
    %291 = vector.extract_strided_slice %271 {offsets = [0, 8], sizes = [8, 8], strides = [1, 1]} : vector<8x32xf32> to vector<8x8xf32>
    %292 = vector.extract_strided_slice %272 {offsets = [0, 8], sizes = [8, 8], strides = [1, 1]} : vector<8x32xf32> to vector<8x8xf32>
    %cst_100 = arith.constant dense<0.000000e+00> : vector<8x8xf32>
    %293 = tpu.matmul %291, %292, %cst_100 {dimension_numbers = #tpu.dot_dimension_numbers<[1], [1], [0], [0], [0, 0, 1, 0], [], []>} : vector<8x8xf32>, vector<8x8xf32>, vector<8x8xf32> -> vector<8x8xf32>
    %cst_101 = arith.constant 0.353553385 : f32
    %294 = vector.broadcast %cst_101 : f32 to vector<8x8xf32>
    %295 = arith.mulf %293, %294 : vector<8x8xf32>
    %cst_102 = arith.constant dense<0xFF800000> : vector<8xf32>
    %296 = vector.multi_reduction <maximumf>, %295, %cst_102 [1] : vector<8x8xf32> to vector<8xf32>
    %297 = vector.shape_cast %296 : vector<8xf32> to vector<8x1xf32>
    %298 = vector.broadcast %297 : vector<8x1xf32> to vector<8x8xf32>
    %299 = arith.subf %295, %298 : vector<8x8xf32>
    %300 = math.exp %299 : vector<8x8xf32>
    %cst_103 = arith.constant dense<0.000000e+00> : vector<8xf32>
    %301 = vector.multi_reduction <add>, %300, %cst_103 [1] : vector<8x8xf32> to vector<8xf32>
    %302 = vector.shape_cast %301 : vector<8xf32> to vector<8x1xf32>
    %303 = tpu.reciprocal %302 {approx = true} : vector<8x1xf32> -> vector<8x1xf32>
    %304 = vector.broadcast %303 : vector<8x1xf32> to vector<8x8xf32>
    %305 = arith.mulf %300, %304 : vector<8x8xf32>
    %306 = vector.extract_strided_slice %273 {offsets = [0, 8], sizes = [8, 8], strides = [1, 1]} : vector<8x32xf32> to vector<8x8xf32>
    %cst_104 = arith.constant dense<0.000000e+00> : vector<8x8xf32>
    %307 = tpu.matmul %305, %306, %cst_104 {dimension_numbers = #tpu.dot_dimension_numbers<[1], [0], [0], [1], [0, 0, 1, 1], [], []>} : vector<8x8xf32>, vector<8x8xf32>, vector<8x8xf32> -> vector<8x8xf32>
    %308 = vector.extract_strided_slice %271 {offsets = [0, 16], sizes = [8, 8], strides = [1, 1]} : vector<8x32xf32> to vector<8x8xf32>
    %309 = vector.extract_strided_slice %272 {offsets = [0, 16], sizes = [8, 8], strides = [1, 1]} : vector<8x32xf32> to vector<8x8xf32>
    %cst_105 = arith.constant dense<0.000000e+00> : vector<8x8xf32>
    %310 = tpu.matmul %308, %309, %cst_105 {dimension_numbers = #tpu.dot_dimension_numbers<[1], [1], [0], [0], [0, 0, 1, 0], [], []>} : vector<8x8xf32>, vector<8x8xf32>, vector<8x8xf32> -> vector<8x8xf32>
    %cst_106 = arith.constant 0.353553385 : f32
    %311 = vector.broadcast %cst_106 : f32 to vector<8x8xf32>
    %312 = arith.mulf %310, %311 : vector<8x8xf32>
    %cst_107 = arith.constant dense<0xFF800000> : vector<8xf32>
    %313 = vector.multi_reduction <maximumf>, %312, %cst_107 [1] : vector<8x8xf32> to vector<8xf32>
    %314 = vector.shape_cast %313 : vector<8xf32> to vector<8x1xf32>
    %315 = vector.broadcast %314 : vector<8x1xf32> to vector<8x8xf32>
    %316 = arith.subf %312, %315 : vector<8x8xf32>
    %317 = math.exp %316 : vector<8x8xf32>
    %cst_108 = arith.constant dense<0.000000e+00> : vector<8xf32>
    %318 = vector.multi_reduction <add>, %317, %cst_108 [1] : vector<8x8xf32> to vector<8xf32>
    %319 = vector.shape_cast %318 : vector<8xf32> to vector<8x1xf32>
    %320 = tpu.reciprocal %319 {approx = true} : vector<8x1xf32> -> vector<8x1xf32>
    %321 = vector.broadcast %320 : vector<8x1xf32> to vector<8x8xf32>
    %322 = arith.mulf %317, %321 : vector<8x8xf32>
    %323 = vector.extract_strided_slice %273 {offsets = [0, 16], sizes = [8, 8], strides = [1, 1]} : vector<8x32xf32> to vector<8x8xf32>
    %cst_109 = arith.constant dense<0.000000e+00> : vector<8x8xf32>
    %324 = tpu.matmul %322, %323, %cst_109 {dimension_numbers = #tpu.dot_dimension_numbers<[1], [0], [0], [1], [0, 0, 1, 1], [], []>} : vector<8x8xf32>, vector<8x8xf32>, vector<8x8xf32> -> vector<8x8xf32>
    %325 = vector.extract_strided_slice %271 {offsets = [0, 24], sizes = [8, 8], strides = [1, 1]} : vector<8x32xf32> to vector<8x8xf32>
    %326 = vector.extract_strided_slice %272 {offsets = [0, 24], sizes = [8, 8], strides = [1, 1]} : vector<8x32xf32> to vector<8x8xf32>
    %cst_110 = arith.constant dense<0.000000e+00> : vector<8x8xf32>
    %327 = tpu.matmul %325, %326, %cst_110 {dimension_numbers = #tpu.dot_dimension_numbers<[1], [1], [0], [0], [0, 0, 1, 0], [], []>} : vector<8x8xf32>, vector<8x8xf32>, vector<8x8xf32> -> vector<8x8xf32>
    %cst_111 = arith.constant 0.353553385 : f32
    %328 = vector.broadcast %cst_111 : f32 to vector<8x8xf32>
    %329 = arith.mulf %327, %328 : vector<8x8xf32>
    %cst_112 = arith.constant dense<0xFF800000> : vector<8xf32>
    %330 = vector.multi_reduction <maximumf>, %329, %cst_112 [1] : vector<8x8xf32> to vector<8xf32>
    %331 = vector.shape_cast %330 : vector<8xf32> to vector<8x1xf32>
    %332 = vector.broadcast %331 : vector<8x1xf32> to vector<8x8xf32>
    %333 = arith.subf %329, %332 : vector<8x8xf32>
    %334 = math.exp %333 : vector<8x8xf32>
    %cst_113 = arith.constant dense<0.000000e+00> : vector<8xf32>
    %335 = vector.multi_reduction <add>, %334, %cst_113 [1] : vector<8x8xf32> to vector<8xf32>
    %336 = vector.shape_cast %335 : vector<8xf32> to vector<8x1xf32>
    %337 = tpu.reciprocal %336 {approx = true} : vector<8x1xf32> -> vector<8x1xf32>
    %338 = vector.broadcast %337 : vector<8x1xf32> to vector<8x8xf32>
    %339 = arith.mulf %334, %338 : vector<8x8xf32>
    %340 = vector.extract_strided_slice %273 {offsets = [0, 24], sizes = [8, 8], strides = [1, 1]} : vector<8x32xf32> to vector<8x8xf32>
    %cst_114 = arith.constant dense<0.000000e+00> : vector<8x8xf32>
    %341 = tpu.matmul %339, %340, %cst_114 {dimension_numbers = #tpu.dot_dimension_numbers<[1], [0], [0], [1], [0, 0, 1, 1], [], []>} : vector<8x8xf32>, vector<8x8xf32>, vector<8x8xf32> -> vector<8x8xf32>
    %342 = tpu.concatenate %290, %307, %324, %341 in 1 : vector<8x8xf32>, vector<8x8xf32>, vector<8x8xf32>, vector<8x8xf32> -> vector<8x32xf32>
    %343 = tpu.concatenate %270, %342 in 0 : vector<8x32xf32>, vector<8x32xf32> -> vector<16x32xf32>
    %cst_115 = arith.constant dense<0.000000e+00> : vector<16x32xf32>
    %344 = tpu.matmul %343, %189, %cst_115 {dimension_numbers = #tpu.dot_dimension_numbers<[1], [0], [0], [1], [0, 0, 1, 1], [], []>} : vector<16x32xf32>, vector<32x32xf32>, vector<16x32xf32> -> vector<16x32xf32>
    %345 = vector.broadcast %190 : vector<1x32xf32> to vector<16x32xf32>
    %346 = arith.addf %344, %345 : vector<16x32xf32>
    %347 = arith.addf %184, %346 : vector<16x32xf32>
    %c0_116 = arith.constant 0 : index
    %c0_117 = arith.constant 0 : index
    %348 = vector.load %arg15[%c0_116, %c0_117] : memref<1x32xf32, #tpu.memory_space<vmem>>, vector<1x32xf32>
    %c0_118 = arith.constant 0 : index
    %c0_119 = arith.constant 0 : index
    %349 = vector.load %arg16[%c0_118, %c0_119] : memref<1x32xf32, #tpu.memory_space<vmem>>, vector<1x32xf32>
    %cst_120 = arith.constant dense<0.000000e+00> : vector<16xf32>
    %350 = vector.multi_reduction <add>, %347, %cst_120 [1] : vector<16x32xf32> to vector<16xf32>
    %351 = vector.shape_cast %350 : vector<16xf32> to vector<16x1xf32>
    %cst_121 = arith.constant 3.200000e+01 : f32
    %352 = vector.broadcast %cst_121 : f32 to vector<16x1xf32>
    %353 = arith.divf %351, %352 : vector<16x1xf32>
    %354 = vector.broadcast %353 : vector<16x1xf32> to vector<16x32xf32>
    %355 = arith.subf %347, %354 : vector<16x32xf32>
    %356 = arith.mulf %355, %355 : vector<16x32xf32>
    %cst_122 = arith.constant dense<0.000000e+00> : vector<16xf32>
    %357 = vector.multi_reduction <add>, %356, %cst_122 [1] : vector<16x32xf32> to vector<16xf32>
    %358 = vector.shape_cast %357 : vector<16xf32> to vector<16x1xf32>
    %cst_123 = arith.constant 3.200000e+01 : f32
    %359 = vector.broadcast %cst_123 : f32 to vector<16x1xf32>
    %360 = arith.divf %358, %359 : vector<16x1xf32>
    %361 = vector.broadcast %353 : vector<16x1xf32> to vector<16x32xf32>
    %362 = arith.subf %347, %361 : vector<16x32xf32>
    %cst_124 = arith.constant 9.99999974E-6 : f32
    %363 = vector.broadcast %cst_124 : f32 to vector<16x1xf32>
    %364 = arith.addf %360, %363 : vector<16x1xf32>
    %365 = math.rsqrt %364 : vector<16x1xf32>
    %366 = vector.broadcast %365 : vector<16x1xf32> to vector<16x32xf32>
    %367 = arith.mulf %362, %366 : vector<16x32xf32>
    %368 = vector.broadcast %348 : vector<1x32xf32> to vector<16x32xf32>
    %369 = arith.mulf %367, %368 : vector<16x32xf32>
    %370 = vector.broadcast %349 : vector<1x32xf32> to vector<16x32xf32>
    %371 = arith.addf %369, %370 : vector<16x32xf32>
    %c0_125 = arith.constant 0 : index
    %c0_126 = arith.constant 0 : index
    %372 = vector.load %arg17[%c0_125, %c0_126] : memref<32x2048xf32, #tpu.memory_space<vmem>>, vector<32x2048xf32>
    %c0_127 = arith.constant 0 : index
    %c0_128 = arith.constant 0 : index
    %373 = vector.load %arg18[%c0_127, %c0_128] : memref<1x2048xf32, #tpu.memory_space<vmem>>, vector<1x2048xf32>
    %c0_129 = arith.constant 0 : index
    %c0_130 = arith.constant 0 : index
    %374 = vector.load %arg19[%c0_129, %c0_130] : memref<2048x32xf32, #tpu.memory_space<vmem>>, vector<2048x32xf32>
    %c0_131 = arith.constant 0 : index
    %c0_132 = arith.constant 0 : index
    %375 = vector.load %arg20[%c0_131, %c0_132] : memref<1x32xf32, #tpu.memory_space<vmem>>, vector<1x32xf32>
    %cst_133 = arith.constant dense<0.000000e+00> : vector<16x2048xf32>
    %376 = tpu.matmul %371, %372, %cst_133 {dimension_numbers = #tpu.dot_dimension_numbers<[1], [0], [0], [1], [0, 0, 1, 1], [], []>} : vector<16x32xf32>, vector<32x2048xf32>, vector<16x2048xf32> -> vector<16x2048xf32>
    %377 = vector.broadcast %373 : vector<1x2048xf32> to vector<16x2048xf32>
    %378 = arith.addf %376, %377 : vector<16x2048xf32>
    %cst_134 = arith.constant 0.000000e+00 : f32
    %379 = vector.broadcast %cst_134 : f32 to vector<16x2048xf32>
    %380 = arith.maximumf %378, %379 : vector<16x2048xf32>
    %cst_135 = arith.constant dense<0.000000e+00> : vector<16x32xf32>
    %381 = tpu.matmul %380, %374, %cst_135 {dimension_numbers = #tpu.dot_dimension_numbers<[1], [0], [0], [1], [0, 0, 1, 1], [], []>} : vector<16x2048xf32>, vector<2048x32xf32>, vector<16x32xf32> -> vector<16x32xf32>
    %382 = vector.broadcast %375 : vector<1x32xf32> to vector<16x32xf32>
    %383 = arith.addf %381, %382 : vector<16x32xf32>
    %384 = arith.addf %371, %383 : vector<16x32xf32>
    %c0_136 = arith.constant 0 : index
    %c0_137 = arith.constant 0 : index
    %385 = vector.load %arg21[%c0_136, %c0_137] : memref<1x32xf32, #tpu.memory_space<vmem>>, vector<1x32xf32>
    %c0_138 = arith.constant 0 : index
    %c0_139 = arith.constant 0 : index
    %386 = vector.load %arg22[%c0_138, %c0_139] : memref<1x32xf32, #tpu.memory_space<vmem>>, vector<1x32xf32>
    %cst_140 = arith.constant dense<0.000000e+00> : vector<16xf32>
    %387 = vector.multi_reduction <add>, %384, %cst_140 [1] : vector<16x32xf32> to vector<16xf32>
    %388 = vector.shape_cast %387 : vector<16xf32> to vector<16x1xf32>
    %cst_141 = arith.constant 3.200000e+01 : f32
    %389 = vector.broadcast %cst_141 : f32 to vector<16x1xf32>
    %390 = arith.divf %388, %389 : vector<16x1xf32>
    %391 = vector.broadcast %390 : vector<16x1xf32> to vector<16x32xf32>
    %392 = arith.subf %384, %391 : vector<16x32xf32>
    %393 = arith.mulf %392, %392 : vector<16x32xf32>
    %cst_142 = arith.constant dense<0.000000e+00> : vector<16xf32>
    %394 = vector.multi_reduction <add>, %393, %cst_142 [1] : vector<16x32xf32> to vector<16xf32>
    %395 = vector.shape_cast %394 : vector<16xf32> to vector<16x1xf32>
    %cst_143 = arith.constant 3.200000e+01 : f32
    %396 = vector.broadcast %cst_143 : f32 to vector<16x1xf32>
    %397 = arith.divf %395, %396 : vector<16x1xf32>
    %398 = vector.broadcast %390 : vector<16x1xf32> to vector<16x32xf32>
    %399 = arith.subf %384, %398 : vector<16x32xf32>
    %cst_144 = arith.constant 9.99999974E-6 : f32
    %400 = vector.broadcast %cst_144 : f32 to vector<16x1xf32>
    %401 = arith.addf %397, %400 : vector<16x1xf32>
    %402 = math.rsqrt %401 : vector<16x1xf32>
    %403 = vector.broadcast %402 : vector<16x1xf32> to vector<16x32xf32>
    %404 = arith.mulf %399, %403 : vector<16x32xf32>
    %405 = vector.broadcast %385 : vector<1x32xf32> to vector<16x32xf32>
    %406 = arith.mulf %404, %405 : vector<16x32xf32>
    %407 = vector.broadcast %386 : vector<1x32xf32> to vector<16x32xf32>
    %408 = arith.addf %406, %407 : vector<16x32xf32>
    %c0_145 = arith.constant 0 : index
    %c0_146 = arith.constant 0 : index
    %409 = vector.load %arg23[%c0_145, %c0_146] : memref<16x32xf32, #tpu.memory_space<vmem>>, vector<16x32xf32>
    tpu.vector_store %arg23[%c0_145, %c0_146], %408 {strides = array<i32>} : memref<16x32xf32, #tpu.memory_space<vmem>>, vector<16x32xf32>,
    return
  }
  func.func @transform_0(%arg0: i32) -> (i32, i32) {
    %c0_i32 = arith.constant 0 : i32
    %c0_i32_0 = arith.constant 0 : i32
    %c0_i32_1 = arith.constant 0 : i32
    return %c0_i32, %c0_i32_0 : i32, i32
  }
  func.func @transform_1(%arg0: i32) -> (i32, i32) {
    %c0_i32 = arith.constant 0 : i32
    %c0_i32_0 = arith.constant 0 : i32
    %c0_i32_1 = arith.constant 0 : i32
    return %c0_i32, %c0_i32_0 : i32, i32
  }
  func.func @transform_2(%arg0: i32) -> (i32, i32) {
    %c0_i32 = arith.constant 0 : i32
    %c0_i32_0 = arith.constant 0 : i32
    %c0_i32_1 = arith.constant 0 : i32
    return %c0_i32, %c0_i32_0 : i32, i32
  }
  func.func @transform_3(%arg0: i32) -> (i32, i32) {
    %c0_i32 = arith.constant 0 : i32
    %c0_i32_0 = arith.constant 0 : i32
    %c0_i32_1 = arith.constant 0 : i32
    return %c0_i32, %c0_i32_0 : i32, i32
  }
  func.func @transform_4(%arg0: i32) -> (i32, i32) {
    %c0_i32 = arith.constant 0 : i32
    %c0_i32_0 = arith.constant 0 : i32
    %c0_i32_1 = arith.constant 0 : i32
    return %c0_i32, %c0_i32_0 : i32, i32
  }
  func.func @transform_5(%arg0: i32) -> (i32, i32) {
    %c0_i32 = arith.constant 0 : i32
    %c0_i32_0 = arith.constant 0 : i32
    %c0_i32_1 = arith.constant 0 : i32
    return %c0_i32, %c0_i32_0 : i32, i32
  }
  func.func @transform_6(%arg0: i32) -> (i32, i32) {
    %c0_i32 = arith.constant 0 : i32
    %c0_i32_0 = arith.constant 0 : i32
    %c0_i32_1 = arith.constant 0 : i32
    return %c0_i32, %c0_i32_0 : i32, i32
  }
  func.func @transform_7(%arg0: i32) -> (i32, i32) {
    %c0_i32 = arith.constant 0 : i32
    %c0_i32_0 = arith.constant 0 : i32
    %c0_i32_1 = arith.constant 0 : i32
    return %c0_i32, %c0_i32_0 : i32, i32
  }
  func.func @transform_8(%arg0: i32) -> (i32, i32) {
    %c0_i32 = arith.constant 0 : i32
    %c0_i32_0 = arith.constant 0 : i32
    %c0_i32_1 = arith.constant 0 : i32
    return %c0_i32, %c0_i32_0 : i32, i32
  }
  func.func @transform_9(%arg0: i32) -> (i32, i32) {
    %c0_i32 = arith.constant 0 : i32
    %c0_i32_0 = arith.constant 0 : i32
    %c0_i32_1 = arith.constant 0 : i32
    return %c0_i32, %c0_i32_0 : i32, i32
  }
  func.func @transform_10(%arg0: i32) -> (i32, i32) {
    %c0_i32 = arith.constant 0 : i32
    %c0_i32_0 = arith.constant 0 : i32
    %c0_i32_1 = arith.constant 0 : i32
    return %c0_i32, %c0_i32_0 : i32, i32
  }
  func.func @transform_11(%arg0: i32) -> (i32, i32) {
    %c0_i32 = arith.constant 0 : i32
    %c0_i32_0 = arith.constant 0 : i32
    %c0_i32_1 = arith.constant 0 : i32
    return %c0_i32, %c0_i32_0 : i32, i32
  }
  func.func @transform_12(%arg0: i32) -> (i32, i32) {
    %c0_i32 = arith.constant 0 : i32
    %c0_i32_0 = arith.constant 0 : i32
    %c0_i32_1 = arith.constant 0 : i32
    return %c0_i32, %c0_i32_0 : i32, i32
  }
  func.func @transform_13(%arg0: i32) -> (i32, i32) {
    %c0_i32 = arith.constant 0 : i32
    %c0_i32_0 = arith.constant 0 : i32
    %c0_i32_1 = arith.constant 0 : i32
    return %c0_i32, %c0_i32_0 : i32, i32
  }
  func.func @transform_14(%arg0: i32) -> (i32, i32) {
    %c0_i32 = arith.constant 0 : i32
    %c0_i32_0 = arith.constant 0 : i32
    %c0_i32_1 = arith.constant 0 : i32
    return %c0_i32, %c0_i32_0 : i32, i32
  }
  func.func @transform_15(%arg0: i32) -> (i32, i32) {
    %c0_i32 = arith.constant 0 : i32
    %c0_i32_0 = arith.constant 0 : i32
    %c0_i32_1 = arith.constant 0 : i32
    return %c0_i32, %c0_i32_0 : i32, i32
  }
  func.func @transform_16(%arg0: i32) -> (i32, i32) {
    %c0_i32 = arith.constant 0 : i32
    %c0_i32_0 = arith.constant 0 : i32
    %c0_i32_1 = arith.constant 0 : i32
    return %c0_i32, %c0_i32_0 : i32, i32
  }
  func.func @transform_17(%arg0: i32) -> (i32, i32) {
    %c0_i32 = arith.constant 0 : i32
    %c0_i32_0 = arith.constant 0 : i32
    %c0_i32_1 = arith.constant 0 : i32
    return %c0_i32, %c0_i32_0 : i32, i32
  }
  func.func @transform_18(%arg0: i32) -> (i32, i32) {
    %c0_i32 = arith.constant 0 : i32
    %c0_i32_0 = arith.constant 0 : i32
    %c0_i32_1 = arith.constant 0 : i32
    return %c0_i32, %c0_i32_0 : i32, i32
  }
  func.func @transform_19(%arg0: i32) -> (i32, i32) {
    %c0_i32 = arith.constant 0 : i32
    %c0_i32_0 = arith.constant 0 : i32
    %c0_i32_1 = arith.constant 0 : i32
    return %c0_i32, %c0_i32_0 : i32, i32
  }
  func.func @transform_20(%arg0: i32) -> (i32, i32) {
    %c0_i32 = arith.constant 0 : i32
    %c0_i32_0 = arith.constant 0 : i32
    %c0_i32_1 = arith.constant 0 : i32
    return %c0_i32, %c0_i32_0 : i32, i32
  }
  func.func @transform_21(%arg0: i32) -> (i32, i32) {
    %c0_i32 = arith.constant 0 : i32
    %c0_i32_0 = arith.constant 0 : i32
    %c0_i32_1 = arith.constant 0 : i32
    return %c0_i32, %c0_i32_0 : i32, i32
  }
  func.func @transform_22(%arg0: i32) -> (i32, i32) {
    %c0_i32 = arith.constant 0 : i32
    %c0_i32_0 = arith.constant 0 : i32
    %c0_i32_1 = arith.constant 0 : i32
    return %c0_i32, %c0_i32_0 : i32, i32
  }
}

module attributes {stable_mosaic.version = 11 : i64} {
  func.func @_head_kernel(%arg0: i32, %arg1: memref<16x32xf32, #tpu.memory_space<vmem>>, %arg2: memref<1x32xf32, #tpu.memory_space<vmem>>, %arg3: memref<1x32xf32, #tpu.memory_space<vmem>>, %arg4: memref<32x1xf32, #tpu.memory_space<vmem>>, %arg5: memref<1x1xf32, #tpu.memory_space<vmem>>, %arg6: memref<2x1xf32, #tpu.memory_space<vmem>>) attributes {dimension_semantics = [#tpu.dimension_semantics<arbitrary>], iteration_bounds = array<i64: 1>, scalar_prefetch = 0 : i64, scratch_operands = 0 : i64, tpu.core_type = #tpu.core_type<tc>, window_params = [{pipeline_mode = #tpu.pipeline_mode<synchronous>, transform_indices = @transform_0, window_bounds = array<i64: 16, 32>}, {pipeline_mode = #tpu.pipeline_mode<synchronous>, transform_indices = @transform_1, window_bounds = array<i64: 1, 32>}, {pipeline_mode = #tpu.pipeline_mode<synchronous>, transform_indices = @transform_2, window_bounds = array<i64: 1, 32>}, {pipeline_mode = #tpu.pipeline_mode<synchronous>, transform_indices = @transform_3, window_bounds = array<i64: 32, 1>}, {pipeline_mode = #tpu.pipeline_mode<synchronous>, transform_indices = @transform_4, window_bounds = array<i64: 1, 1>}, {pipeline_mode = #tpu.pipeline_mode<synchronous>, transform_indices = @transform_5, window_bounds = array<i64: 2, 1>}]} {
    %c0 = arith.constant 0 : index
    %c0_0 = arith.constant 0 : index
    %0 = vector.load %arg1[%c0, %c0_0] : memref<16x32xf32, #tpu.memory_space<vmem>>, vector<16x32xf32>
    %1 = vector.extract_strided_slice %0 {offsets = [7, 0], sizes = [1, 32], strides = [1, 1]} : vector<16x32xf32> to vector<1x32xf32>
    %2 = vector.extract_strided_slice %0 {offsets = [15, 0], sizes = [1, 32], strides = [1, 1]} : vector<16x32xf32> to vector<1x32xf32>
    %3 = tpu.concatenate %1, %2 in 0 : vector<1x32xf32>, vector<1x32xf32> -> vector<2x32xf32>
    %c0_1 = arith.constant 0 : index
    %c0_2 = arith.constant 0 : index
    %4 = vector.load %arg2[%c0_1, %c0_2] : memref<1x32xf32, #tpu.memory_space<vmem>>, vector<1x32xf32>
    %c0_3 = arith.constant 0 : index
    %c0_4 = arith.constant 0 : index
    %5 = vector.load %arg3[%c0_3, %c0_4] : memref<1x32xf32, #tpu.memory_space<vmem>>, vector<1x32xf32>
    %cst = arith.constant dense<0.000000e+00> : vector<2xf32>
    %6 = vector.multi_reduction <add>, %3, %cst [1] : vector<2x32xf32> to vector<2xf32>
    %7 = vector.shape_cast %6 : vector<2xf32> to vector<2x1xf32>
    %cst_5 = arith.constant 3.200000e+01 : f32
    %8 = vector.broadcast %cst_5 : f32 to vector<2x1xf32>
    %9 = arith.divf %7, %8 : vector<2x1xf32>
    %10 = vector.broadcast %9 : vector<2x1xf32> to vector<2x32xf32>
    %11 = arith.subf %3, %10 : vector<2x32xf32>
    %12 = arith.mulf %11, %11 : vector<2x32xf32>
    %cst_6 = arith.constant dense<0.000000e+00> : vector<2xf32>
    %13 = vector.multi_reduction <add>, %12, %cst_6 [1] : vector<2x32xf32> to vector<2xf32>
    %14 = vector.shape_cast %13 : vector<2xf32> to vector<2x1xf32>
    %cst_7 = arith.constant 3.200000e+01 : f32
    %15 = vector.broadcast %cst_7 : f32 to vector<2x1xf32>
    %16 = arith.divf %14, %15 : vector<2x1xf32>
    %17 = vector.broadcast %9 : vector<2x1xf32> to vector<2x32xf32>
    %18 = arith.subf %3, %17 : vector<2x32xf32>
    %cst_8 = arith.constant 9.99999974E-6 : f32
    %19 = vector.broadcast %cst_8 : f32 to vector<2x1xf32>
    %20 = arith.addf %16, %19 : vector<2x1xf32>
    %21 = math.rsqrt %20 : vector<2x1xf32>
    %22 = vector.broadcast %21 : vector<2x1xf32> to vector<2x32xf32>
    %23 = arith.mulf %18, %22 : vector<2x32xf32>
    %24 = vector.broadcast %4 : vector<1x32xf32> to vector<2x32xf32>
    %25 = arith.mulf %23, %24 : vector<2x32xf32>
    %26 = vector.broadcast %5 : vector<1x32xf32> to vector<2x32xf32>
    %27 = arith.addf %25, %26 : vector<2x32xf32>
    %c0_9 = arith.constant 0 : index
    %c0_10 = arith.constant 0 : index
    %28 = vector.load %arg4[%c0_9, %c0_10] : memref<32x1xf32, #tpu.memory_space<vmem>>, vector<32x1xf32>
    %cst_11 = arith.constant dense<0.000000e+00> : vector<2x1xf32>
    %29 = tpu.matmul %27, %28, %cst_11 {dimension_numbers = #tpu.dot_dimension_numbers<[1], [0], [0], [1], [0, 0, 1, 1], [], []>} : vector<2x32xf32>, vector<32x1xf32>, vector<2x1xf32> -> vector<2x1xf32>
    %c0_12 = arith.constant 0 : index
    %c0_13 = arith.constant 0 : index
    %30 = vector.load %arg5[%c0_12, %c0_13] : memref<1x1xf32, #tpu.memory_space<vmem>>, vector<1x1xf32>
    %31 = vector.broadcast %30 : vector<1x1xf32> to vector<2x1xf32>
    %32 = arith.addf %29, %31 : vector<2x1xf32>
    %c0_14 = arith.constant 0 : index
    %c0_15 = arith.constant 0 : index
    %33 = vector.load %arg6[%c0_14, %c0_15] : memref<2x1xf32, #tpu.memory_space<vmem>>, vector<2x1xf32>
    tpu.vector_store %arg6[%c0_14, %c0_15], %32 {strides = array<i32>} : memref<2x1xf32, #tpu.memory_space<vmem>>, vector<2x1xf32>,
    return
  }
  func.func @transform_0(%arg0: i32) -> (i32, i32) {
    %c0_i32 = arith.constant 0 : i32
    %c0_i32_0 = arith.constant 0 : i32
    %c0_i32_1 = arith.constant 0 : i32
    return %c0_i32, %c0_i32_0 : i32, i32
  }
  func.func @transform_1(%arg0: i32) -> (i32, i32) {
    %c0_i32 = arith.constant 0 : i32
    %c0_i32_0 = arith.constant 0 : i32
    %c0_i32_1 = arith.constant 0 : i32
    return %c0_i32, %c0_i32_0 : i32, i32
  }
  func.func @transform_2(%arg0: i32) -> (i32, i32) {
    %c0_i32 = arith.constant 0 : i32
    %c0_i32_0 = arith.constant 0 : i32
    %c0_i32_1 = arith.constant 0 : i32
    return %c0_i32, %c0_i32_0 : i32, i32
  }
  func.func @transform_3(%arg0: i32) -> (i32, i32) {
    %c0_i32 = arith.constant 0 : i32
    %c0_i32_0 = arith.constant 0 : i32
    %c0_i32_1 = arith.constant 0 : i32
    return %c0_i32, %c0_i32_0 : i32, i32
  }
  func.func @transform_4(%arg0: i32) -> (i32, i32) {
    %c0_i32 = arith.constant 0 : i32
    %c0_i32_0 = arith.constant 0 : i32
    %c0_i32_1 = arith.constant 0 : i32
    return %c0_i32, %c0_i32_0 : i32, i32
  }
  func.func @transform_5(%arg0: i32) -> (i32, i32) {
    %c0_i32 = arith.constant 0 : i32
    %c0_i32_0 = arith.constant 0 : i32
    %c0_i32_1 = arith.constant 0 : i32
    return %c0_i32, %c0_i32_0 : i32, i32
  }
}

</mosaic_0001>

<llo_original>
// kernel: transformer_predictor_forward.11
$region0: #{transformer_predictor_forward.11}
  #allocation0 [shape = 'u32[]', space=smem, size = 0x4, offset = 0x4, fixed_abs, tag = 'smem constant byte address 0x4 - core index']
  #allocation1 [shape = 'u32[72,128]{1,0:T(1,128)}', space=vmem, size = 0x9000, scoped, tag = 'internal scratch']
  %s0 = inlined_call_operand.vmem [shape: f32[16,8], index: 0, kind: input, shape index: {}]
  %s1 = inlined_call_operand.vmem [shape: f32[8,32], index: 1, kind: input, shape index: {}]
  %s2 = inlined_call_operand.vmem [shape: f32[1,32], index: 2, kind: input, shape index: {}]
  %s3 = inlined_call_operand.vmem [shape: f32[16,32], index: 3, kind: output, shape index: {}]
  %s4 = sld [smem:[#allocation0]]
  $region22: #{transformer_predictor_forward.11} parent=0
    _
  %s6 = ssub.s32 1, %s4
  %s7 = scalar_select 0, %s6, %s4
  // Predicated region
  $region2: #{transformer_predictor_forward.11} parent=0 // pred_check
    _
  $region3: #{transformer_predictor_forward.11} parent=0 // pred_check_branch
    %9 = sbr.rel (0) target = $region5
  $region4: #{transformer_predictor_forward.11} parent=0 // pred_region
    _
  $region5: #{transformer_predictor_forward.11} parent=0 // pred_fallthru
    _
  // Predicated region
  $region6: #{transformer_predictor_forward.11} parent=0 // pred_check
    _
  $region7: #{transformer_predictor_forward.11} parent=0 // pred_check_branch
    %11 = sbr.rel (0) target = $region9
  $region8: #{transformer_predictor_forward.11} parent=0 // pred_region
    _
  $region9: #{transformer_predictor_forward.11} parent=0 // pred_fallthru
    _
  // Predicated region
  $region10: #{transformer_predictor_forward.11} parent=0 // pred_check
    _
  $region11: #{transformer_predictor_forward.11} parent=0 // pred_check_branch
    %13 = sbr.rel (0) target = $region13
  $region12: #{transformer_predictor_forward.11} parent=0 // pred_region
    _
  $region13: #{transformer_predictor_forward.11} parent=0 // pred_fallthru
    _
  %v14 = vld [vmem:[%s0] sm:$0xff]
  %v15 = vld [vmem:[%s0 + $0x8] sm:$0xff]
  %v16 = vld [vmem:[%s1] sm:$0xff]
  %v17 = vld [vmem:[%s2] sm:$0x1]
  %v19 = vperm.slane %v17, 0
  %vm21 = vcmask 64512
  %v23 = vsel %vm21, %v14, 0
  %v26 = vsel %vm21, %v15, 0
  %28 = vmatpush.msra.mxu0 0.0
  %29 = vmatpush.msra.mxu0 0.0
  %30 = vmatpush.msra.mxu0 0.0
  %31 = vmatpush.msra.mxu0 0.0
  %32 = vmatpush.msra.mxu0 0.0
  %33 = vmatpush.msra.mxu0 0.0
  %34 = vmatpush.msra.mxu0 0.0
  %35 = vmatpush.msra.mxu0 0.0
  %36 = vmatpush.msra.mxu0 0.0
  %37 = vmatpush.msra.mxu0 0.0
  %38 = vmatpush.msra.mxu0 0.0
  %39 = vmatpush.msra.mxu0 0.0
  %40 = vmatpush.msra.mxu0 0.0
  %41 = vmatpush.msra.mxu0 0.0
  %42 = vmatpush.msra.mxu0 0.0
  %43 = vmatpush.msra.mxu0 %v16
  %44 = vmatmul.f32.gmra.mxu0 %v23
  %v45 = vpop.f32.mrf.mxu0
  %v46 = vadd.f32 %v19, %v45
  %47 = vmatmul.f32.gmra.mxu0 %v26
  %v48 = vpop.f32.mrf.mxu0
  %v49 = vadd.f32 %v19, %v48
  %50 = vdwg.mxu0
  %vm51 = vcmask 261120
  %52 = vst.msk [vmem:[%s3] sm:$0xff] %vm51, %v46
  %53 = vst.msk [vmem:[%s3 + $0x8] sm:$0xff] %vm51, %v49
  // Predicated region
  $region14: #{transformer_predictor_forward.11} parent=0 // pred_check
    _
  $region15: #{transformer_predictor_forward.11} parent=0 // pred_check_branch
    %55 = sbr.rel (0) target = $region17
  $region16: #{transformer_predictor_forward.11} parent=0 // pred_region
    _
  $region17: #{transformer_predictor_forward.11} parent=0 // pred_fallthru
    _
  // Predicated region
  $region18: #{transformer_predictor_forward.11} parent=0 // pred_check
    _
  $region19: #{transformer_predictor_forward.11} parent=0 // pred_check_branch
    %57 = sbr.rel (0) target = $region21
  $region20: #{transformer_predictor_forward.11} parent=0 // pred_region
    _
  $region21: #{transformer_predictor_forward.11} parent=0 // pred_fallthru
    _

// kernel: transformer_predictor_forward.14
$region0: #{transformer_predictor_forward.14}
  #allocation0 [shape = 'u32[]', space=smem, size = 0x4, offset = 0x4, fixed_abs, tag = 'smem constant byte address 0x4 - core index']
  #allocation1 [shape = 'u32[72,128]{1,0:T(1,128)}', space=vmem, size = 0x9000, scoped, tag = 'internal scratch']
  %s0 = inlined_call_operand.vmem [shape: f32[16,32], index: 0, kind: input, shape index: {}]
  %s1 = inlined_call_operand.vmem [shape: f32[1,32], index: 1, kind: input, shape index: {}]
  %s2 = inlined_call_operand.vmem [shape: f32[1,32], index: 2, kind: input, shape index: {}]
  %s3 = inlined_call_operand.vmem [shape: f32[16,32], index: 3, kind: output, shape index: {}]
  %s4 = sld [smem:[#allocation0]]
  $region22: #{transformer_predictor_forward.14} parent=0
    _
  %s6 = ssub.s32 1, %s4
  %s7 = scalar_select 0, %s6, %s4
  // Predicated region
  $region2: #{transformer_predictor_forward.14} parent=0 // pred_check
    _
  $region3: #{transformer_predictor_forward.14} parent=0 // pred_check_branch
    %9 = sbr.rel (0) target = $region5
  $region4: #{transformer_predictor_forward.14} parent=0 // pred_region
    _
  $region5: #{transformer_predictor_forward.14} parent=0 // pred_fallthru
    _
  // Predicated region
  $region6: #{transformer_predictor_forward.14} parent=0 // pred_check
    _
  $region7: #{transformer_predictor_forward.14} parent=0 // pred_check_branch
    %11 = sbr.rel (0) target = $region9
  $region8: #{transformer_predictor_forward.14} parent=0 // pred_region
    _
  $region9: #{transformer_predictor_forward.14} parent=0 // pred_fallthru
    _
  // Predicated region
  $region10: #{transformer_predictor_forward.14} parent=0 // pred_check
    _
  $region11: #{transformer_predictor_forward.14} parent=0 // pred_check_branch
    %13 = sbr.rel (0) target = $region13
  $region12: #{transformer_predictor_forward.14} parent=0 // pred_region
    _
  $region13: #{transformer_predictor_forward.14} parent=0 // pred_fallthru
    _
  %v14 = vld [vmem:[%s0] sm:$0xff]
  %v15 = vld [vmem:[%s0 + $0x8] sm:$0xff]
  %v16 = vld [vmem:[%s1] sm:$0x1]
  %v17 = vld [vmem:[%s2] sm:$0x1]
  %vm18 = vcmask 261120
  %v19 = vsel %vm18, %v14, 0.0
  %20 = vadd.xlane.f32.xlu0 %v19
  %v21 = vpop.xlane.xlu0 %20
  %v22 = vsel %vm18, %v15, 0.0
  %23 = vadd.xlane.f32.xlu0 %v22
  %v24 = vpop.xlane.xlu0 %23
  %v25 = vrcp.pop 32.0
  %v26 = vmul.f32 32.0, %v25
  %v27 = vsub.f32 1.0, %v26
  %v28 = vmul.f32 %v25, %v27
  %v29 = vadd.f32 %v25, %v28
  %vm30 = vweird.f32 %v25
  %v31 = vsel %vm30, %v25, %v29
  %v32 = vmul.f32 %v21, %v31
  %v33 = vmul.f32 %v24, %v31
  %v34 = vsub.f32 %v14, %v32
  %v35 = vsub.f32 %v15, %v33
  %v36 = vmul.f32 %v34, %v34
  %v37 = vmul.f32 %v35, %v35
  %v38 = vsel %vm18, %v36, 0.0
  %39 = vadd.xlane.f32.xlu0 %v38
  %v40 = vpop.xlane.xlu0 %39
  %v41 = vsel %vm18, %v37, 0.0
  %42 = vadd.xlane.f32.xlu0 %v41
  %v43 = vpop.xlane.xlu0 %42
  %v44 = vmul.f32 %v40, %v31
  %v45 = vmul.f32 %v43, %v31
  %v46 = vadd.f32 %v44, 1e-05
  %v47 = vadd.f32 %v45, 1e-05
  %v48 = vrsqrt.pop %v46
  %v49 = vmul.f32 %v48, %v46
  %v50 = vmul.f32 %v49, %v48
  %v51 = vmul.f32 0.5, %v50
  %v52 = vsub.f32 1.5, %v51
  %v53 = vmul.f32 %v48, %v52
  %vm54 = vweird.f32 %v46
  %vm55 = vweird.f32 %v48
  %vm56 = vmor %vm54, %vm55
  %v57 = vsel %vm56, %v48, %v53
  %v58 = vrsqrt.pop %v47
  %v59 = vmul.f32 %v58, %v47
  %v60 = vmul.f32 %v59, %v58
  %v61 = vmul.f32 0.5, %v60
  %v62 = vsub.f32 1.5, %v61
  %v63 = vmul.f32 %v58, %v62
  %vm64 = vweird.f32 %v47
  %vm65 = vweird.f32 %v58
  %vm66 = vmor %vm64, %vm65
  %v67 = vsel %vm66, %v58, %v63
  %v68 = vmul.f32 %v34, %v57
  %v69 = vmul.f32 %v35, %v67
  %v71 = vperm.slane %v16, 0
  %v73 = vmul.f32 %v68, %v71
  %v74 = vmul.f32 %v69, %v71
  %v76 = vperm.slane %v17, 0
  %v78 = vadd.f32 %v73, %v76
  %v79 = vadd.f32 %v74, %v76
  %80 = vst.msk [vmem:[%s3] sm:$0xff] %vm18, %v78
  %81 = vst.msk [vmem:[%s3 + $0x8] sm:$0xff] %vm18, %v79
  // Predicated region
  $region14: #{transformer_predictor_forward.14} parent=0 // pred_check
    _
  $region15: #{transformer_predictor_forward.14} parent=0 // pred_check_branch
    %83 = sbr.rel (0) target = $region17
  $region16: #{transformer_predictor_forward.14} parent=0 // pred_region
    _
  $region17: #{transformer_predictor_forward.14} parent=0 // pred_fallthru
    _
  // Predicated region
  $region18: #{transformer_predictor_forward.14} parent=0 // pred_check
    _
  $region19: #{transformer_predictor_forward.14} parent=0 // pred_check_branch
    %85 = sbr.rel (0) target = $region21
  $region20: #{transformer_predictor_forward.14} parent=0 // pred_region
    _
  $region21: #{transformer_predictor_forward.14} parent=0 // pred_fallthru
    _

// kernel: transformer_predictor_forward.21
$region0: #{transformer_predictor_forward.21}
  #allocation0 [shape = 'u32[]', space=smem, size = 0x4, offset = 0x4, fixed_abs, tag = 'smem constant byte address 0x4 - core index']
  #allocation1 [shape = 'u32[72,128]{1,0:T(1,128)}', space=vmem, size = 0x9000, scoped, tag = 'internal scratch']
  #allocation2 [shape = 'f32[1,1]{1,0:T(1,128)S(1)}', space=vmem, size = 0x200, scoped, tag = 'scoped memory for transformer_predictor_forward.21']
  %s0 = inlined_call_operand.vmem [shape: f32[16,32], index: 0, kind: input, shape index: {}]
  %s1 = inlined_call_operand.vmem [shape: f32[1,32], index: 1, kind: input, shape index: {}]
  %s2 = inlined_call_operand.vmem [shape: f32[1,32], index: 2, kind: input, shape index: {}]
  %s3 = inlined_call_operand.vmem [shape: f32[32,1], index: 3, kind: input, shape index: {}]
  %s4 = inlined_call_operand.<no memory space> [shape: f32[1,1], index: 4, kind: input, shape index: {}]
  %s5 = inlined_call_operand.vmem [shape: f32[2,1], index: 5, kind: output, shape index: {}]
  %s6 = sld [smem:[#allocation0]]
  $region30: #{transformer_predictor_forward.21} parent=0
    _
  %s8 = ssub.s32 1, %s6
  %s9 = scalar_select 0, %s8, %s6
  %v10 = vstv %s4
  %11 = vst [vmem:[#allocation2] sm:$0x1] %v10
  // Predicated region
  $region2: #{transformer_predictor_forward.21} parent=0 // pred_check
    _
  $region3: #{transformer_predictor_forward.21} parent=0 // pred_check_branch
    %13 = sbr.rel (0) target = $region5
  $region4: #{transformer_predictor_forward.21} parent=0 // pred_region
    _
  $region5: #{transformer_predictor_forward.21} parent=0 // pred_fallthru
    _
  // Predicated region
  $region6: #{transformer_predictor_forward.21} parent=0 // pred_check
    _
  $region7: #{transformer_predictor_forward.21} parent=0 // pred_check_branch
    %15 = sbr.rel (0) target = $region9
  $region8: #{transformer_predictor_forward.21} parent=0 // pred_region
    _
  $region9: #{transformer_predictor_forward.21} parent=0 // pred_fallthru
    _
  // Predicated region
  $region10: #{transformer_predictor_forward.21} parent=0 // pred_check
    _
  $region11: #{transformer_predictor_forward.21} parent=0 // pred_check_branch
    %17 = sbr.rel (0) target = $region13
  $region12: #{transformer_predictor_forward.21} parent=0 // pred_region
    _
  $region13: #{transformer_predictor_forward.21} parent=0 // pred_fallthru
    _
  // Predicated region
  $region14: #{transformer_predictor_forward.21} parent=0 // pred_check
    _
  $region15: #{transformer_predictor_forward.21} parent=0 // pred_check_branch
    %19 = sbr.rel (0) target = $region17
  $region16: #{transformer_predictor_forward.21} parent=0 // pred_region
    _
  $region17: #{transformer_predictor_forward.21} parent=0 // pred_fallthru
    _
  // Predicated region
  $region18: #{transformer_predictor_forward.21} parent=0 // pred_check
    _
  $region19: #{transformer_predictor_forward.21} parent=0 // pred_check_branch
    %21 = sbr.rel (0) target = $region21
  $region20: #{transformer_predictor_forward.21} parent=0 // pred_region
    _
  $region21: #{transformer_predictor_forward.21} parent=0 // pred_fallthru
    _
  %v22 = vld [vmem:[%s0] sm:$0xff]
  %v23 = vld [vmem:[%s0 + $0x8] sm:$0xff]
  %v25 = vrot.slane %v22, 7
  %v28 = vrot.slane %v23, 6
  %vm30 = vcmask 1040384
  %v31 = vsel %vm30, %v25, %v28
  %v32 = vld [vmem:[%s1] sm:$0x1]
  %v33 = vld [vmem:[%s2] sm:$0x1]
  %vm34 = vcmask 254976
  %v35 = vsel %vm34, %v31, 0.0
  %36 = vadd.xlane.f32.xlu0 %v35
  %v37 = vpop.xlane.xlu0 %36
  %v38 = vrcp.pop 32.0
  %v39 = vmul.f32 32.0, %v38
  %v40 = vsub.f32 1.0, %v39
  %v41 = vmul.f32 %v38, %v40
  %v42 = vadd.f32 %v38, %v41
  %vm43 = vweird.f32 %v38
  %v44 = vsel %vm43, %v38, %v42
  %v45 = vmul.f32 %v37, %v44
  %v46 = vsub.f32 %v31, %v45
  %v47 = vmul.f32 %v46, %v46
  %v48 = vsel %vm34, %v47, 0.0
  %49 = vadd.xlane.f32.xlu0 %v48
  %v50 = vpop.xlane.xlu0 %49
  %v51 = vmul.f32 %v50, %v44
  %v52 = vadd.f32 %v51, 1e-05
  %v53 = vrsqrt.pop %v52
  %v54 = vmul.f32 %v53, %v52
  %v55 = vmul.f32 %v54, %v53
  %v56 = vmul.f32 0.5, %v55
  %v57 = vsub.f32 1.5, %v56
  %v58 = vmul.f32 %v53, %v57
  %vm59 = vweird.f32 %v52
  %vm60 = vweird.f32 %v53
  %vm61 = vmor %vm59, %vm60
  %v62 = vsel %vm61, %v53, %v58
  %v63 = vmul.f32 %v46, %v62
  %v65 = vperm.slane %v32, 0
  %v67 = vmul.f32 %v63, %v65
  %v69 = vperm.slane %v33, 0
  %v71 = vadd.f32 %v67, %v69
  %v72 = vld [vmem:[%s3] sm:$0xff]
  %v73 = vld [vmem:[%s3 + $0x8] sm:$0xff]
  %v74 = vld [vmem:[%s3 + $0x10] sm:$0xff]
  %v75 = vld [vmem:[%s3 + $0x18] sm:$0xff]
  %v76 = vld [vmem:[#allocation2] sm:$0x1]
  %v78 = vperm.slane %v76, 0
  %vm80 = vcmask 261120
  %v82 = vsel %vm80, %v71, 0
  %84 = vmatpush.msra.mxu0 0.0
  %85 = vmatpush.msra.mxu0 0.0
  %86 = vmatpush.msra.mxu0 0.0
  %87 = vmatpush.msra.mxu0 0.0
  %88 = vmatpush.msra.mxu0 0.0
  %89 = vmatpush.msra.mxu0 0.0
  %90 = vmatpush.msra.mxu0 0.0
  %91 = vmatpush.msra.mxu0 0.0
  %92 = vmatpush.msra.mxu0 0.0
  %93 = vmatpush.msra.mxu0 0.0
  %94 = vmatpush.msra.mxu0 0.0
  %95 = vmatpush.msra.mxu0 0.0
  %96 = vmatpush.msra.mxu0 %v75
  %97 = vmatpush.msra.mxu0 %v74
  %98 = vmatpush.msra.mxu0 %v73
  %99 = vmatpush.msra.mxu0 %v72
  %100 = vmatmul.f32.gmra.mxu0 %v82
  %v101 = vpop.f32.mrf.mxu0
  %v102 = vadd.f32 %v78, %v101
  %103 = vdwg.mxu0
  %vm104 = vcmask 1024
  %105 = vst.msk [vmem:[%s5] sm:$0x3] %vm104, %v102
  // Predicated region
  $region22: #{transformer_predictor_forward.21} parent=0 // pred_check
    _
  $region23: #{transformer_predictor_forward.21} parent=0 // pred_check_branch
    %107 = sbr.rel (0) target = $region25
  $region24: #{transformer_predictor_forward.21} parent=0 // pred_region
    _
  $region25: #{transformer_predictor_forward.21} parent=0 // pred_fallthru
    _
  // Predicated region
  $region26: #{transformer_predictor_forward.21} parent=0 // pred_check
    _
  $region27: #{transformer_predictor_forward.21} parent=0 // pred_check_branch
    %109 = sbr.rel (0) target = $region29
  $region28: #{transformer_predictor_forward.21} parent=0 // pred_region
    _
  $region29: #{transformer_predictor_forward.21} parent=0 // pred_fallthru
    _

// kernel: transformer_predictor_forward.12
$region0: #{transformer_predictor_forward.12}
  #allocation0 [shape = 'u32[]', space=smem, size = 0x4, offset = 0x4, fixed_abs, tag = 'smem constant byte address 0x4 - core index']
  #allocation1 [shape = 'u32[72,128]{1,0:T(1,128)}', space=vmem, size = 0x9000, scoped, tag = 'internal scratch']
  %s0 = inlined_call_operand.vmem [shape: f32[16,32], index: 0, kind: input, shape index: {}]
  %s1 = inlined_call_operand.vmem [shape: f32[32,96], index: 1, kind: input, shape index: {}]
  %s2 = inlined_call_operand.vmem [shape: f32[1,96], index: 2, kind: input, shape index: {}]
  %s3 = inlined_call_operand.vmem [shape: f32[32,32], index: 3, kind: input, shape index: {}]
  %s4 = inlined_call_operand.vmem [shape: f32[1,32], index: 4, kind: input, shape index: {}]
  %s5 = inlined_call_operand.vmem [shape: f32[1,32], index: 5, kind: input, shape index: {}]
  %s6 = inlined_call_operand.vmem [shape: f32[1,32], index: 6, kind: input, shape index: {}]
  %s7 = inlined_call_operand.vmem [shape: f32[32,2048], index: 7, kind: input, shape index: {}]
  %s8 = inlined_call_operand.vmem [shape: f32[1,2048], index: 8, kind: input, shape index: {}]
  %s9 = inlined_call_operand.vmem [shape: f32[2048,32], index: 9, kind: input, shape index: {}]
  %s10 = inlined_call_operand.vmem [shape: f32[1,32], index: 10, kind: input, shape index: {}]
  %s11 = inlined_call_operand.vmem [shape: f32[1,32], index: 11, kind: input, shape index: {}]
  %s12 = inlined_call_operand.vmem [shape: f32[1,32], index: 12, kind: input, shape index: {}]
  %s13 = inlined_call_operand.vmem [shape: f32[16,32], index: 13, kind: output, shape index: {}]
  %s14 = sld [smem:[#allocation0]]
  $region62: #{transformer_predictor_forward.12} parent=0
    _
  %s16 = ssub.s32 1, %s14
  %s17 = scalar_select 0, %s16, %s14
  // Predicated region
  $region2: #{transformer_predictor_forward.12} parent=0 // pred_check
    _
  $region3: #{transformer_predictor_forward.12} parent=0 // pred_check_branch
    %19 = sbr.rel (0) target = $region5
  $region4: #{transformer_predictor_forward.12} parent=0 // pred_region
    _
  $region5: #{transformer_predictor_forward.12} parent=0 // pred_fallthru
    _
  // Predicated region
  $region6: #{transformer_predictor_forward.12} parent=0 // pred_check
    _
  $region7: #{transformer_predictor_forward.12} parent=0 // pred_check_branch
    %21 = sbr.rel (0) target = $region9
  $region8: #{transformer_predictor_forward.12} parent=0 // pred_region
    _
  $region9: #{transformer_predictor_forward.12} parent=0 // pred_fallthru
    _
  // Predicated region
  $region10: #{transformer_predictor_forward.12} parent=0 // pred_check
    _
  $region11: #{transformer_predictor_forward.12} parent=0 // pred_check_branch
    %23 = sbr.rel (0) target = $region13
  $region12: #{transformer_predictor_forward.12} parent=0 // pred_region
    _
  $region13: #{transformer_predictor_forward.12} parent=0 // pred_fallthru
    _
  // Predicated region
  $region14: #{transformer_predictor_forward.12} parent=0 // pred_check
    _
  $region15: #{transformer_predictor_forward.12} parent=0 // pred_check_branch
    %25 = sbr.rel (0) target = $region17
  $region16: #{transformer_predictor_forward.12} parent=0 // pred_region
    _
  $region17: #{transformer_predictor_forward.12} parent=0 // pred_fallthru
    _
  // Predicated region
  $region18: #{transformer_predictor_forward.12} parent=0 // pred_check
    _
  $region19: #{transformer_predictor_forward.12} parent=0 // pred_check_branch
    %27 = sbr.rel (0) target = $region21
  $region20: #{transformer_predictor_forward.12} parent=0 // pred_region
    _
  $region21: #{transformer_predictor_forward.12} parent=0 // pred_fallthru
    _
  // Predicated region
  $region22: #{transformer_predictor_forward.12} parent=0 // pred_check
    _
  $region23: #{transformer_predictor_forward.12} parent=0 // pred_check_branch
    %29 = sbr.rel (0) target = $region25
  $region24: #{transformer_predictor_forward.12} parent=0 // pred_region
    _
  $region25: #{transformer_predictor_forward.12} parent=0 // pred_fallthru
    _
  // Predicated region
  $region26: #{transformer_predictor_forward.12} parent=0 // pred_check
    _
  $region27: #{transformer_predictor_forward.12} parent=0 // pred_check_branch
    %31 = sbr.rel (0) target = $region29
  $region28: #{transformer_predictor_forward.12} parent=0 // pred_region
    _
  $region29: #{transformer_predictor_forward.12} parent=0 // pred_fallthru
    _
  // Predicated region
  $region30: #{transformer_predictor_forward.12} parent=0 // pred_check
    _
  $region31: #{transformer_predictor_forward.12} parent=0 // pred_check_branch
    %33 = sbr.rel (0) target = $region33
  $region32: #{transformer_predictor_forward.12} parent=0 // pred_region
    _
  $region33: #{transformer_predictor_forward.12} parent=0 // pred_fallthru
    _
  // Predicated region
  $region34: #{transformer_predictor_forward.12} parent=0 // pred_check
    _
  $region35: #{transformer_predictor_forward.12} parent=0 // pred_check_branch
    %35 = sbr.rel (0) target = $region37
  $region36: #{transformer_predictor_forward.12} parent=0 // pred_region
    _
  $region37: #{transformer_predictor_forward.12} parent=0 // pred_fallthru
    _
  // Predicated region
  $region38: #{transformer_predictor_forward.12} parent=0 // pred_check
    _
  $region39: #{transformer_predictor_forward.12} parent=0 // pred_check_branch
    %37 = sbr.rel (0) target = $region41
  $region40: #{transformer_predictor_forward.12} parent=0 // pred_region
    _
  $region41: #{transformer_predictor_forward.12} parent=0 // pred_fallthru
    _
  // Predicated region
  $region42: #{transformer_predictor_forward.12} parent=0 // pred_check
    _
  $region43: #{transformer_predictor_forward.12} parent=0 // pred_check_branch
    %39 = sbr.rel (0) target = $region45
  $region44: #{transformer_predictor_forward.12} parent=0 // pred_region
    _
  $region45: #{transformer_predictor_forward.12} parent=0 // pred_fallthru
    _
  // Predicated region
  $region46: #{transformer_predictor_forward.12} parent=0 // pred_check
    _
  $region47: #{transformer_predictor_forward.12} parent=0 // pred_check_branch
    %41 = sbr.rel (0) target = $region49
  $region48: #{transformer_predictor_forward.12} parent=0 // pred_region
    _
  $region49: #{transformer_predictor_forward.12} parent=0 // pred_fallthru
    _
  // Predicated region
  $region50: #{transformer_predictor_forward.12} parent=0 // pred_check
    _
  $region51: #{transformer_predictor_forward.12} parent=0 // pred_check_branch
    %43 = sbr.rel (0) target = $region53
  $region52: #{transformer_predictor_forward.12} parent=0 // pred_region
    _
  $region53: #{transformer_predictor_forward.12} parent=0 // pred_fallthru
    _
  %v44 = vld [vmem:[%s0] sm:$0xff]
  %v45 = vld [vmem:[%s0 + $0x8] sm:$0xff]
  %v46 = vld [vmem:[%s1] sm:$0xff]
  %v47 = vld [vmem:[%s1 + $0x8] sm:$0xff]
  %v48 = vld [vmem:[%s1 + $0x10] sm:$0xff]
  %v49 = vld [vmem:[%s1 + $0x18] sm:$0xff]
  %v50 = vld [vmem:[%s2] sm:$0x1]
  %v51 = vld [vmem:[%s3] sm:$0xff]
  %v52 = vld [vmem:[%s3 + $0x8] sm:$0xff]
  %v53 = vld [vmem:[%s3 + $0x10] sm:$0xff]
  %v54 = vld [vmem:[%s3 + $0x18] sm:$0xff]
  %v55 = vld [vmem:[%s4] sm:$0x1]
  %v57 = vperm.slane %v50, 0
  %vm59 = vcmask 261120
  %v61 = vsel %vm59, %v44, 0
  %v64 = vsel %vm59, %v45, 0
  %66 = vmatpush.msra.mxu0 0.0
  %67 = vmatpush.msra.mxu0 0.0
  %68 = vmatpush.msra.mxu0 0.0
  %69 = vmatpush.msra.mxu0 0.0
  %70 = vmatpush.msra.mxu0 0.0
  %71 = vmatpush.msra.mxu0 0.0
  %72 = vmatpush.msra.mxu0 0.0
  %73 = vmatpush.msra.mxu0 0.0
  %74 = vmatpush.msra.mxu0 0.0
  %75 = vmatpush.msra.mxu0 0.0
  %76 = vmatpush.msra.mxu0 0.0
  %77 = vmatpush.msra.mxu0 0.0
  %78 = vmatpush.msra.mxu0 %v49
  %79 = vmatpush.msra.mxu0 %v48
  %80 = vmatpush.msra.mxu0 %v47
  %81 = vmatpush.msra.mxu0 %v46
  %82 = vmatmul.f32.gmra.mxu0 %v61
  %v83 = vpop.f32.mrf.mxu0
  %v84 = vadd.f32 %v57, %v83
  %85 = vmatmul.f32.gmra.mxu0 %v64
  %v86 = vpop.f32.mrf.mxu0
  %v87 = vadd.f32 %v57, %v86
  %88 = vdwg.mxu0
  %90 = vrot.lane.b32.xlu0 %v84, 96
  %v91 = vpop.permute.xlu0 %90
  %vm92 = vcmask 64512
  %v93 = vsel %vm92, %v84, 0
  %v95 = vsel %vm92, %v91, 0
  %97 = vmatpush.xpose.msra.mxu0 0.0
  %98 = vmatpush.xpose.msra.mxu0 0.0
  %99 = vmatpush.xpose.msra.mxu0 0.0
  %100 = vmatpush.xpose.msra.mxu0 0.0
  %101 = vmatpush.xpose.msra.mxu0 0.0
  %102 = vmatpush.xpose.msra.mxu0 0.0
  %103 = vmatpush.xpose.msra.mxu0 0.0
  %104 = vmatpush.xpose.msra.mxu0 0.0
  %105 = vmatpush.xpose.msra.mxu0 0.0
  %106 = vmatpush.xpose.msra.mxu0 0.0
  %107 = vmatpush.xpose.msra.mxu0 0.0
  %108 = vmatpush.xpose.msra.mxu0 0.0
  %109 = vmatpush.xpose.msra.mxu0 0.0
  %110 = vmatpush.xpose.msra.mxu0 0.0
  %111 = vmatpush.xpose.msra.mxu0 0.0
  %112 = vmatpush.xpose.msra.mxu0 %v95
  %113 = vmatmul.f32.gmra.mxu0 %v93
  %v114 = vpop.f32.mrf.mxu0
  %v115 = vadd.f32 0.0, %v114
  %116 = vdwg.mxu0
  %v117 = vmul.f32 %v115, 0.35355338
  %v118 = vsel %vm92, %v117, -inf
  %119 = vmax.xlane.f32.xlu0 %v118
  %v120 = vpop.xlane.xlu0 %119
  %v121 = vsub.f32 %v117, %v120
  %v122 = vmul.f32 %v121, 1.442695
  %v123 = vpow.pop %v122
  %v124 = vsel %vm92, %v123, 0.0
  %125 = vadd.xlane.f32.xlu0 %v124
  %v126 = vpop.xlane.xlu0 %125
  %v127 = vrcp.pop %v126
  %v128 = vmul.f32 %v123, %v127
  %129 = vrot.lane.b32.xlu0 %v84, 64
  %v130 = vpop.permute.xlu0 %129
  %v133 = vsel %vm92, %v128, 0
  %135 = vmatpush.msra.mxu0 0.0
  %136 = vmatpush.msra.mxu0 0.0
  %137 = vmatpush.msra.mxu0 0.0
  %138 = vmatpush.msra.mxu0 0.0
  %139 = vmatpush.msra.mxu0 0.0
  %140 = vmatpush.msra.mxu0 0.0
  %141 = vmatpush.msra.mxu0 0.0
  %142 = vmatpush.msra.mxu0 0.0
  %143 = vmatpush.msra.mxu0 0.0
  %144 = vmatpush.msra.mxu0 0.0
  %145 = vmatpush.msra.mxu0 0.0
  %146 = vmatpush.msra.mxu0 0.0
  %147 = vmatpush.msra.mxu0 0.0
  %148 = vmatpush.msra.mxu0 0.0
  %149 = vmatpush.msra.mxu0 0.0
  %150 = vmatpush.msra.mxu0 %v130
  %151 = vmatmul.f32.gmra.mxu0 %v133
  %v152 = vpop.f32.mrf.mxu0
  %v153 = vadd.f32 0.0, %v152
  %154 = vdwg.mxu0
  %155 = vrot.lane.b32.xlu0 %v84, 120
  %v156 = vpop.permute.xlu0 %155
  %157 = vrot.lane.b32.xlu0 %v84, 88
  %v158 = vpop.permute.xlu0 %157
  %v159 = vsel %vm92, %v156, 0
  %v161 = vsel %vm92, %v158, 0
  %163 = vmatpush.xpose.msra.mxu0 0.0
  %164 = vmatpush.xpose.msra.mxu0 0.0
  %165 = vmatpush.xpose.msra.mxu0 0.0
  %166 = vmatpush.xpose.msra.mxu0 0.0
  %167 = vmatpush.xpose.msra.mxu0 0.0
  %168 = vmatpush.xpose.msra.mxu0 0.0
  %169 = vmatpush.xpose.msra.mxu0 0.0
  %170 = vmatpush.xpose.msra.mxu0 0.0
  %171 = vmatpush.xpose.msra.mxu0 0.0
  %172 = vmatpush.xpose.msra.mxu0 0.0
  %173 = vmatpush.xpose.msra.mxu0 0.0
  %174 = vmatpush.xpose.msra.mxu0 0.0
  %175 = vmatpush.xpose.msra.mxu0 0.0
  %176 = vmatpush.xpose.msra.mxu0 0.0
  %177 = vmatpush.xpose.msra.mxu0 0.0
  %178 = vmatpush.xpose.msra.mxu0 %v161
  %179 = vmatmul.f32.gmra.mxu0 %v159
  %v180 = vpop.f32.mrf.mxu0
  %v181 = vadd.f32 0.0, %v180
  %182 = vdwg.mxu0
  %v183 = vmul.f32 %v181, 0.35355338
  %v184 = vsel %vm92, %v183, -inf
  %185 = vmax.xlane.f32.xlu0 %v184
  %v186 = vpop.xlane.xlu0 %185
  %v187 = vsub.f32 %v183, %v186
  %v188 = vmul.f32 %v187, 1.442695
  %v189 = vpow.pop %v188
  %v190 = vsel %vm92, %v189, 0.0
  %191 = vadd.xlane.f32.xlu0 %v190
  %v192 = vpop.xlane.xlu0 %191
  %v193 = vrcp.pop %v192
  %v194 = vmul.f32 %v189, %v193
  %195 = vrot.lane.b32.xlu0 %v84, 56
  %v196 = vpop.permute.xlu0 %195
  %v199 = vsel %vm92, %v194, 0
  %201 = vmatpush.msra.mxu0 0.0
  %202 = vmatpush.msra.mxu0 0.0
  %203 = vmatpush.msra.mxu0 0.0
  %204 = vmatpush.msra.mxu0 0.0
  %205 = vmatpush.msra.mxu0 0.0
  %206 = vmatpush.msra.mxu0 0.0
  %207 = vmatpush.msra.mxu0 0.0
  %208 = vmatpush.msra.mxu0 0.0
  %209 = vmatpush.msra.mxu0 0.0
  %210 = vmatpush.msra.mxu0 0.0
  %211 = vmatpush.msra.mxu0 0.0
  %212 = vmatpush.msra.mxu0 0.0
  %213 = vmatpush.msra.mxu0 0.0
  %214 = vmatpush.msra.mxu0 0.0
  %215 = vmatpush.msra.mxu0 0.0
  %216 = vmatpush.msra.mxu0 %v196
  %217 = vmatmul.f32.gmra.mxu0 %v199
  %v218 = vpop.f32.mrf.mxu0
  %v219 = vadd.f32 0.0, %v218
  %220 = vdwg.mxu0
  %221 = vrot.lane.b32.xlu0 %v84, 112
  %v222 = vpop.permute.xlu0 %221
  %223 = vrot.lane.b32.xlu0 %v84, 80
  %v224 = vpop.permute.xlu0 %223
  %v225 = vsel %vm92, %v222, 0
  %v227 = vsel %vm92, %v224, 0
  %229 = vmatpush.xpose.msra.mxu0 0.0
  %230 = vmatpush.xpose.msra.mxu0 0.0
  %231 = vmatpush.xpose.msra.mxu0 0.0
  %232 = vmatpush.xpose.msra.mxu0 0.0
  %233 = vmatpush.xpose.msra.mxu0 0.0
  %234 = vmatpush.xpose.msra.mxu0 0.0
  %235 = vmatpush.xpose.msra.mxu0 0.0
  %236 = vmatpush.xpose.msra.mxu0 0.0
  %237 = vmatpush.xpose.msra.mxu0 0.0
  %238 = vmatpush.xpose.msra.mxu0 0.0
  %239 = vmatpush.xpose.msra.mxu0 0.0
  %240 = vmatpush.xpose.msra.mxu0 0.0
  %241 = vmatpush.xpose.msra.mxu0 0.0
  %242 = vmatpush.xpose.msra.mxu0 0.0
  %243 = vmatpush.xpose.msra.mxu0 0.0
  %244 = vmatpush.xpose.msra.mxu0 %v227
  %245 = vmatmul.f32.gmra.mxu0 %v225
  %v246 = vpop.f32.mrf.mxu0
  %v247 = vadd.f32 0.0, %v246
  %248 = vdwg.mxu0
  %v249 = vmul.f32 %v247, 0.35355338
  %v250 = vsel %vm92, %v249, -inf
  %251 = vmax.xlane.f32.xlu0 %v250
  %v252 = vpop.xlane.xlu0 %251
  %v253 = vsub.f32 %v249, %v252
  %v254 = vmul.f32 %v253, 1.442695
  %v255 = vpow.pop %v254
  %v256 = vsel %vm92, %v255, 0.0
  %257 = vadd.xlane.f32.xlu0 %v256
  %v258 = vpop.xlane.xlu0 %257
  %v259 = vrcp.pop %v258
  %v260 = vmul.f32 %v255, %v259
  %261 = vrot.lane.b32.xlu0 %v84, 48
  %v262 = vpop.permute.xlu0 %261
  %v265 = vsel %vm92, %v260, 0
  %267 = vmatpush.msra.mxu0 0.0
  %268 = vmatpush.msra.mxu0 0.0
  %269 = vmatpush.msra.mxu0 0.0
  %270 = vmatpush.msra.mxu0 0.0
  %271 = vmatpush.msra.mxu0 0.0
  %272 = vmatpush.msra.mxu0 0.0
  %273 = vmatpush.msra.mxu0 0.0
  %274 = vmatpush.msra.mxu0 0.0
  %275 = vmatpush.msra.mxu0 0.0
  %276 = vmatpush.msra.mxu0 0.0
  %277 = vmatpush.msra.mxu0 0.0
  %278 = vmatpush.msra.mxu0 0.0
  %279 = vmatpush.msra.mxu0 0.0
  %280 = vmatpush.msra.mxu0 0.0
  %281 = vmatpush.msra.mxu0 0.0
  %282 = vmatpush.msra.mxu0 %v262
  %283 = vmatmul.f32.gmra.mxu0 %v265
  %v284 = vpop.f32.mrf.mxu0
  %v285 = vadd.f32 0.0, %v284
  %286 = vdwg.mxu0
  %287 = vrot.lane.b32.xlu0 %v84, 104
  %v288 = vpop.permute.xlu0 %287
  %289 = vrot.lane.b32.xlu0 %v84, 72
  %v290 = vpop.permute.xlu0 %289
  %v291 = vsel %vm92, %v288, 0
  %v293 = vsel %vm92, %v290, 0
  %295 = vmatpush.xpose.msra.mxu0 0.0
  %296 = vmatpush.xpose.msra.mxu0 0.0
  %297 = vmatpush.xpose.msra.mxu0 0.0
  %298 = vmatpush.xpose.msra.mxu0 0.0
  %299 = vmatpush.xpose.msra.mxu0 0.0
  %300 = vmatpush.xpose.msra.mxu0 0.0
  %301 = vmatpush.xpose.msra.mxu0 0.0
  %302 = vmatpush.xpose.msra.mxu0 0.0
  %303 = vmatpush.xpose.msra.mxu0 0.0
  %304 = vmatpush.xpose.msra.mxu0 0.0
  %305 = vmatpush.xpose.msra.mxu0 0.0
  %306 = vmatpush.xpose.msra.mxu0 0.0
  %307 = vmatpush.xpose.msra.mxu0 0.0
  %308 = vmatpush.xpose.msra.mxu0 0.0
  %309 = vmatpush.xpose.msra.mxu0 0.0
  %310 = vmatpush.xpose.msra.mxu0 %v293
  %311 = vmatmul.f32.gmra.mxu0 %v291
  %v312 = vpop.f32.mrf.mxu0
  %v313 = vadd.f32 0.0, %v312
  %314 = vdwg.mxu0
  %v315 = vmul.f32 %v313, 0.35355338
  %v316 = vsel %vm92, %v315, -inf
  %317 = vmax.xlane.f32.xlu0 %v316
  %v318 = vpop.xlane.xlu0 %317
  %v319 = vsub.f32 %v315, %v318
  %v320 = vmul.f32 %v319, 1.442695
  %v321 = vpow.pop %v320
  %v322 = vsel %vm92, %v321, 0.0
  %323 = vadd.xlane.f32.xlu0 %v322
  %v324 = vpop.xlane.xlu0 %323
  %v325 = vrcp.pop %v324
  %v326 = vmul.f32 %v321, %v325
  %327 = vrot.lane.b32.xlu0 %v84, 40
  %v328 = vpop.permute.xlu0 %327
  %v331 = vsel %vm92, %v326, 0
  %333 = vmatpush.msra.mxu0 0.0
  %334 = vmatpush.msra.mxu0 0.0
  %335 = vmatpush.msra.mxu0 0.0
  %336 = vmatpush.msra.mxu0 0.0
  %337 = vmatpush.msra.mxu0 0.0
  %338 = vmatpush.msra.mxu0 0.0
  %339 = vmatpush.msra.mxu0 0.0
  %340 = vmatpush.msra.mxu0 0.0
  %341 = vmatpush.msra.mxu0 0.0
  %342 = vmatpush.msra.mxu0 0.0
  %343 = vmatpush.msra.mxu0 0.0
  %344 = vmatpush.msra.mxu0 0.0
  %345 = vmatpush.msra.mxu0 0.0
  %346 = vmatpush.msra.mxu0 0.0
  %347 = vmatpush.msra.mxu0 0.0
  %348 = vmatpush.msra.mxu0 %v328
  %349 = vmatmul.f32.gmra.mxu0 %v331
  %v350 = vpop.f32.mrf.mxu0
  %v351 = vadd.f32 0.0, %v350
  %352 = vdwg.mxu0
  %354 = vrot.lane.b32.xlu0 %v219, 8
  %v355 = vpop.permute.xlu0 %354
  %358 = vrot.lane.b32.xlu0 %v285, 16
  %v359 = vpop.permute.xlu0 %358
  %362 = vrot.lane.b32.xlu0 %v351, 24
  %v363 = vpop.permute.xlu0 %362
  %v365 = vsel %vm92, %v153, %v355
  %vm366 = vcmask 130048
  %v367 = vsel %vm366, %v365, %v359
  %vm368 = vcmask 195584
  %v369 = vsel %vm368, %v367, %v363
  %371 = vrot.lane.b32.xlu0 %v87, 96
  %v372 = vpop.permute.xlu0 %371
  %v373 = vsel %vm92, %v87, 0
  %v375 = vsel %vm92, %v372, 0
  %377 = vmatpush.xpose.msra.mxu0 0.0
  %378 = vmatpush.xpose.msra.mxu0 0.0
  %379 = vmatpush.xpose.msra.mxu0 0.0
  %380 = vmatpush.xpose.msra.mxu0 0.0
  %381 = vmatpush.xpose.msra.mxu0 0.0
  %382 = vmatpush.xpose.msra.mxu0 0.0
  %383 = vmatpush.xpose.msra.mxu0 0.0
  %384 = vmatpush.xpose.msra.mxu0 0.0
  %385 = vmatpush.xpose.msra.mxu0 0.0
  %386 = vmatpush.xpose.msra.mxu0 0.0
  %387 = vmatpush.xpose.msra.mxu0 0.0
  %388 = vmatpush.xpose.msra.mxu0 0.0
  %389 = vmatpush.xpose.msra.mxu0 0.0
  %390 = vmatpush.xpose.msra.mxu0 0.0
  %391 = vmatpush.xpose.msra.mxu0 0.0
  %392 = vmatpush.xpose.msra.mxu0 %v375
  %393 = vmatmul.f32.gmra.mxu0 %v373
  %v394 = vpop.f32.mrf.mxu0
  %v395 = vadd.f32 0.0, %v394
  %396 = vdwg.mxu0
  %v397 = vmul.f32 %v395, 0.35355338
  %v398 = vsel %vm92, %v397, -inf
  %399 = vmax.xlane.f32.xlu0 %v398
  %v400 = vpop.xlane.xlu0 %399
  %v401 = vsub.f32 %v397, %v400
  %v402 = vmul.f32 %v401, 1.442695
  %v403 = vpow.pop %v402
  %v404 = vsel %vm92, %v403, 0.0
  %405 = vadd.xlane.f32.xlu0 %v404
  %v406 = vpop.xlane.xlu0 %405
  %v407 = vrcp.pop %v406
  %v408 = vmul.f32 %v403, %v407
  %409 = vrot.lane.b32.xlu0 %v87, 64
  %v410 = vpop.permute.xlu0 %409
  %v413 = vsel %vm92, %v408, 0
  %415 = vmatpush.msra.mxu0 0.0
  %416 = vmatpush.msra.mxu0 0.0
  %417 = vmatpush.msra.mxu0 0.0
  %418 = vmatpush.msra.mxu0 0.0
  %419 = vmatpush.msra.mxu0 0.0
  %420 = vmatpush.msra.mxu0 0.0
  %421 = vmatpush.msra.mxu0 0.0
  %422 = vmatpush.msra.mxu0 0.0
  %423 = vmatpush.msra.mxu0 0.0
  %424 = vmatpush.msra.mxu0 0.0
  %425 = vmatpush.msra.mxu0 0.0
  %426 = vmatpush.msra.mxu0 0.0
  %427 = vmatpush.msra.mxu0 0.0
  %428 = vmatpush.msra.mxu0 0.0
  %429 = vmatpush.msra.mxu0 0.0
  %430 = vmatpush.msra.mxu0 %v410
  %431 = vmatmul.f32.gmra.mxu0 %v413
  %v432 = vpop.f32.mrf.mxu0
  %v433 = vadd.f32 0.0, %v432
  %434 = vdwg.mxu0
  %435 = vrot.lane.b32.xlu0 %v87, 120
  %v436 = vpop.permute.xlu0 %435
  %437 = vrot.lane.b32.xlu0 %v87, 88
  %v438 = vpop.permute.xlu0 %437
  %v439 = vsel %vm92, %v436, 0
  %v441 = vsel %vm92, %v438, 0
  %443 = vmatpush.xpose.msra.mxu0 0.0
  %444 = vmatpush.xpose.msra.mxu0 0.0
  %445 = vmatpush.xpose.msra.mxu0 0.0
  %446 = vmatpush.xpose.msra.mxu0 0.0
  %447 = vmatpush.xpose.msra.mxu0 0.0
  %448 = vmatpush.xpose.msra.mxu0 0.0
  %449 = vmatpush.xpose.msra.mxu0 0.0
  %450 = vmatpush.xpose.msra.mxu0 0.0
  %451 = vmatpush.xpose.msra.mxu0 0.0
  %452 = vmatpush.xpose.msra.mxu0 0.0
  %453 = vmatpush.xpose.msra.mxu0 0.0
  %454 = vmatpush.xpose.msra.mxu0 0.0
  %455 = vmatpush.xpose.msra.mxu0 0.0
  %456 = vmatpush.xpose.msra.mxu0 0.0
  %457 = vmatpush.xpose.msra.mxu0 0.0
  %458 = vmatpush.xpose.msra.mxu0 %v441
  %459 = vmatmul.f32.gmra.mxu0 %v439
  %v460 = vpop.f32.mrf.mxu0
  %v461 = vadd.f32 0.0, %v460
  %462 = vdwg.mxu0
  %v463 = vmul.f32 %v461, 0.35355338
  %v464 = vsel %vm92, %v463, -inf
  %465 = vmax.xlane.f32.xlu0 %v464
  %v466 = vpop.xlane.xlu0 %465
  %v467 = vsub.f32 %v463, %v466
  %v468 = vmul.f32 %v467, 1.442695
  %v469 = vpow.pop %v468
  %v470 = vsel %vm92, %v469, 0.0
  %471 = vadd.xlane.f32.xlu0 %v470
  %v472 = vpop.xlane.xlu0 %471
  %v473 = vrcp.pop %v472
  %v474 = vmul.f32 %v469, %v473
  %475 = vrot.lane.b32.xlu0 %v87, 56
  %v476 = vpop.permute.xlu0 %475
  %v479 = vsel %vm92, %v474, 0
  %481 = vmatpush.msra.mxu0 0.0
  %482 = vmatpush.msra.mxu0 0.0
  %483 = vmatpush.msra.mxu0 0.0
  %484 = vmatpush.msra.mxu0 0.0
  %485 = vmatpush.msra.mxu0 0.0
  %486 = vmatpush.msra.mxu0 0.0
  %487 = vmatpush.msra.mxu0 0.0
  %488 = vmatpush.msra.mxu0 0.0
  %489 = vmatpush.msra.mxu0 0.0
  %490 = vmatpush.msra.mxu0 0.0
  %491 = vmatpush.msra.mxu0 0.0
  %492 = vmatpush.msra.mxu0 0.0
  %493 = vmatpush.msra.mxu0 0.0
  %494 = vmatpush.msra.mxu0 0.0
  %495 = vmatpush.msra.mxu0 0.0
  %496 = vmatpush.msra.mxu0 %v476
  %497 = vmatmul.f32.gmra.mxu0 %v479
  %v498 = vpop.f32.mrf.mxu0
  %v499 = vadd.f32 0.0, %v498
  %500 = vdwg.mxu0
  %501 = vrot.lane.b32.xlu0 %v87, 112
  %v502 = vpop.permute.xlu0 %501
  %503 = vrot.lane.b32.xlu0 %v87, 80
  %v504 = vpop.permute.xlu0 %503
  %v505 = vsel %vm92, %v502, 0
  %v507 = vsel %vm92, %v504, 0
  %509 = vmatpush.xpose.msra.mxu0 0.0
  %510 = vmatpush.xpose.msra.mxu0 0.0
  %511 = vmatpush.xpose.msra.mxu0 0.0
  %512 = vmatpush.xpose.msra.mxu0 0.0
  %513 = vmatpush.xpose.msra.mxu0 0.0
  %514 = vmatpush.xpose.msra.mxu0 0.0
  %515 = vmatpush.xpose.msra.mxu0 0.0
  %516 = vmatpush.xpose.msra.mxu0 0.0
  %517 = vmatpush.xpose.msra.mxu0 0.0
  %518 = vmatpush.xpose.msra.mxu0 0.0
  %519 = vmatpush.xpose.msra.mxu0 0.0
  %520 = vmatpush.xpose.msra.mxu0 0.0
  %521 = vmatpush.xpose.msra.mxu0 0.0
  %522 = vmatpush.xpose.msra.mxu0 0.0
  %523 = vmatpush.xpose.msra.mxu0 0.0
  %524 = vmatpush.xpose.msra.mxu0 %v507
  %525 = vmatmul.f32.gmra.mxu0 %v505
  %v526 = vpop.f32.mrf.mxu0
  %v527 = vadd.f32 0.0, %v526
  %528 = vdwg.mxu0
  %v529 = vmul.f32 %v527, 0.35355338
  %v530 = vsel %vm92, %v529, -inf
  %531 = vmax.xlane.f32.xlu0 %v530
  %v532 = vpop.xlane.xlu0 %531
  %v533 = vsub.f32 %v529, %v532
  %v534 = vmul.f32 %v533, 1.442695
  %v535 = vpow.pop %v534
  %v536 = vsel %vm92, %v535, 0.0
  %537 = vadd.xlane.f32.xlu0 %v536
  %v538 = vpop.xlane.xlu0 %537
  %v539 = vrcp.pop %v538
  %v540 = vmul.f32 %v535, %v539
  %541 = vrot.lane.b32.xlu0 %v87, 48
  %v542 = vpop.permute.xlu0 %541
  %v545 = vsel %vm92, %v540, 0
  %547 = vmatpush.msra.mxu0 0.0
  %548 = vmatpush.msra.mxu0 0.0
  %549 = vmatpush.msra.mxu0 0.0
  %550 = vmatpush.msra.mxu0 0.0
  %551 = vmatpush.msra.mxu0 0.0
  %552 = vmatpush.msra.mxu0 0.0
  %553 = vmatpush.msra.mxu0 0.0
  %554 = vmatpush.msra.mxu0 0.0
  %555 = vmatpush.msra.mxu0 0.0
  %556 = vmatpush.msra.mxu0 0.0
  %557 = vmatpush.msra.mxu0 0.0
  %558 = vmatpush.msra.mxu0 0.0
  %559 = vmatpush.msra.mxu0 0.0
  %560 = vmatpush.msra.mxu0 0.0
  %561 = vmatpush.msra.mxu0 0.0
  %562 = vmatpush.msra.mxu0 %v542
  %563 = vmatmul.f32.gmra.mxu0 %v545
  %v564 = vpop.f32.mrf.mxu0
  %v565 = vadd.f32 0.0, %v564
  %566 = vdwg.mxu0
  %567 = vrot.lane.b32.xlu0 %v87, 104
  %v568 = vpop.permute.xlu0 %567
  %569 = vrot.lane.b32.xlu0 %v87, 72
  %v570 = vpop.permute.xlu0 %569
  %v571 = vsel %vm92, %v568, 0
  %v573 = vsel %vm92, %v570, 0
  %575 = vmatpush.xpose.msra.mxu0 0.0
  %576 = vmatpush.xpose.msra.mxu0 0.0
  %577 = vmatpush.xpose.msra.mxu0 0.0
  %578 = vmatpush.xpose.msra.mxu0 0.0
  %579 = vmatpush.xpose.msra.mxu0 0.0
  %580 = vmatpush.xpose.msra.mxu0 0.0
  %581 = vmatpush.xpose.msra.mxu0 0.0
  %582 = vmatpush.xpose.msra.mxu0 0.0
  %583 = vmatpush.xpose.msra.mxu0 0.0
  %584 = vmatpush.xpose.msra.mxu0 0.0
  %585 = vmatpush.xpose.msra.mxu0 0.0
  %586 = vmatpush.xpose.msra.mxu0 0.0
  %587 = vmatpush.xpose.msra.mxu0 0.0
  %588 = vmatpush.xpose.msra.mxu0 0.0
  %589 = vmatpush.xpose.msra.mxu0 0.0
  %590 = vmatpush.xpose.msra.mxu0 %v573
  %591 = vmatmul.f32.gmra.mxu0 %v571
  %v592 = vpop.f32.mrf.mxu0
  %v593 = vadd.f32 0.0, %v592
  %594 = vdwg.mxu0
  %v595 = vmul.f32 %v593, 0.35355338
  %v596 = vsel %vm92, %v595, -inf
  %597 = vmax.xlane.f32.xlu0 %v596
  %v598 = vpop.xlane.xlu0 %597
  %v599 = vsub.f32 %v595, %v598
  %v600 = vmul.f32 %v599, 1.442695
  %v601 = vpow.pop %v600
  %v602 = vsel %vm92, %v601, 0.0
  %603 = vadd.xlane.f32.xlu0 %v602
  %v604 = vpop.xlane.xlu0 %603
  %v605 = vrcp.pop %v604
  %v606 = vmul.f32 %v601, %v605
  %607 = vrot.lane.b32.xlu0 %v87, 40
  %v608 = vpop.permute.xlu0 %607
  %v611 = vsel %vm92, %v606, 0
  %613 = vmatpush.msra.mxu0 0.0
  %614 = vmatpush.msra.mxu0 0.0
  %615 = vmatpush.msra.mxu0 0.0
  %616 = vmatpush.msra.mxu0 0.0
  %617 = vmatpush.msra.mxu0 0.0
  %618 = vmatpush.msra.mxu0 0.0
  %619 = vmatpush.msra.mxu0 0.0
  %620 = vmatpush.msra.mxu0 0.0
  %621 = vmatpush.msra.mxu0 0.0
  %622 = vmatpush.msra.mxu0 0.0
  %623 = vmatpush.msra.mxu0 0.0
  %624 = vmatpush.msra.mxu0 0.0
  %625 = vmatpush.msra.mxu0 0.0
  %626 = vmatpush.msra.mxu0 0.0
  %627 = vmatpush.msra.mxu0 0.0
  %628 = vmatpush.msra.mxu0 %v608
  %629 = vmatmul.f32.gmra.mxu0 %v611
  %v630 = vpop.f32.mrf.mxu0
  %v631 = vadd.f32 0.0, %v630
  %632 = vdwg.mxu0
  %634 = vrot.lane.b32.xlu0 %v499, 8
  %v635 = vpop.permute.xlu0 %634
  %638 = vrot.lane.b32.xlu0 %v565, 16
  %v639 = vpop.permute.xlu0 %638
  %642 = vrot.lane.b32.xlu0 %v631, 24
  %v643 = vpop.permute.xlu0 %642
  %v645 = vsel %vm92, %v433, %v635
  %v646 = vsel %vm366, %v645, %v639
  %v647 = vsel %vm368, %v646, %v643
  %v649 = vperm.slane %v55, 0
  %v652 = vsel %vm59, %v369, 0
  %v655 = vsel %vm59, %v647, 0
  %657 = vmatpush.msra.mxu0 0.0
  %658 = vmatpush.msra.mxu0 0.0
  %659 = vmatpush.msra.mxu0 0.0
  %660 = vmatpush.msra.mxu0 0.0
  %661 = vmatpush.msra.mxu0 0.0
  %662 = vmatpush.msra.mxu0 0.0
  %663 = vmatpush.msra.mxu0 0.0
  %664 = vmatpush.msra.mxu0 0.0
  %665 = vmatpush.msra.mxu0 0.0
  %666 = vmatpush.msra.mxu0 0.0
  %667 = vmatpush.msra.mxu0 0.0
  %668 = vmatpush.msra.mxu0 0.0
  %669 = vmatpush.msra.mxu0 %v54
  %670 = vmatpush.msra.mxu0 %v53
  %671 = vmatpush.msra.mxu0 %v52
  %672 = vmatpush.msra.mxu0 %v51
  %673 = vmatmul.f32.gmra.mxu0 %v652
  %v674 = vpop.f32.mrf.mxu0
  %v675 = vadd.f32 %v649, %v674
  %676 = vmatmul.f32.gmra.mxu0 %v655
  %v677 = vpop.f32.mrf.mxu0
  %v678 = vadd.f32 %v649, %v677
  %679 = vdwg.mxu0
  %v680 = vadd.f32 %v44, %v675
  %v681 = vadd.f32 %v45, %v678
  %v682 = vld [vmem:[%s5] sm:$0x1]
  %v683 = vld [vmem:[%s6] sm:$0x1]
  %v684 = vsel %vm59, %v680, 0.0
  %685 = vadd.xlane.f32.xlu0 %v684
  %v686 = vpop.xlane.xlu0 %685
  %v687 = vsel %vm59, %v681, 0.0
  %688 = vadd.xlane.f32.xlu0 %v687
  %v689 = vpop.xlane.xlu0 %688
  %v690 = vrcp.pop 32.0
  %v691 = vmul.f32 32.0, %v690
  %v692 = vsub.f32 1.0, %v691
  %v693 = vmul.f32 %v690, %v692
  %v694 = vadd.f32 %v690, %v693
  %vm695 = vweird.f32 %v690
  %v696 = vsel %vm695, %v690, %v694
  %v697 = vmul.f32 %v686, %v696
  %v698 = vmul.f32 %v689, %v696
  %v699 = vsub.f32 %v680, %v697
  %v700 = vsub.f32 %v681, %v698
  %v701 = vmul.f32 %v699, %v699
  %v702 = vmul.f32 %v700, %v700
  %v703 = vsel %vm59, %v701, 0.0
  %704 = vadd.xlane.f32.xlu0 %v703
  %v705 = vpop.xlane.xlu0 %704
  %v706 = vsel %vm59, %v702, 0.0
  %707 = vadd.xlane.f32.xlu0 %v706
  %v708 = vpop.xlane.xlu0 %707
  %v709 = vmul.f32 %v705, %v696
  %v710 = vmul.f32 %v708, %v696
  %v711 = vadd.f32 %v709, 1e-05
  %v712 = vadd.f32 %v710, 1e-05
  %v713 = vrsqrt.pop %v711
  %v714 = vmul.f32 %v713, %v711
  %v715 = vmul.f32 %v714, %v713
  %v716 = vmul.f32 0.5, %v715
  %v717 = vsub.f32 1.5, %v716
  %v718 = vmul.f32 %v713, %v717
  %vm719 = vweird.f32 %v711
  %vm720 = vweird.f32 %v713
  %vm721 = vmor %vm719, %vm720
  %v722 = vsel %vm721, %v713, %v718
  %v723 = vrsqrt.pop %v712
  %v724 = vmul.f32 %v723, %v712
  %v725 = vmul.f32 %v724, %v723
  %v726 = vmul.f32 0.5, %v725
  %v727 = vsub.f32 1.5, %v726
  %v728 = vmul.f32 %v723, %v727
  %vm729 = vweird.f32 %v712
  %vm730 = vweird.f32 %v723
  %vm731 = vmor %vm729, %vm730
  %v732 = vsel %vm731, %v723, %v728
  %v733 = vmul.f32 %v699, %v722
  %v734 = vmul.f32 %v700, %v732
  %v736 = vperm.slane %v682, 0
  %v738 = vmul.f32 %v733, %v736
  %v739 = vmul.f32 %v734, %v736
  %v741 = vperm.slane %v683, 0
  %v743 = vadd.f32 %v738, %v741
  %v744 = vadd.f32 %v739, %v741
  %v745 = vld [vmem:[%s7] sm:$0xff]
  %v746 = vld [vmem:[%s7 + $0x8] sm:$0xff]
  %v747 = vld [vmem:[%s7 + $0x10] sm:$0xff]
  %v748 = vld [vmem:[%s7 + $0x18] sm:$0xff]
  %v749 = vld [vmem:[%s7 + $0x20] sm:$0xff]
  %v750 = vld [vmem:[%s7 + $0x28] sm:$0xff]
  %v751 = vld [vmem:[%s7 + $0x30] sm:$0xff]
  %v752 = vld [vmem:[%s7 + $0x38] sm:$0xff]
  %v753 = vld [vmem:[%s7 + $0x40] sm:$0xff]
  %v754 = vld [vmem:[%s7 + $0x48] sm:$0xff]
  %v755 = vld [vmem:[%s7 + $0x50] sm:$0xff]
  %v756 = vld [vmem:[%s7 + $0x58] sm:$0xff]
  %v757 = vld [vmem:[%s7 + $0x60] sm:$0xff]
  %v758 = vld [vmem:[%s7 + $0x68] sm:$0xff]
  %v759 = vld [vmem:[%s7 + $0x70] sm:$0xff]
  %v760 = vld [vmem:[%s7 + $0x78] sm:$0xff]
  %v761 = vld [vmem:[%s7 + $0x80] sm:$0xff]
  %v762 = vld [vmem:[%s7 + $0x88] sm:$0xff]
  %v763 = vld [vmem:[%s7 + $0x90] sm:$0xff]
  %v764 = vld [vmem:[%s7 + $0x98] sm:$0xff]
  %v765 = vld [vmem:[%s7 + $0xa0] sm:$0xff]
  %v766 = vld [vmem:[%s7 + $0xa8] sm:$0xff]
  %v767 = vld [vmem:[%s7 + $0xb0] sm:$0xff]
  %v768 = vld [vmem:[%s7 + $0xb8] sm:$0xff]
  %v769 = vld [vmem:[%s7 + $0xc0] sm:$0xff]
  %v770 = vld [vmem:[%s7 + $0xc8] sm:$0xff]
  %v771 = vld [vmem:[%s7 + $0xd0] sm:$0xff]
  %v772 = vld [vmem:[%s7 + $0xd8] sm:$0xff]
  %v773 = vld [vmem:[%s7 + $0xe0] sm:$0xff]
  %v774 = vld [vmem:[%s7 + $0xe8] sm:$0xff]
  %v775 = vld [vmem:[%s7 + $0xf0] sm:$0xff]
  %v776 = vld [vmem:[%s7 + $0xf8] sm:$0xff]
  %v777 = vld [vmem:[%s7 + $0x100] sm:$0xff]
  %v778 = vld [vmem:[%s7 + $0x108] sm:$0xff]
  %v779 = vld [vmem:[%s7 + $0x110] sm:$0xff]
  %v780 = vld [vmem:[%s7 + $0x118] sm:$0xff]
  %v781 = vld [vmem:[%s7 + $0x120] sm:$0xff]
  %v782 = vld [vmem:[%s7 + $0x128] sm:$0xff]
  %v783 = vld [vmem:[%s7 + $0x130] sm:$0xff]
  %v784 = vld [vmem:[%s7 + $0x138] sm:$0xff]
  %v785 = vld [vmem:[%s7 + $0x140] sm:$0xff]
  %v786 = vld [vmem:[%s7 + $0x148] sm:$0xff]
  %v787 = vld [vmem:[%s7 + $0x150] sm:$0xff]
  %v788 = vld [vmem:[%s7 + $0x158] sm:$0xff]
  %v789 = vld [vmem:[%s7 + $0x160] sm:$0xff]
  %v790 = vld [vmem:[%s7 + $0x168] sm:$0xff]
  %v791 = vld [vmem:[%s7 + $0x170] sm:$0xff]
  %v792 = vld [vmem:[%s7 + $0x178] sm:$0xff]
  %v793 = vld [vmem:[%s7 + $0x180] sm:$0xff]
  %v794 = vld [vmem:[%s7 + $0x188] sm:$0xff]
  %v795 = vld [vmem:[%s7 + $0x190] sm:$0xff]
  %v796 = vld [vmem:[%s7 + $0x198] sm:$0xff]
  %v797 = vld [vmem:[%s7 + $0x1a0] sm:$0xff]
  %v798 = vld [vmem:[%s7 + $0x1a8] sm:$0xff]
  %v799 = vld [vmem:[%s7 + $0x1b0] sm:$0xff]
  %v800 = vld [vmem:[%s7 + $0x1b8] sm:$0xff]
  %v801 = vld [vmem:[%s7 + $0x1c0] sm:$0xff]
  %v802 = vld [vmem:[%s7 + $0x1c8] sm:$0xff]
  %v803 = vld [vmem:[%s7 + $0x1d0] sm:$0xff]
  %v804 = vld [vmem:[%s7 + $0x1d8] sm:$0xff]
  %v805 = vld [vmem:[%s7 + $0x1e0] sm:$0xff]
  %v806 = vld [vmem:[%s7 + $0x1e8] sm:$0xff]
  %v807 = vld [vmem:[%s7 + $0x1f0] sm:$0xff]
  %v808 = vld [vmem:[%s7 + $0x1f8] sm:$0xff]
  %v809 = vld [vmem:[%s8] sm:$0xff]
  %v810 = vld [vmem:[%s8 + $0x8] sm:$0xff]
  %v811 = vld [vmem:[%s9] sm:$0xff]
  %v812 = vld [vmem:[%s9 + $0x8] sm:$0xff]
  %v813 = vld [vmem:[%s9 + $0x10] sm:$0xff]
  %v814 = vld [vmem:[%s9 + $0x18] sm:$0xff]
  %v815 = vld [vmem:[%s9 + $0x20] sm:$0xff]
  %v816 = vld [vmem:[%s9 + $0x28] sm:$0xff]
  %v817 = vld [vmem:[%s9 + $0x30] sm:$0xff]
  %v818 = vld [vmem:[%s9 + $0x38] sm:$0xff]
  %v819 = vld [vmem:[%s9 + $0x40] sm:$0xff]
  %v820 = vld [vmem:[%s9 + $0x48] sm:$0xff]
  %v821 = vld [vmem:[%s9 + $0x50] sm:$0xff]
  %v822 = vld [vmem:[%s9 + $0x58] sm:$0xff]
  %v823 = vld [vmem:[%s9 + $0x60] sm:$0xff]
  %v824 = vld [vmem:[%s9 + $0x68] sm:$0xff]
  %v825 = vld [vmem:[%s9 + $0x70] sm:$0xff]
  %v826 = vld [vmem:[%s9 + $0x78] sm:$0xff]
  %v827 = vld [vmem:[%s9 + $0x80] sm:$0xff]
  %v828 = vld [vmem:[%s9 + $0x88] sm:$0xff]
  %v829 = vld [vmem:[%s9 + $0x90] sm:$0xff]
  %v830 = vld [vmem:[%s9 + $0x98] sm:$0xff]
  %v831 = vld [vmem:[%s9 + $0xa0] sm:$0xff]
  %v832 = vld [vmem:[%s9 + $0xa8] sm:$0xff]
  %v833 = vld [vmem:[%s9 + $0xb0] sm:$0xff]
  %v834 = vld [vmem:[%s9 + $0xb8] sm:$0xff]
  %v835 = vld [vmem:[%s9 + $0xc0] sm:$0xff]
  %v836 = vld [vmem:[%s9 + $0xc8] sm:$0xff]
  %v837 = vld [vmem:[%s9 + $0xd0] sm:$0xff]
  %v838 = vld [vmem:[%s9 + $0xd8] sm:$0xff]
  %v839 = vld [vmem:[%s9 + $0xe0] sm:$0xff]
  %v840 = vld [vmem:[%s9 + $0xe8] sm:$0xff]
  %v841 = vld [vmem:[%s9 + $0xf0] sm:$0xff]
  %v842 = vld [vmem:[%s9 + $0xf8] sm:$0xff]
  %v843 = vld [vmem:[%s9 + $0x100] sm:$0xff]
  %v844 = vld [vmem:[%s9 + $0x108] sm:$0xff]
  %v845 = vld [vmem:[%s9 + $0x110] sm:$0xff]
  %v846 = vld [vmem:[%s9 + $0x118] sm:$0xff]
  %v847 = vld [vmem:[%s9 + $0x120] sm:$0xff]
  %v848 = vld [vmem:[%s9 + $0x128] sm:$0xff]
  %v849 = vld [vmem:[%s9 + $0x130] sm:$0xff]
  %v850 = vld [vmem:[%s9 + $0x138] sm:$0xff]
  %v851 = vld [vmem:[%s9 + $0x140] sm:$0xff]
  %v852 = vld [vmem:[%s9 + $0x148] sm:$0xff]
  %v853 = vld [vmem:[%s9 + $0x150] sm:$0xff]
  %v854 = vld [vmem:[%s9 + $0x158] sm:$0xff]
  %v855 = vld [vmem:[%s9 + $0x160] sm:$0xff]
  %v856 = vld [vmem:[%s9 + $0x168] sm:$0xff]
  %v857 = vld [vmem:[%s9 + $0x170] sm:$0xff]
  %v858 = vld [vmem:[%s9 + $0x178] sm:$0xff]
  %v859 = vld [vmem:[%s9 + $0x180] sm:$0xff]
  %v860 = vld [vmem:[%s9 + $0x188] sm:$0xff]
  %v861 = vld [vmem:[%s9 + $0x190] sm:$0xff]
  %v862 = vld [vmem:[%s9 + $0x198] sm:$0xff]
  %v863 = vld [vmem:[%s9 + $0x1a0] sm:$0xff]
  %v864 = vld [vmem:[%s9 + $0x1a8] sm:$0xff]
  %v865 = vld [vmem:[%s9 + $0x1b0] sm:$0xff]
  %v866 = vld [vmem:[%s9 + $0x1b8] sm:$0xff]
  %v867 = vld [vmem:[%s9 + $0x1c0] sm:$0xff]
  %v868 = vld [vmem:[%s9 + $0x1c8] sm:$0xff]
  %v869 = vld [vmem:[%s9 + $0x1d0] sm:$0xff]
  %v870 = vld [vmem:[%s9 + $0x1d8] sm:$0xff]
  %v871 = vld [vmem:[%s9 + $0x1e0] sm:$0xff]
  %v872 = vld [vmem:[%s9 + $0x1e8] sm:$0xff]
  %v873 = vld [vmem:[%s9 + $0x1f0] sm:$0xff]
  %v874 = vld [vmem:[%s9 + $0x1f8] sm:$0xff]
  %v875 = vld [vmem:[%s9 + $0x200] sm:$0xff]
  %v876 = vld [vmem:[%s9 + $0x208] sm:$0xff]
  %v877 = vld [vmem:[%s9 + $0x210] sm:$0xff]
  %v878 = vld [vmem:[%s9 + $0x218] sm:$0xff]
  %v879 = vld [vmem:[%s9 + $0x220] sm:$0xff]
  %v880 = vld [vmem:[%s9 + $0x228] sm:$0xff]
  %v881 = vld [vmem:[%s9 + $0x230] sm:$0xff]
  %v882 = vld [vmem:[%s9 + $0x238] sm:$0xff]
  %v883 = vld [vmem:[%s9 + $0x240] sm:$0xff]
  %v884 = vld [vmem:[%s9 + $0x248] sm:$0xff]
  %v885 = vld [vmem:[%s9 + $0x250] sm:$0xff]
  %v886 = vld [vmem:[%s9 + $0x258] sm:$0xff]
  %v887 = vld [vmem:[%s9 + $0x260] sm:$0xff]
  %v888 = vld [vmem:[%s9 + $0x268] sm:$0xff]
  %v889 = vld [vmem:[%s9 + $0x270] sm:$0xff]
  %v890 = vld [vmem:[%s9 + $0x278] sm:$0xff]
  %v891 = vld [vmem:[%s9 + $0x280] sm:$0xff]
  %v892 = vld [vmem:[%s9 + $0x288] sm:$0xff]
  %v893 = vld [vmem:[%s9 + $0x290] sm:$0xff]
  %v894 = vld [vmem:[%s9 + $0x298] sm:$0xff]
  %v895 = vld [vmem:[%s9 + $0x2a0] sm:$0xff]
  %v896 = vld [vmem:[%s9 + $0x2a8] sm:$0xff]
  %v897 = vld [vmem:[%s9 + $0x2b0] sm:$0xff]
  %v898 = vld [vmem:[%s9 + $0x2b8] sm:$0xff]
  %v899 = vld [vmem:[%s9 + $0x2c0] sm:$0xff]
  %v900 = vld [vmem:[%s9 + $0x2c8] sm:$0xff]
  %v901 = vld [vmem:[%s9 + $0x2d0] sm:$0xff]
  %v902 = vld [vmem:[%s9 + $0x2d8] sm:$0xff]
  %v903 = vld [vmem:[%s9 + $0x2e0] sm:$0xff]
  %v904 = vld [vmem:[%s9 + $0x2e8] sm:$0xff]
  %v905 = vld [vmem:[%s9 + $0x2f0] sm:$0xff]
  %v906 = vld [vmem:[%s9 + $0x2f8] sm:$0xff]
  %v907 = vld [vmem:[%s9 + $0x300] sm:$0xff]
  %v908 = vld [vmem:[%s9 + $0x308] sm:$0xff]
  %v909 = vld [vmem:[%s9 + $0x310] sm:$0xff]
  %v910 = vld [vmem:[%s9 + $0x318] sm:$0xff]
  %v911 = vld [vmem:[%s9 + $0x320] sm:$0xff]
  %v912 = vld [vmem:[%s9 + $0x328] sm:$0xff]
  %v913 = vld [vmem:[%s9 + $0x330] sm:$0xff]
  %v914 = vld [vmem:[%s9 + $0x338] sm:$0xff]
  %v915 = vld [vmem:[%s9 + $0x340] sm:$0xff]
  %v916 = vld [vmem:[%s9 + $0x348] sm:$0xff]
  %v917 = vld [vmem:[%s9 + $0x350] sm:$0xff]
  %v918 = vld [vmem:[%s9 + $0x358] sm:$0xff]
  %v919 = vld [vmem:[%s9 + $0x360] sm:$0xff]
  %v920 = vld [vmem:[%s9 + $0x368] sm:$0xff]
  %v921 = vld [vmem:[%s9 + $0x370] sm:$0xff]
  %v922 = vld [vmem:[%s9 + $0x378] sm:$0xff]
  %v923 = vld [vmem:[%s9 + $0x380] sm:$0xff]
  %v924 = vld [vmem:[%s9 + $0x388] sm:$0xff]
  %v925 = vld [vmem:[%s9 + $0x390] sm:$0xff]
  %v926 = vld [vmem:[%s9 + $0x398] sm:$0xff]
  %v927 = vld [vmem:[%s9 + $0x3a0] sm:$0xff]
  %v928 = vld [vmem:[%s9 + $0x3a8] sm:$0xff]
  %v929 = vld [vmem:[%s9 + $0x3b0] sm:$0xff]
  %v930 = vld [vmem:[%s9 + $0x3b8] sm:$0xff]
  %v931 = vld [vmem:[%s9 + $0x3c0] sm:$0xff]
  %v932 = vld [vmem:[%s9 + $0x3c8] sm:$0xff]
  %v933 = vld [vmem:[%s9 + $0x3d0] sm:$0xff]
  %v934 = vld [vmem:[%s9 + $0x3d8] sm:$0xff]
  %v935 = vld [vmem:[%s9 + $0x3e0] sm:$0xff]
  %v936 = vld [vmem:[%s9 + $0x3e8] sm:$0xff]
  %v937 = vld [vmem:[%s9 + $0x3f0] sm:$0xff]
  %v938 = vld [vmem:[%s9 + $0x3f8] sm:$0xff]
  %v939 = vld [vmem:[%s9 + $0x400] sm:$0xff]
  %v940 = vld [vmem:[%s9 + $0x408] sm:$0xff]
  %v941 = vld [vmem:[%s9 + $0x410] sm:$0xff]
  %v942 = vld [vmem:[%s9 + $0x418] sm:$0xff]
  %v943 = vld [vmem:[%s9 + $0x420] sm:$0xff]
  %v944 = vld [vmem:[%s9 + $0x428] sm:$0xff]
  %v945 = vld [vmem:[%s9 + $0x430] sm:$0xff]
  %v946 = vld [vmem:[%s9 + $0x438] sm:$0xff]
  %v947 = vld [vmem:[%s9 + $0x440] sm:$0xff]
  %v948 = vld [vmem:[%s9 + $0x448] sm:$0xff]
  %v949 = vld [vmem:[%s9 + $0x450] sm:$0xff]
  %v950 = vld [vmem:[%s9 + $0x458] sm:$0xff]
  %v951 = vld [vmem:[%s9 + $0x460] sm:$0xff]
  %v952 = vld [vmem:[%s9 + $0x468] sm:$0xff]
  %v953 = vld [vmem:[%s9 + $0x470] sm:$0xff]
  %v954 = vld [vmem:[%s9 + $0x478] sm:$0xff]
  %v955 = vld [vmem:[%s9 + $0x480] sm:$0xff]
  %v956 = vld [vmem:[%s9 + $0x488] sm:$0xff]
  %v957 = vld [vmem:[%s9 + $0x490] sm:$0xff]
  %v958 = vld [vmem:[%s9 + $0x498] sm:$0xff]
  %v959 = vld [vmem:[%s9 + $0x4a0] sm:$0xff]
  %v960 = vld [vmem:[%s9 + $0x4a8] sm:$0xff]
  %v961 = vld [vmem:[%s9 + $0x4b0] sm:$0xff]
  %v962 = vld [vmem:[%s9 + $0x4b8] sm:$0xff]
  %v963 = vld [vmem:[%s9 + $0x4c0] sm:$0xff]
  %v964 = vld [vmem:[%s9 + $0x4c8] sm:$0xff]
  %v965 = vld [vmem:[%s9 + $0x4d0] sm:$0xff]
  %v966 = vld [vmem:[%s9 + $0x4d8] sm:$0xff]
  %v967 = vld [vmem:[%s9 + $0x4e0] sm:$0xff]
  %v968 = vld [vmem:[%s9 + $0x4e8] sm:$0xff]
  %v969 = vld [vmem:[%s9 + $0x4f0] sm:$0xff]
  %v970 = vld [vmem:[%s9 + $0x4f8] sm:$0xff]
  %v971 = vld [vmem:[%s9 + $0x500] sm:$0xff]
  %v972 = vld [vmem:[%s9 + $0x508] sm:$0xff]
  %v973 = vld [vmem:[%s9 + $0x510] sm:$0xff]
  %v974 = vld [vmem:[%s9 + $0x518] sm:$0xff]
  %v975 = vld [vmem:[%s9 + $0x520] sm:$0xff]
  %v976 = vld [vmem:[%s9 + $0x528] sm:$0xff]
  %v977 = vld [vmem:[%s9 + $0x530] sm:$0xff]
  %v978 = vld [vmem:[%s9 + $0x538] sm:$0xff]
  %v979 = vld [vmem:[%s9 + $0x540] sm:$0xff]
  %v980 = vld [vmem:[%s9 + $0x548] sm:$0xff]
  %v981 = vld [vmem:[%s9 + $0x550] sm:$0xff]
  %v982 = vld [vmem:[%s9 + $0x558] sm:$0xff]
  %v983 = vld [vmem:[%s9 + $0x560] sm:$0xff]
  %v984 = vld [vmem:[%s9 + $0x568] sm:$0xff]
  %v985 = vld [vmem:[%s9 + $0x570] sm:$0xff]
  %v986 = vld [vmem:[%s9 + $0x578] sm:$0xff]
  %v987 = vld [vmem:[%s9 + $0x580] sm:$0xff]
  %v988 = vld [vmem:[%s9 + $0x588] sm:$0xff]
  %v989 = vld [vmem:[%s9 + $0x590] sm:$0xff]
  %v990 = vld [vmem:[%s9 + $0x598] sm:$0xff]
  %v991 = vld [vmem:[%s9 + $0x5a0] sm:$0xff]
  %v992 = vld [vmem:[%s9 + $0x5a8] sm:$0xff]
  %v993 = vld [vmem:[%s9 + $0x5b0] sm:$0xff]
  %v994 = vld [vmem:[%s9 + $0x5b8] sm:$0xff]
  %v995 = vld [vmem:[%s9 + $0x5c0] sm:$0xff]
  %v996 = vld [vmem:[%s9 + $0x5c8] sm:$0xff]
  %v997 = vld [vmem:[%s9 + $0x5d0] sm:$0xff]
  %v998 = vld [vmem:[%s9 + $0x5d8] sm:$0xff]
  %v999 = vld [vmem:[%s9 + $0x5e0] sm:$0xff]
  %v1000 = vld [vmem:[%s9 + $0x5e8] sm:$0xff]
  %v1001 = vld [vmem:[%s9 + $0x5f0] sm:$0xff]
  %v1002 = vld [vmem:[%s9 + $0x5f8] sm:$0xff]
  %v1003 = vld [vmem:[%s9 + $0x600] sm:$0xff]
  %v1004 = vld [vmem:[%s9 + $0x608] sm:$0xff]
  %v1005 = vld [vmem:[%s9 + $0x610] sm:$0xff]
  %v1006 = vld [vmem:[%s9 + $0x618] sm:$0xff]
  %v1007 = vld [vmem:[%s9 + $0x620] sm:$0xff]
  %v1008 = vld [vmem:[%s9 + $0x628] sm:$0xff]
  %v1009 = vld [vmem:[%s9 + $0x630] sm:$0xff]
  %v1010 = vld [vmem:[%s9 + $0x638] sm:$0xff]
  %v1011 = vld [vmem:[%s9 + $0x640] sm:$0xff]
  %v1012 = vld [vmem:[%s9 + $0x648] sm:$0xff]
  %v1013 = vld [vmem:[%s9 + $0x650] sm:$0xff]
  %v1014 = vld [vmem:[%s9 + $0x658] sm:$0xff]
  %v1015 = vld [vmem:[%s9 + $0x660] sm:$0xff]
  %v1016 = vld [vmem:[%s9 + $0x668] sm:$0xff]
  %v1017 = vld [vmem:[%s9 + $0x670] sm:$0xff]
  %v1018 = vld [vmem:[%s9 + $0x678] sm:$0xff]
  %v1019 = vld [vmem:[%s9 + $0x680] sm:$0xff]
  %v1020 = vld [vmem:[%s9 + $0x688] sm:$0xff]
  %v1021 = vld [vmem:[%s9 + $0x690] sm:$0xff]
  %v1022 = vld [vmem:[%s9 + $0x698] sm:$0xff]
  %v1023 = vld [vmem:[%s9 + $0x6a0] sm:$0xff]
  %v1024 = vld [vmem:[%s9 + $0x6a8] sm:$0xff]
  %v1025 = vld [vmem:[%s9 + $0x6b0] sm:$0xff]
  %v1026 = vld [vmem:[%s9 + $0x6b8] sm:$0xff]
  %v1027 = vld [vmem:[%s9 + $0x6c0] sm:$0xff]
  %v1028 = vld [vmem:[%s9 + $0x6c8] sm:$0xff]
  %v1029 = vld [vmem:[%s9 + $0x6d0] sm:$0xff]
  %v1030 = vld [vmem:[%s9 + $0x6d8] sm:$0xff]
  %v1031 = vld [vmem:[%s9 + $0x6e0] sm:$0xff]
  %v1032 = vld [vmem:[%s9 + $0x6e8] sm:$0xff]
  %v1033 = vld [vmem:[%s9 + $0x6f0] sm:$0xff]
  %v1034 = vld [vmem:[%s9 + $0x6f8] sm:$0xff]
  %v1035 = vld [vmem:[%s9 + $0x700] sm:$0xff]
  %v1036 = vld [vmem:[%s9 + $0x708] sm:$0xff]
  %v1037 = vld [vmem:[%s9 + $0x710] sm:$0xff]
  %v1038 = vld [vmem:[%s9 + $0x718] sm:$0xff]
  %v1039 = vld [vmem:[%s9 + $0x720] sm:$0xff]
  %v1040 = vld [vmem:[%s9 + $0x728] sm:$0xff]
  %v1041 = vld [vmem:[%s9 + $0x730] sm:$0xff]
  %v1042 = vld [vmem:[%s9 + $0x738] sm:$0xff]
  %v1043 = vld [vmem:[%s9 + $0x740] sm:$0xff]
  %v1044 = vld [vmem:[%s9 + $0x748] sm:$0xff]
  %v1045 = vld [vmem:[%s9 + $0x750] sm:$0xff]
  %v1046 = vld [vmem:[%s9 + $0x758] sm:$0xff]
  %v1047 = vld [vmem:[%s9 + $0x760] sm:$0xff]
  %v1048 = vld [vmem:[%s9 + $0x768] sm:$0xff]
  %v1049 = vld [vmem:[%s9 + $0x770] sm:$0xff]
  %v1050 = vld [vmem:[%s9 + $0x778] sm:$0xff]
  %v1051 = vld [vmem:[%s9 + $0x780] sm:$0xff]
  %v1052 = vld [vmem:[%s9 + $0x788] sm:$0xff]
  %v1053 = vld [vmem:[%s9 + $0x790] sm:$0xff]
  %v1054 = vld [vmem:[%s9 + $0x798] sm:$0xff]
  %v1055 = vld [vmem:[%s9 + $0x7a0] sm:$0xff]
  %v1056 = vld [vmem:[%s9 + $0x7a8] sm:$0xff]
  %v1057 = vld [vmem:[%s9 + $0x7b0] sm:$0xff]
  %v1058 = vld [vmem:[%s9 + $0x7b8] sm:$0xff]
  %v1059 = vld [vmem:[%s9 + $0x7c0] sm:$0xff]
  %v1060 = vld [vmem:[%s9 + $0x7c8] sm:$0xff]
  %v1061 = vld [vmem:[%s9 + $0x7d0] sm:$0xff]
  %v1062 = vld [vmem:[%s9 + $0x7d8] sm:$0xff]
  %v1063 = vld [vmem:[%s9 + $0x7e0] sm:$0xff]
  %v1064 = vld [vmem:[%s9 + $0x7e8] sm:$0xff]
  %v1065 = vld [vmem:[%s9 + $0x7f0] sm:$0xff]
  %v1066 = vld [vmem:[%s9 + $0x7f8] sm:$0xff]
  %v1067 = vld [vmem:[%s10] sm:$0x1]
  %v1070 = vperm.slane %v809, 0
  %v1071 = vperm.slane %v809, 1
  %v1072 = vperm.slane %v809, 2
  %v1073 = vperm.slane %v809, 3
  %v1074 = vperm.slane %v809, 4
  %v1075 = vperm.slane %v809, 5
  %v1076 = vperm.slane %v809, 6
  %v1077 = vperm.slane %v809, 7
  %v1078 = vperm.slane %v810, 0
  %v1079 = vperm.slane %v810, 1
  %v1080 = vperm.slane %v810, 2
  %v1081 = vperm.slane %v810, 3
  %v1082 = vperm.slane %v810, 4
  %v1083 = vperm.slane %v810, 5
  %v1084 = vperm.slane %v810, 6
  %v1085 = vperm.slane %v810, 7
  %v1103 = vsel %vm59, %v743, 0
  %v1106 = vsel %vm59, %v744, 0
  %1108 = vmatpush.msra.mxu0 0.0
  %1109 = vmatpush.msra.mxu0 0.0
  %1110 = vmatpush.msra.mxu0 0.0
  %1111 = vmatpush.msra.mxu0 0.0
  %1112 = vmatpush.msra.mxu0 0.0
  %1113 = vmatpush.msra.mxu0 0.0
  %1114 = vmatpush.msra.mxu0 0.0
  %1115 = vmatpush.msra.mxu0 0.0
  %1116 = vmatpush.msra.mxu0 0.0
  %1117 = vmatpush.msra.mxu0 0.0
  %1118 = vmatpush.msra.mxu0 0.0
  %1119 = vmatpush.msra.mxu0 0.0
  %1120 = vmatpush.msra.mxu0 %v793
  %1121 = vmatpush.msra.mxu0 %v777
  %1122 = vmatpush.msra.mxu0 %v761
  %1123 = vmatpush.msra.mxu0 %v745
  %1124 = vmatmul.f32.gmra.mxu0 %v1103
  %v1125 = vpop.f32.mrf.mxu0
  %v1126 = vadd.f32 %v1070, %v1125
  %1127 = vmatmul.f32.gmra.mxu0 %v1106
  %v1128 = vpop.f32.mrf.mxu0
  %v1129 = vadd.f32 %v1070, %v1128
  %1130 = vdwg.mxu0
  %1131 = vmatpush.msra.mxu0 0.0
  %1132 = vmatpush.msra.mxu0 0.0
  %1133 = vmatpush.msra.mxu0 0.0
  %1134 = vmatpush.msra.mxu0 0.0
  %1135 = vmatpush.msra.mxu0 0.0
  %1136 = vmatpush.msra.mxu0 0.0
  %1137 = vmatpush.msra.mxu0 0.0
  %1138 = vmatpush.msra.mxu0 0.0
  %1139 = vmatpush.msra.mxu0 0.0
  %1140 = vmatpush.msra.mxu0 0.0
  %1141 = vmatpush.msra.mxu0 0.0
  %1142 = vmatpush.msra.mxu0 0.0
  %1143 = vmatpush.msra.mxu0 %v794
  %1144 = vmatpush.msra.mxu0 %v778
  %1145 = vmatpush.msra.mxu0 %v762
  %1146 = vmatpush.msra.mxu0 %v746
  %1147 = vmatmul.f32.gmra.mxu0 %v1103
  %v1148 = vpop.f32.mrf.mxu0
  %v1149 = vadd.f32 %v1071, %v1148
  %1150 = vmatmul.f32.gmra.mxu0 %v1106
  %v1151 = vpop.f32.mrf.mxu0
  %v1152 = vadd.f32 %v1071, %v1151
  %1153 = vdwg.mxu0
  %1154 = vmatpush.msra.mxu0 0.0
  %1155 = vmatpush.msra.mxu0 0.0
  %1156 = vmatpush.msra.mxu0 0.0
  %1157 = vmatpush.msra.mxu0 0.0
  %1158 = vmatpush.msra.mxu0 0.0
  %1159 = vmatpush.msra.mxu0 0.0
  %1160 = vmatpush.msra.mxu0 0.0
  %1161 = vmatpush.msra.mxu0 0.0
  %1162 = vmatpush.msra.mxu0 0.0
  %1163 = vmatpush.msra.mxu0 0.0
  %1164 = vmatpush.msra.mxu0 0.0
  %1165 = vmatpush.msra.mxu0 0.0
  %1166 = vmatpush.msra.mxu0 %v795
  %1167 = vmatpush.msra.mxu0 %v779
  %1168 = vmatpush.msra.mxu0 %v763
  %1169 = vmatpush.msra.mxu0 %v747
  %1170 = vmatmul.f32.gmra.mxu0 %v1103
  %v1171 = vpop.f32.mrf.mxu0
  %v1172 = vadd.f32 %v1072, %v1171
  %1173 = vmatmul.f32.gmra.mxu0 %v1106
  %v1174 = vpop.f32.mrf.mxu0
  %v1175 = vadd.f32 %v1072, %v1174
  %1176 = vdwg.mxu0
  %1177 = vmatpush.msra.mxu0 0.0
  %1178 = vmatpush.msra.mxu0 0.0
  %1179 = vmatpush.msra.mxu0 0.0
  %1180 = vmatpush.msra.mxu0 0.0
  %1181 = vmatpush.msra.mxu0 0.0
  %1182 = vmatpush.msra.mxu0 0.0
  %1183 = vmatpush.msra.mxu0 0.0
  %1184 = vmatpush.msra.mxu0 0.0
  %1185 = vmatpush.msra.mxu0 0.0
  %1186 = vmatpush.msra.mxu0 0.0
  %1187 = vmatpush.msra.mxu0 0.0
  %1188 = vmatpush.msra.mxu0 0.0
  %1189 = vmatpush.msra.mxu0 %v796
  %1190 = vmatpush.msra.mxu0 %v780
  %1191 = vmatpush.msra.mxu0 %v764
  %1192 = vmatpush.msra.mxu0 %v748
  %1193 = vmatmul.f32.gmra.mxu0 %v1103
  %v1194 = vpop.f32.mrf.mxu0
  %v1195 = vadd.f32 %v1073, %v1194
  %1196 = vmatmul.f32.gmra.mxu0 %v1106
  %v1197 = vpop.f32.mrf.mxu0
  %v1198 = vadd.f32 %v1073, %v1197
  %1199 = vdwg.mxu0
  %1200 = vmatpush.msra.mxu0 0.0
  %1201 = vmatpush.msra.mxu0 0.0
  %1202 = vmatpush.msra.mxu0 0.0
  %1203 = vmatpush.msra.mxu0 0.0
  %1204 = vmatpush.msra.mxu0 0.0
  %1205 = vmatpush.msra.mxu0 0.0
  %1206 = vmatpush.msra.mxu0 0.0
  %1207 = vmatpush.msra.mxu0 0.0
  %1208 = vmatpush.msra.mxu0 0.0
  %1209 = vmatpush.msra.mxu0 0.0
  %1210 = vmatpush.msra.mxu0 0.0
  %1211 = vmatpush.msra.mxu0 0.0
  %1212 = vmatpush.msra.mxu0 %v797
  %1213 = vmatpush.msra.mxu0 %v781
  %1214 = vmatpush.msra.mxu0 %v765
  %1215 = vmatpush.msra.mxu0 %v749
  %1216 = vmatmul.f32.gmra.mxu0 %v1103
  %v1217 = vpop.f32.mrf.mxu0
  %v1218 = vadd.f32 %v1074, %v1217
  %1219 = vmatmul.f32.gmra.mxu0 %v1106
  %v1220 = vpop.f32.mrf.mxu0
  %v1221 = vadd.f32 %v1074, %v1220
  %1222 = vdwg.mxu0
  %1223 = vmatpush.msra.mxu0 0.0
  %1224 = vmatpush.msra.mxu0 0.0
  %1225 = vmatpush.msra.mxu0 0.0
  %1226 = vmatpush.msra.mxu0 0.0
  %1227 = vmatpush.msra.mxu0 0.0
  %1228 = vmatpush.msra.mxu0 0.0
  %1229 = vmatpush.msra.mxu0 0.0
  %1230 = vmatpush.msra.mxu0 0.0
  %1231 = vmatpush.msra.mxu0 0.0
  %1232 = vmatpush.msra.mxu0 0.0
  %1233 = vmatpush.msra.mxu0 0.0
  %1234 = vmatpush.msra.mxu0 0.0
  %1235 = vmatpush.msra.mxu0 %v798
  %1236 = vmatpush.msra.mxu0 %v782
  %1237 = vmatpush.msra.mxu0 %v766
  %1238 = vmatpush.msra.mxu0 %v750
  %1239 = vmatmul.f32.gmra.mxu0 %v1103
  %v1240 = vpop.f32.mrf.mxu0
  %v1241 = vadd.f32 %v1075, %v1240
  %1242 = vmatmul.f32.gmra.mxu0 %v1106
  %v1243 = vpop.f32.mrf.mxu0
  %v1244 = vadd.f32 %v1075, %v1243
  %1245 = vdwg.mxu0
  %1246 = vmatpush.msra.mxu0 0.0
  %1247 = vmatpush.msra.mxu0 0.0
  %1248 = vmatpush.msra.mxu0 0.0
  %1249 = vmatpush.msra.mxu0 0.0
  %1250 = vmatpush.msra.mxu0 0.0
  %1251 = vmatpush.msra.mxu0 0.0
  %1252 = vmatpush.msra.mxu0 0.0
  %1253 = vmatpush.msra.mxu0 0.0
  %1254 = vmatpush.msra.mxu0 0.0
  %1255 = vmatpush.msra.mxu0 0.0
  %1256 = vmatpush.msra.mxu0 0.0
  %1257 = vmatpush.msra.mxu0 0.0
  %1258 = vmatpush.msra.mxu0 %v799
  %1259 = vmatpush.msra.mxu0 %v783
  %1260 = vmatpush.msra.mxu0 %v767
  %1261 = vmatpush.msra.mxu0 %v751
  %1262 = vmatmul.f32.gmra.mxu0 %v1103
  %v1263 = vpop.f32.mrf.mxu0
  %v1264 = vadd.f32 %v1076, %v1263
  %1265 = vmatmul.f32.gmra.mxu0 %v1106
  %v1266 = vpop.f32.mrf.mxu0
  %v1267 = vadd.f32 %v1076, %v1266
  %1268 = vdwg.mxu0
  %1269 = vmatpush.msra.mxu0 0.0
  %1270 = vmatpush.msra.mxu0 0.0
  %1271 = vmatpush.msra.mxu0 0.0
  %1272 = vmatpush.msra.mxu0 0.0
  %1273 = vmatpush.msra.mxu0 0.0
  %1274 = vmatpush.msra.mxu0 0.0
  %1275 = vmatpush.msra.mxu0 0.0
  %1276 = vmatpush.msra.mxu0 0.0
  %1277 = vmatpush.msra.mxu0 0.0
  %1278 = vmatpush.msra.mxu0 0.0
  %1279 = vmatpush.msra.mxu0 0.0
  %1280 = vmatpush.msra.mxu0 0.0
  %1281 = vmatpush.msra.mxu0 %v800
  %1282 = vmatpush.msra.mxu0 %v784
  %1283 = vmatpush.msra.mxu0 %v768
  %1284 = vmatpush.msra.mxu0 %v752
  %1285 = vmatmul.f32.gmra.mxu0 %v1103
  %v1286 = vpop.f32.mrf.mxu0
  %v1287 = vadd.f32 %v1077, %v1286
  %1288 = vmatmul.f32.gmra.mxu0 %v1106
  %v1289 = vpop.f32.mrf.mxu0
  %v1290 = vadd.f32 %v1077, %v1289
  %1291 = vdwg.mxu0
  %1292 = vmatpush.msra.mxu0 0.0
  %1293 = vmatpush.msra.mxu0 0.0
  %1294 = vmatpush.msra.mxu0 0.0
  %1295 = vmatpush.msra.mxu0 0.0
  %1296 = vmatpush.msra.mxu0 0.0
  %1297 = vmatpush.msra.mxu0 0.0
  %1298 = vmatpush.msra.mxu0 0.0
  %1299 = vmatpush.msra.mxu0 0.0
  %1300 = vmatpush.msra.mxu0 0.0
  %1301 = vmatpush.msra.mxu0 0.0
  %1302 = vmatpush.msra.mxu0 0.0
  %1303 = vmatpush.msra.mxu0 0.0
  %1304 = vmatpush.msra.mxu0 %v801
  %1305 = vmatpush.msra.mxu0 %v785
  %1306 = vmatpush.msra.mxu0 %v769
  %1307 = vmatpush.msra.mxu0 %v753
  %1308 = vmatmul.f32.gmra.mxu0 %v1103
  %v1309 = vpop.f32.mrf.mxu0
  %v1310 = vadd.f32 %v1078, %v1309
  %1311 = vmatmul.f32.gmra.mxu0 %v1106
  %v1312 = vpop.f32.mrf.mxu0
  %v1313 = vadd.f32 %v1078, %v1312
  %1314 = vdwg.mxu0
  %1315 = vmatpush.msra.mxu0 0.0
  %1316 = vmatpush.msra.mxu0 0.0
  %1317 = vmatpush.msra.mxu0 0.0
  %1318 = vmatpush.msra.mxu0 0.0
  %1319 = vmatpush.msra.mxu0 0.0
  %1320 = vmatpush.msra.mxu0 0.0
  %1321 = vmatpush.msra.mxu0 0.0
  %1322 = vmatpush.msra.mxu0 0.0
  %1323 = vmatpush.msra.mxu0 0.0
  %1324 = vmatpush.msra.mxu0 0.0
  %1325 = vmatpush.msra.mxu0 0.0
  %1326 = vmatpush.msra.mxu0 0.0
  %1327 = vmatpush.msra.mxu0 %v802
  %1328 = vmatpush.msra.mxu0 %v786
  %1329 = vmatpush.msra.mxu0 %v770
  %1330 = vmatpush.msra.mxu0 %v754
  %1331 = vmatmul.f32.gmra.mxu0 %v1103
  %v1332 = vpop.f32.mrf.mxu0
  %v1333 = vadd.f32 %v1079, %v1332
  %1334 = vmatmul.f32.gmra.mxu0 %v1106
  %v1335 = vpop.f32.mrf.mxu0
  %v1336 = vadd.f32 %v1079, %v1335
  %1337 = vdwg.mxu0
  %1338 = vmatpush.msra.mxu0 0.0
  %1339 = vmatpush.msra.mxu0 0.0
  %1340 = vmatpush.msra.mxu0 0.0
  %1341 = vmatpush.msra.mxu0 0.0
  %1342 = vmatpush.msra.mxu0 0.0
  %1343 = vmatpush.msra.mxu0 0.0
  %1344 = vmatpush.msra.mxu0 0.0
  %1345 = vmatpush.msra.mxu0 0.0
  %1346 = vmatpush.msra.mxu0 0.0
  %1347 = vmatpush.msra.mxu0 0.0
  %1348 = vmatpush.msra.mxu0 0.0
  %1349 = vmatpush.msra.mxu0 0.0
  %1350 = vmatpush.msra.mxu0 %v803
  %1351 = vmatpush.msra.mxu0 %v787
  %1352 = vmatpush.msra.mxu0 %v771
  %1353 = vmatpush.msra.mxu0 %v755
  %1354 = vmatmul.f32.gmra.mxu0 %v1103
  %v1355 = vpop.f32.mrf.mxu0
  %v1356 = vadd.f32 %v1080, %v1355
  %1357 = vmatmul.f32.gmra.mxu0 %v1106
  %v1358 = vpop.f32.mrf.mxu0
  %v1359 = vadd.f32 %v1080, %v1358
  %1360 = vdwg.mxu0
  %1361 = vmatpush.msra.mxu0 0.0
  %1362 = vmatpush.msra.mxu0 0.0
  %1363 = vmatpush.msra.mxu0 0.0
  %1364 = vmatpush.msra.mxu0 0.0
  %1365 = vmatpush.msra.mxu0 0.0
  %1366 = vmatpush.msra.mxu0 0.0
  %1367 = vmatpush.msra.mxu0 0.0
  %1368 = vmatpush.msra.mxu0 0.0
  %1369 = vmatpush.msra.mxu0 0.0
  %1370 = vmatpush.msra.mxu0 0.0
  %1371 = vmatpush.msra.mxu0 0.0
  %1372 = vmatpush.msra.mxu0 0.0
  %1373 = vmatpush.msra.mxu0 %v804
  %1374 = vmatpush.msra.mxu0 %v788
  %1375 = vmatpush.msra.mxu0 %v772
  %1376 = vmatpush.msra.mxu0 %v756
  %1377 = vmatmul.f32.gmra.mxu0 %v1103
  %v1378 = vpop.f32.mrf.mxu0
  %v1379 = vadd.f32 %v1081, %v1378
  %1380 = vmatmul.f32.gmra.mxu0 %v1106
  %v1381 = vpop.f32.mrf.mxu0
  %v1382 = vadd.f32 %v1081, %v1381
  %1383 = vdwg.mxu0
  %1384 = vmatpush.msra.mxu0 0.0
  %1385 = vmatpush.msra.mxu0 0.0
  %1386 = vmatpush.msra.mxu0 0.0
  %1387 = vmatpush.msra.mxu0 0.0
  %1388 = vmatpush.msra.mxu0 0.0
  %1389 = vmatpush.msra.mxu0 0.0
  %1390 = vmatpush.msra.mxu0 0.0
  %1391 = vmatpush.msra.mxu0 0.0
  %1392 = vmatpush.msra.mxu0 0.0
  %1393 = vmatpush.msra.mxu0 0.0
  %1394 = vmatpush.msra.mxu0 0.0
  %1395 = vmatpush.msra.mxu0 0.0
  %1396 = vmatpush.msra.mxu0 %v805
  %1397 = vmatpush.msra.mxu0 %v789
  %1398 = vmatpush.msra.mxu0 %v773
  %1399 = vmatpush.msra.mxu0 %v757
  %1400 = vmatmul.f32.gmra.mxu0 %v1103
  %v1401 = vpop.f32.mrf.mxu0
  %v1402 = vadd.f32 %v1082, %v1401
  %1403 = vmatmul.f32.gmra.mxu0 %v1106
  %v1404 = vpop.f32.mrf.mxu0
  %v1405 = vadd.f32 %v1082, %v1404
  %1406 = vdwg.mxu0
  %1407 = vmatpush.msra.mxu0 0.0
  %1408 = vmatpush.msra.mxu0 0.0
  %1409 = vmatpush.msra.mxu0 0.0
  %1410 = vmatpush.msra.mxu0 0.0
  %1411 = vmatpush.msra.mxu0 0.0
  %1412 = vmatpush.msra.mxu0 0.0
  %1413 = vmatpush.msra.mxu0 0.0
  %1414 = vmatpush.msra.mxu0 0.0
  %1415 = vmatpush.msra.mxu0 0.0
  %1416 = vmatpush.msra.mxu0 0.0
  %1417 = vmatpush.msra.mxu0 0.0
  %1418 = vmatpush.msra.mxu0 0.0
  %1419 = vmatpush.msra.mxu0 %v806
  %1420 = vmatpush.msra.mxu0 %v790
  %1421 = vmatpush.msra.mxu0 %v774
  %1422 = vmatpush.msra.mxu0 %v758
  %1423 = vmatmul.f32.gmra.mxu0 %v1103
  %v1424 = vpop.f32.mrf.mxu0
  %v1425 = vadd.f32 %v1083, %v1424
  %1426 = vmatmul.f32.gmra.mxu0 %v1106
  %v1427 = vpop.f32.mrf.mxu0
  %v1428 = vadd.f32 %v1083, %v1427
  %1429 = vdwg.mxu0
  %1430 = vmatpush.msra.mxu0 0.0
  %1431 = vmatpush.msra.mxu0 0.0
  %1432 = vmatpush.msra.mxu0 0.0
  %1433 = vmatpush.msra.mxu0 0.0
  %1434 = vmatpush.msra.mxu0 0.0
  %1435 = vmatpush.msra.mxu0 0.0
  %1436 = vmatpush.msra.mxu0 0.0
  %1437 = vmatpush.msra.mxu0 0.0
  %1438 = vmatpush.msra.mxu0 0.0
  %1439 = vmatpush.msra.mxu0 0.0
  %1440 = vmatpush.msra.mxu0 0.0
  %1441 = vmatpush.msra.mxu0 0.0
  %1442 = vmatpush.msra.mxu0 %v807
  %1443 = vmatpush.msra.mxu0 %v791
  %1444 = vmatpush.msra.mxu0 %v775
  %1445 = vmatpush.msra.mxu0 %v759
  %1446 = vmatmul.f32.gmra.mxu0 %v1103
  %v1447 = vpop.f32.mrf.mxu0
  %v1448 = vadd.f32 %v1084, %v1447
  %1449 = vmatmul.f32.gmra.mxu0 %v1106
  %v1450 = vpop.f32.mrf.mxu0
  %v1451 = vadd.f32 %v1084, %v1450
  %1452 = vdwg.mxu0
  %1453 = vmatpush.msra.mxu0 0.0
  %1454 = vmatpush.msra.mxu0 0.0
  %1455 = vmatpush.msra.mxu0 0.0
  %1456 = vmatpush.msra.mxu0 0.0
  %1457 = vmatpush.msra.mxu0 0.0
  %1458 = vmatpush.msra.mxu0 0.0
  %1459 = vmatpush.msra.mxu0 0.0
  %1460 = vmatpush.msra.mxu0 0.0
  %1461 = vmatpush.msra.mxu0 0.0
  %1462 = vmatpush.msra.mxu0 0.0
  %1463 = vmatpush.msra.mxu0 0.0
  %1464 = vmatpush.msra.mxu0 0.0
  %1465 = vmatpush.msra.mxu0 %v808
  %1466 = vmatpush.msra.mxu0 %v792
  %1467 = vmatpush.msra.mxu0 %v776
  %1468 = vmatpush.msra.mxu0 %v760
  %1469 = vmatmul.f32.gmra.mxu0 %v1103
  %v1470 = vpop.f32.mrf.mxu0
  %v1471 = vadd.f32 %v1085, %v1470
  %1472 = vmatmul.f32.gmra.mxu0 %v1106
  %v1473 = vpop.f32.mrf.mxu0
  %v1474 = vadd.f32 %v1085, %v1473
  %1475 = vdwg.mxu0
  %v1476 = vmax.f32 %v1126, 0.0
  %v1477 = vmax.f32 %v1149, 0.0
  %v1478 = vmax.f32 %v1172, 0.0
  %v1479 = vmax.f32 %v1195, 0.0
  %v1480 = vmax.f32 %v1218, 0.0
  %v1481 = vmax.f32 %v1241, 0.0
  %v1482 = vmax.f32 %v1264, 0.0
  %v1483 = vmax.f32 %v1287, 0.0
  %v1484 = vmax.f32 %v1310, 0.0
  %v1485 = vmax.f32 %v1333, 0.0
  %v1486 = vmax.f32 %v1356, 0.0
  %v1487 = vmax.f32 %v1379, 0.0
  %v1488 = vmax.f32 %v1402, 0.0
  %v1489 = vmax.f32 %v1425, 0.0
  %v1490 = vmax.f32 %v1448, 0.0
  %v1491 = vmax.f32 %v1471, 0.0
  %v1492 = vmax.f32 %v1129, 0.0
  %v1493 = vmax.f32 %v1152, 0.0
  %v1494 = vmax.f32 %v1175, 0.0
  %v1495 = vmax.f32 %v1198, 0.0
  %v1496 = vmax.f32 %v1221, 0.0
  %v1497 = vmax.f32 %v1244, 0.0
  %v1498 = vmax.f32 %v1267, 0.0
  %v1499 = vmax.f32 %v1290, 0.0
  %v1500 = vmax.f32 %v1313, 0.0
  %v1501 = vmax.f32 %v1336, 0.0
  %v1502 = vmax.f32 %v1359, 0.0
  %v1503 = vmax.f32 %v1382, 0.0
  %v1504 = vmax.f32 %v1405, 0.0
  %v1505 = vmax.f32 %v1428, 0.0
  %v1506 = vmax.f32 %v1451, 0.0
  %v1507 = vmax.f32 %v1474, 0.0
  %v1509 = vperm.slane %v1067, 0
  %1511 = vmatpush.msra.mxu0 %v826
  %1512 = vmatpush.msra.mxu0 %v825
  %1513 = vmatpush.msra.mxu0 %v824
  %1514 = vmatpush.msra.mxu0 %v823
  %1515 = vmatpush.msra.mxu0 %v822
  %1516 = vmatpush.msra.mxu0 %v821
  %1517 = vmatpush.msra.mxu0 %v820
  %1518 = vmatpush.msra.mxu0 %v819
  %1519 = vmatpush.msra.mxu0 %v818
  %1520 = vmatpush.msra.mxu0 %v817
  %1521 = vmatpush.msra.mxu0 %v816
  %1522 = vmatpush.msra.mxu0 %v815
  %1523 = vmatpush.msra.mxu0 %v814
  %1524 = vmatpush.msra.mxu0 %v813
  %1525 = vmatpush.msra.mxu0 %v812
  %1526 = vmatpush.msra.mxu0 %v811
  %1527 = vmatmul.f32.gmra.mxu0 %v1476
  %v1528 = vpop.f32.mrf.mxu0
  %v1529 = vadd.f32 %v1509, %v1528
  %1530 = vmatmul.f32.gmra.mxu0 %v1492
  %v1531 = vpop.f32.mrf.mxu0
  %v1532 = vadd.f32 %v1509, %v1531
  %1533 = vdwg.mxu0
  %1534 = vmatpush.msra.mxu0 %v842
  %1535 = vmatpush.msra.mxu0 %v841
  %1536 = vmatpush.msra.mxu0 %v840
  %1537 = vmatpush.msra.mxu0 %v839
  %1538 = vmatpush.msra.mxu0 %v838
  %1539 = vmatpush.msra.mxu0 %v837
  %1540 = vmatpush.msra.mxu0 %v836
  %1541 = vmatpush.msra.mxu0 %v835
  %1542 = vmatpush.msra.mxu0 %v834
  %1543 = vmatpush.msra.mxu0 %v833
  %1544 = vmatpush.msra.mxu0 %v832
  %1545 = vmatpush.msra.mxu0 %v831
  %1546 = vmatpush.msra.mxu0 %v830
  %1547 = vmatpush.msra.mxu0 %v829
  %1548 = vmatpush.msra.mxu0 %v828
  %1549 = vmatpush.msra.mxu0 %v827
  %1550 = vmatmul.f32.gmra.mxu0 %v1477
  %v1551 = vpop.f32.mrf.mxu0
  %v1552 = vadd.f32 %v1529, %v1551
  %1553 = vmatmul.f32.gmra.mxu0 %v1493
  %v1554 = vpop.f32.mrf.mxu0
  %v1555 = vadd.f32 %v1532, %v1554
  %1556 = vdwg.mxu0
  %1557 = vmatpush.msra.mxu0 %v858
  %1558 = vmatpush.msra.mxu0 %v857
  %1559 = vmatpush.msra.mxu0 %v856
  %1560 = vmatpush.msra.mxu0 %v855
  %1561 = vmatpush.msra.mxu0 %v854
  %1562 = vmatpush.msra.mxu0 %v853
  %1563 = vmatpush.msra.mxu0 %v852
  %1564 = vmatpush.msra.mxu0 %v851
  %1565 = vmatpush.msra.mxu0 %v850
  %1566 = vmatpush.msra.mxu0 %v849
  %1567 = vmatpush.msra.mxu0 %v848
  %1568 = vmatpush.msra.mxu0 %v847
  %1569 = vmatpush.msra.mxu0 %v846
  %1570 = vmatpush.msra.mxu0 %v845
  %1571 = vmatpush.msra.mxu0 %v844
  %1572 = vmatpush.msra.mxu0 %v843
  %1573 = vmatmul.f32.gmra.mxu0 %v1478
  %v1574 = vpop.f32.mrf.mxu0
  %v1575 = vadd.f32 %v1552, %v1574
  %1576 = vmatmul.f32.gmra.mxu0 %v1494
  %v1577 = vpop.f32.mrf.mxu0
  %v1578 = vadd.f32 %v1555, %v1577
  %1579 = vdwg.mxu0
  %1580 = vmatpush.msra.mxu0 %v874
  %1581 = vmatpush.msra.mxu0 %v873
  %1582 = vmatpush.msra.mxu0 %v872
  %1583 = vmatpush.msra.mxu0 %v871
  %1584 = vmatpush.msra.mxu0 %v870
  %1585 = vmatpush.msra.mxu0 %v869
  %1586 = vmatpush.msra.mxu0 %v868
  %1587 = vmatpush.msra.mxu0 %v867
  %1588 = vmatpush.msra.mxu0 %v866
  %1589 = vmatpush.msra.mxu0 %v865
  %1590 = vmatpush.msra.mxu0 %v864
  %1591 = vmatpush.msra.mxu0 %v863
  %1592 = vmatpush.msra.mxu0 %v862
  %1593 = vmatpush.msra.mxu0 %v861
  %1594 = vmatpush.msra.mxu0 %v860
  %1595 = vmatpush.msra.mxu0 %v859
  %1596 = vmatmul.f32.gmra.mxu0 %v1479
  %v1597 = vpop.f32.mrf.mxu0
  %v1598 = vadd.f32 %v1575, %v1597
  %1599 = vmatmul.f32.gmra.mxu0 %v1495
  %v1600 = vpop.f32.mrf.mxu0
  %v1601 = vadd.f32 %v1578, %v1600
  %1602 = vdwg.mxu0
  %1603 = vmatpush.msra.mxu0 %v890
  %1604 = vmatpush.msra.mxu0 %v889
  %1605 = vmatpush.msra.mxu0 %v888
  %1606 = vmatpush.msra.mxu0 %v887
  %1607 = vmatpush.msra.mxu0 %v886
  %1608 = vmatpush.msra.mxu0 %v885
  %1609 = vmatpush.msra.mxu0 %v884
  %1610 = vmatpush.msra.mxu0 %v883
  %1611 = vmatpush.msra.mxu0 %v882
  %1612 = vmatpush.msra.mxu0 %v881
  %1613 = vmatpush.msra.mxu0 %v880
  %1614 = vmatpush.msra.mxu0 %v879
  %1615 = vmatpush.msra.mxu0 %v878
  %1616 = vmatpush.msra.mxu0 %v877
  %1617 = vmatpush.msra.mxu0 %v876
  %1618 = vmatpush.msra.mxu0 %v875
  %1619 = vmatmul.f32.gmra.mxu0 %v1480
  %v1620 = vpop.f32.mrf.mxu0
  %v1621 = vadd.f32 %v1598, %v1620
  %1622 = vmatmul.f32.gmra.mxu0 %v1496
  %v1623 = vpop.f32.mrf.mxu0
  %v1624 = vadd.f32 %v1601, %v1623
  %1625 = vdwg.mxu0
  %1626 = vmatpush.msra.mxu0 %v906
  %1627 = vmatpush.msra.mxu0 %v905
  %1628 = vmatpush.msra.mxu0 %v904
  %1629 = vmatpush.msra.mxu0 %v903
  %1630 = vmatpush.msra.mxu0 %v902
  %1631 = vmatpush.msra.mxu0 %v901
  %1632 = vmatpush.msra.mxu0 %v900
  %1633 = vmatpush.msra.mxu0 %v899
  %1634 = vmatpush.msra.mxu0 %v898
  %1635 = vmatpush.msra.mxu0 %v897
  %1636 = vmatpush.msra.mxu0 %v896
  %1637 = vmatpush.msra.mxu0 %v895
  %1638 = vmatpush.msra.mxu0 %v894
  %1639 = vmatpush.msra.mxu0 %v893
  %1640 = vmatpush.msra.mxu0 %v892
  %1641 = vmatpush.msra.mxu0 %v891
  %1642 = vmatmul.f32.gmra.mxu0 %v1481
  %v1643 = vpop.f32.mrf.mxu0
  %v1644 = vadd.f32 %v1621, %v1643
  %1645 = vmatmul.f32.gmra.mxu0 %v1497
  %v1646 = vpop.f32.mrf.mxu0
  %v1647 = vadd.f32 %v1624, %v1646
  %1648 = vdwg.mxu0
  %1649 = vmatpush.msra.mxu0 %v922
  %1650 = vmatpush.msra.mxu0 %v921
  %1651 = vmatpush.msra.mxu0 %v920
  %1652 = vmatpush.msra.mxu0 %v919
  %1653 = vmatpush.msra.mxu0 %v918
  %1654 = vmatpush.msra.mxu0 %v917
  %1655 = vmatpush.msra.mxu0 %v916
  %1656 = vmatpush.msra.mxu0 %v915
  %1657 = vmatpush.msra.mxu0 %v914
  %1658 = vmatpush.msra.mxu0 %v913
  %1659 = vmatpush.msra.mxu0 %v912
  %1660 = vmatpush.msra.mxu0 %v911
  %1661 = vmatpush.msra.mxu0 %v910
  %1662 = vmatpush.msra.mxu0 %v909
  %1663 = vmatpush.msra.mxu0 %v908
  %1664 = vmatpush.msra.mxu0 %v907
  %1665 = vmatmul.f32.gmra.mxu0 %v1482
  %v1666 = vpop.f32.mrf.mxu0
  %v1667 = vadd.f32 %v1644, %v1666
  %1668 = vmatmul.f32.gmra.mxu0 %v1498
  %v1669 = vpop.f32.mrf.mxu0
  %v1670 = vadd.f32 %v1647, %v1669
  %1671 = vdwg.mxu0
  %1672 = vmatpush.msra.mxu0 %v938
  %1673 = vmatpush.msra.mxu0 %v937
  %1674 = vmatpush.msra.mxu0 %v936
  %1675 = vmatpush.msra.mxu0 %v935
  %1676 = vmatpush.msra.mxu0 %v934
  %1677 = vmatpush.msra.mxu0 %v933
  %1678 = vmatpush.msra.mxu0 %v932
  %1679 = vmatpush.msra.mxu0 %v931
  %1680 = vmatpush.msra.mxu0 %v930
  %1681 = vmatpush.msra.mxu0 %v929
  %1682 = vmatpush.msra.mxu0 %v928
  %1683 = vmatpush.msra.mxu0 %v927
  %1684 = vmatpush.msra.mxu0 %v926
  %1685 = vmatpush.msra.mxu0 %v925
  %1686 = vmatpush.msra.mxu0 %v924
  %1687 = vmatpush.msra.mxu0 %v923
  %1688 = vmatmul.f32.gmra.mxu0 %v1483
  %v1689 = vpop.f32.mrf.mxu0
  %v1690 = vadd.f32 %v1667, %v1689
  %1691 = vmatmul.f32.gmra.mxu0 %v1499
  %v1692 = vpop.f32.mrf.mxu0
  %v1693 = vadd.f32 %v1670, %v1692
  %1694 = vdwg.mxu0
  %1695 = vmatpush.msra.mxu0 %v954
  %1696 = vmatpush.msra.mxu0 %v953
  %1697 = vmatpush.msra.mxu0 %v952
  %1698 = vmatpush.msra.mxu0 %v951
  %1699 = vmatpush.msra.mxu0 %v950
  %1700 = vmatpush.msra.mxu0 %v949
  %1701 = vmatpush.msra.mxu0 %v948
  %1702 = vmatpush.msra.mxu0 %v947
  %1703 = vmatpush.msra.mxu0 %v946
  %1704 = vmatpush.msra.mxu0 %v945
  %1705 = vmatpush.msra.mxu0 %v944
  %1706 = vmatpush.msra.mxu0 %v943
  %1707 = vmatpush.msra.mxu0 %v942
  %1708 = vmatpush.msra.mxu0 %v941
  %1709 = vmatpush.msra.mxu0 %v940
  %1710 = vmatpush.msra.mxu0 %v939
  %1711 = vmatmul.f32.gmra.mxu0 %v1484
  %v1712 = vpop.f32.mrf.mxu0
  %v1713 = vadd.f32 %v1690, %v1712
  %1714 = vmatmul.f32.gmra.mxu0 %v1500
  %v1715 = vpop.f32.mrf.mxu0
  %v1716 = vadd.f32 %v1693, %v1715
  %1717 = vdwg.mxu0
  %1718 = vmatpush.msra.mxu0 %v970
  %1719 = vmatpush.msra.mxu0 %v969
  %1720 = vmatpush.msra.mxu0 %v968
  %1721 = vmatpush.msra.mxu0 %v967
  %1722 = vmatpush.msra.mxu0 %v966
  %1723 = vmatpush.msra.mxu0 %v965
  %1724 = vmatpush.msra.mxu0 %v964
  %1725 = vmatpush.msra.mxu0 %v963
  %1726 = vmatpush.msra.mxu0 %v962
  %1727 = vmatpush.msra.mxu0 %v961
  %1728 = vmatpush.msra.mxu0 %v960
  %1729 = vmatpush.msra.mxu0 %v959
  %1730 = vmatpush.msra.mxu0 %v958
  %1731 = vmatpush.msra.mxu0 %v957
  %1732 = vmatpush.msra.mxu0 %v956
  %1733 = vmatpush.msra.mxu0 %v955
  %1734 = vmatmul.f32.gmra.mxu0 %v1485
  %v1735 = vpop.f32.mrf.mxu0
  %v1736 = vadd.f32 %v1713, %v1735
  %1737 = vmatmul.f32.gmra.mxu0 %v1501
  %v1738 = vpop.f32.mrf.mxu0
  %v1739 = vadd.f32 %v1716, %v1738
  %1740 = vdwg.mxu0
  %1741 = vmatpush.msra.mxu0 %v986
  %1742 = vmatpush.msra.mxu0 %v985
  %1743 = vmatpush.msra.mxu0 %v984
  %1744 = vmatpush.msra.mxu0 %v983
  %1745 = vmatpush.msra.mxu0 %v982
  %1746 = vmatpush.msra.mxu0 %v981
  %1747 = vmatpush.msra.mxu0 %v980
  %1748 = vmatpush.msra.mxu0 %v979
  %1749 = vmatpush.msra.mxu0 %v978
  %1750 = vmatpush.msra.mxu0 %v977
  %1751 = vmatpush.msra.mxu0 %v976
  %1752 = vmatpush.msra.mxu0 %v975
  %1753 = vmatpush.msra.mxu0 %v974
  %1754 = vmatpush.msra.mxu0 %v973
  %1755 = vmatpush.msra.mxu0 %v972
  %1756 = vmatpush.msra.mxu0 %v971
  %1757 = vmatmul.f32.gmra.mxu0 %v1486
  %v1758 = vpop.f32.mrf.mxu0
  %v1759 = vadd.f32 %v1736, %v1758
  %1760 = vmatmul.f32.gmra.mxu0 %v1502
  %v1761 = vpop.f32.mrf.mxu0
  %v1762 = vadd.f32 %v1739, %v1761
  %1763 = vdwg.mxu0
  %1764 = vmatpush.msra.mxu0 %v1002
  %1765 = vmatpush.msra.mxu0 %v1001
  %1766 = vmatpush.msra.mxu0 %v1000
  %1767 = vmatpush.msra.mxu0 %v999
  %1768 = vmatpush.msra.mxu0 %v998
  %1769 = vmatpush.msra.mxu0 %v997
  %1770 = vmatpush.msra.mxu0 %v996
  %1771 = vmatpush.msra.mxu0 %v995
  %1772 = vmatpush.msra.mxu0 %v994
  %1773 = vmatpush.msra.mxu0 %v993
  %1774 = vmatpush.msra.mxu0 %v992
  %1775 = vmatpush.msra.mxu0 %v991
  %1776 = vmatpush.msra.mxu0 %v990
  %1777 = vmatpush.msra.mxu0 %v989
  %1778 = vmatpush.msra.mxu0 %v988
  %1779 = vmatpush.msra.mxu0 %v987
  %1780 = vmatmul.f32.gmra.mxu0 %v1487
  %v1781 = vpop.f32.mrf.mxu0
  %v1782 = vadd.f32 %v1759, %v1781
  %1783 = vmatmul.f32.gmra.mxu0 %v1503
  %v1784 = vpop.f32.mrf.mxu0
  %v1785 = vadd.f32 %v1762, %v1784
  %1786 = vdwg.mxu0
  %1787 = vmatpush.msra.mxu0 %v1018
  %1788 = vmatpush.msra.mxu0 %v1017
  %1789 = vmatpush.msra.mxu0 %v1016
  %1790 = vmatpush.msra.mxu0 %v1015
  %1791 = vmatpush.msra.mxu0 %v1014
  %1792 = vmatpush.msra.mxu0 %v1013
  %1793 = vmatpush.msra.mxu0 %v1012
  %1794 = vmatpush.msra.mxu0 %v1011
  %1795 = vmatpush.msra.mxu0 %v1010
  %1796 = vmatpush.msra.mxu0 %v1009
  %1797 = vmatpush.msra.mxu0 %v1008
  %1798 = vmatpush.msra.mxu0 %v1007
  %1799 = vmatpush.msra.mxu0 %v1006
  %1800 = vmatpush.msra.mxu0 %v1005
  %1801 = vmatpush.msra.mxu0 %v1004
  %1802 = vmatpush.msra.mxu0 %v1003
  %1803 = vmatmul.f32.gmra.mxu0 %v1488
  %v1804 = vpop.f32.mrf.mxu0
  %v1805 = vadd.f32 %v1782, %v1804
  %1806 = vmatmul.f32.gmra.mxu0 %v1504
  %v1807 = vpop.f32.mrf.mxu0
  %v1808 = vadd.f32 %v1785, %v1807
  %1809 = vdwg.mxu0
  %1810 = vmatpush.msra.mxu0 %v1034
  %1811 = vmatpush.msra.mxu0 %v1033
  %1812 = vmatpush.msra.mxu0 %v1032
  %1813 = vmatpush.msra.mxu0 %v1031
  %1814 = vmatpush.msra.mxu0 %v1030
  %1815 = vmatpush.msra.mxu0 %v1029
  %1816 = vmatpush.msra.mxu0 %v1028
  %1817 = vmatpush.msra.mxu0 %v1027
  %1818 = vmatpush.msra.mxu0 %v1026
  %1819 = vmatpush.msra.mxu0 %v1025
  %1820 = vmatpush.msra.mxu0 %v1024
  %1821 = vmatpush.msra.mxu0 %v1023
  %1822 = vmatpush.msra.mxu0 %v1022
  %1823 = vmatpush.msra.mxu0 %v1021
  %1824 = vmatpush.msra.mxu0 %v1020
  %1825 = vmatpush.msra.mxu0 %v1019
  %1826 = vmatmul.f32.gmra.mxu0 %v1489
  %v1827 = vpop.f32.mrf.mxu0
  %v1828 = vadd.f32 %v1805, %v1827
  %1829 = vmatmul.f32.gmra.mxu0 %v1505
  %v1830 = vpop.f32.mrf.mxu0
  %v1831 = vadd.f32 %v1808, %v1830
  %1832 = vdwg.mxu0
  %1833 = vmatpush.msra.mxu0 %v1050
  %1834 = vmatpush.msra.mxu0 %v1049
  %1835 = vmatpush.msra.mxu0 %v1048
  %1836 = vmatpush.msra.mxu0 %v1047
  %1837 = vmatpush.msra.mxu0 %v1046
  %1838 = vmatpush.msra.mxu0 %v1045
  %1839 = vmatpush.msra.mxu0 %v1044
  %1840 = vmatpush.msra.mxu0 %v1043
  %1841 = vmatpush.msra.mxu0 %v1042
  %1842 = vmatpush.msra.mxu0 %v1041
  %1843 = vmatpush.msra.mxu0 %v1040
  %1844 = vmatpush.msra.mxu0 %v1039
  %1845 = vmatpush.msra.mxu0 %v1038
  %1846 = vmatpush.msra.mxu0 %v1037
  %1847 = vmatpush.msra.mxu0 %v1036
  %1848 = vmatpush.msra.mxu0 %v1035
  %1849 = vmatmul.f32.gmra.mxu0 %v1490
  %v1850 = vpop.f32.mrf.mxu0
  %v1851 = vadd.f32 %v1828, %v1850
  %1852 = vmatmul.f32.gmra.mxu0 %v1506
  %v1853 = vpop.f32.mrf.mxu0
  %v1854 = vadd.f32 %v1831, %v1853
  %1855 = vdwg.mxu0
  %1856 = vmatpush.msra.mxu0 %v1066
  %1857 = vmatpush.msra.mxu0 %v1065
  %1858 = vmatpush.msra.mxu0 %v1064
  %1859 = vmatpush.msra.mxu0 %v1063
  %1860 = vmatpush.msra.mxu0 %v1062
  %1861 = vmatpush.msra.mxu0 %v1061
  %1862 = vmatpush.msra.mxu0 %v1060
  %1863 = vmatpush.msra.mxu0 %v1059
  %1864 = vmatpush.msra.mxu0 %v1058
  %1865 = vmatpush.msra.mxu0 %v1057
  %1866 = vmatpush.msra.mxu0 %v1056
  %1867 = vmatpush.msra.mxu0 %v1055
  %1868 = vmatpush.msra.mxu0 %v1054
  %1869 = vmatpush.msra.mxu0 %v1053
  %1870 = vmatpush.msra.mxu0 %v1052
  %1871 = vmatpush.msra.mxu0 %v1051
  %1872 = vmatmul.f32.gmra.mxu0 %v1491
  %v1873 = vpop.f32.mrf.mxu0
  %v1874 = vadd.f32 %v1851, %v1873
  %1875 = vmatmul.f32.gmra.mxu0 %v1507
  %v1876 = vpop.f32.mrf.mxu0
  %v1877 = vadd.f32 %v1854, %v1876
  %1878 = vdwg.mxu0
  %v1879 = vadd.f32 %v743, %v1874
  %v1880 = vadd.f32 %v744, %v1877
  %v1881 = vld [vmem:[%s11] sm:$0x1]
  %v1882 = vld [vmem:[%s12] sm:$0x1]
  %v1883 = vsel %vm59, %v1879, 0.0
  %1884 = vadd.xlane.f32.xlu0 %v1883
  %v1885 = vpop.xlane.xlu0 %1884
  %v1886 = vsel %vm59, %v1880, 0.0
  %1887 = vadd.xlane.f32.xlu0 %v1886
  %v1888 = vpop.xlane.xlu0 %1887
  %v1889 = vmul.f32 %v1885, %v696
  %v1890 = vmul.f32 %v1888, %v696
  %v1891 = vsub.f32 %v1879, %v1889
  %v1892 = vsub.f32 %v1880, %v1890
  %v1893 = vmul.f32 %v1891, %v1891
  %v1894 = vmul.f32 %v1892, %v1892
  %v1895 = vsel %vm59, %v1893, 0.0
  %1896 = vadd.xlane.f32.xlu0 %v1895
  %v1897 = vpop.xlane.xlu0 %1896
  %v1898 = vsel %vm59, %v1894, 0.0
  %1899 = vadd.xlane.f32.xlu0 %v1898
  %v1900 = vpop.xlane.xlu0 %1899
  %v1901 = vmul.f32 %v1897, %v696
  %v1902 = vmul.f32 %v1900, %v696
  %v1903 = vadd.f32 %v1901, 1e-05
  %v1904 = vadd.f32 %v1902, 1e-05
  %v1905 = vrsqrt.pop %v1903
  %v1906 = vmul.f32 %v1905, %v1903
  %v1907 = vmul.f32 %v1906, %v1905
  %v1908 = vmul.f32 0.5, %v1907
  %v1909 = vsub.f32 1.5, %v1908
  %v1910 = vmul.f32 %v1905, %v1909
  %vm1911 = vweird.f32 %v1903
  %vm1912 = vweird.f32 %v1905
  %vm1913 = vmor %vm1911, %vm1912
  %v1914 = vsel %vm1913, %v1905, %v1910
  %v1915 = vrsqrt.pop %v1904
  %v1916 = vmul.f32 %v1915, %v1904
  %v1917 = vmul.f32 %v1916, %v1915
  %v1918 = vmul.f32 0.5, %v1917
  %v1919 = vsub.f32 1.5, %v1918
  %v1920 = vmul.f32 %v1915, %v1919
  %vm1921 = vweird.f32 %v1904
  %vm1922 = vweird.f32 %v1915
  %vm1923 = vmor %vm1921, %vm1922
  %v1924 = vsel %vm1923, %v1915, %v1920
  %v1925 = vmul.f32 %v1891, %v1914
  %v1926 = vmul.f32 %v1892, %v1924
  %v1928 = vperm.slane %v1881, 0
  %v1930 = vmul.f32 %v1925, %v1928
  %v1931 = vmul.f32 %v1926, %v1928
  %v1933 = vperm.slane %v1882, 0
  %v1935 = vadd.f32 %v1930, %v1933
  %v1936 = vadd.f32 %v1931, %v1933
  %1937 = vst.msk [vmem:[%s13] sm:$0xff] %vm59, %v1935
  %1938 = vst.msk [vmem:[%s13 + $0x8] sm:$0xff] %vm59, %v1936
  // Predicated region
  $region54: #{transformer_predictor_forward.12} parent=0 // pred_check
    _
  $region55: #{transformer_predictor_forward.12} parent=0 // pred_check_branch
    %1940 = sbr.rel (0) target = $region57
  $region56: #{transformer_predictor_forward.12} parent=0 // pred_region
    _
  $region57: #{transformer_predictor_forward.12} parent=0 // pred_fallthru
    _
  // Predicated region
  $region58: #{transformer_predictor_forward.12} parent=0 // pred_check
    _
  $region59: #{transformer_predictor_forward.12} parent=0 // pred_check_branch
    %1942 = sbr.rel (0) target = $region61
  $region60: #{transformer_predictor_forward.12} parent=0 // pred_region
    _
  $region61: #{transformer_predictor_forward.12} parent=0 // pred_fallthru
    _

// kernel: transformer_predictor_forward.15
$region0: #{transformer_predictor_forward.15}
  #allocation0 [shape = 'u32[]', space=smem, size = 0x4, offset = 0x4, fixed_abs, tag = 'smem constant byte address 0x4 - core index']
  #allocation1 [shape = 'u32[72,128]{1,0:T(1,128)}', space=vmem, size = 0x9000, scoped, tag = 'internal scratch']
  %s0 = inlined_call_operand.vmem [shape: f32[16,32], index: 0, kind: input, shape index: {}]
  %s1 = inlined_call_operand.vmem [shape: f32[16,32], index: 1, kind: input, shape index: {}]
  %s2 = inlined_call_operand.vmem [shape: f32[32,96], index: 2, kind: input, shape index: {}]
  %s3 = inlined_call_operand.vmem [shape: f32[1,96], index: 3, kind: input, shape index: {}]
  %s4 = inlined_call_operand.vmem [shape: f32[32,32], index: 4, kind: input, shape index: {}]
  %s5 = inlined_call_operand.vmem [shape: f32[1,32], index: 5, kind: input, shape index: {}]
  %s6 = inlined_call_operand.vmem [shape: f32[1,32], index: 6, kind: input, shape index: {}]
  %s7 = inlined_call_operand.vmem [shape: f32[1,32], index: 7, kind: input, shape index: {}]
  %s8 = inlined_call_operand.vmem [shape: f32[32,32], index: 8, kind: input, shape index: {}]
  %s9 = inlined_call_operand.vmem [shape: f32[1,32], index: 9, kind: input, shape index: {}]
  %s10 = inlined_call_operand.vmem [shape: f32[32,64], index: 10, kind: input, shape index: {}]
  %s11 = inlined_call_operand.vmem [shape: f32[1,64], index: 11, kind: input, shape index: {}]
  %s12 = inlined_call_operand.vmem [shape: f32[32,32], index: 12, kind: input, shape index: {}]
  %s13 = inlined_call_operand.vmem [shape: f32[1,32], index: 13, kind: input, shape index: {}]
  %s14 = inlined_call_operand.vmem [shape: f32[1,32], index: 14, kind: input, shape index: {}]
  %s15 = inlined_call_operand.vmem [shape: f32[1,32], index: 15, kind: input, shape index: {}]
  %s16 = inlined_call_operand.vmem [shape: f32[32,2048], index: 16, kind: input, shape index: {}]
  %s17 = inlined_call_operand.vmem [shape: f32[1,2048], index: 17, kind: input, shape index: {}]
  %s18 = inlined_call_operand.vmem [shape: f32[2048,32], index: 18, kind: input, shape index: {}]
  %s19 = inlined_call_operand.vmem [shape: f32[1,32], index: 19, kind: input, shape index: {}]
  %s20 = inlined_call_operand.vmem [shape: f32[1,32], index: 20, kind: input, shape index: {}]
  %s21 = inlined_call_operand.vmem [shape: f32[1,32], index: 21, kind: input, shape index: {}]
  %s22 = inlined_call_operand.vmem [shape: f32[16,32], index: 22, kind: output, shape index: {}]
  %s23 = sld [smem:[#allocation0]]
  $region98: #{transformer_predictor_forward.15} parent=0
    _
  %s25 = ssub.s32 1, %s23
  %s26 = scalar_select 0, %s25, %s23
  // Predicated region
  $region2: #{transformer_predictor_forward.15} parent=0 // pred_check
    _
  $region3: #{transformer_predictor_forward.15} parent=0 // pred_check_branch
    %28 = sbr.rel (0) target = $region5
  $region4: #{transformer_predictor_forward.15} parent=0 // pred_region
    _
  $region5: #{transformer_predictor_forward.15} parent=0 // pred_fallthru
    _
  // Predicated region
  $region6: #{transformer_predictor_forward.15} parent=0 // pred_check
    _
  $region7: #{transformer_predictor_forward.15} parent=0 // pred_check_branch
    %30 = sbr.rel (0) target = $region9
  $region8: #{transformer_predictor_forward.15} parent=0 // pred_region
    _
  $region9: #{transformer_predictor_forward.15} parent=0 // pred_fallthru
    _
  // Predicated region
  $region10: #{transformer_predictor_forward.15} parent=0 // pred_check
    _
  $region11: #{transformer_predictor_forward.15} parent=0 // pred_check_branch
    %32 = sbr.rel (0) target = $region13
  $region12: #{transformer_predictor_forward.15} parent=0 // pred_region
    _
  $region13: #{transformer_predictor_forward.15} parent=0 // pred_fallthru
    _
  // Predicated region
  $region14: #{transformer_predictor_forward.15} parent=0 // pred_check
    _
  $region15: #{transformer_predictor_forward.15} parent=0 // pred_check_branch
    %34 = sbr.rel (0) target = $region17
  $region16: #{transformer_predictor_forward.15} parent=0 // pred_region
    _
  $region17: #{transformer_predictor_forward.15} parent=0 // pred_fallthru
    _
  // Predicated region
  $region18: #{transformer_predictor_forward.15} parent=0 // pred_check
    _
  $region19: #{transformer_predictor_forward.15} parent=0 // pred_check_branch
    %36 = sbr.rel (0) target = $region21
  $region20: #{transformer_predictor_forward.15} parent=0 // pred_region
    _
  $region21: #{transformer_predictor_forward.15} parent=0 // pred_fallthru
    _
  // Predicated region
  $region22: #{transformer_predictor_forward.15} parent=0 // pred_check
    _
  $region23: #{transformer_predictor_forward.15} parent=0 // pred_check_branch
    %38 = sbr.rel (0) target = $region25
  $region24: #{transformer_predictor_forward.15} parent=0 // pred_region
    _
  $region25: #{transformer_predictor_forward.15} parent=0 // pred_fallthru
    _
  // Predicated region
  $region26: #{transformer_predictor_forward.15} parent=0 // pred_check
    _
  $region27: #{transformer_predictor_forward.15} parent=0 // pred_check_branch
    %40 = sbr.rel (0) target = $region29
  $region28: #{transformer_predictor_forward.15} parent=0 // pred_region
    _
  $region29: #{transformer_predictor_forward.15} parent=0 // pred_fallthru
    _
  // Predicated region
  $region30: #{transformer_predictor_forward.15} parent=0 // pred_check
    _
  $region31: #{transformer_predictor_forward.15} parent=0 // pred_check_branch
    %42 = sbr.rel (0) target = $region33
  $region32: #{transformer_predictor_forward.15} parent=0 // pred_region
    _
  $region33: #{transformer_predictor_forward.15} parent=0 // pred_fallthru
    _
  // Predicated region
  $region34: #{transformer_predictor_forward.15} parent=0 // pred_check
    _
  $region35: #{transformer_predictor_forward.15} parent=0 // pred_check_branch
    %44 = sbr.rel (0) target = $region37
  $region36: #{transformer_predictor_forward.15} parent=0 // pred_region
    _
  $region37: #{transformer_predictor_forward.15} parent=0 // pred_fallthru
    _
  // Predicated region
  $region38: #{transformer_predictor_forward.15} parent=0 // pred_check
    _
  $region39: #{transformer_predictor_forward.15} parent=0 // pred_check_branch
    %46 = sbr.rel (0) target = $region41
  $region40: #{transformer_predictor_forward.15} parent=0 // pred_region
    _
  $region41: #{transformer_predictor_forward.15} parent=0 // pred_fallthru
    _
  // Predicated region
  $region42: #{transformer_predictor_forward.15} parent=0 // pred_check
    _
  $region43: #{transformer_predictor_forward.15} parent=0 // pred_check_branch
    %48 = sbr.rel (0) target = $region45
  $region44: #{transformer_predictor_forward.15} parent=0 // pred_region
    _
  $region45: #{transformer_predictor_forward.15} parent=0 // pred_fallthru
    _
  // Predicated region
  $region46: #{transformer_predictor_forward.15} parent=0 // pred_check
    _
  $region47: #{transformer_predictor_forward.15} parent=0 // pred_check_branch
    %50 = sbr.rel (0) target = $region49
  $region48: #{transformer_predictor_forward.15} parent=0 // pred_region
    _
  $region49: #{transformer_predictor_forward.15} parent=0 // pred_fallthru
    _
  // Predicated region
  $region50: #{transformer_predictor_forward.15} parent=0 // pred_check
    _
  $region51: #{transformer_predictor_forward.15} parent=0 // pred_check_branch
    %52 = sbr.rel (0) target = $region53
  $region52: #{transformer_predictor_forward.15} parent=0 // pred_region
    _
  $region53: #{transformer_predictor_forward.15} parent=0 // pred_fallthru
    _
  // Predicated region
  $region54: #{transformer_predictor_forward.15} parent=0 // pred_check
    _
  $region55: #{transformer_predictor_forward.15} parent=0 // pred_check_branch
    %54 = sbr.rel (0) target = $region57
  $region56: #{transformer_predictor_forward.15} parent=0 // pred_region
    _
  $region57: #{transformer_predictor_forward.15} parent=0 // pred_fallthru
    _
  // Predicated region
  $region58: #{transformer_predictor_forward.15} parent=0 // pred_check
    _
  $region59: #{transformer_predictor_forward.15} parent=0 // pred_check_branch
    %56 = sbr.rel (0) target = $region61
  $region60: #{transformer_predictor_forward.15} parent=0 // pred_region
    _
  $region61: #{transformer_predictor_forward.15} parent=0 // pred_fallthru
    _
  // Predicated region
  $region62: #{transformer_predictor_forward.15} parent=0 // pred_check
    _
  $region63: #{transformer_predictor_forward.15} parent=0 // pred_check_branch
    %58 = sbr.rel (0) target = $region65
  $region64: #{transformer_predictor_forward.15} parent=0 // pred_region
    _
  $region65: #{transformer_predictor_forward.15} parent=0 // pred_fallthru
    _
  // Predicated region
  $region66: #{transformer_predictor_forward.15} parent=0 // pred_check
    _
  $region67: #{transformer_predictor_forward.15} parent=0 // pred_check_branch
    %60 = sbr.rel (0) target = $region69
  $region68: #{transformer_predictor_forward.15} parent=0 // pred_region
    _
  $region69: #{transformer_predictor_forward.15} parent=0 // pred_fallthru
    _
  // Predicated region
  $region70: #{transformer_predictor_forward.15} parent=0 // pred_check
    _
  $region71: #{transformer_predictor_forward.15} parent=0 // pred_check_branch
    %62 = sbr.rel (0) target = $region73
  $region72: #{transformer_predictor_forward.15} parent=0 // pred_region
    _
  $region73: #{transformer_predictor_forward.15} parent=0 // pred_fallthru
    _
  // Predicated region
  $region74: #{transformer_predictor_forward.15} parent=0 // pred_check
    _
  $region75: #{transformer_predictor_forward.15} parent=0 // pred_check_branch
    %64 = sbr.rel (0) target = $region77
  $region76: #{transformer_predictor_forward.15} parent=0 // pred_region
    _
  $region77: #{transformer_predictor_forward.15} parent=0 // pred_fallthru
    _
  // Predicated region
  $region78: #{transformer_predictor_forward.15} parent=0 // pred_check
    _
  $region79: #{transformer_predictor_forward.15} parent=0 // pred_check_branch
    %66 = sbr.rel (0) target = $region81
  $region80: #{transformer_predictor_forward.15} parent=0 // pred_region
    _
  $region81: #{transformer_predictor_forward.15} parent=0 // pred_fallthru
    _
  // Predicated region
  $region82: #{transformer_predictor_forward.15} parent=0 // pred_check
    _
  $region83: #{transformer_predictor_forward.15} parent=0 // pred_check_branch
    %68 = sbr.rel (0) target = $region85
  $region84: #{transformer_predictor_forward.15} parent=0 // pred_region
    _
  $region85: #{transformer_predictor_forward.15} parent=0 // pred_fallthru
    _
  // Predicated region
  $region86: #{transformer_predictor_forward.15} parent=0 // pred_check
    _
  $region87: #{transformer_predictor_forward.15} parent=0 // pred_check_branch
    %70 = sbr.rel (0) target = $region89
  $region88: #{transformer_predictor_forward.15} parent=0 // pred_region
    _
  $region89: #{transformer_predictor_forward.15} parent=0 // pred_fallthru
    _
  %v71 = vld [vmem:[%s0] sm:$0xff]
  %v72 = vld [vmem:[%s0 + $0x8] sm:$0xff]
  %v73 = vld [vmem:[%s1] sm:$0xff]
  %v74 = vld [vmem:[%s1 + $0x8] sm:$0xff]
  %v75 = vld [vmem:[%s2] sm:$0xff]
  %v76 = vld [vmem:[%s2 + $0x8] sm:$0xff]
  %v77 = vld [vmem:[%s2 + $0x10] sm:$0xff]
  %v78 = vld [vmem:[%s2 + $0x18] sm:$0xff]
  %v79 = vld [vmem:[%s3] sm:$0x1]
  %v80 = vld [vmem:[%s4] sm:$0xff]
  %v81 = vld [vmem:[%s4 + $0x8] sm:$0xff]
  %v82 = vld [vmem:[%s4 + $0x10] sm:$0xff]
  %v83 = vld [vmem:[%s4 + $0x18] sm:$0xff]
  %v84 = vld [vmem:[%s5] sm:$0x1]
  %v86 = vperm.slane %v79, 0
  %vm88 = vcmask 261120
  %v90 = vsel %vm88, %v71, 0
  %v93 = vsel %vm88, %v72, 0
  %95 = vmatpush.msra.mxu0 0.0
  %96 = vmatpush.msra.mxu0 0.0
  %97 = vmatpush.msra.mxu0 0.0
  %98 = vmatpush.msra.mxu0 0.0
  %99 = vmatpush.msra.mxu0 0.0
  %100 = vmatpush.msra.mxu0 0.0
  %101 = vmatpush.msra.mxu0 0.0
  %102 = vmatpush.msra.mxu0 0.0
  %103 = vmatpush.msra.mxu0 0.0
  %104 = vmatpush.msra.mxu0 0.0
  %105 = vmatpush.msra.mxu0 0.0
  %106 = vmatpush.msra.mxu0 0.0
  %107 = vmatpush.msra.mxu0 %v78
  %108 = vmatpush.msra.mxu0 %v77
  %109 = vmatpush.msra.mxu0 %v76
  %110 = vmatpush.msra.mxu0 %v75
  %111 = vmatmul.f32.gmra.mxu0 %v90
  %v112 = vpop.f32.mrf.mxu0
  %v113 = vadd.f32 %v86, %v112
  %114 = vmatmul.f32.gmra.mxu0 %v93
  %v115 = vpop.f32.mrf.mxu0
  %v116 = vadd.f32 %v86, %v115
  %117 = vdwg.mxu0
  %119 = vrot.lane.b32.xlu0 %v113, 96
  %v120 = vpop.permute.xlu0 %119
  %vm121 = vcmask 64512
  %v122 = vsel %vm121, %v113, 0
  %v124 = vsel %vm121, %v120, 0
  %126 = vmatpush.xpose.msra.mxu0 0.0
  %127 = vmatpush.xpose.msra.mxu0 0.0
  %128 = vmatpush.xpose.msra.mxu0 0.0
  %129 = vmatpush.xpose.msra.mxu0 0.0
  %130 = vmatpush.xpose.msra.mxu0 0.0
  %131 = vmatpush.xpose.msra.mxu0 0.0
  %132 = vmatpush.xpose.msra.mxu0 0.0
  %133 = vmatpush.xpose.msra.mxu0 0.0
  %134 = vmatpush.xpose.msra.mxu0 0.0
  %135 = vmatpush.xpose.msra.mxu0 0.0
  %136 = vmatpush.xpose.msra.mxu0 0.0
  %137 = vmatpush.xpose.msra.mxu0 0.0
  %138 = vmatpush.xpose.msra.mxu0 0.0
  %139 = vmatpush.xpose.msra.mxu0 0.0
  %140 = vmatpush.xpose.msra.mxu0 0.0
  %141 = vmatpush.xpose.msra.mxu0 %v124
  %142 = vmatmul.f32.gmra.mxu0 %v122
  %v143 = vpop.f32.mrf.mxu0
  %v144 = vadd.f32 0.0, %v143
  %145 = vdwg.mxu0
  %v146 = vmul.f32 %v144, 0.35355338
  %v147 = vsel %vm121, %v146, -inf
  %148 = vmax.xlane.f32.xlu0 %v147
  %v149 = vpop.xlane.xlu0 %148
  %v150 = vsub.f32 %v146, %v149
  %v151 = vmul.f32 %v150, 1.442695
  %v152 = vpow.pop %v151
  %v153 = vsel %vm121, %v152, 0.0
  %154 = vadd.xlane.f32.xlu0 %v153
  %v155 = vpop.xlane.xlu0 %154
  %v156 = vrcp.pop %v155
  %v157 = vmul.f32 %v152, %v156
  %158 = vrot.lane.b32.xlu0 %v113, 64
  %v159 = vpop.permute.xlu0 %158
  %v162 = vsel %vm121, %v157, 0
  %164 = vmatpush.msra.mxu0 0.0
  %165 = vmatpush.msra.mxu0 0.0
  %166 = vmatpush.msra.mxu0 0.0
  %167 = vmatpush.msra.mxu0 0.0
  %168 = vmatpush.msra.mxu0 0.0
  %169 = vmatpush.msra.mxu0 0.0
  %170 = vmatpush.msra.mxu0 0.0
  %171 = vmatpush.msra.mxu0 0.0
  %172 = vmatpush.msra.mxu0 0.0
  %173 = vmatpush.msra.mxu0 0.0
  %174 = vmatpush.msra.mxu0 0.0
  %175 = vmatpush.msra.mxu0 0.0
  %176 = vmatpush.msra.mxu0 0.0
  %177 = vmatpush.msra.mxu0 0.0
  %178 = vmatpush.msra.mxu0 0.0
  %179 = vmatpush.msra.mxu0 %v159
  %180 = vmatmul.f32.gmra.mxu0 %v162
  %v181 = vpop.f32.mrf.mxu0
  %v182 = vadd.f32 0.0, %v181
  %183 = vdwg.mxu0
  %184 = vrot.lane.b32.xlu0 %v113, 120
  %v185 = vpop.permute.xlu0 %184
  %186 = vrot.lane.b32.xlu0 %v113, 88
  %v187 = vpop.permute.xlu0 %186
  %v188 = vsel %vm121, %v185, 0
  %v190 = vsel %vm121, %v187, 0
  %192 = vmatpush.xpose.msra.mxu0 0.0
  %193 = vmatpush.xpose.msra.mxu0 0.0
  %194 = vmatpush.xpose.msra.mxu0 0.0
  %195 = vmatpush.xpose.msra.mxu0 0.0
  %196 = vmatpush.xpose.msra.mxu0 0.0
  %197 = vmatpush.xpose.msra.mxu0 0.0
  %198 = vmatpush.xpose.msra.mxu0 0.0
  %199 = vmatpush.xpose.msra.mxu0 0.0
  %200 = vmatpush.xpose.msra.mxu0 0.0
  %201 = vmatpush.xpose.msra.mxu0 0.0
  %202 = vmatpush.xpose.msra.mxu0 0.0
  %203 = vmatpush.xpose.msra.mxu0 0.0
  %204 = vmatpush.xpose.msra.mxu0 0.0
  %205 = vmatpush.xpose.msra.mxu0 0.0
  %206 = vmatpush.xpose.msra.mxu0 0.0
  %207 = vmatpush.xpose.msra.mxu0 %v190
  %208 = vmatmul.f32.gmra.mxu0 %v188
  %v209 = vpop.f32.mrf.mxu0
  %v210 = vadd.f32 0.0, %v209
  %211 = vdwg.mxu0
  %v212 = vmul.f32 %v210, 0.35355338
  %v213 = vsel %vm121, %v212, -inf
  %214 = vmax.xlane.f32.xlu0 %v213
  %v215 = vpop.xlane.xlu0 %214
  %v216 = vsub.f32 %v212, %v215
  %v217 = vmul.f32 %v216, 1.442695
  %v218 = vpow.pop %v217
  %v219 = vsel %vm121, %v218, 0.0
  %220 = vadd.xlane.f32.xlu0 %v219
  %v221 = vpop.xlane.xlu0 %220
  %v222 = vrcp.pop %v221
  %v223 = vmul.f32 %v218, %v222
  %224 = vrot.lane.b32.xlu0 %v113, 56
  %v225 = vpop.permute.xlu0 %224
  %v228 = vsel %vm121, %v223, 0
  %230 = vmatpush.msra.mxu0 0.0
  %231 = vmatpush.msra.mxu0 0.0
  %232 = vmatpush.msra.mxu0 0.0
  %233 = vmatpush.msra.mxu0 0.0
  %234 = vmatpush.msra.mxu0 0.0
  %235 = vmatpush.msra.mxu0 0.0
  %236 = vmatpush.msra.mxu0 0.0
  %237 = vmatpush.msra.mxu0 0.0
  %238 = vmatpush.msra.mxu0 0.0
  %239 = vmatpush.msra.mxu0 0.0
  %240 = vmatpush.msra.mxu0 0.0
  %241 = vmatpush.msra.mxu0 0.0
  %242 = vmatpush.msra.mxu0 0.0
  %243 = vmatpush.msra.mxu0 0.0
  %244 = vmatpush.msra.mxu0 0.0
  %245 = vmatpush.msra.mxu0 %v225
  %246 = vmatmul.f32.gmra.mxu0 %v228
  %v247 = vpop.f32.mrf.mxu0
  %v248 = vadd.f32 0.0, %v247
  %249 = vdwg.mxu0
  %250 = vrot.lane.b32.xlu0 %v113, 112
  %v251 = vpop.permute.xlu0 %250
  %252 = vrot.lane.b32.xlu0 %v113, 80
  %v253 = vpop.permute.xlu0 %252
  %v254 = vsel %vm121, %v251, 0
  %v256 = vsel %vm121, %v253, 0
  %258 = vmatpush.xpose.msra.mxu0 0.0
  %259 = vmatpush.xpose.msra.mxu0 0.0
  %260 = vmatpush.xpose.msra.mxu0 0.0
  %261 = vmatpush.xpose.msra.mxu0 0.0
  %262 = vmatpush.xpose.msra.mxu0 0.0
  %263 = vmatpush.xpose.msra.mxu0 0.0
  %264 = vmatpush.xpose.msra.mxu0 0.0
  %265 = vmatpush.xpose.msra.mxu0 0.0
  %266 = vmatpush.xpose.msra.mxu0 0.0
  %267 = vmatpush.xpose.msra.mxu0 0.0
  %268 = vmatpush.xpose.msra.mxu0 0.0
  %269 = vmatpush.xpose.msra.mxu0 0.0
  %270 = vmatpush.xpose.msra.mxu0 0.0
  %271 = vmatpush.xpose.msra.mxu0 0.0
  %272 = vmatpush.xpose.msra.mxu0 0.0
  %273 = vmatpush.xpose.msra.mxu0 %v256
  %274 = vmatmul.f32.gmra.mxu0 %v254
  %v275 = vpop.f32.mrf.mxu0
  %v276 = vadd.f32 0.0, %v275
  %277 = vdwg.mxu0
  %v278 = vmul.f32 %v276, 0.35355338
  %v279 = vsel %vm121, %v278, -inf
  %280 = vmax.xlane.f32.xlu0 %v279
  %v281 = vpop.xlane.xlu0 %280
  %v282 = vsub.f32 %v278, %v281
  %v283 = vmul.f32 %v282, 1.442695
  %v284 = vpow.pop %v283
  %v285 = vsel %vm121, %v284, 0.0
  %286 = vadd.xlane.f32.xlu0 %v285
  %v287 = vpop.xlane.xlu0 %286
  %v288 = vrcp.pop %v287
  %v289 = vmul.f32 %v284, %v288
  %290 = vrot.lane.b32.xlu0 %v113, 48
  %v291 = vpop.permute.xlu0 %290
  %v294 = vsel %vm121, %v289, 0
  %296 = vmatpush.msra.mxu0 0.0
  %297 = vmatpush.msra.mxu0 0.0
  %298 = vmatpush.msra.mxu0 0.0
  %299 = vmatpush.msra.mxu0 0.0
  %300 = vmatpush.msra.mxu0 0.0
  %301 = vmatpush.msra.mxu0 0.0
  %302 = vmatpush.msra.mxu0 0.0
  %303 = vmatpush.msra.mxu0 0.0
  %304 = vmatpush.msra.mxu0 0.0
  %305 = vmatpush.msra.mxu0 0.0
  %306 = vmatpush.msra.mxu0 0.0
  %307 = vmatpush.msra.mxu0 0.0
  %308 = vmatpush.msra.mxu0 0.0
  %309 = vmatpush.msra.mxu0 0.0
  %310 = vmatpush.msra.mxu0 0.0
  %311 = vmatpush.msra.mxu0 %v291
  %312 = vmatmul.f32.gmra.mxu0 %v294
  %v313 = vpop.f32.mrf.mxu0
  %v314 = vadd.f32 0.0, %v313
  %315 = vdwg.mxu0
  %316 = vrot.lane.b32.xlu0 %v113, 104
  %v317 = vpop.permute.xlu0 %316
  %318 = vrot.lane.b32.xlu0 %v113, 72
  %v319 = vpop.permute.xlu0 %318
  %v320 = vsel %vm121, %v317, 0
  %v322 = vsel %vm121, %v319, 0
  %324 = vmatpush.xpose.msra.mxu0 0.0
  %325 = vmatpush.xpose.msra.mxu0 0.0
  %326 = vmatpush.xpose.msra.mxu0 0.0
  %327 = vmatpush.xpose.msra.mxu0 0.0
  %328 = vmatpush.xpose.msra.mxu0 0.0
  %329 = vmatpush.xpose.msra.mxu0 0.0
  %330 = vmatpush.xpose.msra.mxu0 0.0
  %331 = vmatpush.xpose.msra.mxu0 0.0
  %332 = vmatpush.xpose.msra.mxu0 0.0
  %333 = vmatpush.xpose.msra.mxu0 0.0
  %334 = vmatpush.xpose.msra.mxu0 0.0
  %335 = vmatpush.xpose.msra.mxu0 0.0
  %336 = vmatpush.xpose.msra.mxu0 0.0
  %337 = vmatpush.xpose.msra.mxu0 0.0
  %338 = vmatpush.xpose.msra.mxu0 0.0
  %339 = vmatpush.xpose.msra.mxu0 %v322
  %340 = vmatmul.f32.gmra.mxu0 %v320
  %v341 = vpop.f32.mrf.mxu0
  %v342 = vadd.f32 0.0, %v341
  %343 = vdwg.mxu0
  %v344 = vmul.f32 %v342, 0.35355338
  %v345 = vsel %vm121, %v344, -inf
  %346 = vmax.xlane.f32.xlu0 %v345
  %v347 = vpop.xlane.xlu0 %346
  %v348 = vsub.f32 %v344, %v347
  %v349 = vmul.f32 %v348, 1.442695
  %v350 = vpow.pop %v349
  %v351 = vsel %vm121, %v350, 0.0
  %352 = vadd.xlane.f32.xlu0 %v351
  %v353 = vpop.xlane.xlu0 %352
  %v354 = vrcp.pop %v353
  %v355 = vmul.f32 %v350, %v354
  %356 = vrot.lane.b32.xlu0 %v113, 40
  %v357 = vpop.permute.xlu0 %356
  %v360 = vsel %vm121, %v355, 0
  %362 = vmatpush.msra.mxu0 0.0
  %363 = vmatpush.msra.mxu0 0.0
  %364 = vmatpush.msra.mxu0 0.0
  %365 = vmatpush.msra.mxu0 0.0
  %366 = vmatpush.msra.mxu0 0.0
  %367 = vmatpush.msra.mxu0 0.0
  %368 = vmatpush.msra.mxu0 0.0
  %369 = vmatpush.msra.mxu0 0.0
  %370 = vmatpush.msra.mxu0 0.0
  %371 = vmatpush.msra.mxu0 0.0
  %372 = vmatpush.msra.mxu0 0.0
  %373 = vmatpush.msra.mxu0 0.0
  %374 = vmatpush.msra.mxu0 0.0
  %375 = vmatpush.msra.mxu0 0.0
  %376 = vmatpush.msra.mxu0 0.0
  %377 = vmatpush.msra.mxu0 %v357
  %378 = vmatmul.f32.gmra.mxu0 %v360
  %v379 = vpop.f32.mrf.mxu0
  %v380 = vadd.f32 0.0, %v379
  %381 = vdwg.mxu0
  %383 = vrot.lane.b32.xlu0 %v248, 8
  %v384 = vpop.permute.xlu0 %383
  %387 = vrot.lane.b32.xlu0 %v314, 16
  %v388 = vpop.permute.xlu0 %387
  %391 = vrot.lane.b32.xlu0 %v380, 24
  %v392 = vpop.permute.xlu0 %391
  %v394 = vsel %vm121, %v182, %v384
  %vm395 = vcmask 130048
  %v396 = vsel %vm395, %v394, %v388
  %vm397 = vcmask 195584
  %v398 = vsel %vm397, %v396, %v392
  %400 = vrot.lane.b32.xlu0 %v116, 96
  %v401 = vpop.permute.xlu0 %400
  %v402 = vsel %vm121, %v116, 0
  %v404 = vsel %vm121, %v401, 0
  %406 = vmatpush.xpose.msra.mxu0 0.0
  %407 = vmatpush.xpose.msra.mxu0 0.0
  %408 = vmatpush.xpose.msra.mxu0 0.0
  %409 = vmatpush.xpose.msra.mxu0 0.0
  %410 = vmatpush.xpose.msra.mxu0 0.0
  %411 = vmatpush.xpose.msra.mxu0 0.0
  %412 = vmatpush.xpose.msra.mxu0 0.0
  %413 = vmatpush.xpose.msra.mxu0 0.0
  %414 = vmatpush.xpose.msra.mxu0 0.0
  %415 = vmatpush.xpose.msra.mxu0 0.0
  %416 = vmatpush.xpose.msra.mxu0 0.0
  %417 = vmatpush.xpose.msra.mxu0 0.0
  %418 = vmatpush.xpose.msra.mxu0 0.0
  %419 = vmatpush.xpose.msra.mxu0 0.0
  %420 = vmatpush.xpose.msra.mxu0 0.0
  %421 = vmatpush.xpose.msra.mxu0 %v404
  %422 = vmatmul.f32.gmra.mxu0 %v402
  %v423 = vpop.f32.mrf.mxu0
  %v424 = vadd.f32 0.0, %v423
  %425 = vdwg.mxu0
  %v426 = vmul.f32 %v424, 0.35355338
  %v427 = vsel %vm121, %v426, -inf
  %428 = vmax.xlane.f32.xlu0 %v427
  %v429 = vpop.xlane.xlu0 %428
  %v430 = vsub.f32 %v426, %v429
  %v431 = vmul.f32 %v430, 1.442695
  %v432 = vpow.pop %v431
  %v433 = vsel %vm121, %v432, 0.0
  %434 = vadd.xlane.f32.xlu0 %v433
  %v435 = vpop.xlane.xlu0 %434
  %v436 = vrcp.pop %v435
  %v437 = vmul.f32 %v432, %v436
  %438 = vrot.lane.b32.xlu0 %v116, 64
  %v439 = vpop.permute.xlu0 %438
  %v442 = vsel %vm121, %v437, 0
  %444 = vmatpush.msra.mxu0 0.0
  %445 = vmatpush.msra.mxu0 0.0
  %446 = vmatpush.msra.mxu0 0.0
  %447 = vmatpush.msra.mxu0 0.0
  %448 = vmatpush.msra.mxu0 0.0
  %449 = vmatpush.msra.mxu0 0.0
  %450 = vmatpush.msra.mxu0 0.0
  %451 = vmatpush.msra.mxu0 0.0
  %452 = vmatpush.msra.mxu0 0.0
  %453 = vmatpush.msra.mxu0 0.0
  %454 = vmatpush.msra.mxu0 0.0
  %455 = vmatpush.msra.mxu0 0.0
  %456 = vmatpush.msra.mxu0 0.0
  %457 = vmatpush.msra.mxu0 0.0
  %458 = vmatpush.msra.mxu0 0.0
  %459 = vmatpush.msra.mxu0 %v439
  %460 = vmatmul.f32.gmra.mxu0 %v442
  %v461 = vpop.f32.mrf.mxu0
  %v462 = vadd.f32 0.0, %v461
  %463 = vdwg.mxu0
  %464 = vrot.lane.b32.xlu0 %v116, 120
  %v465 = vpop.permute.xlu0 %464
  %466 = vrot.lane.b32.xlu0 %v116, 88
  %v467 = vpop.permute.xlu0 %466
  %v468 = vsel %vm121, %v465, 0
  %v470 = vsel %vm121, %v467, 0
  %472 = vmatpush.xpose.msra.mxu0 0.0
  %473 = vmatpush.xpose.msra.mxu0 0.0
  %474 = vmatpush.xpose.msra.mxu0 0.0
  %475 = vmatpush.xpose.msra.mxu0 0.0
  %476 = vmatpush.xpose.msra.mxu0 0.0
  %477 = vmatpush.xpose.msra.mxu0 0.0
  %478 = vmatpush.xpose.msra.mxu0 0.0
  %479 = vmatpush.xpose.msra.mxu0 0.0
  %480 = vmatpush.xpose.msra.mxu0 0.0
  %481 = vmatpush.xpose.msra.mxu0 0.0
  %482 = vmatpush.xpose.msra.mxu0 0.0
  %483 = vmatpush.xpose.msra.mxu0 0.0
  %484 = vmatpush.xpose.msra.mxu0 0.0
  %485 = vmatpush.xpose.msra.mxu0 0.0
  %486 = vmatpush.xpose.msra.mxu0 0.0
  %487 = vmatpush.xpose.msra.mxu0 %v470
  %488 = vmatmul.f32.gmra.mxu0 %v468
  %v489 = vpop.f32.mrf.mxu0
  %v490 = vadd.f32 0.0, %v489
  %491 = vdwg.mxu0
  %v492 = vmul.f32 %v490, 0.35355338
  %v493 = vsel %vm121, %v492, -inf
  %494 = vmax.xlane.f32.xlu0 %v493
  %v495 = vpop.xlane.xlu0 %494
  %v496 = vsub.f32 %v492, %v495
  %v497 = vmul.f32 %v496, 1.442695
  %v498 = vpow.pop %v497
  %v499 = vsel %vm121, %v498, 0.0
  %500 = vadd.xlane.f32.xlu0 %v499
  %v501 = vpop.xlane.xlu0 %500
  %v502 = vrcp.pop %v501
  %v503 = vmul.f32 %v498, %v502
  %504 = vrot.lane.b32.xlu0 %v116, 56
  %v505 = vpop.permute.xlu0 %504
  %v508 = vsel %vm121, %v503, 0
  %510 = vmatpush.msra.mxu0 0.0
  %511 = vmatpush.msra.mxu0 0.0
  %512 = vmatpush.msra.mxu0 0.0
  %513 = vmatpush.msra.mxu0 0.0
  %514 = vmatpush.msra.mxu0 0.0
  %515 = vmatpush.msra.mxu0 0.0
  %516 = vmatpush.msra.mxu0 0.0
  %517 = vmatpush.msra.mxu0 0.0
  %518 = vmatpush.msra.mxu0 0.0
  %519 = vmatpush.msra.mxu0 0.0
  %520 = vmatpush.msra.mxu0 0.0
  %521 = vmatpush.msra.mxu0 0.0
  %522 = vmatpush.msra.mxu0 0.0
  %523 = vmatpush.msra.mxu0 0.0
  %524 = vmatpush.msra.mxu0 0.0
  %525 = vmatpush.msra.mxu0 %v505
  %526 = vmatmul.f32.gmra.mxu0 %v508
  %v527 = vpop.f32.mrf.mxu0
  %v528 = vadd.f32 0.0, %v527
  %529 = vdwg.mxu0
  %530 = vrot.lane.b32.xlu0 %v116, 112
  %v531 = vpop.permute.xlu0 %530
  %532 = vrot.lane.b32.xlu0 %v116, 80
  %v533 = vpop.permute.xlu0 %532
  %v534 = vsel %vm121, %v531, 0
  %v536 = vsel %vm121, %v533, 0
  %538 = vmatpush.xpose.msra.mxu0 0.0
  %539 = vmatpush.xpose.msra.mxu0 0.0
  %540 = vmatpush.xpose.msra.mxu0 0.0
  %541 = vmatpush.xpose.msra.mxu0 0.0
  %542 = vmatpush.xpose.msra.mxu0 0.0
  %543 = vmatpush.xpose.msra.mxu0 0.0
  %544 = vmatpush.xpose.msra.mxu0 0.0
  %545 = vmatpush.xpose.msra.mxu0 0.0
  %546 = vmatpush.xpose.msra.mxu0 0.0
  %547 = vmatpush.xpose.msra.mxu0 0.0
  %548 = vmatpush.xpose.msra.mxu0 0.0
  %549 = vmatpush.xpose.msra.mxu0 0.0
  %550 = vmatpush.xpose.msra.mxu0 0.0
  %551 = vmatpush.xpose.msra.mxu0 0.0
  %552 = vmatpush.xpose.msra.mxu0 0.0
  %553 = vmatpush.xpose.msra.mxu0 %v536
  %554 = vmatmul.f32.gmra.mxu0 %v534
  %v555 = vpop.f32.mrf.mxu0
  %v556 = vadd.f32 0.0, %v555
  %557 = vdwg.mxu0
  %v558 = vmul.f32 %v556, 0.35355338
  %v559 = vsel %vm121, %v558, -inf
  %560 = vmax.xlane.f32.xlu0 %v559
  %v561 = vpop.xlane.xlu0 %560
  %v562 = vsub.f32 %v558, %v561
  %v563 = vmul.f32 %v562, 1.442695
  %v564 = vpow.pop %v563
  %v565 = vsel %vm121, %v564, 0.0
  %566 = vadd.xlane.f32.xlu0 %v565
  %v567 = vpop.xlane.xlu0 %566
  %v568 = vrcp.pop %v567
  %v569 = vmul.f32 %v564, %v568
  %570 = vrot.lane.b32.xlu0 %v116, 48
  %v571 = vpop.permute.xlu0 %570
  %v574 = vsel %vm121, %v569, 0
  %576 = vmatpush.msra.mxu0 0.0
  %577 = vmatpush.msra.mxu0 0.0
  %578 = vmatpush.msra.mxu0 0.0
  %579 = vmatpush.msra.mxu0 0.0
  %580 = vmatpush.msra.mxu0 0.0
  %581 = vmatpush.msra.mxu0 0.0
  %582 = vmatpush.msra.mxu0 0.0
  %583 = vmatpush.msra.mxu0 0.0
  %584 = vmatpush.msra.mxu0 0.0
  %585 = vmatpush.msra.mxu0 0.0
  %586 = vmatpush.msra.mxu0 0.0
  %587 = vmatpush.msra.mxu0 0.0
  %588 = vmatpush.msra.mxu0 0.0
  %589 = vmatpush.msra.mxu0 0.0
  %590 = vmatpush.msra.mxu0 0.0
  %591 = vmatpush.msra.mxu0 %v571
  %592 = vmatmul.f32.gmra.mxu0 %v574
  %v593 = vpop.f32.mrf.mxu0
  %v594 = vadd.f32 0.0, %v593
  %595 = vdwg.mxu0
  %596 = vrot.lane.b32.xlu0 %v116, 104
  %v597 = vpop.permute.xlu0 %596
  %598 = vrot.lane.b32.xlu0 %v116, 72
  %v599 = vpop.permute.xlu0 %598
  %v600 = vsel %vm121, %v597, 0
  %v602 = vsel %vm121, %v599, 0
  %604 = vmatpush.xpose.msra.mxu0 0.0
  %605 = vmatpush.xpose.msra.mxu0 0.0
  %606 = vmatpush.xpose.msra.mxu0 0.0
  %607 = vmatpush.xpose.msra.mxu0 0.0
  %608 = vmatpush.xpose.msra.mxu0 0.0
  %609 = vmatpush.xpose.msra.mxu0 0.0
  %610 = vmatpush.xpose.msra.mxu0 0.0
  %611 = vmatpush.xpose.msra.mxu0 0.0
  %612 = vmatpush.xpose.msra.mxu0 0.0
  %613 = vmatpush.xpose.msra.mxu0 0.0
  %614 = vmatpush.xpose.msra.mxu0 0.0
  %615 = vmatpush.xpose.msra.mxu0 0.0
  %616 = vmatpush.xpose.msra.mxu0 0.0
  %617 = vmatpush.xpose.msra.mxu0 0.0
  %618 = vmatpush.xpose.msra.mxu0 0.0
  %619 = vmatpush.xpose.msra.mxu0 %v602
  %620 = vmatmul.f32.gmra.mxu0 %v600
  %v621 = vpop.f32.mrf.mxu0
  %v622 = vadd.f32 0.0, %v621
  %623 = vdwg.mxu0
  %v624 = vmul.f32 %v622, 0.35355338
  %v625 = vsel %vm121, %v624, -inf
  %626 = vmax.xlane.f32.xlu0 %v625
  %v627 = vpop.xlane.xlu0 %626
  %v628 = vsub.f32 %v624, %v627
  %v629 = vmul.f32 %v628, 1.442695
  %v630 = vpow.pop %v629
  %v631 = vsel %vm121, %v630, 0.0
  %632 = vadd.xlane.f32.xlu0 %v631
  %v633 = vpop.xlane.xlu0 %632
  %v634 = vrcp.pop %v633
  %v635 = vmul.f32 %v630, %v634
  %636 = vrot.lane.b32.xlu0 %v116, 40
  %v637 = vpop.permute.xlu0 %636
  %v640 = vsel %vm121, %v635, 0
  %642 = vmatpush.msra.mxu0 0.0
  %643 = vmatpush.msra.mxu0 0.0
  %644 = vmatpush.msra.mxu0 0.0
  %645 = vmatpush.msra.mxu0 0.0
  %646 = vmatpush.msra.mxu0 0.0
  %647 = vmatpush.msra.mxu0 0.0
  %648 = vmatpush.msra.mxu0 0.0
  %649 = vmatpush.msra.mxu0 0.0
  %650 = vmatpush.msra.mxu0 0.0
  %651 = vmatpush.msra.mxu0 0.0
  %652 = vmatpush.msra.mxu0 0.0
  %653 = vmatpush.msra.mxu0 0.0
  %654 = vmatpush.msra.mxu0 0.0
  %655 = vmatpush.msra.mxu0 0.0
  %656 = vmatpush.msra.mxu0 0.0
  %657 = vmatpush.msra.mxu0 %v637
  %658 = vmatmul.f32.gmra.mxu0 %v640
  %v659 = vpop.f32.mrf.mxu0
  %v660 = vadd.f32 0.0, %v659
  %661 = vdwg.mxu0
  %663 = vrot.lane.b32.xlu0 %v528, 8
  %v664 = vpop.permute.xlu0 %663
  %667 = vrot.lane.b32.xlu0 %v594, 16
  %v668 = vpop.permute.xlu0 %667
  %671 = vrot.lane.b32.xlu0 %v660, 24
  %v672 = vpop.permute.xlu0 %671
  %v674 = vsel %vm121, %v462, %v664
  %v675 = vsel %vm395, %v674, %v668
  %v676 = vsel %vm397, %v675, %v672
  %v678 = vperm.slane %v84, 0
  %v681 = vsel %vm88, %v398, 0
  %v684 = vsel %vm88, %v676, 0
  %686 = vmatpush.msra.mxu0 0.0
  %687 = vmatpush.msra.mxu0 0.0
  %688 = vmatpush.msra.mxu0 0.0
  %689 = vmatpush.msra.mxu0 0.0
  %690 = vmatpush.msra.mxu0 0.0
  %691 = vmatpush.msra.mxu0 0.0
  %692 = vmatpush.msra.mxu0 0.0
  %693 = vmatpush.msra.mxu0 0.0
  %694 = vmatpush.msra.mxu0 0.0
  %695 = vmatpush.msra.mxu0 0.0
  %696 = vmatpush.msra.mxu0 0.0
  %697 = vmatpush.msra.mxu0 0.0
  %698 = vmatpush.msra.mxu0 %v83
  %699 = vmatpush.msra.mxu0 %v82
  %700 = vmatpush.msra.mxu0 %v81
  %701 = vmatpush.msra.mxu0 %v80
  %702 = vmatmul.f32.gmra.mxu0 %v681
  %v703 = vpop.f32.mrf.mxu0
  %v704 = vadd.f32 %v678, %v703
  %705 = vmatmul.f32.gmra.mxu0 %v684
  %v706 = vpop.f32.mrf.mxu0
  %v707 = vadd.f32 %v678, %v706
  %708 = vdwg.mxu0
  %v709 = vadd.f32 %v71, %v704
  %v710 = vadd.f32 %v72, %v707
  %v711 = vld [vmem:[%s6] sm:$0x1]
  %v712 = vld [vmem:[%s7] sm:$0x1]
  %v713 = vsel %vm88, %v709, 0.0
  %714 = vadd.xlane.f32.xlu0 %v713
  %v715 = vpop.xlane.xlu0 %714
  %v716 = vsel %vm88, %v710, 0.0
  %717 = vadd.xlane.f32.xlu0 %v716
  %v718 = vpop.xlane.xlu0 %717
  %v719 = vrcp.pop 32.0
  %v720 = vmul.f32 32.0, %v719
  %v721 = vsub.f32 1.0, %v720
  %v722 = vmul.f32 %v719, %v721
  %v723 = vadd.f32 %v719, %v722
  %vm724 = vweird.f32 %v719
  %v725 = vsel %vm724, %v719, %v723
  %v726 = vmul.f32 %v715, %v725
  %v727 = vmul.f32 %v718, %v725
  %v728 = vsub.f32 %v709, %v726
  %v729 = vsub.f32 %v710, %v727
  %v730 = vmul.f32 %v728, %v728
  %v731 = vmul.f32 %v729, %v729
  %v732 = vsel %vm88, %v730, 0.0
  %733 = vadd.xlane.f32.xlu0 %v732
  %v734 = vpop.xlane.xlu0 %733
  %v735 = vsel %vm88, %v731, 0.0
  %736 = vadd.xlane.f32.xlu0 %v735
  %v737 = vpop.xlane.xlu0 %736
  %v738 = vmul.f32 %v734, %v725
  %v739 = vmul.f32 %v737, %v725
  %v740 = vadd.f32 %v738, 1e-05
  %v741 = vadd.f32 %v739, 1e-05
  %v742 = vrsqrt.pop %v740
  %v743 = vmul.f32 %v742, %v740
  %v744 = vmul.f32 %v743, %v742
  %v745 = vmul.f32 0.5, %v744
  %v746 = vsub.f32 1.5, %v745
  %v747 = vmul.f32 %v742, %v746
  %vm748 = vweird.f32 %v740
  %vm749 = vweird.f32 %v742
  %vm750 = vmor %vm748, %vm749
  %v751 = vsel %vm750, %v742, %v747
  %v752 = vrsqrt.pop %v741
  %v753 = vmul.f32 %v752, %v741
  %v754 = vmul.f32 %v753, %v752
  %v755 = vmul.f32 0.5, %v754
  %v756 = vsub.f32 1.5, %v755
  %v757 = vmul.f32 %v752, %v756
  %vm758 = vweird.f32 %v741
  %vm759 = vweird.f32 %v752
  %vm760 = vmor %vm758, %vm759
  %v761 = vsel %vm760, %v752, %v757
  %v762 = vmul.f32 %v728, %v751
  %v763 = vmul.f32 %v729, %v761
  %v765 = vperm.slane %v711, 0
  %v767 = vmul.f32 %v762, %v765
  %v768 = vmul.f32 %v763, %v765
  %v770 = vperm.slane %v712, 0
  %v772 = vadd.f32 %v767, %v770
  %v773 = vadd.f32 %v768, %v770
  %v774 = vld [vmem:[%s8] sm:$0xff]
  %v775 = vld [vmem:[%s8 + $0x8] sm:$0xff]
  %v776 = vld [vmem:[%s8 + $0x10] sm:$0xff]
  %v777 = vld [vmem:[%s8 + $0x18] sm:$0xff]
  %v778 = vld [vmem:[%s9] sm:$0x1]
  %v779 = vld [vmem:[%s10] sm:$0xff]
  %v780 = vld [vmem:[%s10 + $0x8] sm:$0xff]
  %v781 = vld [vmem:[%s10 + $0x10] sm:$0xff]
  %v782 = vld [vmem:[%s10 + $0x18] sm:$0xff]
  %v783 = vld [vmem:[%s11] sm:$0x1]
  %v784 = vld [vmem:[%s12] sm:$0xff]
  %v785 = vld [vmem:[%s12 + $0x8] sm:$0xff]
  %v786 = vld [vmem:[%s12 + $0x10] sm:$0xff]
  %v787 = vld [vmem:[%s12 + $0x18] sm:$0xff]
  %v788 = vld [vmem:[%s13] sm:$0x1]
  %v790 = vperm.slane %v778, 0
  %v793 = vsel %vm88, %v772, 0
  %v796 = vsel %vm88, %v773, 0
  %798 = vmatpush.msra.mxu0 0.0
  %799 = vmatpush.msra.mxu0 0.0
  %800 = vmatpush.msra.mxu0 0.0
  %801 = vmatpush.msra.mxu0 0.0
  %802 = vmatpush.msra.mxu0 0.0
  %803 = vmatpush.msra.mxu0 0.0
  %804 = vmatpush.msra.mxu0 0.0
  %805 = vmatpush.msra.mxu0 0.0
  %806 = vmatpush.msra.mxu0 0.0
  %807 = vmatpush.msra.mxu0 0.0
  %808 = vmatpush.msra.mxu0 0.0
  %809 = vmatpush.msra.mxu0 0.0
  %810 = vmatpush.msra.mxu0 %v777
  %811 = vmatpush.msra.mxu0 %v776
  %812 = vmatpush.msra.mxu0 %v775
  %813 = vmatpush.msra.mxu0 %v774
  %814 = vmatmul.f32.gmra.mxu0 %v793
  %v815 = vpop.f32.mrf.mxu0
  %v816 = vadd.f32 %v790, %v815
  %817 = vmatmul.f32.gmra.mxu0 %v796
  %v818 = vpop.f32.mrf.mxu0
  %v819 = vadd.f32 %v790, %v818
  %820 = vdwg.mxu0
  %v822 = vperm.slane %v783, 0
  %v825 = vsel %vm88, %v73, 0
  %v828 = vsel %vm88, %v74, 0
  %830 = vmatpush.msra.mxu0 0.0
  %831 = vmatpush.msra.mxu0 0.0
  %832 = vmatpush.msra.mxu0 0.0
  %833 = vmatpush.msra.mxu0 0.0
  %834 = vmatpush.msra.mxu0 0.0
  %835 = vmatpush.msra.mxu0 0.0
  %836 = vmatpush.msra.mxu0 0.0
  %837 = vmatpush.msra.mxu0 0.0
  %838 = vmatpush.msra.mxu0 0.0
  %839 = vmatpush.msra.mxu0 0.0
  %840 = vmatpush.msra.mxu0 0.0
  %841 = vmatpush.msra.mxu0 0.0
  %842 = vmatpush.msra.mxu0 %v782
  %843 = vmatpush.msra.mxu0 %v781
  %844 = vmatpush.msra.mxu0 %v780
  %845 = vmatpush.msra.mxu0 %v779
  %846 = vmatmul.f32.gmra.mxu0 %v825
  %v847 = vpop.f32.mrf.mxu0
  %v848 = vadd.f32 %v822, %v847
  %849 = vmatmul.f32.gmra.mxu0 %v828
  %v850 = vpop.f32.mrf.mxu0
  %v851 = vadd.f32 %v822, %v850
  %852 = vdwg.mxu0
  %v854 = vsel %vm121, %v816, 0
  %v857 = vsel %vm121, %v848, 0
  %859 = vmatpush.xpose.msra.mxu0 0.0
  %860 = vmatpush.xpose.msra.mxu0 0.0
  %861 = vmatpush.xpose.msra.mxu0 0.0
  %862 = vmatpush.xpose.msra.mxu0 0.0
  %863 = vmatpush.xpose.msra.mxu0 0.0
  %864 = vmatpush.xpose.msra.mxu0 0.0
  %865 = vmatpush.xpose.msra.mxu0 0.0
  %866 = vmatpush.xpose.msra.mxu0 0.0
  %867 = vmatpush.xpose.msra.mxu0 0.0
  %868 = vmatpush.xpose.msra.mxu0 0.0
  %869 = vmatpush.xpose.msra.mxu0 0.0
  %870 = vmatpush.xpose.msra.mxu0 0.0
  %871 = vmatpush.xpose.msra.mxu0 0.0
  %872 = vmatpush.xpose.msra.mxu0 0.0
  %873 = vmatpush.xpose.msra.mxu0 0.0
  %874 = vmatpush.xpose.msra.mxu0 %v857
  %875 = vmatmul.f32.gmra.mxu0 %v854
  %v876 = vpop.f32.mrf.mxu0
  %v877 = vadd.f32 0.0, %v876
  %878 = vdwg.mxu0
  %v879 = vmul.f32 %v877, 0.35355338
  %v880 = vsel %vm121, %v879, -inf
  %881 = vmax.xlane.f32.xlu0 %v880
  %v882 = vpop.xlane.xlu0 %881
  %v883 = vsub.f32 %v879, %v882
  %v884 = vmul.f32 %v883, 1.442695
  %v885 = vpow.pop %v884
  %v886 = vsel %vm121, %v885, 0.0
  %887 = vadd.xlane.f32.xlu0 %v886
  %v888 = vpop.xlane.xlu0 %887
  %v889 = vrcp.pop %v888
  %v890 = vmul.f32 %v885, %v889
  %891 = vrot.lane.b32.xlu0 %v848, 96
  %v892 = vpop.permute.xlu0 %891
  %v895 = vsel %vm121, %v890, 0
  %897 = vmatpush.msra.mxu0 0.0
  %898 = vmatpush.msra.mxu0 0.0
  %899 = vmatpush.msra.mxu0 0.0
  %900 = vmatpush.msra.mxu0 0.0
  %901 = vmatpush.msra.mxu0 0.0
  %902 = vmatpush.msra.mxu0 0.0
  %903 = vmatpush.msra.mxu0 0.0
  %904 = vmatpush.msra.mxu0 0.0
  %905 = vmatpush.msra.mxu0 0.0
  %906 = vmatpush.msra.mxu0 0.0
  %907 = vmatpush.msra.mxu0 0.0
  %908 = vmatpush.msra.mxu0 0.0
  %909 = vmatpush.msra.mxu0 0.0
  %910 = vmatpush.msra.mxu0 0.0
  %911 = vmatpush.msra.mxu0 0.0
  %912 = vmatpush.msra.mxu0 %v892
  %913 = vmatmul.f32.gmra.mxu0 %v895
  %v914 = vpop.f32.mrf.mxu0
  %v915 = vadd.f32 0.0, %v914
  %916 = vdwg.mxu0
  %917 = vrot.lane.b32.xlu0 %v816, 120
  %v918 = vpop.permute.xlu0 %917
  %919 = vrot.lane.b32.xlu0 %v848, 120
  %v920 = vpop.permute.xlu0 %919
  %v921 = vsel %vm121, %v918, 0
  %v923 = vsel %vm121, %v920, 0
  %925 = vmatpush.xpose.msra.mxu0 0.0
  %926 = vmatpush.xpose.msra.mxu0 0.0
  %927 = vmatpush.xpose.msra.mxu0 0.0
  %928 = vmatpush.xpose.msra.mxu0 0.0
  %929 = vmatpush.xpose.msra.mxu0 0.0
  %930 = vmatpush.xpose.msra.mxu0 0.0
  %931 = vmatpush.xpose.msra.mxu0 0.0
  %932 = vmatpush.xpose.msra.mxu0 0.0
  %933 = vmatpush.xpose.msra.mxu0 0.0
  %934 = vmatpush.xpose.msra.mxu0 0.0
  %935 = vmatpush.xpose.msra.mxu0 0.0
  %936 = vmatpush.xpose.msra.mxu0 0.0
  %937 = vmatpush.xpose.msra.mxu0 0.0
  %938 = vmatpush.xpose.msra.mxu0 0.0
  %939 = vmatpush.xpose.msra.mxu0 0.0
  %940 = vmatpush.xpose.msra.mxu0 %v923
  %941 = vmatmul.f32.gmra.mxu0 %v921
  %v942 = vpop.f32.mrf.mxu0
  %v943 = vadd.f32 0.0, %v942
  %944 = vdwg.mxu0
  %v945 = vmul.f32 %v943, 0.35355338
  %v946 = vsel %vm121, %v945, -inf
  %947 = vmax.xlane.f32.xlu0 %v946
  %v948 = vpop.xlane.xlu0 %947
  %v949 = vsub.f32 %v945, %v948
  %v950 = vmul.f32 %v949, 1.442695
  %v951 = vpow.pop %v950
  %v952 = vsel %vm121, %v951, 0.0
  %953 = vadd.xlane.f32.xlu0 %v952
  %v954 = vpop.xlane.xlu0 %953
  %v955 = vrcp.pop %v954
  %v956 = vmul.f32 %v951, %v955
  %957 = vrot.lane.b32.xlu0 %v848, 88
  %v958 = vpop.permute.xlu0 %957
  %v961 = vsel %vm121, %v956, 0
  %963 = vmatpush.msra.mxu0 0.0
  %964 = vmatpush.msra.mxu0 0.0
  %965 = vmatpush.msra.mxu0 0.0
  %966 = vmatpush.msra.mxu0 0.0
  %967 = vmatpush.msra.mxu0 0.0
  %968 = vmatpush.msra.mxu0 0.0
  %969 = vmatpush.msra.mxu0 0.0
  %970 = vmatpush.msra.mxu0 0.0
  %971 = vmatpush.msra.mxu0 0.0
  %972 = vmatpush.msra.mxu0 0.0
  %973 = vmatpush.msra.mxu0 0.0
  %974 = vmatpush.msra.mxu0 0.0
  %975 = vmatpush.msra.mxu0 0.0
  %976 = vmatpush.msra.mxu0 0.0
  %977 = vmatpush.msra.mxu0 0.0
  %978 = vmatpush.msra.mxu0 %v958
  %979 = vmatmul.f32.gmra.mxu0 %v961
  %v980 = vpop.f32.mrf.mxu0
  %v981 = vadd.f32 0.0, %v980
  %982 = vdwg.mxu0
  %983 = vrot.lane.b32.xlu0 %v816, 112
  %v984 = vpop.permute.xlu0 %983
  %985 = vrot.lane.b32.xlu0 %v848, 112
  %v986 = vpop.permute.xlu0 %985
  %v987 = vsel %vm121, %v984, 0
  %v989 = vsel %vm121, %v986, 0
  %991 = vmatpush.xpose.msra.mxu0 0.0
  %992 = vmatpush.xpose.msra.mxu0 0.0
  %993 = vmatpush.xpose.msra.mxu0 0.0
  %994 = vmatpush.xpose.msra.mxu0 0.0
  %995 = vmatpush.xpose.msra.mxu0 0.0
  %996 = vmatpush.xpose.msra.mxu0 0.0
  %997 = vmatpush.xpose.msra.mxu0 0.0
  %998 = vmatpush.xpose.msra.mxu0 0.0
  %999 = vmatpush.xpose.msra.mxu0 0.0
  %1000 = vmatpush.xpose.msra.mxu0 0.0
  %1001 = vmatpush.xpose.msra.mxu0 0.0
  %1002 = vmatpush.xpose.msra.mxu0 0.0
  %1003 = vmatpush.xpose.msra.mxu0 0.0
  %1004 = vmatpush.xpose.msra.mxu0 0.0
  %1005 = vmatpush.xpose.msra.mxu0 0.0
  %1006 = vmatpush.xpose.msra.mxu0 %v989
  %1007 = vmatmul.f32.gmra.mxu0 %v987
  %v1008 = vpop.f32.mrf.mxu0
  %v1009 = vadd.f32 0.0, %v1008
  %1010 = vdwg.mxu0
  %v1011 = vmul.f32 %v1009, 0.35355338
  %v1012 = vsel %vm121, %v1011, -inf
  %1013 = vmax.xlane.f32.xlu0 %v1012
  %v1014 = vpop.xlane.xlu0 %1013
  %v1015 = vsub.f32 %v1011, %v1014
  %v1016 = vmul.f32 %v1015, 1.442695
  %v1017 = vpow.pop %v1016
  %v1018 = vsel %vm121, %v1017, 0.0
  %1019 = vadd.xlane.f32.xlu0 %v1018
  %v1020 = vpop.xlane.xlu0 %1019
  %v1021 = vrcp.pop %v1020
  %v1022 = vmul.f32 %v1017, %v1021
  %1023 = vrot.lane.b32.xlu0 %v848, 80
  %v1024 = vpop.permute.xlu0 %1023
  %v1027 = vsel %vm121, %v1022, 0
  %1029 = vmatpush.msra.mxu0 0.0
  %1030 = vmatpush.msra.mxu0 0.0
  %1031 = vmatpush.msra.mxu0 0.0
  %1032 = vmatpush.msra.mxu0 0.0
  %1033 = vmatpush.msra.mxu0 0.0
  %1034 = vmatpush.msra.mxu0 0.0
  %1035 = vmatpush.msra.mxu0 0.0
  %1036 = vmatpush.msra.mxu0 0.0
  %1037 = vmatpush.msra.mxu0 0.0
  %1038 = vmatpush.msra.mxu0 0.0
  %1039 = vmatpush.msra.mxu0 0.0
  %1040 = vmatpush.msra.mxu0 0.0
  %1041 = vmatpush.msra.mxu0 0.0
  %1042 = vmatpush.msra.mxu0 0.0
  %1043 = vmatpush.msra.mxu0 0.0
  %1044 = vmatpush.msra.mxu0 %v1024
  %1045 = vmatmul.f32.gmra.mxu0 %v1027
  %v1046 = vpop.f32.mrf.mxu0
  %v1047 = vadd.f32 0.0, %v1046
  %1048 = vdwg.mxu0
  %1049 = vrot.lane.b32.xlu0 %v816, 104
  %v1050 = vpop.permute.xlu0 %1049
  %1051 = vrot.lane.b32.xlu0 %v848, 104
  %v1052 = vpop.permute.xlu0 %1051
  %v1053 = vsel %vm121, %v1050, 0
  %v1055 = vsel %vm121, %v1052, 0
  %1057 = vmatpush.xpose.msra.mxu0 0.0
  %1058 = vmatpush.xpose.msra.mxu0 0.0
  %1059 = vmatpush.xpose.msra.mxu0 0.0
  %1060 = vmatpush.xpose.msra.mxu0 0.0
  %1061 = vmatpush.xpose.msra.mxu0 0.0
  %1062 = vmatpush.xpose.msra.mxu0 0.0
  %1063 = vmatpush.xpose.msra.mxu0 0.0
  %1064 = vmatpush.xpose.msra.mxu0 0.0
  %1065 = vmatpush.xpose.msra.mxu0 0.0
  %1066 = vmatpush.xpose.msra.mxu0 0.0
  %1067 = vmatpush.xpose.msra.mxu0 0.0
  %1068 = vmatpush.xpose.msra.mxu0 0.0
  %1069 = vmatpush.xpose.msra.mxu0 0.0
  %1070 = vmatpush.xpose.msra.mxu0 0.0
  %1071 = vmatpush.xpose.msra.mxu0 0.0
  %1072 = vmatpush.xpose.msra.mxu0 %v1055
  %1073 = vmatmul.f32.gmra.mxu0 %v1053
  %v1074 = vpop.f32.mrf.mxu0
  %v1075 = vadd.f32 0.0, %v1074
  %1076 = vdwg.mxu0
  %v1077 = vmul.f32 %v1075, 0.35355338
  %v1078 = vsel %vm121, %v1077, -inf
  %1079 = vmax.xlane.f32.xlu0 %v1078
  %v1080 = vpop.xlane.xlu0 %1079
  %v1081 = vsub.f32 %v1077, %v1080
  %v1082 = vmul.f32 %v1081, 1.442695
  %v1083 = vpow.pop %v1082
  %v1084 = vsel %vm121, %v1083, 0.0
  %1085 = vadd.xlane.f32.xlu0 %v1084
  %v1086 = vpop.xlane.xlu0 %1085
  %v1087 = vrcp.pop %v1086
  %v1088 = vmul.f32 %v1083, %v1087
  %1089 = vrot.lane.b32.xlu0 %v848, 72
  %v1090 = vpop.permute.xlu0 %1089
  %v1093 = vsel %vm121, %v1088, 0
  %1095 = vmatpush.msra.mxu0 0.0
  %1096 = vmatpush.msra.mxu0 0.0
  %1097 = vmatpush.msra.mxu0 0.0
  %1098 = vmatpush.msra.mxu0 0.0
  %1099 = vmatpush.msra.mxu0 0.0
  %1100 = vmatpush.msra.mxu0 0.0
  %1101 = vmatpush.msra.mxu0 0.0
  %1102 = vmatpush.msra.mxu0 0.0
  %1103 = vmatpush.msra.mxu0 0.0
  %1104 = vmatpush.msra.mxu0 0.0
  %1105 = vmatpush.msra.mxu0 0.0
  %1106 = vmatpush.msra.mxu0 0.0
  %1107 = vmatpush.msra.mxu0 0.0
  %1108 = vmatpush.msra.mxu0 0.0
  %1109 = vmatpush.msra.mxu0 0.0
  %1110 = vmatpush.msra.mxu0 %v1090
  %1111 = vmatmul.f32.gmra.mxu0 %v1093
  %v1112 = vpop.f32.mrf.mxu0
  %v1113 = vadd.f32 0.0, %v1112
  %1114 = vdwg.mxu0
  %1116 = vrot.lane.b32.xlu0 %v981, 8
  %v1117 = vpop.permute.xlu0 %1116
  %1120 = vrot.lane.b32.xlu0 %v1047, 16
  %v1121 = vpop.permute.xlu0 %1120
  %1124 = vrot.lane.b32.xlu0 %v1113, 24
  %v1125 = vpop.permute.xlu0 %1124
  %v1127 = vsel %vm121, %v915, %v1117
  %v1128 = vsel %vm395, %v1127, %v1121
  %v1129 = vsel %vm397, %v1128, %v1125
  %v1131 = vsel %vm121, %v819, 0
  %v1134 = vsel %vm121, %v851, 0
  %1136 = vmatpush.xpose.msra.mxu0 0.0
  %1137 = vmatpush.xpose.msra.mxu0 0.0
  %1138 = vmatpush.xpose.msra.mxu0 0.0
  %1139 = vmatpush.xpose.msra.mxu0 0.0
  %1140 = vmatpush.xpose.msra.mxu0 0.0
  %1141 = vmatpush.xpose.msra.mxu0 0.0
  %1142 = vmatpush.xpose.msra.mxu0 0.0
  %1143 = vmatpush.xpose.msra.mxu0 0.0
  %1144 = vmatpush.xpose.msra.mxu0 0.0
  %1145 = vmatpush.xpose.msra.mxu0 0.0
  %1146 = vmatpush.xpose.msra.mxu0 0.0
  %1147 = vmatpush.xpose.msra.mxu0 0.0
  %1148 = vmatpush.xpose.msra.mxu0 0.0
  %1149 = vmatpush.xpose.msra.mxu0 0.0
  %1150 = vmatpush.xpose.msra.mxu0 0.0
  %1151 = vmatpush.xpose.msra.mxu0 %v1134
  %1152 = vmatmul.f32.gmra.mxu0 %v1131
  %v1153 = vpop.f32.mrf.mxu0
  %v1154 = vadd.f32 0.0, %v1153
  %1155 = vdwg.mxu0
  %v1156 = vmul.f32 %v1154, 0.35355338
  %v1157 = vsel %vm121, %v1156, -inf
  %1158 = vmax.xlane.f32.xlu0 %v1157
  %v1159 = vpop.xlane.xlu0 %1158
  %v1160 = vsub.f32 %v1156, %v1159
  %v1161 = vmul.f32 %v1160, 1.442695
  %v1162 = vpow.pop %v1161
  %v1163 = vsel %vm121, %v1162, 0.0
  %1164 = vadd.xlane.f32.xlu0 %v1163
  %v1165 = vpop.xlane.xlu0 %1164
  %v1166 = vrcp.pop %v1165
  %v1167 = vmul.f32 %v1162, %v1166
  %1168 = vrot.lane.b32.xlu0 %v851, 96
  %v1169 = vpop.permute.xlu0 %1168
  %v1172 = vsel %vm121, %v1167, 0
  %1174 = vmatpush.msra.mxu0 0.0
  %1175 = vmatpush.msra.mxu0 0.0
  %1176 = vmatpush.msra.mxu0 0.0
  %1177 = vmatpush.msra.mxu0 0.0
  %1178 = vmatpush.msra.mxu0 0.0
  %1179 = vmatpush.msra.mxu0 0.0
  %1180 = vmatpush.msra.mxu0 0.0
  %1181 = vmatpush.msra.mxu0 0.0
  %1182 = vmatpush.msra.mxu0 0.0
  %1183 = vmatpush.msra.mxu0 0.0
  %1184 = vmatpush.msra.mxu0 0.0
  %1185 = vmatpush.msra.mxu0 0.0
  %1186 = vmatpush.msra.mxu0 0.0
  %1187 = vmatpush.msra.mxu0 0.0
  %1188 = vmatpush.msra.mxu0 0.0
  %1189 = vmatpush.msra.mxu0 %v1169
  %1190 = vmatmul.f32.gmra.mxu0 %v1172
  %v1191 = vpop.f32.mrf.mxu0
  %v1192 = vadd.f32 0.0, %v1191
  %1193 = vdwg.mxu0
  %1194 = vrot.lane.b32.xlu0 %v819, 120
  %v1195 = vpop.permute.xlu0 %1194
  %1196 = vrot.lane.b32.xlu0 %v851, 120
  %v1197 = vpop.permute.xlu0 %1196
  %v1198 = vsel %vm121, %v1195, 0
  %v1200 = vsel %vm121, %v1197, 0
  %1202 = vmatpush.xpose.msra.mxu0 0.0
  %1203 = vmatpush.xpose.msra.mxu0 0.0
  %1204 = vmatpush.xpose.msra.mxu0 0.0
  %1205 = vmatpush.xpose.msra.mxu0 0.0
  %1206 = vmatpush.xpose.msra.mxu0 0.0
  %1207 = vmatpush.xpose.msra.mxu0 0.0
  %1208 = vmatpush.xpose.msra.mxu0 0.0
  %1209 = vmatpush.xpose.msra.mxu0 0.0
  %1210 = vmatpush.xpose.msra.mxu0 0.0
  %1211 = vmatpush.xpose.msra.mxu0 0.0
  %1212 = vmatpush.xpose.msra.mxu0 0.0
  %1213 = vmatpush.xpose.msra.mxu0 0.0
  %1214 = vmatpush.xpose.msra.mxu0 0.0
  %1215 = vmatpush.xpose.msra.mxu0 0.0
  %1216 = vmatpush.xpose.msra.mxu0 0.0
  %1217 = vmatpush.xpose.msra.mxu0 %v1200
  %1218 = vmatmul.f32.gmra.mxu0 %v1198
  %v1219 = vpop.f32.mrf.mxu0
  %v1220 = vadd.f32 0.0, %v1219
  %1221 = vdwg.mxu0
  %v1222 = vmul.f32 %v1220, 0.35355338
  %v1223 = vsel %vm121, %v1222, -inf
  %1224 = vmax.xlane.f32.xlu0 %v1223
  %v1225 = vpop.xlane.xlu0 %1224
  %v1226 = vsub.f32 %v1222, %v1225
  %v1227 = vmul.f32 %v1226, 1.442695
  %v1228 = vpow.pop %v1227
  %v1229 = vsel %vm121, %v1228, 0.0
  %1230 = vadd.xlane.f32.xlu0 %v1229
  %v1231 = vpop.xlane.xlu0 %1230
  %v1232 = vrcp.pop %v1231
  %v1233 = vmul.f32 %v1228, %v1232
  %1234 = vrot.lane.b32.xlu0 %v851, 88
  %v1235 = vpop.permute.xlu0 %1234
  %v1238 = vsel %vm121, %v1233, 0
  %1240 = vmatpush.msra.mxu0 0.0
  %1241 = vmatpush.msra.mxu0 0.0
  %1242 = vmatpush.msra.mxu0 0.0
  %1243 = vmatpush.msra.mxu0 0.0
  %1244 = vmatpush.msra.mxu0 0.0
  %1245 = vmatpush.msra.mxu0 0.0
  %1246 = vmatpush.msra.mxu0 0.0
  %1247 = vmatpush.msra.mxu0 0.0
  %1248 = vmatpush.msra.mxu0 0.0
  %1249 = vmatpush.msra.mxu0 0.0
  %1250 = vmatpush.msra.mxu0 0.0
  %1251 = vmatpush.msra.mxu0 0.0
  %1252 = vmatpush.msra.mxu0 0.0
  %1253 = vmatpush.msra.mxu0 0.0
  %1254 = vmatpush.msra.mxu0 0.0
  %1255 = vmatpush.msra.mxu0 %v1235
  %1256 = vmatmul.f32.gmra.mxu0 %v1238
  %v1257 = vpop.f32.mrf.mxu0
  %v1258 = vadd.f32 0.0, %v1257
  %1259 = vdwg.mxu0
  %1260 = vrot.lane.b32.xlu0 %v819, 112
  %v1261 = vpop.permute.xlu0 %1260
  %1262 = vrot.lane.b32.xlu0 %v851, 112
  %v1263 = vpop.permute.xlu0 %1262
  %v1264 = vsel %vm121, %v1261, 0
  %v1266 = vsel %vm121, %v1263, 0
  %1268 = vmatpush.xpose.msra.mxu0 0.0
  %1269 = vmatpush.xpose.msra.mxu0 0.0
  %1270 = vmatpush.xpose.msra.mxu0 0.0
  %1271 = vmatpush.xpose.msra.mxu0 0.0
  %1272 = vmatpush.xpose.msra.mxu0 0.0
  %1273 = vmatpush.xpose.msra.mxu0 0.0
  %1274 = vmatpush.xpose.msra.mxu0 0.0
  %1275 = vmatpush.xpose.msra.mxu0 0.0
  %1276 = vmatpush.xpose.msra.mxu0 0.0
  %1277 = vmatpush.xpose.msra.mxu0 0.0
  %1278 = vmatpush.xpose.msra.mxu0 0.0
  %1279 = vmatpush.xpose.msra.mxu0 0.0
  %1280 = vmatpush.xpose.msra.mxu0 0.0
  %1281 = vmatpush.xpose.msra.mxu0 0.0
  %1282 = vmatpush.xpose.msra.mxu0 0.0
  %1283 = vmatpush.xpose.msra.mxu0 %v1266
  %1284 = vmatmul.f32.gmra.mxu0 %v1264
  %v1285 = vpop.f32.mrf.mxu0
  %v1286 = vadd.f32 0.0, %v1285
  %1287 = vdwg.mxu0
  %v1288 = vmul.f32 %v1286, 0.35355338
  %v1289 = vsel %vm121, %v1288, -inf
  %1290 = vmax.xlane.f32.xlu0 %v1289
  %v1291 = vpop.xlane.xlu0 %1290
  %v1292 = vsub.f32 %v1288, %v1291
  %v1293 = vmul.f32 %v1292, 1.442695
  %v1294 = vpow.pop %v1293
  %v1295 = vsel %vm121, %v1294, 0.0
  %1296 = vadd.xlane.f32.xlu0 %v1295
  %v1297 = vpop.xlane.xlu0 %1296
  %v1298 = vrcp.pop %v1297
  %v1299 = vmul.f32 %v1294, %v1298
  %1300 = vrot.lane.b32.xlu0 %v851, 80
  %v1301 = vpop.permute.xlu0 %1300
  %v1304 = vsel %vm121, %v1299, 0
  %1306 = vmatpush.msra.mxu0 0.0
  %1307 = vmatpush.msra.mxu0 0.0
  %1308 = vmatpush.msra.mxu0 0.0
  %1309 = vmatpush.msra.mxu0 0.0
  %1310 = vmatpush.msra.mxu0 0.0
  %1311 = vmatpush.msra.mxu0 0.0
  %1312 = vmatpush.msra.mxu0 0.0
  %1313 = vmatpush.msra.mxu0 0.0
  %1314 = vmatpush.msra.mxu0 0.0
  %1315 = vmatpush.msra.mxu0 0.0
  %1316 = vmatpush.msra.mxu0 0.0
  %1317 = vmatpush.msra.mxu0 0.0
  %1318 = vmatpush.msra.mxu0 0.0
  %1319 = vmatpush.msra.mxu0 0.0
  %1320 = vmatpush.msra.mxu0 0.0
  %1321 = vmatpush.msra.mxu0 %v1301
  %1322 = vmatmul.f32.gmra.mxu0 %v1304
  %v1323 = vpop.f32.mrf.mxu0
  %v1324 = vadd.f32 0.0, %v1323
  %1325 = vdwg.mxu0
  %1326 = vrot.lane.b32.xlu0 %v819, 104
  %v1327 = vpop.permute.xlu0 %1326
  %1328 = vrot.lane.b32.xlu0 %v851, 104
  %v1329 = vpop.permute.xlu0 %1328
  %v1330 = vsel %vm121, %v1327, 0
  %v1332 = vsel %vm121, %v1329, 0
  %1334 = vmatpush.xpose.msra.mxu0 0.0
  %1335 = vmatpush.xpose.msra.mxu0 0.0
  %1336 = vmatpush.xpose.msra.mxu0 0.0
  %1337 = vmatpush.xpose.msra.mxu0 0.0
  %1338 = vmatpush.xpose.msra.mxu0 0.0
  %1339 = vmatpush.xpose.msra.mxu0 0.0
  %1340 = vmatpush.xpose.msra.mxu0 0.0
  %1341 = vmatpush.xpose.msra.mxu0 0.0
  %1342 = vmatpush.xpose.msra.mxu0 0.0
  %1343 = vmatpush.xpose.msra.mxu0 0.0
  %1344 = vmatpush.xpose.msra.mxu0 0.0
  %1345 = vmatpush.xpose.msra.mxu0 0.0
  %1346 = vmatpush.xpose.msra.mxu0 0.0
  %1347 = vmatpush.xpose.msra.mxu0 0.0
  %1348 = vmatpush.xpose.msra.mxu0 0.0
  %1349 = vmatpush.xpose.msra.mxu0 %v1332
  %1350 = vmatmul.f32.gmra.mxu0 %v1330
  %v1351 = vpop.f32.mrf.mxu0
  %v1352 = vadd.f32 0.0, %v1351
  %1353 = vdwg.mxu0
  %v1354 = vmul.f32 %v1352, 0.35355338
  %v1355 = vsel %vm121, %v1354, -inf
  %1356 = vmax.xlane.f32.xlu0 %v1355
  %v1357 = vpop.xlane.xlu0 %1356
  %v1358 = vsub.f32 %v1354, %v1357
  %v1359 = vmul.f32 %v1358, 1.442695
  %v1360 = vpow.pop %v1359
  %v1361 = vsel %vm121, %v1360, 0.0
  %1362 = vadd.xlane.f32.xlu0 %v1361
  %v1363 = vpop.xlane.xlu0 %1362
  %v1364 = vrcp.pop %v1363
  %v1365 = vmul.f32 %v1360, %v1364
  %1366 = vrot.lane.b32.xlu0 %v851, 72
  %v1367 = vpop.permute.xlu0 %1366
  %v1370 = vsel %vm121, %v1365, 0
  %1372 = vmatpush.msra.mxu0 0.0
  %1373 = vmatpush.msra.mxu0 0.0
  %1374 = vmatpush.msra.mxu0 0.0
  %1375 = vmatpush.msra.mxu0 0.0
  %1376 = vmatpush.msra.mxu0 0.0
  %1377 = vmatpush.msra.mxu0 0.0
  %1378 = vmatpush.msra.mxu0 0.0
  %1379 = vmatpush.msra.mxu0 0.0
  %1380 = vmatpush.msra.mxu0 0.0
  %1381 = vmatpush.msra.mxu0 0.0
  %1382 = vmatpush.msra.mxu0 0.0
  %1383 = vmatpush.msra.mxu0 0.0
  %1384 = vmatpush.msra.mxu0 0.0
  %1385 = vmatpush.msra.mxu0 0.0
  %1386 = vmatpush.msra.mxu0 0.0
  %1387 = vmatpush.msra.mxu0 %v1367
  %1388 = vmatmul.f32.gmra.mxu0 %v1370
  %v1389 = vpop.f32.mrf.mxu0
  %v1390 = vadd.f32 0.0, %v1389
  %1391 = vdwg.mxu0
  %1393 = vrot.lane.b32.xlu0 %v1258, 8
  %v1394 = vpop.permute.xlu0 %1393
  %1397 = vrot.lane.b32.xlu0 %v1324, 16
  %v1398 = vpop.permute.xlu0 %1397
  %1401 = vrot.lane.b32.xlu0 %v1390, 24
  %v1402 = vpop.permute.xlu0 %1401
  %v1404 = vsel %vm121, %v1192, %v1394
  %v1405 = vsel %vm395, %v1404, %v1398
  %v1406 = vsel %vm397, %v1405, %v1402
  %v1408 = vperm.slane %v788, 0
  %v1411 = vsel %vm88, %v1129, 0
  %v1414 = vsel %vm88, %v1406, 0
  %1416 = vmatpush.msra.mxu0 0.0
  %1417 = vmatpush.msra.mxu0 0.0
  %1418 = vmatpush.msra.mxu0 0.0
  %1419 = vmatpush.msra.mxu0 0.0
  %1420 = vmatpush.msra.mxu0 0.0
  %1421 = vmatpush.msra.mxu0 0.0
  %1422 = vmatpush.msra.mxu0 0.0
  %1423 = vmatpush.msra.mxu0 0.0
  %1424 = vmatpush.msra.mxu0 0.0
  %1425 = vmatpush.msra.mxu0 0.0
  %1426 = vmatpush.msra.mxu0 0.0
  %1427 = vmatpush.msra.mxu0 0.0
  %1428 = vmatpush.msra.mxu0 %v787
  %1429 = vmatpush.msra.mxu0 %v786
  %1430 = vmatpush.msra.mxu0 %v785
  %1431 = vmatpush.msra.mxu0 %v784
  %1432 = vmatmul.f32.gmra.mxu0 %v1411
  %v1433 = vpop.f32.mrf.mxu0
  %v1434 = vadd.f32 %v1408, %v1433
  %1435 = vmatmul.f32.gmra.mxu0 %v1414
  %v1436 = vpop.f32.mrf.mxu0
  %v1437 = vadd.f32 %v1408, %v1436
  %1438 = vdwg.mxu0
  %v1439 = vadd.f32 %v772, %v1434
  %v1440 = vadd.f32 %v773, %v1437
  %v1441 = vld [vmem:[%s14] sm:$0x1]
  %v1442 = vld [vmem:[%s15] sm:$0x1]
  %v1443 = vsel %vm88, %v1439, 0.0
  %1444 = vadd.xlane.f32.xlu0 %v1443
  %v1445 = vpop.xlane.xlu0 %1444
  %v1446 = vsel %vm88, %v1440, 0.0
  %1447 = vadd.xlane.f32.xlu0 %v1446
  %v1448 = vpop.xlane.xlu0 %1447
  %v1449 = vmul.f32 %v1445, %v725
  %v1450 = vmul.f32 %v1448, %v725
  %v1451 = vsub.f32 %v1439, %v1449
  %v1452 = vsub.f32 %v1440, %v1450
  %v1453 = vmul.f32 %v1451, %v1451
  %v1454 = vmul.f32 %v1452, %v1452
  %v1455 = vsel %vm88, %v1453, 0.0
  %1456 = vadd.xlane.f32.xlu0 %v1455
  %v1457 = vpop.xlane.xlu0 %1456
  %v1458 = vsel %vm88, %v1454, 0.0
  %1459 = vadd.xlane.f32.xlu0 %v1458
  %v1460 = vpop.xlane.xlu0 %1459
  %v1461 = vmul.f32 %v1457, %v725
  %v1462 = vmul.f32 %v1460, %v725
  %v1463 = vadd.f32 %v1461, 1e-05
  %v1464 = vadd.f32 %v1462, 1e-05
  %v1465 = vrsqrt.pop %v1463
  %v1466 = vmul.f32 %v1465, %v1463
  %v1467 = vmul.f32 %v1466, %v1465
  %v1468 = vmul.f32 0.5, %v1467
  %v1469 = vsub.f32 1.5, %v1468
  %v1470 = vmul.f32 %v1465, %v1469
  %vm1471 = vweird.f32 %v1463
  %vm1472 = vweird.f32 %v1465
  %vm1473 = vmor %vm1471, %vm1472
  %v1474 = vsel %vm1473, %v1465, %v1470
  %v1475 = vrsqrt.pop %v1464
  %v1476 = vmul.f32 %v1475, %v1464
  %v1477 = vmul.f32 %v1476, %v1475
  %v1478 = vmul.f32 0.5, %v1477
  %v1479 = vsub.f32 1.5, %v1478
  %v1480 = vmul.f32 %v1475, %v1479
  %vm1481 = vweird.f32 %v1464
  %vm1482 = vweird.f32 %v1475
  %vm1483 = vmor %vm1481, %vm1482
  %v1484 = vsel %vm1483, %v1475, %v1480
  %v1485 = vmul.f32 %v1451, %v1474
  %v1486 = vmul.f32 %v1452, %v1484
  %v1488 = vperm.slane %v1441, 0
  %v1490 = vmul.f32 %v1485, %v1488
  %v1491 = vmul.f32 %v1486, %v1488
  %v1493 = vperm.slane %v1442, 0
  %v1495 = vadd.f32 %v1490, %v1493
  %v1496 = vadd.f32 %v1491, %v1493
  %v1497 = vld [vmem:[%s16] sm:$0xff]
  %v1498 = vld [vmem:[%s16 + $0x8] sm:$0xff]
  %v1499 = vld [vmem:[%s16 + $0x10] sm:$0xff]
  %v1500 = vld [vmem:[%s16 + $0x18] sm:$0xff]
  %v1501 = vld [vmem:[%s16 + $0x20] sm:$0xff]
  %v1502 = vld [vmem:[%s16 + $0x28] sm:$0xff]
  %v1503 = vld [vmem:[%s16 + $0x30] sm:$0xff]
  %v1504 = vld [vmem:[%s16 + $0x38] sm:$0xff]
  %v1505 = vld [vmem:[%s16 + $0x40] sm:$0xff]
  %v1506 = vld [vmem:[%s16 + $0x48] sm:$0xff]
  %v1507 = vld [vmem:[%s16 + $0x50] sm:$0xff]
  %v1508 = vld [vmem:[%s16 + $0x58] sm:$0xff]
  %v1509 = vld [vmem:[%s16 + $0x60] sm:$0xff]
  %v1510 = vld [vmem:[%s16 + $0x68] sm:$0xff]
  %v1511 = vld [vmem:[%s16 + $0x70] sm:$0xff]
  %v1512 = vld [vmem:[%s16 + $0x78] sm:$0xff]
  %v1513 = vld [vmem:[%s16 + $0x80] sm:$0xff]
  %v1514 = vld [vmem:[%s16 + $0x88] sm:$0xff]
  %v1515 = vld [vmem:[%s16 + $0x90] sm:$0xff]
  %v1516 = vld [vmem:[%s16 + $0x98] sm:$0xff]
  %v1517 = vld [vmem:[%s16 + $0xa0] sm:$0xff]
  %v1518 = vld [vmem:[%s16 + $0xa8] sm:$0xff]
  %v1519 = vld [vmem:[%s16 + $0xb0] sm:$0xff]
  %v1520 = vld [vmem:[%s16 + $0xb8] sm:$0xff]
  %v1521 = vld [vmem:[%s16 + $0xc0] sm:$0xff]
  %v1522 = vld [vmem:[%s16 + $0xc8] sm:$0xff]
  %v1523 = vld [vmem:[%s16 + $0xd0] sm:$0xff]
  %v1524 = vld [vmem:[%s16 + $0xd8] sm:$0xff]
  %v1525 = vld [vmem:[%s16 + $0xe0] sm:$0xff]
  %v1526 = vld [vmem:[%s16 + $0xe8] sm:$0xff]
  %v1527 = vld [vmem:[%s16 + $0xf0] sm:$0xff]
  %v1528 = vld [vmem:[%s16 + $0xf8] sm:$0xff]
  %v1529 = vld [vmem:[%s16 + $0x100] sm:$0xff]
  %v1530 = vld [vmem:[%s16 + $0x108] sm:$0xff]
  %v1531 = vld [vmem:[%s16 + $0x110] sm:$0xff]
  %v1532 = vld [vmem:[%s16 + $0x118] sm:$0xff]
  %v1533 = vld [vmem:[%s16 + $0x120] sm:$0xff]
  %v1534 = vld [vmem:[%s16 + $0x128] sm:$0xff]
  %v1535 = vld [vmem:[%s16 + $0x130] sm:$0xff]
  %v1536 = vld [vmem:[%s16 + $0x138] sm:$0xff]
  %v1537 = vld [vmem:[%s16 + $0x140] sm:$0xff]
  %v1538 = vld [vmem:[%s16 + $0x148] sm:$0xff]
  %v1539 = vld [vmem:[%s16 + $0x150] sm:$0xff]
  %v1540 = vld [vmem:[%s16 + $0x158] sm:$0xff]
  %v1541 = vld [vmem:[%s16 + $0x160] sm:$0xff]
  %v1542 = vld [vmem:[%s16 + $0x168] sm:$0xff]
  %v1543 = vld [vmem:[%s16 + $0x170] sm:$0xff]
  %v1544 = vld [vmem:[%s16 + $0x178] sm:$0xff]
  %v1545 = vld [vmem:[%s16 + $0x180] sm:$0xff]
  %v1546 = vld [vmem:[%s16 + $0x188] sm:$0xff]
  %v1547 = vld [vmem:[%s16 + $0x190] sm:$0xff]
  %v1548 = vld [vmem:[%s16 + $0x198] sm:$0xff]
  %v1549 = vld [vmem:[%s16 + $0x1a0] sm:$0xff]
  %v1550 = vld [vmem:[%s16 + $0x1a8] sm:$0xff]
  %v1551 = vld [vmem:[%s16 + $0x1b0] sm:$0xff]
  %v1552 = vld [vmem:[%s16 + $0x1b8] sm:$0xff]
  %v1553 = vld [vmem:[%s16 + $0x1c0] sm:$0xff]
  %v1554 = vld [vmem:[%s16 + $0x1c8] sm:$0xff]
  %v1555 = vld [vmem:[%s16 + $0x1d0] sm:$0xff]
  %v1556 = vld [vmem:[%s16 + $0x1d8] sm:$0xff]
  %v1557 = vld [vmem:[%s16 + $0x1e0] sm:$0xff]
  %v1558 = vld [vmem:[%s16 + $0x1e8] sm:$0xff]
  %v1559 = vld [vmem:[%s16 + $0x1f0] sm:$0xff]
  %v1560 = vld [vmem:[%s16 + $0x1f8] sm:$0xff]
  %v1561 = vld [vmem:[%s17] sm:$0xff]
  %v1562 = vld [vmem:[%s17 + $0x8] sm:$0xff]
  %v1563 = vld [vmem:[%s18] sm:$0xff]
  %v1564 = vld [vmem:[%s18 + $0x8] sm:$0xff]
  %v1565 = vld [vmem:[%s18 + $0x10] sm:$0xff]
  %v1566 = vld [vmem:[%s18 + $0x18] sm:$0xff]
  %v1567 = vld [vmem:[%s18 + $0x20] sm:$0xff]
  %v1568 = vld [vmem:[%s18 + $0x28] sm:$0xff]
  %v1569 = vld [vmem:[%s18 + $0x30] sm:$0xff]
  %v1570 = vld [vmem:[%s18 + $0x38] sm:$0xff]
  %v1571 = vld [vmem:[%s18 + $0x40] sm:$0xff]
  %v1572 = vld [vmem:[%s18 + $0x48] sm:$0xff]
  %v1573 = vld [vmem:[%s18 + $0x50] sm:$0xff]
  %v1574 = vld [vmem:[%s18 + $0x58] sm:$0xff]
  %v1575 = vld [vmem:[%s18 + $0x60] sm:$0xff]
  %v1576 = vld [vmem:[%s18 + $0x68] sm:$0xff]
  %v1577 = vld [vmem:[%s18 + $0x70] sm:$0xff]
  %v1578 = vld [vmem:[%s18 + $0x78] sm:$0xff]
  %v1579 = vld [vmem:[%s18 + $0x80] sm:$0xff]
  %v1580 = vld [vmem:[%s18 + $0x88] sm:$0xff]
  %v1581 = vld [vmem:[%s18 + $0x90] sm:$0xff]
  %v1582 = vld [vmem:[%s18 + $0x98] sm:$0xff]
  %v1583 = vld [vmem:[%s18 + $0xa0] sm:$0xff]
  %v1584 = vld [vmem:[%s18 + $0xa8] sm:$0xff]
  %v1585 = vld [vmem:[%s18 + $0xb0] sm:$0xff]
  %v1586 = vld [vmem:[%s18 + $0xb8] sm:$0xff]
  %v1587 = vld [vmem:[%s18 + $0xc0] sm:$0xff]
  %v1588 = vld [vmem:[%s18 + $0xc8] sm:$0xff]
  %v1589 = vld [vmem:[%s18 + $0xd0] sm:$0xff]
  %v1590 = vld [vmem:[%s18 + $0xd8] sm:$0xff]
  %v1591 = vld [vmem:[%s18 + $0xe0] sm:$0xff]
  %v1592 = vld [vmem:[%s18 + $0xe8] sm:$0xff]
  %v1593 = vld [vmem:[%s18 + $0xf0] sm:$0xff]
  %v1594 = vld [vmem:[%s18 + $0xf8] sm:$0xff]
  %v1595 = vld [vmem:[%s18 + $0x100] sm:$0xff]
  %v1596 = vld [vmem:[%s18 + $0x108] sm:$0xff]
  %v1597 = vld [vmem:[%s18 + $0x110] sm:$0xff]
  %v1598 = vld [vmem:[%s18 + $0x118] sm:$0xff]
  %v1599 = vld [vmem:[%s18 + $0x120] sm:$0xff]
  %v1600 = vld [vmem:[%s18 + $0x128] sm:$0xff]
  %v1601 = vld [vmem:[%s18 + $0x130] sm:$0xff]
  %v1602 = vld [vmem:[%s18 + $0x138] sm:$0xff]
  %v1603 = vld [vmem:[%s18 + $0x140] sm:$0xff]
  %v1604 = vld [vmem:[%s18 + $0x148] sm:$0xff]
  %v1605 = vld [vmem:[%s18 + $0x150] sm:$0xff]
  %v1606 = vld [vmem:[%s18 + $0x158] sm:$0xff]
  %v1607 = vld [vmem:[%s18 + $0x160] sm:$0xff]
  %v1608 = vld [vmem:[%s18 + $0x168] sm:$0xff]
  %v1609 = vld [vmem:[%s18 + $0x170] sm:$0xff]
  %v1610 = vld [vmem:[%s18 + $0x178] sm:$0xff]
  %v1611 = vld [vmem:[%s18 + $0x180] sm:$0xff]
  %v1612 = vld [vmem:[%s18 + $0x188] sm:$0xff]
  %v1613 = vld [vmem:[%s18 + $0x190] sm:$0xff]
  %v1614 = vld [vmem:[%s18 + $0x198] sm:$0xff]
  %v1615 = vld [vmem:[%s18 + $0x1a0] sm:$0xff]
  %v1616 = vld [vmem:[%s18 + $0x1a8] sm:$0xff]
  %v1617 = vld [vmem:[%s18 + $0x1b0] sm:$0xff]
  %v1618 = vld [vmem:[%s18 + $0x1b8] sm:$0xff]
  %v1619 = vld [vmem:[%s18 + $0x1c0] sm:$0xff]
  %v1620 = vld [vmem:[%s18 + $0x1c8] sm:$0xff]
  %v1621 = vld [vmem:[%s18 + $0x1d0] sm:$0xff]
  %v1622 = vld [vmem:[%s18 + $0x1d8] sm:$0xff]
  %v1623 = vld [vmem:[%s18 + $0x1e0] sm:$0xff]
  %v1624 = vld [vmem:[%s18 + $0x1e8] sm:$0xff]
  %v1625 = vld [vmem:[%s18 + $0x1f0] sm:$0xff]
  %v1626 = vld [vmem:[%s18 + $0x1f8] sm:$0xff]
  %v1627 = vld [vmem:[%s18 + $0x200] sm:$0xff]
  %v1628 = vld [vmem:[%s18 + $0x208] sm:$0xff]
  %v1629 = vld [vmem:[%s18 + $0x210] sm:$0xff]
  %v1630 = vld [vmem:[%s18 + $0x218] sm:$0xff]
  %v1631 = vld [vmem:[%s18 + $0x220] sm:$0xff]
  %v1632 = vld [vmem:[%s18 + $0x228] sm:$0xff]
  %v1633 = vld [vmem:[%s18 + $0x230] sm:$0xff]
  %v1634 = vld [vmem:[%s18 + $0x238] sm:$0xff]
  %v1635 = vld [vmem:[%s18 + $0x240] sm:$0xff]
  %v1636 = vld [vmem:[%s18 + $0x248] sm:$0xff]
  %v1637 = vld [vmem:[%s18 + $0x250] sm:$0xff]
  %v1638 = vld [vmem:[%s18 + $0x258] sm:$0xff]
  %v1639 = vld [vmem:[%s18 + $0x260] sm:$0xff]
  %v1640 = vld [vmem:[%s18 + $0x268] sm:$0xff]
  %v1641 = vld [vmem:[%s18 + $0x270] sm:$0xff]
  %v1642 = vld [vmem:[%s18 + $0x278] sm:$0xff]
  %v1643 = vld [vmem:[%s18 + $0x280] sm:$0xff]
  %v1644 = vld [vmem:[%s18 + $0x288] sm:$0xff]
  %v1645 = vld [vmem:[%s18 + $0x290] sm:$0xff]
  %v1646 = vld [vmem:[%s18 + $0x298] sm:$0xff]
  %v1647 = vld [vmem:[%s18 + $0x2a0] sm:$0xff]
  %v1648 = vld [vmem:[%s18 + $0x2a8] sm:$0xff]
  %v1649 = vld [vmem:[%s18 + $0x2b0] sm:$0xff]
  %v1650 = vld [vmem:[%s18 + $0x2b8] sm:$0xff]
  %v1651 = vld [vmem:[%s18 + $0x2c0] sm:$0xff]
  %v1652 = vld [vmem:[%s18 + $0x2c8] sm:$0xff]
  %v1653 = vld [vmem:[%s18 + $0x2d0] sm:$0xff]
  %v1654 = vld [vmem:[%s18 + $0x2d8] sm:$0xff]
  %v1655 = vld [vmem:[%s18 + $0x2e0] sm:$0xff]
  %v1656 = vld [vmem:[%s18 + $0x2e8] sm:$0xff]
  %v1657 = vld [vmem:[%s18 + $0x2f0] sm:$0xff]
  %v1658 = vld [vmem:[%s18 + $0x2f8] sm:$0xff]
  %v1659 = vld [vmem:[%s18 + $0x300] sm:$0xff]
  %v1660 = vld [vmem:[%s18 + $0x308] sm:$0xff]
  %v1661 = vld [vmem:[%s18 + $0x310] sm:$0xff]
  %v1662 = vld [vmem:[%s18 + $0x318] sm:$0xff]
  %v1663 = vld [vmem:[%s18 + $0x320] sm:$0xff]
  %v1664 = vld [vmem:[%s18 + $0x328] sm:$0xff]
  %v1665 = vld [vmem:[%s18 + $0x330] sm:$0xff]
  %v1666 = vld [vmem:[%s18 + $0x338] sm:$0xff]
  %v1667 = vld [vmem:[%s18 + $0x340] sm:$0xff]
  %v1668 = vld [vmem:[%s18 + $0x348] sm:$0xff]
  %v1669 = vld [vmem:[%s18 + $0x350] sm:$0xff]
  %v1670 = vld [vmem:[%s18 + $0x358] sm:$0xff]
  %v1671 = vld [vmem:[%s18 + $0x360] sm:$0xff]
  %v1672 = vld [vmem:[%s18 + $0x368] sm:$0xff]
  %v1673 = vld [vmem:[%s18 + $0x370] sm:$0xff]
  %v1674 = vld [vmem:[%s18 + $0x378] sm:$0xff]
  %v1675 = vld [vmem:[%s18 + $0x380] sm:$0xff]
  %v1676 = vld [vmem:[%s18 + $0x388] sm:$0xff]
  %v1677 = vld [vmem:[%s18 + $0x390] sm:$0xff]
  %v1678 = vld [vmem:[%s18 + $0x398] sm:$0xff]
  %v1679 = vld [vmem:[%s18 + $0x3a0] sm:$0xff]
  %v1680 = vld [vmem:[%s18 + $0x3a8] sm:$0xff]
  %v1681 = vld [vmem:[%s18 + $0x3b0] sm:$0xff]
  %v1682 = vld [vmem:[%s18 + $0x3b8] sm:$0xff]
  %v1683 = vld [vmem:[%s18 + $0x3c0] sm:$0xff]
  %v1684 = vld [vmem:[%s18 + $0x3c8] sm:$0xff]
  %v1685 = vld [vmem:[%s18 + $0x3d0] sm:$0xff]
  %v1686 = vld [vmem:[%s18 + $0x3d8] sm:$0xff]
  %v1687 = vld [vmem:[%s18 + $0x3e0] sm:$0xff]
  %v1688 = vld [vmem:[%s18 + $0x3e8] sm:$0xff]
  %v1689 = vld [vmem:[%s18 + $0x3f0] sm:$0xff]
  %v1690 = vld [vmem:[%s18 + $0x3f8] sm:$0xff]
  %v1691 = vld [vmem:[%s18 + $0x400] sm:$0xff]
  %v1692 = vld [vmem:[%s18 + $0x408] sm:$0xff]
  %v1693 = vld [vmem:[%s18 + $0x410] sm:$0xff]
  %v1694 = vld [vmem:[%s18 + $0x418] sm:$0xff]
  %v1695 = vld [vmem:[%s18 + $0x420] sm:$0xff]
  %v1696 = vld [vmem:[%s18 + $0x428] sm:$0xff]
  %v1697 = vld [vmem:[%s18 + $0x430] sm:$0xff]
  %v1698 = vld [vmem:[%s18 + $0x438] sm:$0xff]
  %v1699 = vld [vmem:[%s18 + $0x440] sm:$0xff]
  %v1700 = vld [vmem:[%s18 + $0x448] sm:$0xff]
  %v1701 = vld [vmem:[%s18 + $0x450] sm:$0xff]
  %v1702 = vld [vmem:[%s18 + $0x458] sm:$0xff]
  %v1703 = vld [vmem:[%s18 + $0x460] sm:$0xff]
  %v1704 = vld [vmem:[%s18 + $0x468] sm:$0xff]
  %v1705 = vld [vmem:[%s18 + $0x470] sm:$0xff]
  %v1706 = vld [vmem:[%s18 + $0x478] sm:$0xff]
  %v1707 = vld [vmem:[%s18 + $0x480] sm:$0xff]
  %v1708 = vld [vmem:[%s18 + $0x488] sm:$0xff]
  %v1709 = vld [vmem:[%s18 + $0x490] sm:$0xff]
  %v1710 = vld [vmem:[%s18 + $0x498] sm:$0xff]
  %v1711 = vld [vmem:[%s18 + $0x4a0] sm:$0xff]
  %v1712 = vld [vmem:[%s18 + $0x4a8] sm:$0xff]
  %v1713 = vld [vmem:[%s18 + $0x4b0] sm:$0xff]
  %v1714 = vld [vmem:[%s18 + $0x4b8] sm:$0xff]
  %v1715 = vld [vmem:[%s18 + $0x4c0] sm:$0xff]
  %v1716 = vld [vmem:[%s18 + $0x4c8] sm:$0xff]
  %v1717 = vld [vmem:[%s18 + $0x4d0] sm:$0xff]
  %v1718 = vld [vmem:[%s18 + $0x4d8] sm:$0xff]
  %v1719 = vld [vmem:[%s18 + $0x4e0] sm:$0xff]
  %v1720 = vld [vmem:[%s18 + $0x4e8] sm:$0xff]
  %v1721 = vld [vmem:[%s18 + $0x4f0] sm:$0xff]
  %v1722 = vld [vmem:[%s18 + $0x4f8] sm:$0xff]
  %v1723 = vld [vmem:[%s18 + $0x500] sm:$0xff]
  %v1724 = vld [vmem:[%s18 + $0x508] sm:$0xff]
  %v1725 = vld [vmem:[%s18 + $0x510] sm:$0xff]
  %v1726 = vld [vmem:[%s18 + $0x518] sm:$0xff]
  %v1727 = vld [vmem:[%s18 + $0x520] sm:$0xff]
  %v1728 = vld [vmem:[%s18 + $0x528] sm:$0xff]
  %v1729 = vld [vmem:[%s18 + $0x530] sm:$0xff]
  %v1730 = vld [vmem:[%s18 + $0x538] sm:$0xff]
  %v1731 = vld [vmem:[%s18 + $0x540] sm:$0xff]
  %v1732 = vld [vmem:[%s18 + $0x548] sm:$0xff]
  %v1733 = vld [vmem:[%s18 + $0x550] sm:$0xff]
  %v1734 = vld [vmem:[%s18 + $0x558] sm:$0xff]
  %v1735 = vld [vmem:[%s18 + $0x560] sm:$0xff]
  %v1736 = vld [vmem:[%s18 + $0x568] sm:$0xff]
  %v1737 = vld [vmem:[%s18 + $0x570] sm:$0xff]
  %v1738 = vld [vmem:[%s18 + $0x578] sm:$0xff]
  %v1739 = vld [vmem:[%s18 + $0x580] sm:$0xff]
  %v1740 = vld [vmem:[%s18 + $0x588] sm:$0xff]
  %v1741 = vld [vmem:[%s18 + $0x590] sm:$0xff]
  %v1742 = vld [vmem:[%s18 + $0x598] sm:$0xff]
  %v1743 = vld [vmem:[%s18 + $0x5a0] sm:$0xff]
  %v1744 = vld [vmem:[%s18 + $0x5a8] sm:$0xff]
  %v1745 = vld [vmem:[%s18 + $0x5b0] sm:$0xff]
  %v1746 = vld [vmem:[%s18 + $0x5b8] sm:$0xff]
  %v1747 = vld [vmem:[%s18 + $0x5c0] sm:$0xff]
  %v1748 = vld [vmem:[%s18 + $0x5c8] sm:$0xff]
  %v1749 = vld [vmem:[%s18 + $0x5d0] sm:$0xff]
  %v1750 = vld [vmem:[%s18 + $0x5d8] sm:$0xff]
  %v1751 = vld [vmem:[%s18 + $0x5e0] sm:$0xff]
  %v1752 = vld [vmem:[%s18 + $0x5e8] sm:$0xff]
  %v1753 = vld [vmem:[%s18 + $0x5f0] sm:$0xff]
  %v1754 = vld [vmem:[%s18 + $0x5f8] sm:$0xff]
  %v1755 = vld [vmem:[%s18 + $0x600] sm:$0xff]
  %v1756 = vld [vmem:[%s18 + $0x608] sm:$0xff]
  %v1757 = vld [vmem:[%s18 + $0x610] sm:$0xff]
  %v1758 = vld [vmem:[%s18 + $0x618] sm:$0xff]
  %v1759 = vld [vmem:[%s18 + $0x620] sm:$0xff]
  %v1760 = vld [vmem:[%s18 + $0x628] sm:$0xff]
  %v1761 = vld [vmem:[%s18 + $0x630] sm:$0xff]
  %v1762 = vld [vmem:[%s18 + $0x638] sm:$0xff]
  %v1763 = vld [vmem:[%s18 + $0x640] sm:$0xff]
  %v1764 = vld [vmem:[%s18 + $0x648] sm:$0xff]
  %v1765 = vld [vmem:[%s18 + $0x650] sm:$0xff]
  %v1766 = vld [vmem:[%s18 + $0x658] sm:$0xff]
  %v1767 = vld [vmem:[%s18 + $0x660] sm:$0xff]
  %v1768 = vld [vmem:[%s18 + $0x668] sm:$0xff]
  %v1769 = vld [vmem:[%s18 + $0x670] sm:$0xff]
  %v1770 = vld [vmem:[%s18 + $0x678] sm:$0xff]
  %v1771 = vld [vmem:[%s18 + $0x680] sm:$0xff]
  %v1772 = vld [vmem:[%s18 + $0x688] sm:$0xff]
  %v1773 = vld [vmem:[%s18 + $0x690] sm:$0xff]
  %v1774 = vld [vmem:[%s18 + $0x698] sm:$0xff]
  %v1775 = vld [vmem:[%s18 + $0x6a0] sm:$0xff]
  %v1776 = vld [vmem:[%s18 + $0x6a8] sm:$0xff]
  %v1777 = vld [vmem:[%s18 + $0x6b0] sm:$0xff]
  %v1778 = vld [vmem:[%s18 + $0x6b8] sm:$0xff]
  %v1779 = vld [vmem:[%s18 + $0x6c0] sm:$0xff]
  %v1780 = vld [vmem:[%s18 + $0x6c8] sm:$0xff]
  %v1781 = vld [vmem:[%s18 + $0x6d0] sm:$0xff]
  %v1782 = vld [vmem:[%s18 + $0x6d8] sm:$0xff]
  %v1783 = vld [vmem:[%s18 + $0x6e0] sm:$0xff]
  %v1784 = vld [vmem:[%s18 + $0x6e8] sm:$0xff]
  %v1785 = vld [vmem:[%s18 + $0x6f0] sm:$0xff]
  %v1786 = vld [vmem:[%s18 + $0x6f8] sm:$0xff]
  %v1787 = vld [vmem:[%s18 + $0x700] sm:$0xff]
  %v1788 = vld [vmem:[%s18 + $0x708] sm:$0xff]
  %v1789 = vld [vmem:[%s18 + $0x710] sm:$0xff]
  %v1790 = vld [vmem:[%s18 + $0x718] sm:$0xff]
  %v1791 = vld [vmem:[%s18 + $0x720] sm:$0xff]
  %v1792 = vld [vmem:[%s18 + $0x728] sm:$0xff]
  %v1793 = vld [vmem:[%s18 + $0x730] sm:$0xff]
  %v1794 = vld [vmem:[%s18 + $0x738] sm:$0xff]
  %v1795 = vld [vmem:[%s18 + $0x740] sm:$0xff]
  %v1796 = vld [vmem:[%s18 + $0x748] sm:$0xff]
  %v1797 = vld [vmem:[%s18 + $0x750] sm:$0xff]
  %v1798 = vld [vmem:[%s18 + $0x758] sm:$0xff]
  %v1799 = vld [vmem:[%s18 + $0x760] sm:$0xff]
  %v1800 = vld [vmem:[%s18 + $0x768] sm:$0xff]
  %v1801 = vld [vmem:[%s18 + $0x770] sm:$0xff]
  %v1802 = vld [vmem:[%s18 + $0x778] sm:$0xff]
  %v1803 = vld [vmem:[%s18 + $0x780] sm:$0xff]
  %v1804 = vld [vmem:[%s18 + $0x788] sm:$0xff]
  %v1805 = vld [vmem:[%s18 + $0x790] sm:$0xff]
  %v1806 = vld [vmem:[%s18 + $0x798] sm:$0xff]
  %v1807 = vld [vmem:[%s18 + $0x7a0] sm:$0xff]
  %v1808 = vld [vmem:[%s18 + $0x7a8] sm:$0xff]
  %v1809 = vld [vmem:[%s18 + $0x7b0] sm:$0xff]
  %v1810 = vld [vmem:[%s18 + $0x7b8] sm:$0xff]
  %v1811 = vld [vmem:[%s18 + $0x7c0] sm:$0xff]
  %v1812 = vld [vmem:[%s18 + $0x7c8] sm:$0xff]
  %v1813 = vld [vmem:[%s18 + $0x7d0] sm:$0xff]
  %v1814 = vld [vmem:[%s18 + $0x7d8] sm:$0xff]
  %v1815 = vld [vmem:[%s18 + $0x7e0] sm:$0xff]
  %v1816 = vld [vmem:[%s18 + $0x7e8] sm:$0xff]
  %v1817 = vld [vmem:[%s18 + $0x7f0] sm:$0xff]
  %v1818 = vld [vmem:[%s18 + $0x7f8] sm:$0xff]
  %v1819 = vld [vmem:[%s19] sm:$0x1]
  %v1822 = vperm.slane %v1561, 0
  %v1823 = vperm.slane %v1561, 1
  %v1824 = vperm.slane %v1561, 2
  %v1825 = vperm.slane %v1561, 3
  %v1826 = vperm.slane %v1561, 4
  %v1827 = vperm.slane %v1561, 5
  %v1828 = vperm.slane %v1561, 6
  %v1829 = vperm.slane %v1561, 7
  %v1830 = vperm.slane %v1562, 0
  %v1831 = vperm.slane %v1562, 1
  %v1832 = vperm.slane %v1562, 2
  %v1833 = vperm.slane %v1562, 3
  %v1834 = vperm.slane %v1562, 4
  %v1835 = vperm.slane %v1562, 5
  %v1836 = vperm.slane %v1562, 6
  %v1837 = vperm.slane %v1562, 7
  %v1855 = vsel %vm88, %v1495, 0
  %v1858 = vsel %vm88, %v1496, 0
  %1860 = vmatpush.msra.mxu0 0.0
  %1861 = vmatpush.msra.mxu0 0.0
  %1862 = vmatpush.msra.mxu0 0.0
  %1863 = vmatpush.msra.mxu0 0.0
  %1864 = vmatpush.msra.mxu0 0.0
  %1865 = vmatpush.msra.mxu0 0.0
  %1866 = vmatpush.msra.mxu0 0.0
  %1867 = vmatpush.msra.mxu0 0.0
  %1868 = vmatpush.msra.mxu0 0.0
  %1869 = vmatpush.msra.mxu0 0.0
  %1870 = vmatpush.msra.mxu0 0.0
  %1871 = vmatpush.msra.mxu0 0.0
  %1872 = vmatpush.msra.mxu0 %v1545
  %1873 = vmatpush.msra.mxu0 %v1529
  %1874 = vmatpush.msra.mxu0 %v1513
  %1875 = vmatpush.msra.mxu0 %v1497
  %1876 = vmatmul.f32.gmra.mxu0 %v1855
  %v1877 = vpop.f32.mrf.mxu0
  %v1878 = vadd.f32 %v1822, %v1877
  %1879 = vmatmul.f32.gmra.mxu0 %v1858
  %v1880 = vpop.f32.mrf.mxu0
  %v1881 = vadd.f32 %v1822, %v1880
  %1882 = vdwg.mxu0
  %1883 = vmatpush.msra.mxu0 0.0
  %1884 = vmatpush.msra.mxu0 0.0
  %1885 = vmatpush.msra.mxu0 0.0
  %1886 = vmatpush.msra.mxu0 0.0
  %1887 = vmatpush.msra.mxu0 0.0
  %1888 = vmatpush.msra.mxu0 0.0
  %1889 = vmatpush.msra.mxu0 0.0
  %1890 = vmatpush.msra.mxu0 0.0
  %1891 = vmatpush.msra.mxu0 0.0
  %1892 = vmatpush.msra.mxu0 0.0
  %1893 = vmatpush.msra.mxu0 0.0
  %1894 = vmatpush.msra.mxu0 0.0
  %1895 = vmatpush.msra.mxu0 %v1546
  %1896 = vmatpush.msra.mxu0 %v1530
  %1897 = vmatpush.msra.mxu0 %v1514
  %1898 = vmatpush.msra.mxu0 %v1498
  %1899 = vmatmul.f32.gmra.mxu0 %v1855
  %v1900 = vpop.f32.mrf.mxu0
  %v1901 = vadd.f32 %v1823, %v1900
  %1902 = vmatmul.f32.gmra.mxu0 %v1858
  %v1903 = vpop.f32.mrf.mxu0
  %v1904 = vadd.f32 %v1823, %v1903
  %1905 = vdwg.mxu0
  %1906 = vmatpush.msra.mxu0 0.0
  %1907 = vmatpush.msra.mxu0 0.0
  %1908 = vmatpush.msra.mxu0 0.0
  %1909 = vmatpush.msra.mxu0 0.0
  %1910 = vmatpush.msra.mxu0 0.0
  %1911 = vmatpush.msra.mxu0 0.0
  %1912 = vmatpush.msra.mxu0 0.0
  %1913 = vmatpush.msra.mxu0 0.0
  %1914 = vmatpush.msra.mxu0 0.0
  %1915 = vmatpush.msra.mxu0 0.0
  %1916 = vmatpush.msra.mxu0 0.0
  %1917 = vmatpush.msra.mxu0 0.0
  %1918 = vmatpush.msra.mxu0 %v1547
  %1919 = vmatpush.msra.mxu0 %v1531
  %1920 = vmatpush.msra.mxu0 %v1515
  %1921 = vmatpush.msra.mxu0 %v1499
  %1922 = vmatmul.f32.gmra.mxu0 %v1855
  %v1923 = vpop.f32.mrf.mxu0
  %v1924 = vadd.f32 %v1824, %v1923
  %1925 = vmatmul.f32.gmra.mxu0 %v1858
  %v1926 = vpop.f32.mrf.mxu0
  %v1927 = vadd.f32 %v1824, %v1926
  %1928 = vdwg.mxu0
  %1929 = vmatpush.msra.mxu0 0.0
  %1930 = vmatpush.msra.mxu0 0.0
  %1931 = vmatpush.msra.mxu0 0.0
  %1932 = vmatpush.msra.mxu0 0.0
  %1933 = vmatpush.msra.mxu0 0.0
  %1934 = vmatpush.msra.mxu0 0.0
  %1935 = vmatpush.msra.mxu0 0.0
  %1936 = vmatpush.msra.mxu0 0.0
  %1937 = vmatpush.msra.mxu0 0.0
  %1938 = vmatpush.msra.mxu0 0.0
  %1939 = vmatpush.msra.mxu0 0.0
  %1940 = vmatpush.msra.mxu0 0.0
  %1941 = vmatpush.msra.mxu0 %v1548
  %1942 = vmatpush.msra.mxu0 %v1532
  %1943 = vmatpush.msra.mxu0 %v1516
  %1944 = vmatpush.msra.mxu0 %v1500
  %1945 = vmatmul.f32.gmra.mxu0 %v1855
  %v1946 = vpop.f32.mrf.mxu0
  %v1947 = vadd.f32 %v1825, %v1946
  %1948 = vmatmul.f32.gmra.mxu0 %v1858
  %v1949 = vpop.f32.mrf.mxu0
  %v1950 = vadd.f32 %v1825, %v1949
  %1951 = vdwg.mxu0
  %1952 = vmatpush.msra.mxu0 0.0
  %1953 = vmatpush.msra.mxu0 0.0
  %1954 = vmatpush.msra.mxu0 0.0
  %1955 = vmatpush.msra.mxu0 0.0
  %1956 = vmatpush.msra.mxu0 0.0
  %1957 = vmatpush.msra.mxu0 0.0
  %1958 = vmatpush.msra.mxu0 0.0
  %1959 = vmatpush.msra.mxu0 0.0
  %1960 = vmatpush.msra.mxu0 0.0
  %1961 = vmatpush.msra.mxu0 0.0
  %1962 = vmatpush.msra.mxu0 0.0
  %1963 = vmatpush.msra.mxu0 0.0
  %1964 = vmatpush.msra.mxu0 %v1549
  %1965 = vmatpush.msra.mxu0 %v1533
  %1966 = vmatpush.msra.mxu0 %v1517
  %1967 = vmatpush.msra.mxu0 %v1501
  %1968 = vmatmul.f32.gmra.mxu0 %v1855
  %v1969 = vpop.f32.mrf.mxu0
  %v1970 = vadd.f32 %v1826, %v1969
  %1971 = vmatmul.f32.gmra.mxu0 %v1858
  %v1972 = vpop.f32.mrf.mxu0
  %v1973 = vadd.f32 %v1826, %v1972
  %1974 = vdwg.mxu0
  %1975 = vmatpush.msra.mxu0 0.0
  %1976 = vmatpush.msra.mxu0 0.0
  %1977 = vmatpush.msra.mxu0 0.0
  %1978 = vmatpush.msra.mxu0 0.0
  %1979 = vmatpush.msra.mxu0 0.0
  %1980 = vmatpush.msra.mxu0 0.0
  %1981 = vmatpush.msra.mxu0 0.0
  %1982 = vmatpush.msra.mxu0 0.0
  %1983 = vmatpush.msra.mxu0 0.0
  %1984 = vmatpush.msra.mxu0 0.0
  %1985 = vmatpush.msra.mxu0 0.0
  %1986 = vmatpush.msra.mxu0 0.0
  %1987 = vmatpush.msra.mxu0 %v1550
  %1988 = vmatpush.msra.mxu0 %v1534
  %1989 = vmatpush.msra.mxu0 %v1518
  %1990 = vmatpush.msra.mxu0 %v1502
  %1991 = vmatmul.f32.gmra.mxu0 %v1855
  %v1992 = vpop.f32.mrf.mxu0
  %v1993 = vadd.f32 %v1827, %v1992
  %1994 = vmatmul.f32.gmra.mxu0 %v1858
  %v1995 = vpop.f32.mrf.mxu0
  %v1996 = vadd.f32 %v1827, %v1995
  %1997 = vdwg.mxu0
  %1998 = vmatpush.msra.mxu0 0.0
  %1999 = vmatpush.msra.mxu0 0.0
  %2000 = vmatpush.msra.mxu0 0.0
  %2001 = vmatpush.msra.mxu0 0.0
  %2002 = vmatpush.msra.mxu0 0.0
  %2003 = vmatpush.msra.mxu0 0.0
  %2004 = vmatpush.msra.mxu0 0.0
  %2005 = vmatpush.msra.mxu0 0.0
  %2006 = vmatpush.msra.mxu0 0.0
  %2007 = vmatpush.msra.mxu0 0.0
  %2008 = vmatpush.msra.mxu0 0.0
  %2009 = vmatpush.msra.mxu0 0.0
  %2010 = vmatpush.msra.mxu0 %v1551
  %2011 = vmatpush.msra.mxu0 %v1535
  %2012 = vmatpush.msra.mxu0 %v1519
  %2013 = vmatpush.msra.mxu0 %v1503
  %2014 = vmatmul.f32.gmra.mxu0 %v1855
  %v2015 = vpop.f32.mrf.mxu0
  %v2016 = vadd.f32 %v1828, %v2015
  %2017 = vmatmul.f32.gmra.mxu0 %v1858
  %v2018 = vpop.f32.mrf.mxu0
  %v2019 = vadd.f32 %v1828, %v2018
  %2020 = vdwg.mxu0
  %2021 = vmatpush.msra.mxu0 0.0
  %2022 = vmatpush.msra.mxu0 0.0
  %2023 = vmatpush.msra.mxu0 0.0
  %2024 = vmatpush.msra.mxu0 0.0
  %2025 = vmatpush.msra.mxu0 0.0
  %2026 = vmatpush.msra.mxu0 0.0
  %2027 = vmatpush.msra.mxu0 0.0
  %2028 = vmatpush.msra.mxu0 0.0
  %2029 = vmatpush.msra.mxu0 0.0
  %2030 = vmatpush.msra.mxu0 0.0
  %2031 = vmatpush.msra.mxu0 0.0
  %2032 = vmatpush.msra.mxu0 0.0
  %2033 = vmatpush.msra.mxu0 %v1552
  %2034 = vmatpush.msra.mxu0 %v1536
  %2035 = vmatpush.msra.mxu0 %v1520
  %2036 = vmatpush.msra.mxu0 %v1504
  %2037 = vmatmul.f32.gmra.mxu0 %v1855
  %v2038 = vpop.f32.mrf.mxu0
  %v2039 = vadd.f32 %v1829, %v2038
  %2040 = vmatmul.f32.gmra.mxu0 %v1858
  %v2041 = vpop.f32.mrf.mxu0
  %v2042 = vadd.f32 %v1829, %v2041
  %2043 = vdwg.mxu0
  %2044 = vmatpush.msra.mxu0 0.0
  %2045 = vmatpush.msra.mxu0 0.0
  %2046 = vmatpush.msra.mxu0 0.0
  %2047 = vmatpush.msra.mxu0 0.0
  %2048 = vmatpush.msra.mxu0 0.0
  %2049 = vmatpush.msra.mxu0 0.0
  %2050 = vmatpush.msra.mxu0 0.0
  %2051 = vmatpush.msra.mxu0 0.0
  %2052 = vmatpush.msra.mxu0 0.0
  %2053 = vmatpush.msra.mxu0 0.0
  %2054 = vmatpush.msra.mxu0 0.0
  %2055 = vmatpush.msra.mxu0 0.0
  %2056 = vmatpush.msra.mxu0 %v1553
  %2057 = vmatpush.msra.mxu0 %v1537
  %2058 = vmatpush.msra.mxu0 %v1521
  %2059 = vmatpush.msra.mxu0 %v1505
  %2060 = vmatmul.f32.gmra.mxu0 %v1855
  %v2061 = vpop.f32.mrf.mxu0
  %v2062 = vadd.f32 %v1830, %v2061
  %2063 = vmatmul.f32.gmra.mxu0 %v1858
  %v2064 = vpop.f32.mrf.mxu0
  %v2065 = vadd.f32 %v1830, %v2064
  %2066 = vdwg.mxu0
  %2067 = vmatpush.msra.mxu0 0.0
  %2068 = vmatpush.msra.mxu0 0.0
  %2069 = vmatpush.msra.mxu0 0.0
  %2070 = vmatpush.msra.mxu0 0.0
  %2071 = vmatpush.msra.mxu0 0.0
  %2072 = vmatpush.msra.mxu0 0.0
  %2073 = vmatpush.msra.mxu0 0.0
  %2074 = vmatpush.msra.mxu0 0.0
  %2075 = vmatpush.msra.mxu0 0.0
  %2076 = vmatpush.msra.mxu0 0.0
  %2077 = vmatpush.msra.mxu0 0.0
  %2078 = vmatpush.msra.mxu0 0.0
  %2079 = vmatpush.msra.mxu0 %v1554
  %2080 = vmatpush.msra.mxu0 %v1538
  %2081 = vmatpush.msra.mxu0 %v1522
  %2082 = vmatpush.msra.mxu0 %v1506
  %2083 = vmatmul.f32.gmra.mxu0 %v1855
  %v2084 = vpop.f32.mrf.mxu0
  %v2085 = vadd.f32 %v1831, %v2084
  %2086 = vmatmul.f32.gmra.mxu0 %v1858
  %v2087 = vpop.f32.mrf.mxu0
  %v2088 = vadd.f32 %v1831, %v2087
  %2089 = vdwg.mxu0
  %2090 = vmatpush.msra.mxu0 0.0
  %2091 = vmatpush.msra.mxu0 0.0
  %2092 = vmatpush.msra.mxu0 0.0
  %2093 = vmatpush.msra.mxu0 0.0
  %2094 = vmatpush.msra.mxu0 0.0
  %2095 = vmatpush.msra.mxu0 0.0
  %2096 = vmatpush.msra.mxu0 0.0
  %2097 = vmatpush.msra.mxu0 0.0
  %2098 = vmatpush.msra.mxu0 0.0
  %2099 = vmatpush.msra.mxu0 0.0
  %2100 = vmatpush.msra.mxu0 0.0
  %2101 = vmatpush.msra.mxu0 0.0
  %2102 = vmatpush.msra.mxu0 %v1555
  %2103 = vmatpush.msra.mxu0 %v1539
  %2104 = vmatpush.msra.mxu0 %v1523
  %2105 = vmatpush.msra.mxu0 %v1507
  %2106 = vmatmul.f32.gmra.mxu0 %v1855
  %v2107 = vpop.f32.mrf.mxu0
  %v2108 = vadd.f32 %v1832, %v2107
  %2109 = vmatmul.f32.gmra.mxu0 %v1858
  %v2110 = vpop.f32.mrf.mxu0
  %v2111 = vadd.f32 %v1832, %v2110
  %2112 = vdwg.mxu0
  %2113 = vmatpush.msra.mxu0 0.0
  %2114 = vmatpush.msra.mxu0 0.0
  %2115 = vmatpush.msra.mxu0 0.0
  %2116 = vmatpush.msra.mxu0 0.0
  %2117 = vmatpush.msra.mxu0 0.0
  %2118 = vmatpush.msra.mxu0 0.0
  %2119 = vmatpush.msra.mxu0 0.0
  %2120 = vmatpush.msra.mxu0 0.0
  %2121 = vmatpush.msra.mxu0 0.0
  %2122 = vmatpush.msra.mxu0 0.0
  %2123 = vmatpush.msra.mxu0 0.0
  %2124 = vmatpush.msra.mxu0 0.0
  %2125 = vmatpush.msra.mxu0 %v1556
  %2126 = vmatpush.msra.mxu0 %v1540
  %2127 = vmatpush.msra.mxu0 %v1524
  %2128 = vmatpush.msra.mxu0 %v1508
  %2129 = vmatmul.f32.gmra.mxu0 %v1855
  %v2130 = vpop.f32.mrf.mxu0
  %v2131 = vadd.f32 %v1833, %v2130
  %2132 = vmatmul.f32.gmra.mxu0 %v1858
  %v2133 = vpop.f32.mrf.mxu0
  %v2134 = vadd.f32 %v1833, %v2133
  %2135 = vdwg.mxu0
  %2136 = vmatpush.msra.mxu0 0.0
  %2137 = vmatpush.msra.mxu0 0.0
  %2138 = vmatpush.msra.mxu0 0.0
  %2139 = vmatpush.msra.mxu0 0.0
  %2140 = vmatpush.msra.mxu0 0.0
  %2141 = vmatpush.msra.mxu0 0.0
  %2142 = vmatpush.msra.mxu0 0.0
  %2143 = vmatpush.msra.mxu0 0.0
  %2144 = vmatpush.msra.mxu0 0.0
  %2145 = vmatpush.msra.mxu0 0.0
  %2146 = vmatpush.msra.mxu0 0.0
  %2147 = vmatpush.msra.mxu0 0.0
  %2148 = vmatpush.msra.mxu0 %v1557
  %2149 = vmatpush.msra.mxu0 %v1541
  %2150 = vmatpush.msra.mxu0 %v1525
  %2151 = vmatpush.msra.mxu0 %v1509
  %2152 = vmatmul.f32.gmra.mxu0 %v1855
  %v2153 = vpop.f32.mrf.mxu0
  %v2154 = vadd.f32 %v1834, %v2153
  %2155 = vmatmul.f32.gmra.mxu0 %v1858
  %v2156 = vpop.f32.mrf.mxu0
  %v2157 = vadd.f32 %v1834, %v2156
  %2158 = vdwg.mxu0
  %2159 = vmatpush.msra.mxu0 0.0
  %2160 = vmatpush.msra.mxu0 0.0
  %2161 = vmatpush.msra.mxu0 0.0
  %2162 = vmatpush.msra.mxu0 0.0
  %2163 = vmatpush.msra.mxu0 0.0
  %2164 = vmatpush.msra.mxu0 0.0
  %2165 = vmatpush.msra.mxu0 0.0
  %2166 = vmatpush.msra.mxu0 0.0
  %2167 = vmatpush.msra.mxu0 0.0
  %2168 = vmatpush.msra.mxu0 0.0
  %2169 = vmatpush.msra.mxu0 0.0
  %2170 = vmatpush.msra.mxu0 0.0
  %2171 = vmatpush.msra.mxu0 %v1558
  %2172 = vmatpush.msra.mxu0 %v1542
  %2173 = vmatpush.msra.mxu0 %v1526
  %2174 = vmatpush.msra.mxu0 %v1510
  %2175 = vmatmul.f32.gmra.mxu0 %v1855
  %v2176 = vpop.f32.mrf.mxu0
  %v2177 = vadd.f32 %v1835, %v2176
  %2178 = vmatmul.f32.gmra.mxu0 %v1858
  %v2179 = vpop.f32.mrf.mxu0
  %v2180 = vadd.f32 %v1835, %v2179
  %2181 = vdwg.mxu0
  %2182 = vmatpush.msra.mxu0 0.0
  %2183 = vmatpush.msra.mxu0 0.0
  %2184 = vmatpush.msra.mxu0 0.0
  %2185 = vmatpush.msra.mxu0 0.0
  %2186 = vmatpush.msra.mxu0 0.0
  %2187 = vmatpush.msra.mxu0 0.0
  %2188 = vmatpush.msra.mxu0 0.0
  %2189 = vmatpush.msra.mxu0 0.0
  %2190 = vmatpush.msra.mxu0 0.0
  %2191 = vmatpush.msra.mxu0 0.0
  %2192 = vmatpush.msra.mxu0 0.0
  %2193 = vmatpush.msra.mxu0 0.0
  %2194 = vmatpush.msra.mxu0 %v1559
  %2195 = vmatpush.msra.mxu0 %v1543
  %2196 = vmatpush.msra.mxu0 %v1527
  %2197 = vmatpush.msra.mxu0 %v1511
  %2198 = vmatmul.f32.gmra.mxu0 %v1855
  %v2199 = vpop.f32.mrf.mxu0
  %v2200 = vadd.f32 %v1836, %v2199
  %2201 = vmatmul.f32.gmra.mxu0 %v1858
  %v2202 = vpop.f32.mrf.mxu0
  %v2203 = vadd.f32 %v1836, %v2202
  %2204 = vdwg.mxu0
  %2205 = vmatpush.msra.mxu0 0.0
  %2206 = vmatpush.msra.mxu0 0.0
  %2207 = vmatpush.msra.mxu0 0.0
  %2208 = vmatpush.msra.mxu0 0.0
  %2209 = vmatpush.msra.mxu0 0.0
  %2210 = vmatpush.msra.mxu0 0.0
  %2211 = vmatpush.msra.mxu0 0.0
  %2212 = vmatpush.msra.mxu0 0.0
  %2213 = vmatpush.msra.mxu0 0.0
  %2214 = vmatpush.msra.mxu0 0.0
  %2215 = vmatpush.msra.mxu0 0.0
  %2216 = vmatpush.msra.mxu0 0.0
  %2217 = vmatpush.msra.mxu0 %v1560
  %2218 = vmatpush.msra.mxu0 %v1544
  %2219 = vmatpush.msra.mxu0 %v1528
  %2220 = vmatpush.msra.mxu0 %v1512
  %2221 = vmatmul.f32.gmra.mxu0 %v1855
  %v2222 = vpop.f32.mrf.mxu0
  %v2223 = vadd.f32 %v1837, %v2222
  %2224 = vmatmul.f32.gmra.mxu0 %v1858
  %v2225 = vpop.f32.mrf.mxu0
  %v2226 = vadd.f32 %v1837, %v2225
  %2227 = vdwg.mxu0
  %v2228 = vmax.f32 %v1878, 0.0
  %v2229 = vmax.f32 %v1901, 0.0
  %v2230 = vmax.f32 %v1924, 0.0
  %v2231 = vmax.f32 %v1947, 0.0
  %v2232 = vmax.f32 %v1970, 0.0
  %v2233 = vmax.f32 %v1993, 0.0
  %v2234 = vmax.f32 %v2016, 0.0
  %v2235 = vmax.f32 %v2039, 0.0
  %v2236 = vmax.f32 %v2062, 0.0
  %v2237 = vmax.f32 %v2085, 0.0
  %v2238 = vmax.f32 %v2108, 0.0
  %v2239 = vmax.f32 %v2131, 0.0
  %v2240 = vmax.f32 %v2154, 0.0
  %v2241 = vmax.f32 %v2177, 0.0
  %v2242 = vmax.f32 %v2200, 0.0
  %v2243 = vmax.f32 %v2223, 0.0
  %v2244 = vmax.f32 %v1881, 0.0
  %v2245 = vmax.f32 %v1904, 0.0
  %v2246 = vmax.f32 %v1927, 0.0
  %v2247 = vmax.f32 %v1950, 0.0
  %v2248 = vmax.f32 %v1973, 0.0
  %v2249 = vmax.f32 %v1996, 0.0
  %v2250 = vmax.f32 %v2019, 0.0
  %v2251 = vmax.f32 %v2042, 0.0
  %v2252 = vmax.f32 %v2065, 0.0
  %v2253 = vmax.f32 %v2088, 0.0
  %v2254 = vmax.f32 %v2111, 0.0
  %v2255 = vmax.f32 %v2134, 0.0
  %v2256 = vmax.f32 %v2157, 0.0
  %v2257 = vmax.f32 %v2180, 0.0
  %v2258 = vmax.f32 %v2203, 0.0
  %v2259 = vmax.f32 %v2226, 0.0
  %v2261 = vperm.slane %v1819, 0
  %2263 = vmatpush.msra.mxu0 %v1578
  %2264 = vmatpush.msra.mxu0 %v1577
  %2265 = vmatpush.msra.mxu0 %v1576
  %2266 = vmatpush.msra.mxu0 %v1575
  %2267 = vmatpush.msra.mxu0 %v1574
  %2268 = vmatpush.msra.mxu0 %v1573
  %2269 = vmatpush.msra.mxu0 %v1572
  %2270 = vmatpush.msra.mxu0 %v1571
  %2271 = vmatpush.msra.mxu0 %v1570
  %2272 = vmatpush.msra.mxu0 %v1569
  %2273 = vmatpush.msra.mxu0 %v1568
  %2274 = vmatpush.msra.mxu0 %v1567
  %2275 = vmatpush.msra.mxu0 %v1566
  %2276 = vmatpush.msra.mxu0 %v1565
  %2277 = vmatpush.msra.mxu0 %v1564
  %2278 = vmatpush.msra.mxu0 %v1563
  %2279 = vmatmul.f32.gmra.mxu0 %v2228
  %v2280 = vpop.f32.mrf.mxu0
  %v2281 = vadd.f32 %v2261, %v2280
  %2282 = vmatmul.f32.gmra.mxu0 %v2244
  %v2283 = vpop.f32.mrf.mxu0
  %v2284 = vadd.f32 %v2261, %v2283
  %2285 = vdwg.mxu0
  %2286 = vmatpush.msra.mxu0 %v1594
  %2287 = vmatpush.msra.mxu0 %v1593
  %2288 = vmatpush.msra.mxu0 %v1592
  %2289 = vmatpush.msra.mxu0 %v1591
  %2290 = vmatpush.msra.mxu0 %v1590
  %2291 = vmatpush.msra.mxu0 %v1589
  %2292 = vmatpush.msra.mxu0 %v1588
  %2293 = vmatpush.msra.mxu0 %v1587
  %2294 = vmatpush.msra.mxu0 %v1586
  %2295 = vmatpush.msra.mxu0 %v1585
  %2296 = vmatpush.msra.mxu0 %v1584
  %2297 = vmatpush.msra.mxu0 %v1583
  %2298 = vmatpush.msra.mxu0 %v1582
  %2299 = vmatpush.msra.mxu0 %v1581
  %2300 = vmatpush.msra.mxu0 %v1580
  %2301 = vmatpush.msra.mxu0 %v1579
  %2302 = vmatmul.f32.gmra.mxu0 %v2229
  %v2303 = vpop.f32.mrf.mxu0
  %v2304 = vadd.f32 %v2281, %v2303
  %2305 = vmatmul.f32.gmra.mxu0 %v2245
  %v2306 = vpop.f32.mrf.mxu0
  %v2307 = vadd.f32 %v2284, %v2306
  %2308 = vdwg.mxu0
  %2309 = vmatpush.msra.mxu0 %v1610
  %2310 = vmatpush.msra.mxu0 %v1609
  %2311 = vmatpush.msra.mxu0 %v1608
  %2312 = vmatpush.msra.mxu0 %v1607
  %2313 = vmatpush.msra.mxu0 %v1606
  %2314 = vmatpush.msra.mxu0 %v1605
  %2315 = vmatpush.msra.mxu0 %v1604
  %2316 = vmatpush.msra.mxu0 %v1603
  %2317 = vmatpush.msra.mxu0 %v1602
  %2318 = vmatpush.msra.mxu0 %v1601
  %2319 = vmatpush.msra.mxu0 %v1600
  %2320 = vmatpush.msra.mxu0 %v1599
  %2321 = vmatpush.msra.mxu0 %v1598
  %2322 = vmatpush.msra.mxu0 %v1597
  %2323 = vmatpush.msra.mxu0 %v1596
  %2324 = vmatpush.msra.mxu0 %v1595
  %2325 = vmatmul.f32.gmra.mxu0 %v2230
  %v2326 = vpop.f32.mrf.mxu0
  %v2327 = vadd.f32 %v2304, %v2326
  %2328 = vmatmul.f32.gmra.mxu0 %v2246
  %v2329 = vpop.f32.mrf.mxu0
  %v2330 = vadd.f32 %v2307, %v2329
  %2331 = vdwg.mxu0
  %2332 = vmatpush.msra.mxu0 %v1626
  %2333 = vmatpush.msra.mxu0 %v1625
  %2334 = vmatpush.msra.mxu0 %v1624
  %2335 = vmatpush.msra.mxu0 %v1623
  %2336 = vmatpush.msra.mxu0 %v1622
  %2337 = vmatpush.msra.mxu0 %v1621
  %2338 = vmatpush.msra.mxu0 %v1620
  %2339 = vmatpush.msra.mxu0 %v1619
  %2340 = vmatpush.msra.mxu0 %v1618
  %2341 = vmatpush.msra.mxu0 %v1617
  %2342 = vmatpush.msra.mxu0 %v1616
  %2343 = vmatpush.msra.mxu0 %v1615
  %2344 = vmatpush.msra.mxu0 %v1614
  %2345 = vmatpush.msra.mxu0 %v1613
  %2346 = vmatpush.msra.mxu0 %v1612
  %2347 = vmatpush.msra.mxu0 %v1611
  %2348 = vmatmul.f32.gmra.mxu0 %v2231
  %v2349 = vpop.f32.mrf.mxu0
  %v2350 = vadd.f32 %v2327, %v2349
  %2351 = vmatmul.f32.gmra.mxu0 %v2247
  %v2352 = vpop.f32.mrf.mxu0
  %v2353 = vadd.f32 %v2330, %v2352
  %2354 = vdwg.mxu0
  %2355 = vmatpush.msra.mxu0 %v1642
  %2356 = vmatpush.msra.mxu0 %v1641
  %2357 = vmatpush.msra.mxu0 %v1640
  %2358 = vmatpush.msra.mxu0 %v1639
  %2359 = vmatpush.msra.mxu0 %v1638
  %2360 = vmatpush.msra.mxu0 %v1637
  %2361 = vmatpush.msra.mxu0 %v1636
  %2362 = vmatpush.msra.mxu0 %v1635
  %2363 = vmatpush.msra.mxu0 %v1634
  %2364 = vmatpush.msra.mxu0 %v1633
  %2365 = vmatpush.msra.mxu0 %v1632
  %2366 = vmatpush.msra.mxu0 %v1631
  %2367 = vmatpush.msra.mxu0 %v1630
  %2368 = vmatpush.msra.mxu0 %v1629
  %2369 = vmatpush.msra.mxu0 %v1628
  %2370 = vmatpush.msra.mxu0 %v1627
  %2371 = vmatmul.f32.gmra.mxu0 %v2232
  %v2372 = vpop.f32.mrf.mxu0
  %v2373 = vadd.f32 %v2350, %v2372
  %2374 = vmatmul.f32.gmra.mxu0 %v2248
  %v2375 = vpop.f32.mrf.mxu0
  %v2376 = vadd.f32 %v2353, %v2375
  %2377 = vdwg.mxu0
  %2378 = vmatpush.msra.mxu0 %v1658
  %2379 = vmatpush.msra.mxu0 %v1657
  %2380 = vmatpush.msra.mxu0 %v1656
  %2381 = vmatpush.msra.mxu0 %v1655
  %2382 = vmatpush.msra.mxu0 %v1654
  %2383 = vmatpush.msra.mxu0 %v1653
  %2384 = vmatpush.msra.mxu0 %v1652
  %2385 = vmatpush.msra.mxu0 %v1651
  %2386 = vmatpush.msra.mxu0 %v1650
  %2387 = vmatpush.msra.mxu0 %v1649
  %2388 = vmatpush.msra.mxu0 %v1648
  %2389 = vmatpush.msra.mxu0 %v1647
  %2390 = vmatpush.msra.mxu0 %v1646
  %2391 = vmatpush.msra.mxu0 %v1645
  %2392 = vmatpush.msra.mxu0 %v1644
  %2393 = vmatpush.msra.mxu0 %v1643
  %2394 = vmatmul.f32.gmra.mxu0 %v2233
  %v2395 = vpop.f32.mrf.mxu0
  %v2396 = vadd.f32 %v2373, %v2395
  %2397 = vmatmul.f32.gmra.mxu0 %v2249
  %v2398 = vpop.f32.mrf.mxu0
  %v2399 = vadd.f32 %v2376, %v2398
  %2400 = vdwg.mxu0
  %2401 = vmatpush.msra.mxu0 %v1674
  %2402 = vmatpush.msra.mxu0 %v1673
  %2403 = vmatpush.msra.mxu0 %v1672
  %2404 = vmatpush.msra.mxu0 %v1671
  %2405 = vmatpush.msra.mxu0 %v1670
  %2406 = vmatpush.msra.mxu0 %v1669
  %2407 = vmatpush.msra.mxu0 %v1668
  %2408 = vmatpush.msra.mxu0 %v1667
  %2409 = vmatpush.msra.mxu0 %v1666
  %2410 = vmatpush.msra.mxu0 %v1665
  %2411 = vmatpush.msra.mxu0 %v1664
  %2412 = vmatpush.msra.mxu0 %v1663
  %2413 = vmatpush.msra.mxu0 %v1662
  %2414 = vmatpush.msra.mxu0 %v1661
  %2415 = vmatpush.msra.mxu0 %v1660
  %2416 = vmatpush.msra.mxu0 %v1659
  %2417 = vmatmul.f32.gmra.mxu0 %v2234
  %v2418 = vpop.f32.mrf.mxu0
  %v2419 = vadd.f32 %v2396, %v2418
  %2420 = vmatmul.f32.gmra.mxu0 %v2250
  %v2421 = vpop.f32.mrf.mxu0
  %v2422 = vadd.f32 %v2399, %v2421
  %2423 = vdwg.mxu0
  %2424 = vmatpush.msra.mxu0 %v1690
  %2425 = vmatpush.msra.mxu0 %v1689
  %2426 = vmatpush.msra.mxu0 %v1688
  %2427 = vmatpush.msra.mxu0 %v1687
  %2428 = vmatpush.msra.mxu0 %v1686
  %2429 = vmatpush.msra.mxu0 %v1685
  %2430 = vmatpush.msra.mxu0 %v1684
  %2431 = vmatpush.msra.mxu0 %v1683
  %2432 = vmatpush.msra.mxu0 %v1682
  %2433 = vmatpush.msra.mxu0 %v1681
  %2434 = vmatpush.msra.mxu0 %v1680
  %2435 = vmatpush.msra.mxu0 %v1679
  %2436 = vmatpush.msra.mxu0 %v1678
  %2437 = vmatpush.msra.mxu0 %v1677
  %2438 = vmatpush.msra.mxu0 %v1676
  %2439 = vmatpush.msra.mxu0 %v1675
  %2440 = vmatmul.f32.gmra.mxu0 %v2235
  %v2441 = vpop.f32.mrf.mxu0
  %v2442 = vadd.f32 %v2419, %v2441
  %2443 = vmatmul.f32.gmra.mxu0 %v2251
  %v2444 = vpop.f32.mrf.mxu0
  %v2445 = vadd.f32 %v2422, %v2444
  %2446 = vdwg.mxu0
  %2447 = vmatpush.msra.mxu0 %v1706
  %2448 = vmatpush.msra.mxu0 %v1705
  %2449 = vmatpush.msra.mxu0 %v1704
  %2450 = vmatpush.msra.mxu0 %v1703
  %2451 = vmatpush.msra.mxu0 %v1702
  %2452 = vmatpush.msra.mxu0 %v1701
  %2453 = vmatpush.msra.mxu0 %v1700
  %2454 = vmatpush.msra.mxu0 %v1699
  %2455 = vmatpush.msra.mxu0 %v1698
  %2456 = vmatpush.msra.mxu0 %v1697
  %2457 = vmatpush.msra.mxu0 %v1696
  %2458 = vmatpush.msra.mxu0 %v1695
  %2459 = vmatpush.msra.mxu0 %v1694
  %2460 = vmatpush.msra.mxu0 %v1693
  %2461 = vmatpush.msra.mxu0 %v1692
  %2462 = vmatpush.msra.mxu0 %v1691
  %2463 = vmatmul.f32.gmra.mxu0 %v2236
  %v2464 = vpop.f32.mrf.mxu0
  %v2465 = vadd.f32 %v2442, %v2464
  %2466 = vmatmul.f32.gmra.mxu0 %v2252
  %v2467 = vpop.f32.mrf.mxu0
  %v2468 = vadd.f32 %v2445, %v2467
  %2469 = vdwg.mxu0
  %2470 = vmatpush.msra.mxu0 %v1722
  %2471 = vmatpush.msra.mxu0 %v1721
  %2472 = vmatpush.msra.mxu0 %v1720
  %2473 = vmatpush.msra.mxu0 %v1719
  %2474 = vmatpush.msra.mxu0 %v1718
  %2475 = vmatpush.msra.mxu0 %v1717
  %2476 = vmatpush.msra.mxu0 %v1716
  %2477 = vmatpush.msra.mxu0 %v1715
  %2478 = vmatpush.msra.mxu0 %v1714
  %2479 = vmatpush.msra.mxu0 %v1713
  %2480 = vmatpush.msra.mxu0 %v1712
  %2481 = vmatpush.msra.mxu0 %v1711
  %2482 = vmatpush.msra.mxu0 %v1710
  %2483 = vmatpush.msra.mxu0 %v1709
  %2484 = vmatpush.msra.mxu0 %v1708
  %2485 = vmatpush.msra.mxu0 %v1707
  %2486 = vmatmul.f32.gmra.mxu0 %v2237
  %v2487 = vpop.f32.mrf.mxu0
  %v2488 = vadd.f32 %v2465, %v2487
  %2489 = vmatmul.f32.gmra.mxu0 %v2253
  %v2490 = vpop.f32.mrf.mxu0
  %v2491 = vadd.f32 %v2468, %v2490
  %2492 = vdwg.mxu0
  %2493 = vmatpush.msra.mxu0 %v1738
  %2494 = vmatpush.msra.mxu0 %v1737
  %2495 = vmatpush.msra.mxu0 %v1736
  %2496 = vmatpush.msra.mxu0 %v1735
  %2497 = vmatpush.msra.mxu0 %v1734
  %2498 = vmatpush.msra.mxu0 %v1733
  %2499 = vmatpush.msra.mxu0 %v1732
  %2500 = vmatpush.msra.mxu0 %v1731
  %2501 = vmatpush.msra.mxu0 %v1730
  %2502 = vmatpush.msra.mxu0 %v1729
  %2503 = vmatpush.msra.mxu0 %v1728
  %2504 = vmatpush.msra.mxu0 %v1727
  %2505 = vmatpush.msra.mxu0 %v1726
  %2506 = vmatpush.msra.mxu0 %v1725
  %2507 = vmatpush.msra.mxu0 %v1724
  %2508 = vmatpush.msra.mxu0 %v1723
  %2509 = vmatmul.f32.gmra.mxu0 %v2238
  %v2510 = vpop.f32.mrf.mxu0
  %v2511 = vadd.f32 %v2488, %v2510
  %2512 = vmatmul.f32.gmra.mxu0 %v2254
  %v2513 = vpop.f32.mrf.mxu0
  %v2514 = vadd.f32 %v2491, %v2513
  %2515 = vdwg.mxu0
  %2516 = vmatpush.msra.mxu0 %v1754
  %2517 = vmatpush.msra.mxu0 %v1753
  %2518 = vmatpush.msra.mxu0 %v1752
  %2519 = vmatpush.msra.mxu0 %v1751
  %2520 = vmatpush.msra.mxu0 %v1750
  %2521 = vmatpush.msra.mxu0 %v1749
  %2522 = vmatpush.msra.mxu0 %v1748
  %2523 = vmatpush.msra.mxu0 %v1747
  %2524 = vmatpush.msra.mxu0 %v1746
  %2525 = vmatpush.msra.mxu0 %v1745
  %2526 = vmatpush.msra.mxu0 %v1744
  %2527 = vmatpush.msra.mxu0 %v1743
  %2528 = vmatpush.msra.mxu0 %v1742
  %2529 = vmatpush.msra.mxu0 %v1741
  %2530 = vmatpush.msra.mxu0 %v1740
  %2531 = vmatpush.msra.mxu0 %v1739
  %2532 = vmatmul.f32.gmra.mxu0 %v2239
  %v2533 = vpop.f32.mrf.mxu0
  %v2534 = vadd.f32 %v2511, %v2533
  %2535 = vmatmul.f32.gmra.mxu0 %v2255
  %v2536 = vpop.f32.mrf.mxu0
  %v2537 = vadd.f32 %v2514, %v2536
  %2538 = vdwg.mxu0
  %2539 = vmatpush.msra.mxu0 %v1770
  %2540 = vmatpush.msra.mxu0 %v1769
  %2541 = vmatpush.msra.mxu0 %v1768
  %2542 = vmatpush.msra.mxu0 %v1767
  %2543 = vmatpush.msra.mxu0 %v1766
  %2544 = vmatpush.msra.mxu0 %v1765
  %2545 = vmatpush.msra.mxu0 %v1764
  %2546 = vmatpush.msra.mxu0 %v1763
  %2547 = vmatpush.msra.mxu0 %v1762
  %2548 = vmatpush.msra.mxu0 %v1761
  %2549 = vmatpush.msra.mxu0 %v1760
  %2550 = vmatpush.msra.mxu0 %v1759
  %2551 = vmatpush.msra.mxu0 %v1758
  %2552 = vmatpush.msra.mxu0 %v1757
  %2553 = vmatpush.msra.mxu0 %v1756
  %2554 = vmatpush.msra.mxu0 %v1755
  %2555 = vmatmul.f32.gmra.mxu0 %v2240
  %v2556 = vpop.f32.mrf.mxu0
  %v2557 = vadd.f32 %v2534, %v2556
  %2558 = vmatmul.f32.gmra.mxu0 %v2256
  %v2559 = vpop.f32.mrf.mxu0
  %v2560 = vadd.f32 %v2537, %v2559
  %2561 = vdwg.mxu0
  %2562 = vmatpush.msra.mxu0 %v1786
  %2563 = vmatpush.msra.mxu0 %v1785
  %2564 = vmatpush.msra.mxu0 %v1784
  %2565 = vmatpush.msra.mxu0 %v1783
  %2566 = vmatpush.msra.mxu0 %v1782
  %2567 = vmatpush.msra.mxu0 %v1781
  %2568 = vmatpush.msra.mxu0 %v1780
  %2569 = vmatpush.msra.mxu0 %v1779
  %2570 = vmatpush.msra.mxu0 %v1778
  %2571 = vmatpush.msra.mxu0 %v1777
  %2572 = vmatpush.msra.mxu0 %v1776
  %2573 = vmatpush.msra.mxu0 %v1775
  %2574 = vmatpush.msra.mxu0 %v1774
  %2575 = vmatpush.msra.mxu0 %v1773
  %2576 = vmatpush.msra.mxu0 %v1772
  %2577 = vmatpush.msra.mxu0 %v1771
  %2578 = vmatmul.f32.gmra.mxu0 %v2241
  %v2579 = vpop.f32.mrf.mxu0
  %v2580 = vadd.f32 %v2557, %v2579
  %2581 = vmatmul.f32.gmra.mxu0 %v2257
  %v2582 = vpop.f32.mrf.mxu0
  %v2583 = vadd.f32 %v2560, %v2582
  %2584 = vdwg.mxu0
  %2585 = vmatpush.msra.mxu0 %v1802
  %2586 = vmatpush.msra.mxu0 %v1801
  %2587 = vmatpush.msra.mxu0 %v1800
  %2588 = vmatpush.msra.mxu0 %v1799
  %2589 = vmatpush.msra.mxu0 %v1798
  %2590 = vmatpush.msra.mxu0 %v1797
  %2591 = vmatpush.msra.mxu0 %v1796
  %2592 = vmatpush.msra.mxu0 %v1795
  %2593 = vmatpush.msra.mxu0 %v1794
  %2594 = vmatpush.msra.mxu0 %v1793
  %2595 = vmatpush.msra.mxu0 %v1792
  %2596 = vmatpush.msra.mxu0 %v1791
  %2597 = vmatpush.msra.mxu0 %v1790
  %2598 = vmatpush.msra.mxu0 %v1789
  %2599 = vmatpush.msra.mxu0 %v1788
  %2600 = vmatpush.msra.mxu0 %v1787
  %2601 = vmatmul.f32.gmra.mxu0 %v2242
  %v2602 = vpop.f32.mrf.mxu0
  %v2603 = vadd.f32 %v2580, %v2602
  %2604 = vmatmul.f32.gmra.mxu0 %v2258
  %v2605 = vpop.f32.mrf.mxu0
  %v2606 = vadd.f32 %v2583, %v2605
  %2607 = vdwg.mxu0
  %2608 = vmatpush.msra.mxu0 %v1818
  %2609 = vmatpush.msra.mxu0 %v1817
  %2610 = vmatpush.msra.mxu0 %v1816
  %2611 = vmatpush.msra.mxu0 %v1815
  %2612 = vmatpush.msra.mxu0 %v1814
  %2613 = vmatpush.msra.mxu0 %v1813
  %2614 = vmatpush.msra.mxu0 %v1812
  %2615 = vmatpush.msra.mxu0 %v1811
  %2616 = vmatpush.msra.mxu0 %v1810
  %2617 = vmatpush.msra.mxu0 %v1809
  %2618 = vmatpush.msra.mxu0 %v1808
  %2619 = vmatpush.msra.mxu0 %v1807
  %2620 = vmatpush.msra.mxu0 %v1806
  %2621 = vmatpush.msra.mxu0 %v1805
  %2622 = vmatpush.msra.mxu0 %v1804
  %2623 = vmatpush.msra.mxu0 %v1803
  %2624 = vmatmul.f32.gmra.mxu0 %v2243
  %v2625 = vpop.f32.mrf.mxu0
  %v2626 = vadd.f32 %v2603, %v2625
  %2627 = vmatmul.f32.gmra.mxu0 %v2259
  %v2628 = vpop.f32.mrf.mxu0
  %v2629 = vadd.f32 %v2606, %v2628
  %2630 = vdwg.mxu0
  %v2631 = vadd.f32 %v1495, %v2626
  %v2632 = vadd.f32 %v1496, %v2629
  %v2633 = vld [vmem:[%s20] sm:$0x1]
  %v2634 = vld [vmem:[%s21] sm:$0x1]
  %v2635 = vsel %vm88, %v2631, 0.0
  %2636 = vadd.xlane.f32.xlu0 %v2635
  %v2637 = vpop.xlane.xlu0 %2636
  %v2638 = vsel %vm88, %v2632, 0.0
  %2639 = vadd.xlane.f32.xlu0 %v2638
  %v2640 = vpop.xlane.xlu0 %2639
  %v2641 = vmul.f32 %v2637, %v725
  %v2642 = vmul.f32 %v2640, %v725
  %v2643 = vsub.f32 %v2631, %v2641
  %v2644 = vsub.f32 %v2632, %v2642
  %v2645 = vmul.f32 %v2643, %v2643
  %v2646 = vmul.f32 %v2644, %v2644
  %v2647 = vsel %vm88, %v2645, 0.0
  %2648 = vadd.xlane.f32.xlu0 %v2647
  %v2649 = vpop.xlane.xlu0 %2648
  %v2650 = vsel %vm88, %v2646, 0.0
  %2651 = vadd.xlane.f32.xlu0 %v2650
  %v2652 = vpop.xlane.xlu0 %2651
  %v2653 = vmul.f32 %v2649, %v725
  %v2654 = vmul.f32 %v2652, %v725
  %v2655 = vadd.f32 %v2653, 1e-05
  %v2656 = vadd.f32 %v2654, 1e-05
  %v2657 = vrsqrt.pop %v2655
  %v2658 = vmul.f32 %v2657, %v2655
  %v2659 = vmul.f32 %v2658, %v2657
  %v2660 = vmul.f32 0.5, %v2659
  %v2661 = vsub.f32 1.5, %v2660
  %v2662 = vmul.f32 %v2657, %v2661
  %vm2663 = vweird.f32 %v2655
  %vm2664 = vweird.f32 %v2657
  %vm2665 = vmor %vm2663, %vm2664
  %v2666 = vsel %vm2665, %v2657, %v2662
  %v2667 = vrsqrt.pop %v2656
  %v2668 = vmul.f32 %v2667, %v2656
  %v2669 = vmul.f32 %v2668, %v2667
  %v2670 = vmul.f32 0.5, %v2669
  %v2671 = vsub.f32 1.5, %v2670
  %v2672 = vmul.f32 %v2667, %v2671
  %vm2673 = vweird.f32 %v2656
  %vm2674 = vweird.f32 %v2667
  %vm2675 = vmor %vm2673, %vm2674
  %v2676 = vsel %vm2675, %v2667, %v2672
  %v2677 = vmul.f32 %v2643, %v2666
  %v2678 = vmul.f32 %v2644, %v2676
  %v2680 = vperm.slane %v2633, 0
  %v2682 = vmul.f32 %v2677, %v2680
  %v2683 = vmul.f32 %v2678, %v2680
  %v2685 = vperm.slane %v2634, 0
  %v2687 = vadd.f32 %v2682, %v2685
  %v2688 = vadd.f32 %v2683, %v2685
  %2689 = vst.msk [vmem:[%s22] sm:$0xff] %vm88, %v2687
  %2690 = vst.msk [vmem:[%s22 + $0x8] sm:$0xff] %vm88, %v2688
  // Predicated region
  $region90: #{transformer_predictor_forward.15} parent=0 // pred_check
    _
  $region91: #{transformer_predictor_forward.15} parent=0 // pred_check_branch
    %2692 = sbr.rel (0) target = $region93
  $region92: #{transformer_predictor_forward.15} parent=0 // pred_region
    _
  $region93: #{transformer_predictor_forward.15} parent=0 // pred_fallthru
    _
  // Predicated region
  $region94: #{transformer_predictor_forward.15} parent=0 // pred_check
    _
  $region95: #{transformer_predictor_forward.15} parent=0 // pred_check_branch
    %2694 = sbr.rel (0) target = $region97
  $region96: #{transformer_predictor_forward.15} parent=0 // pred_region
    _
  $region97: #{transformer_predictor_forward.15} parent=0 // pred_fallthru
    _

</llo_original>
